<compile_context>
chip_gen: v7x
topology: tpu7x:2x2x1
jax: 0.10.0
libtpu: 0.0.40
codegen_flags: <defaults>
</compile_context>

<pallas_src>
import functools

import jax
import jax.numpy as jnp
from jax.experimental import pallas as pl
from jax.experimental.pallas import tpu as pltpu

MXU_DTYPE = jnp.bfloat16
LANE = 128

_CONV_LAYERS = (("conv1", 3, 16), ("conv2", 16, 64), ("conv3", 64, 128), ("conv4", 128, 128))
_FC = (128, 8)


def _round_up(n, m):
    return (n + m - 1) // m * m


# --------------------------- Pallas kernels ---------------------------------

def _conv_relu_pool_kernel(a00_ref, a01_ref, a10_ref, a11_ref, w_ref, b_ref, o_ref):
    """maxpool2x2(relu(conv+b)) == relu(max_corners(conv) + b); all fused, f32 accumulate."""
    w = w_ref[...]

    def mm(a_ref):
        return jnp.dot(a_ref[...], w, preferred_element_type=jnp.float32)

    y = jnp.maximum(jnp.maximum(mm(a00_ref), mm(a01_ref)),
                    jnp.maximum(mm(a10_ref), mm(a11_ref)))
    o_ref[...] = jnp.maximum(y + b_ref[...], 0.0).astype(o_ref.dtype)


def _matmul_bias_kernel(a_ref, w_ref, b_ref, o_ref, *, relu):
    y = jnp.dot(a_ref[...], w_ref[...], preferred_element_type=jnp.float32) + b_ref[...]
    if relu:
        y = jnp.maximum(y, 0.0)
    o_ref[...] = y.astype(o_ref.dtype)


# --------------------------- Pallas wrappers ---------------------------------

def _pick_tm(M, K):
    """Bound per-step VMEM (A tiles are double-buffered) while keeping M-tiles MXU-friendly."""
    if M <= 256:
        return M            # single full block (exempt from (8,128) divisibility)
    return 128 if K > 2048 else 256


def conv_relu_pool(corners, w, b):
    """corners: 4 x (M, K) bf16 im2col matrices (one per 2x2 pool corner);
    w: (K, Np) bf16; b: (1, Np) f32  ->  (M, Np) f32 pooled activations."""
    M, K = corners[0].shape
    Np = w.shape[1]
    tm = _pick_tm(M, K)
    a_spec = pl.BlockSpec((tm, K), lambda i: (i, 0))
    return pl.pallas_call(
        _conv_relu_pool_kernel,
        out_shape=jax.ShapeDtypeStruct((M, Np), jnp.float32),
        grid=(pl.cdiv(M, tm),),
        in_specs=[a_spec, a_spec, a_spec, a_spec,
                  pl.BlockSpec((K, Np), lambda i: (0, 0)),   # weight resident across M tiles
                  pl.BlockSpec((1, Np), lambda i: (0, 0))],  # bias resident
        out_specs=pl.BlockSpec((tm, Np), lambda i: (i, 0)),
        compiler_params=pltpu.CompilerParams(dimension_semantics=("parallel",)),
    )(*corners, w, b)


def matmul_bias(a, w, b, *, relu):
    """a: (M, K) bf16, w: (K, Np) bf16, b: (1, Np) f32 -> (M, Np) f32."""
    M, K = a.shape
    Np = w.shape[1]
    tm = _pick_tm(M, K)
    return pl.pallas_call(
        functools.partial(_matmul_bias_kernel, relu=relu),
        out_shape=jax.ShapeDtypeStruct((M, Np), jnp.float32),
        grid=(pl.cdiv(M, tm),),
        in_specs=[pl.BlockSpec((tm, K), lambda i: (i, 0)),
                  pl.BlockSpec((K, Np), lambda i: (0, 0)),
                  pl.BlockSpec((1, Np), lambda i: (0, 0))],
        out_specs=pl.BlockSpec((tm, Np), lambda i: (i, 0)),
        compiler_params=pltpu.CompilerParams(dimension_semantics=("parallel",)),
    )(a, w, b)


# --------------------------- Glue (plain JAX, fused under one jit) -----------

def _extract_patches_k5_s2_p2(x):
    """NHWC x -> (N, Ho, Wo, 25*C) bf16 patch tensor, feature order (ky, kx, c)."""
    # TODO(synk): im2col is still materialized by XLA (fused in one jit, carried as bf16);
    # a fully in-kernel patch loop (25 shifted dots over a K grid axis) is a further step.
    x = x.astype(MXU_DTYPE)  # pure data movement: identical bits to casting after extraction
    N, H, W, C = x.shape
    Ho = (H - 1) // 2 + 1
    Wo = (W - 1) // 2 + 1
    xp = jnp.pad(x, ((0, 0), (2, 2), (2, 2), (0, 0)))
    taps = []
    for dy in range(5):
        for dx in range(5):
            taps.append(xp[:, dy:dy + 2 * Ho - 1:2, dx:dx + 2 * Wo - 1:2, :])
    p = jnp.stack(taps, axis=3)                      # (N, Ho, Wo, 25, C)
    return p.reshape(N, Ho, Wo, 25 * C), Ho, Wo


def _im2col_pool_corners(x):
    """Return 4 im2col matrices (N*H2*W2, 25*C), one per corner of each 2x2 pool window."""
    p, Ho, Wo = _extract_patches_k5_s2_p2(x)
    N = p.shape[0]
    H2, W2 = Ho // 2, Wo // 2
    p = p[:, :2 * H2, :2 * W2]                       # MaxPool2d(2,2) floors odd spatial dims
    K = p.shape[-1]
    corners = [p[:, dy::2, dx::2].reshape(N * H2 * W2, K)
               for dy in (0, 1) for dx in (0, 1)]
    return corners, (N, H2, W2)


def _im2col(x):
    p, Ho, Wo = _extract_patches_k5_s2_p2(x)
    N = p.shape[0]
    return p.reshape(N * Ho * Wo, p.shape[-1]), (N, Ho, Wo)


# --------------------------- Model -------------------------------------------

def init_params(key):
    """Weights pre-reshaped to im2col layout, Cout zero-padded to 128 lanes, pre-cast to bf16."""
    ks = jax.random.split(key, 5)
    params = {}
    for k, (name, cin, cout) in zip(ks[:4], _CONV_LAYERS):
        std = (1.0 / (5 * 5 * cin)) ** 0.5
        w = std * jax.random.normal(k, (cout, cin, 5, 5), jnp.float32)   # PyTorch OIHW layout
        cpad = _round_up(cout, LANE)
        wm = jnp.transpose(w, (2, 3, 1, 0)).reshape(25 * cin, cout)      # (ky,kx,cin) x cout
        params[name] = {
            "w": jnp.pad(wm, ((0, 0), (0, cpad - cout))).astype(MXU_DTYPE),
            "b": jnp.zeros((1, cpad), jnp.float32),
        }
    cin, cout = _FC
    std = (1.0 / cin) ** 0.5
    wf = std * jax.random.normal(ks[4], (cout, cin), jnp.float32)        # PyTorch (out, in)
    cpad = _round_up(cout, LANE)
    params["fc1"] = {
        "w": jnp.pad(wf.T, ((0, 0), (0, cpad - cout))).astype(MXU_DTYPE),
        "b": jnp.zeros((1, cpad), jnp.float32),
    }
    return params


@jax.jit
def source_forward(params, x):
    """x: (N, 3, H, W) NCHW float32; H = W = 64 so the final feature map is 128 x 1 x 1."""
    x = jnp.transpose(x, (0, 2, 3, 1))                         # single NCHW -> NHWC transpose
    # conv1..conv3: conv(k5,s2,p2) + ReLU + maxpool(2,2), fused in one Pallas call each.
    for name, _, cout in _CONV_LAYERS[:3]:
        p = params[name]
        corners, (N, H2, W2) = _im2col_pool_corners(x)
        y = conv_relu_pool(corners, p["w"], p["b"])            # (N*H2*W2, 128) f32
        x = y[:, :cout].reshape(N, H2, W2, cout)               # drop lane padding
    # conv4: conv + ReLU, no pool.
    name, _, cout = _CONV_LAYERS[3]
    p = params[name]
    a, (N, Ho, Wo) = _im2col(x)
    y = matmul_bias(a, p["w"], p["b"], relu=True)              # (N*Ho*Wo, 128) f32
    x = y[:, :cout].reshape(N, Ho * Wo * cout)                 # flatten (Ho = Wo = 1 here)
    # TODO(synk): nn.Dropout(p=0.3) is identity at inference; training-mode RNG mask not reproduced.
    p = params["fc1"]
    z = matmul_bias(x.astype(MXU_DTYPE), p["w"], p["b"], relu=False)
    return z[:, :_FC[1]]                                       # (N, 8) logits


if __name__ == "__main__":
    key = jax.random.PRNGKey(0)
    k_param, k_x = jax.random.split(key)
    params = init_params(k_param)
    x = jax.random.normal(k_x, (2, 3, 64, 64), jnp.float32)
    out = source_forward(params, x)
    out = jax.block_until_ready(out)
    assert out.shape == (2, 8), out.shape
    print("KERNEL_OK")
</pallas_src>

<mosaic_0001>
module attributes {stable_mosaic.version = 11 : i64} {
  func.func @_conv_relu_pool_kernel(%arg0: i32, %arg1: memref<256x75xbf16, #tpu.memory_space<vmem>>, %arg2: memref<256x75xbf16, #tpu.memory_space<vmem>>, %arg3: memref<256x75xbf16, #tpu.memory_space<vmem>>, %arg4: memref<256x75xbf16, #tpu.memory_space<vmem>>, %arg5: memref<75x128xbf16, #tpu.memory_space<vmem>>, %arg6: memref<1x128xf32, #tpu.memory_space<vmem>>, %arg7: memref<256x128xf32, #tpu.memory_space<vmem>>) attributes {dimension_semantics = [#tpu.dimension_semantics<parallel>], iteration_bounds = array<i64: 2>, scalar_prefetch = 0 : i64, scratch_operands = 0 : i64, tpu.core_type = #tpu.core_type<tc>, window_params = [{transform_indices = @transform_0, window_bounds = array<i64: 256, 75>}, {transform_indices = @transform_1, window_bounds = array<i64: 256, 75>}, {transform_indices = @transform_2, window_bounds = array<i64: 256, 75>}, {transform_indices = @transform_3, window_bounds = array<i64: 256, 75>}, {pipeline_mode = #tpu.pipeline_mode<synchronous>, transform_indices = @transform_4, window_bounds = array<i64: 75, 128>}, {pipeline_mode = #tpu.pipeline_mode<synchronous>, transform_indices = @transform_5, window_bounds = array<i64: 1, 128>}, {transform_indices = @transform_6, window_bounds = array<i64: 256, 128>}]} {
    %c0 = arith.constant 0 : index
    %c0_0 = arith.constant 0 : index
    %0 = vector.load %arg5[%c0, %c0_0] : memref<75x128xbf16, #tpu.memory_space<vmem>>, vector<75x128xbf16>
    %c0_1 = arith.constant 0 : index
    %c0_2 = arith.constant 0 : index
    %1 = vector.load %arg1[%c0_1, %c0_2] : memref<256x75xbf16, #tpu.memory_space<vmem>>, vector<256x75xbf16>
    %cst = arith.constant dense<0.000000e+00> : vector<256x128xf32>
    %2 = tpu.matmul %1, %0, %cst {dimension_numbers = #tpu.dot_dimension_numbers<[1], [0], [0], [1], [0, 0, 1, 1], [], []>} : vector<256x75xbf16>, vector<75x128xbf16>, vector<256x128xf32> -> vector<256x128xf32>
    %c0_3 = arith.constant 0 : index
    %c0_4 = arith.constant 0 : index
    %3 = vector.load %arg2[%c0_3, %c0_4] : memref<256x75xbf16, #tpu.memory_space<vmem>>, vector<256x75xbf16>
    %cst_5 = arith.constant dense<0.000000e+00> : vector<256x128xf32>
    %4 = tpu.matmul %3, %0, %cst_5 {dimension_numbers = #tpu.dot_dimension_numbers<[1], [0], [0], [1], [0, 0, 1, 1], [], []>} : vector<256x75xbf16>, vector<75x128xbf16>, vector<256x128xf32> -> vector<256x128xf32>
    %5 = arith.maximumf %2, %4 : vector<256x128xf32>
    %c0_6 = arith.constant 0 : index
    %c0_7 = arith.constant 0 : index
    %6 = vector.load %arg3[%c0_6, %c0_7] : memref<256x75xbf16, #tpu.memory_space<vmem>>, vector<256x75xbf16>
    %cst_8 = arith.constant dense<0.000000e+00> : vector<256x128xf32>
    %7 = tpu.matmul %6, %0, %cst_8 {dimension_numbers = #tpu.dot_dimension_numbers<[1], [0], [0], [1], [0, 0, 1, 1], [], []>} : vector<256x75xbf16>, vector<75x128xbf16>, vector<256x128xf32> -> vector<256x128xf32>
    %c0_9 = arith.constant 0 : index
    %c0_10 = arith.constant 0 : index
    %8 = vector.load %arg4[%c0_9, %c0_10] : memref<256x75xbf16, #tpu.memory_space<vmem>>, vector<256x75xbf16>
    %cst_11 = arith.constant dense<0.000000e+00> : vector<256x128xf32>
    %9 = tpu.matmul %8, %0, %cst_11 {dimension_numbers = #tpu.dot_dimension_numbers<[1], [0], [0], [1], [0, 0, 1, 1], [], []>} : vector<256x75xbf16>, vector<75x128xbf16>, vector<256x128xf32> -> vector<256x128xf32>
    %10 = arith.maximumf %7, %9 : vector<256x128xf32>
    %11 = arith.maximumf %5, %10 : vector<256x128xf32>
    %c0_12 = arith.constant 0 : index
    %c0_13 = arith.constant 0 : index
    %12 = vector.load %arg6[%c0_12, %c0_13] : memref<1x128xf32, #tpu.memory_space<vmem>>, vector<1x128xf32>
    %13 = vector.broadcast %12 : vector<1x128xf32> to vector<256x128xf32>
    %14 = arith.addf %11, %13 : vector<256x128xf32>
    %cst_14 = arith.constant 0.000000e+00 : f32
    %15 = vector.broadcast %cst_14 : f32 to vector<256x128xf32>
    %16 = arith.maximumf %14, %15 : vector<256x128xf32>
    %c0_15 = arith.constant 0 : index
    %c0_16 = arith.constant 0 : index
    %17 = vector.load %arg7[%c0_15, %c0_16] : memref<256x128xf32, #tpu.memory_space<vmem>>, vector<256x128xf32>
    tpu.vector_store %arg7[%c0_15, %c0_16], %16 {strides = array<i32>} : memref<256x128xf32, #tpu.memory_space<vmem>>, vector<256x128xf32>,
    return
  }
  func.func @transform_0(%arg0: i32) -> (i32, i32) {
    %c0_i32 = arith.constant 0 : i32
    %c0_i32_0 = arith.constant 0 : i32
    return %arg0, %c0_i32 : i32, i32
  }
  func.func @transform_1(%arg0: i32) -> (i32, i32) {
    %c0_i32 = arith.constant 0 : i32
    %c0_i32_0 = arith.constant 0 : i32
    return %arg0, %c0_i32 : i32, i32
  }
  func.func @transform_2(%arg0: i32) -> (i32, i32) {
    %c0_i32 = arith.constant 0 : i32
    %c0_i32_0 = arith.constant 0 : i32
    return %arg0, %c0_i32 : i32, i32
  }
  func.func @transform_3(%arg0: i32) -> (i32, i32) {
    %c0_i32 = arith.constant 0 : i32
    %c0_i32_0 = arith.constant 0 : i32
    return %arg0, %c0_i32 : i32, i32
  }
  func.func @transform_4(%arg0: i32) -> (i32, i32) {
    %c0_i32 = arith.constant 0 : i32
    %c0_i32_0 = arith.constant 0 : i32
    %c0_i32_1 = arith.constant 0 : i32
    return %c0_i32, %c0_i32_0 : i32, i32
  }
  func.func @transform_5(%arg0: i32) -> (i32, i32) {
    %c0_i32 = arith.constant 0 : i32
    %c0_i32_0 = arith.constant 0 : i32
    %c0_i32_1 = arith.constant 0 : i32
    return %c0_i32, %c0_i32_0 : i32, i32
  }
  func.func @transform_6(%arg0: i32) -> (i32, i32) {
    %c0_i32 = arith.constant 0 : i32
    %c0_i32_0 = arith.constant 0 : i32
    return %arg0, %c0_i32 : i32, i32
  }
}

module attributes {stable_mosaic.version = 11 : i64} {
  func.func @_conv_relu_pool_kernel(%arg0: i32, %arg1: memref<32x400xbf16, #tpu.memory_space<vmem>>, %arg2: memref<32x400xbf16, #tpu.memory_space<vmem>>, %arg3: memref<32x400xbf16, #tpu.memory_space<vmem>>, %arg4: memref<32x400xbf16, #tpu.memory_space<vmem>>, %arg5: memref<400x128xbf16, #tpu.memory_space<vmem>>, %arg6: memref<1x128xf32, #tpu.memory_space<vmem>>, %arg7: memref<32x128xf32, #tpu.memory_space<vmem>>) attributes {dimension_semantics = [#tpu.dimension_semantics<parallel>], iteration_bounds = array<i64: 1>, scalar_prefetch = 0 : i64, scratch_operands = 0 : i64, tpu.core_type = #tpu.core_type<tc>, window_params = [{transform_indices = @transform_0, window_bounds = array<i64: 32, 400>}, {transform_indices = @transform_1, window_bounds = array<i64: 32, 400>}, {transform_indices = @transform_2, window_bounds = array<i64: 32, 400>}, {transform_indices = @transform_3, window_bounds = array<i64: 32, 400>}, {pipeline_mode = #tpu.pipeline_mode<synchronous>, transform_indices = @transform_4, window_bounds = array<i64: 400, 128>}, {pipeline_mode = #tpu.pipeline_mode<synchronous>, transform_indices = @transform_5, window_bounds = array<i64: 1, 128>}, {transform_indices = @transform_6, window_bounds = array<i64: 32, 128>}]} {
    %c0 = arith.constant 0 : index
    %c0_0 = arith.constant 0 : index
    %0 = vector.load %arg5[%c0, %c0_0] : memref<400x128xbf16, #tpu.memory_space<vmem>>, vector<400x128xbf16>
    %c0_1 = arith.constant 0 : index
    %c0_2 = arith.constant 0 : index
    %1 = vector.load %arg1[%c0_1, %c0_2] : memref<32x400xbf16, #tpu.memory_space<vmem>>, vector<32x400xbf16>
    %cst = arith.constant dense<0.000000e+00> : vector<32x128xf32>
    %2 = tpu.matmul %1, %0, %cst {dimension_numbers = #tpu.dot_dimension_numbers<[1], [0], [0], [1], [0, 0, 1, 1], [], []>} : vector<32x400xbf16>, vector<400x128xbf16>, vector<32x128xf32> -> vector<32x128xf32>
    %c0_3 = arith.constant 0 : index
    %c0_4 = arith.constant 0 : index
    %3 = vector.load %arg2[%c0_3, %c0_4] : memref<32x400xbf16, #tpu.memory_space<vmem>>, vector<32x400xbf16>
    %cst_5 = arith.constant dense<0.000000e+00> : vector<32x128xf32>
    %4 = tpu.matmul %3, %0, %cst_5 {dimension_numbers = #tpu.dot_dimension_numbers<[1], [0], [0], [1], [0, 0, 1, 1], [], []>} : vector<32x400xbf16>, vector<400x128xbf16>, vector<32x128xf32> -> vector<32x128xf32>
    %5 = arith.maximumf %2, %4 : vector<32x128xf32>
    %c0_6 = arith.constant 0 : index
    %c0_7 = arith.constant 0 : index
    %6 = vector.load %arg3[%c0_6, %c0_7] : memref<32x400xbf16, #tpu.memory_space<vmem>>, vector<32x400xbf16>
    %cst_8 = arith.constant dense<0.000000e+00> : vector<32x128xf32>
    %7 = tpu.matmul %6, %0, %cst_8 {dimension_numbers = #tpu.dot_dimension_numbers<[1], [0], [0], [1], [0, 0, 1, 1], [], []>} : vector<32x400xbf16>, vector<400x128xbf16>, vector<32x128xf32> -> vector<32x128xf32>
    %c0_9 = arith.constant 0 : index
    %c0_10 = arith.constant 0 : index
    %8 = vector.load %arg4[%c0_9, %c0_10] : memref<32x400xbf16, #tpu.memory_space<vmem>>, vector<32x400xbf16>
    %cst_11 = arith.constant dense<0.000000e+00> : vector<32x128xf32>
    %9 = tpu.matmul %8, %0, %cst_11 {dimension_numbers = #tpu.dot_dimension_numbers<[1], [0], [0], [1], [0, 0, 1, 1], [], []>} : vector<32x400xbf16>, vector<400x128xbf16>, vector<32x128xf32> -> vector<32x128xf32>
    %10 = arith.maximumf %7, %9 : vector<32x128xf32>
    %11 = arith.maximumf %5, %10 : vector<32x128xf32>
    %c0_12 = arith.constant 0 : index
    %c0_13 = arith.constant 0 : index
    %12 = vector.load %arg6[%c0_12, %c0_13] : memref<1x128xf32, #tpu.memory_space<vmem>>, vector<1x128xf32>
    %13 = vector.broadcast %12 : vector<1x128xf32> to vector<32x128xf32>
    %14 = arith.addf %11, %13 : vector<32x128xf32>
    %cst_14 = arith.constant 0.000000e+00 : f32
    %15 = vector.broadcast %cst_14 : f32 to vector<32x128xf32>
    %16 = arith.maximumf %14, %15 : vector<32x128xf32>
    %c0_15 = arith.constant 0 : index
    %c0_16 = arith.constant 0 : index
    %17 = vector.load %arg7[%c0_15, %c0_16] : memref<32x128xf32, #tpu.memory_space<vmem>>, vector<32x128xf32>
    tpu.vector_store %arg7[%c0_15, %c0_16], %16 {strides = array<i32>} : memref<32x128xf32, #tpu.memory_space<vmem>>, vector<32x128xf32>,
    return
  }
  func.func @transform_0(%arg0: i32) -> (i32, i32) {
    %c0_i32 = arith.constant 0 : i32
    %c0_i32_0 = arith.constant 0 : i32
    return %arg0, %c0_i32 : i32, i32
  }
  func.func @transform_1(%arg0: i32) -> (i32, i32) {
    %c0_i32 = arith.constant 0 : i32
    %c0_i32_0 = arith.constant 0 : i32
    return %arg0, %c0_i32 : i32, i32
  }
  func.func @transform_2(%arg0: i32) -> (i32, i32) {
    %c0_i32 = arith.constant 0 : i32
    %c0_i32_0 = arith.constant 0 : i32
    return %arg0, %c0_i32 : i32, i32
  }
  func.func @transform_3(%arg0: i32) -> (i32, i32) {
    %c0_i32 = arith.constant 0 : i32
    %c0_i32_0 = arith.constant 0 : i32
    return %arg0, %c0_i32 : i32, i32
  }
  func.func @transform_4(%arg0: i32) -> (i32, i32) {
    %c0_i32 = arith.constant 0 : i32
    %c0_i32_0 = arith.constant 0 : i32
    %c0_i32_1 = arith.constant 0 : i32
    return %c0_i32, %c0_i32_0 : i32, i32
  }
  func.func @transform_5(%arg0: i32) -> (i32, i32) {
    %c0_i32 = arith.constant 0 : i32
    %c0_i32_0 = arith.constant 0 : i32
    %c0_i32_1 = arith.constant 0 : i32
    return %c0_i32, %c0_i32_0 : i32, i32
  }
  func.func @transform_6(%arg0: i32) -> (i32, i32) {
    %c0_i32 = arith.constant 0 : i32
    %c0_i32_0 = arith.constant 0 : i32
    return %arg0, %c0_i32 : i32, i32
  }
}

module attributes {stable_mosaic.version = 11 : i64} {
  func.func @_conv_relu_pool_kernel(%arg0: i32, %arg1: memref<2x1600xbf16, #tpu.memory_space<vmem>>, %arg2: memref<2x1600xbf16, #tpu.memory_space<vmem>>, %arg3: memref<2x1600xbf16, #tpu.memory_space<vmem>>, %arg4: memref<2x1600xbf16, #tpu.memory_space<vmem>>, %arg5: memref<1600x128xbf16, #tpu.memory_space<vmem>>, %arg6: memref<1x128xf32, #tpu.memory_space<vmem>>, %arg7: memref<2x128xf32, #tpu.memory_space<vmem>>) attributes {dimension_semantics = [#tpu.dimension_semantics<parallel>], iteration_bounds = array<i64: 1>, scalar_prefetch = 0 : i64, scratch_operands = 0 : i64, tpu.core_type = #tpu.core_type<tc>, window_params = [{transform_indices = @transform_0, window_bounds = array<i64: 2, 1600>}, {transform_indices = @transform_1, window_bounds = array<i64: 2, 1600>}, {transform_indices = @transform_2, window_bounds = array<i64: 2, 1600>}, {transform_indices = @transform_3, window_bounds = array<i64: 2, 1600>}, {pipeline_mode = #tpu.pipeline_mode<synchronous>, transform_indices = @transform_4, window_bounds = array<i64: 1600, 128>}, {pipeline_mode = #tpu.pipeline_mode<synchronous>, transform_indices = @transform_5, window_bounds = array<i64: 1, 128>}, {transform_indices = @transform_6, window_bounds = array<i64: 2, 128>}]} {
    %c0 = arith.constant 0 : index
    %c0_0 = arith.constant 0 : index
    %0 = vector.load %arg5[%c0, %c0_0] : memref<1600x128xbf16, #tpu.memory_space<vmem>>, vector<1600x128xbf16>
    %c0_1 = arith.constant 0 : index
    %c0_2 = arith.constant 0 : index
    %1 = vector.load %arg1[%c0_1, %c0_2] : memref<2x1600xbf16, #tpu.memory_space<vmem>>, vector<2x1600xbf16>
    %cst = arith.constant dense<0.000000e+00> : vector<2x128xf32>
    %2 = tpu.matmul %1, %0, %cst {dimension_numbers = #tpu.dot_dimension_numbers<[1], [0], [0], [1], [0, 0, 1, 1], [], []>} : vector<2x1600xbf16>, vector<1600x128xbf16>, vector<2x128xf32> -> vector<2x128xf32>
    %c0_3 = arith.constant 0 : index
    %c0_4 = arith.constant 0 : index
    %3 = vector.load %arg2[%c0_3, %c0_4] : memref<2x1600xbf16, #tpu.memory_space<vmem>>, vector<2x1600xbf16>
    %cst_5 = arith.constant dense<0.000000e+00> : vector<2x128xf32>
    %4 = tpu.matmul %3, %0, %cst_5 {dimension_numbers = #tpu.dot_dimension_numbers<[1], [0], [0], [1], [0, 0, 1, 1], [], []>} : vector<2x1600xbf16>, vector<1600x128xbf16>, vector<2x128xf32> -> vector<2x128xf32>
    %5 = arith.maximumf %2, %4 : vector<2x128xf32>
    %c0_6 = arith.constant 0 : index
    %c0_7 = arith.constant 0 : index
    %6 = vector.load %arg3[%c0_6, %c0_7] : memref<2x1600xbf16, #tpu.memory_space<vmem>>, vector<2x1600xbf16>
    %cst_8 = arith.constant dense<0.000000e+00> : vector<2x128xf32>
    %7 = tpu.matmul %6, %0, %cst_8 {dimension_numbers = #tpu.dot_dimension_numbers<[1], [0], [0], [1], [0, 0, 1, 1], [], []>} : vector<2x1600xbf16>, vector<1600x128xbf16>, vector<2x128xf32> -> vector<2x128xf32>
    %c0_9 = arith.constant 0 : index
    %c0_10 = arith.constant 0 : index
    %8 = vector.load %arg4[%c0_9, %c0_10] : memref<2x1600xbf16, #tpu.memory_space<vmem>>, vector<2x1600xbf16>
    %cst_11 = arith.constant dense<0.000000e+00> : vector<2x128xf32>
    %9 = tpu.matmul %8, %0, %cst_11 {dimension_numbers = #tpu.dot_dimension_numbers<[1], [0], [0], [1], [0, 0, 1, 1], [], []>} : vector<2x1600xbf16>, vector<1600x128xbf16>, vector<2x128xf32> -> vector<2x128xf32>
    %10 = arith.maximumf %7, %9 : vector<2x128xf32>
    %11 = arith.maximumf %5, %10 : vector<2x128xf32>
    %c0_12 = arith.constant 0 : index
    %c0_13 = arith.constant 0 : index
    %12 = vector.load %arg6[%c0_12, %c0_13] : memref<1x128xf32, #tpu.memory_space<vmem>>, vector<1x128xf32>
    %13 = vector.broadcast %12 : vector<1x128xf32> to vector<2x128xf32>
    %14 = arith.addf %11, %13 : vector<2x128xf32>
    %cst_14 = arith.constant 0.000000e+00 : f32
    %15 = vector.broadcast %cst_14 : f32 to vector<2x128xf32>
    %16 = arith.maximumf %14, %15 : vector<2x128xf32>
    %c0_15 = arith.constant 0 : index
    %c0_16 = arith.constant 0 : index
    %17 = vector.load %arg7[%c0_15, %c0_16] : memref<2x128xf32, #tpu.memory_space<vmem>>, vector<2x128xf32>
    tpu.vector_store %arg7[%c0_15, %c0_16], %16 {strides = array<i32>} : memref<2x128xf32, #tpu.memory_space<vmem>>, vector<2x128xf32>,
    return
  }
  func.func @transform_0(%arg0: i32) -> (i32, i32) {
    %c0_i32 = arith.constant 0 : i32
    %c0_i32_0 = arith.constant 0 : i32
    return %arg0, %c0_i32 : i32, i32
  }
  func.func @transform_1(%arg0: i32) -> (i32, i32) {
    %c0_i32 = arith.constant 0 : i32
    %c0_i32_0 = arith.constant 0 : i32
    return %arg0, %c0_i32 : i32, i32
  }
  func.func @transform_2(%arg0: i32) -> (i32, i32) {
    %c0_i32 = arith.constant 0 : i32
    %c0_i32_0 = arith.constant 0 : i32
    return %arg0, %c0_i32 : i32, i32
  }
  func.func @transform_3(%arg0: i32) -> (i32, i32) {
    %c0_i32 = arith.constant 0 : i32
    %c0_i32_0 = arith.constant 0 : i32
    return %arg0, %c0_i32 : i32, i32
  }
  func.func @transform_4(%arg0: i32) -> (i32, i32) {
    %c0_i32 = arith.constant 0 : i32
    %c0_i32_0 = arith.constant 0 : i32
    %c0_i32_1 = arith.constant 0 : i32
    return %c0_i32, %c0_i32_0 : i32, i32
  }
  func.func @transform_5(%arg0: i32) -> (i32, i32) {
    %c0_i32 = arith.constant 0 : i32
    %c0_i32_0 = arith.constant 0 : i32
    %c0_i32_1 = arith.constant 0 : i32
    return %c0_i32, %c0_i32_0 : i32, i32
  }
  func.func @transform_6(%arg0: i32) -> (i32, i32) {
    %c0_i32 = arith.constant 0 : i32
    %c0_i32_0 = arith.constant 0 : i32
    return %arg0, %c0_i32 : i32, i32
  }
}

module attributes {stable_mosaic.version = 11 : i64} {
  func.func @_matmul_bias_kernel(%arg0: i32, %arg1: memref<2x3200xbf16, #tpu.memory_space<vmem>>, %arg2: memref<3200x128xbf16, #tpu.memory_space<vmem>>, %arg3: memref<1x128xf32, #tpu.memory_space<vmem>>, %arg4: memref<2x128xf32, #tpu.memory_space<vmem>>) attributes {dimension_semantics = [#tpu.dimension_semantics<parallel>], iteration_bounds = array<i64: 1>, scalar_prefetch = 0 : i64, scratch_operands = 0 : i64, tpu.core_type = #tpu.core_type<tc>, window_params = [{transform_indices = @transform_0, window_bounds = array<i64: 2, 3200>}, {pipeline_mode = #tpu.pipeline_mode<synchronous>, transform_indices = @transform_1, window_bounds = array<i64: 3200, 128>}, {pipeline_mode = #tpu.pipeline_mode<synchronous>, transform_indices = @transform_2, window_bounds = array<i64: 1, 128>}, {transform_indices = @transform_3, window_bounds = array<i64: 2, 128>}]} {
    %c0 = arith.constant 0 : index
    %c0_0 = arith.constant 0 : index
    %0 = vector.load %arg1[%c0, %c0_0] : memref<2x3200xbf16, #tpu.memory_space<vmem>>, vector<2x3200xbf16>
    %c0_1 = arith.constant 0 : index
    %c0_2 = arith.constant 0 : index
    %1 = vector.load %arg2[%c0_1, %c0_2] : memref<3200x128xbf16, #tpu.memory_space<vmem>>, vector<3200x128xbf16>
    %cst = arith.constant dense<0.000000e+00> : vector<2x128xf32>
    %2 = tpu.matmul %0, %1, %cst {dimension_numbers = #tpu.dot_dimension_numbers<[1], [0], [0], [1], [0, 0, 1, 1], [], []>} : vector<2x3200xbf16>, vector<3200x128xbf16>, vector<2x128xf32> -> vector<2x128xf32>
    %c0_3 = arith.constant 0 : index
    %c0_4 = arith.constant 0 : index
    %3 = vector.load %arg3[%c0_3, %c0_4] : memref<1x128xf32, #tpu.memory_space<vmem>>, vector<1x128xf32>
    %4 = vector.broadcast %3 : vector<1x128xf32> to vector<2x128xf32>
    %5 = arith.addf %2, %4 : vector<2x128xf32>
    %cst_5 = arith.constant 0.000000e+00 : f32
    %6 = vector.broadcast %cst_5 : f32 to vector<2x128xf32>
    %7 = arith.maximumf %5, %6 : vector<2x128xf32>
    %c0_6 = arith.constant 0 : index
    %c0_7 = arith.constant 0 : index
    %8 = vector.load %arg4[%c0_6, %c0_7] : memref<2x128xf32, #tpu.memory_space<vmem>>, vector<2x128xf32>
    tpu.vector_store %arg4[%c0_6, %c0_7], %7 {strides = array<i32>} : memref<2x128xf32, #tpu.memory_space<vmem>>, vector<2x128xf32>,
    return
  }
  func.func @transform_0(%arg0: i32) -> (i32, i32) {
    %c0_i32 = arith.constant 0 : i32
    %c0_i32_0 = arith.constant 0 : i32
    return %arg0, %c0_i32 : i32, i32
  }
  func.func @transform_1(%arg0: i32) -> (i32, i32) {
    %c0_i32 = arith.constant 0 : i32
    %c0_i32_0 = arith.constant 0 : i32
    %c0_i32_1 = arith.constant 0 : i32
    return %c0_i32, %c0_i32_0 : i32, i32
  }
  func.func @transform_2(%arg0: i32) -> (i32, i32) {
    %c0_i32 = arith.constant 0 : i32
    %c0_i32_0 = arith.constant 0 : i32
    %c0_i32_1 = arith.constant 0 : i32
    return %c0_i32, %c0_i32_0 : i32, i32
  }
  func.func @transform_3(%arg0: i32) -> (i32, i32) {
    %c0_i32 = arith.constant 0 : i32
    %c0_i32_0 = arith.constant 0 : i32
    return %arg0, %c0_i32 : i32, i32
  }
}

module attributes {stable_mosaic.version = 11 : i64} {
  func.func @_matmul_bias_kernel(%arg0: i32, %arg1: memref<2x128xbf16, #tpu.memory_space<vmem>>, %arg2: memref<128x128xbf16, #tpu.memory_space<vmem>>, %arg3: memref<1x128xf32, #tpu.memory_space<vmem>>, %arg4: memref<2x128xf32, #tpu.memory_space<vmem>>) attributes {dimension_semantics = [#tpu.dimension_semantics<parallel>], iteration_bounds = array<i64: 1>, scalar_prefetch = 0 : i64, scratch_operands = 0 : i64, tpu.core_type = #tpu.core_type<tc>, window_params = [{transform_indices = @transform_0, window_bounds = array<i64: 2, 128>}, {pipeline_mode = #tpu.pipeline_mode<synchronous>, transform_indices = @transform_1, window_bounds = array<i64: 128, 128>}, {pipeline_mode = #tpu.pipeline_mode<synchronous>, transform_indices = @transform_2, window_bounds = array<i64: 1, 128>}, {transform_indices = @transform_3, window_bounds = array<i64: 2, 128>}]} {
    %c0 = arith.constant 0 : index
    %c0_0 = arith.constant 0 : index
    %0 = vector.load %arg1[%c0, %c0_0] : memref<2x128xbf16, #tpu.memory_space<vmem>>, vector<2x128xbf16>
    %c0_1 = arith.constant 0 : index
    %c0_2 = arith.constant 0 : index
    %1 = vector.load %arg2[%c0_1, %c0_2] : memref<128x128xbf16, #tpu.memory_space<vmem>>, vector<128x128xbf16>
    %cst = arith.constant dense<0.000000e+00> : vector<2x128xf32>
    %2 = tpu.matmul %0, %1, %cst {dimension_numbers = #tpu.dot_dimension_numbers<[1], [0], [0], [1], [0, 0, 1, 1], [], []>} : vector<2x128xbf16>, vector<128x128xbf16>, vector<2x128xf32> -> vector<2x128xf32>
    %c0_3 = arith.constant 0 : index
    %c0_4 = arith.constant 0 : index
    %3 = vector.load %arg3[%c0_3, %c0_4] : memref<1x128xf32, #tpu.memory_space<vmem>>, vector<1x128xf32>
    %4 = vector.broadcast %3 : vector<1x128xf32> to vector<2x128xf32>
    %5 = arith.addf %2, %4 : vector<2x128xf32>
    %c0_5 = arith.constant 0 : index
    %c0_6 = arith.constant 0 : index
    %6 = vector.load %arg4[%c0_5, %c0_6] : memref<2x128xf32, #tpu.memory_space<vmem>>, vector<2x128xf32>
    tpu.vector_store %arg4[%c0_5, %c0_6], %5 {strides = array<i32>} : memref<2x128xf32, #tpu.memory_space<vmem>>, vector<2x128xf32>,
    return
  }
  func.func @transform_0(%arg0: i32) -> (i32, i32) {
    %c0_i32 = arith.constant 0 : i32
    %c0_i32_0 = arith.constant 0 : i32
    return %arg0, %c0_i32 : i32, i32
  }
  func.func @transform_1(%arg0: i32) -> (i32, i32) {
    %c0_i32 = arith.constant 0 : i32
    %c0_i32_0 = arith.constant 0 : i32
    %c0_i32_1 = arith.constant 0 : i32
    return %c0_i32, %c0_i32_0 : i32, i32
  }
  func.func @transform_2(%arg0: i32) -> (i32, i32) {
    %c0_i32 = arith.constant 0 : i32
    %c0_i32_0 = arith.constant 0 : i32
    %c0_i32_1 = arith.constant 0 : i32
    return %c0_i32, %c0_i32_0 : i32, i32
  }
  func.func @transform_3(%arg0: i32) -> (i32, i32) {
    %c0_i32 = arith.constant 0 : i32
    %c0_i32_0 = arith.constant 0 : i32
    return %arg0, %c0_i32 : i32, i32
  }
}

</mosaic_0001>

<llo_original>
// kernel: source_forward.5
$region0: #{source_forward.5}
  #allocation0 [shape = 'u32[]', space=smem, size = 0x4, offset = 0x4, fixed_abs, tag = 'smem constant byte address 0x4 - core index']
  #allocation1 [shape = 'u32[144,128]{1,0:T(1,128)}', space=vmem, size = 0x12000, scoped, tag = 'internal scratch']
  %s0 = inlined_call_operand.vmem [shape: bf16[512,75], index: 0, kind: input, shape index: {}]
  %s1 = inlined_call_operand.vmem [shape: bf16[512,75], index: 1, kind: input, shape index: {}]
  %s2 = inlined_call_operand.vmem [shape: bf16[512,75], index: 2, kind: input, shape index: {}]
  %s3 = inlined_call_operand.vmem [shape: bf16[512,75], index: 3, kind: input, shape index: {}]
  %s4 = inlined_call_operand.vmem [shape: bf16[75,128], index: 4, kind: input, shape index: {}]
  %s5 = inlined_call_operand.vmem [shape: f32[1,128], index: 5, kind: input, shape index: {}]
  %s6 = inlined_call_operand.vmem [shape: f32[512,128], index: 6, kind: output, shape index: {}]
  %s7 = sld [smem:[#allocation0]]
  $region57: #{source_forward.5} parent=0
    _
  %s9 = ssub.s32 1, %s7
  %s10 = scalar_select 0, %s9, %s7
  loop: start=0, step=1, limit=4
  $region2: #{source_forward.5} parent=0 // loop_pre_header
    _
  $region3: #{source_forward.5} parent=0 // loop_header
    %s12 = sphi 0, %s16
    %p13 = scmp.ge.s32.totalorder %s12, 4
    %s22 = sphi 0, %s24
    %s25 = sphi 0, %s22
    %s26 = sphi 0, %s25
    %s42 = sphi 0, %s26
    %s48 = sphi 0, %s50
    %s51 = sphi 0, %s48
    %s52 = sphi 0, %s51
    %s68 = sphi 0, %s52
    %s74 = sphi 0, %s76
    %s77 = sphi 0, %s74
    %s78 = sphi 0, %s77
    %s94 = sphi 0, %s78
    %s100 = sphi 0, %s102
    %s103 = sphi 0, %s100
    %s104 = sphi 0, %s103
    %s120 = sphi 0, %s104
    %s124 = sphi 0, %s124
    %s126 = sphi 0, %s124
    %s127 = sphi 0, %s126
    %s141 = sphi 0, %s127
    %s145 = sphi 0, %s145
    %s147 = sphi 0, %s145
    %s148 = sphi 0, %s147
    %s162 = sphi 0, %s148
    %s168 = sphi 0, %s170
    %s171 = sphi 0, %s168
    %s172 = sphi 0, %s171
    %s188 = sphi 0, %s172
  $region4: #{source_forward.5} parent=0 // loop_header_branch
    %15 = sbr.rel (%p13) target = $region8
  $region5: #{source_forward.5} parent=0 // loop_body
    %s17 = ssub.s32 %s12, 1
    %s18 = ssub.s32 %s12, 2
    %s19 = sadd.s32 %s12, 1
    %s20 = ssub.s32 %s12, %s19
    %p21 = scmp.eq.s32.totalorder %s20, 0
    %s23 = sadd.s32 %s22, 1
    %s24 = scalar_select %p21, %s22, %s23
    %p27 = pneg %p21
    %p28 = scmp.eq.s32.totalorder %s12, 1
    %p29 = por %p27, %p28
    %p30 = scmp.ne.s32.totalorder %s22, %s25
    %p31 = scmp.eq.s32.totalorder %s12, 0
    %p32 = por %p30, %p31
    %p33 = scmp.ne.s32.totalorder %s22, %s25
    %p34 = scmp.eq.s32.totalorder %s17, 1
    %p35 = por %p33, %p34
    %p36 = scmp.ne.s32.totalorder %s25, %s26
    %p37 = scmp.eq.s32.totalorder %s17, 0
    %p38 = por %p36, %p37
    %p39 = scmp.ne.s32.totalorder %s25, %s26
    %p40 = scmp.eq.s32.totalorder %s18, 1
    %p41 = por %p39, %p40
    %p43 = scmp.ne.s32.totalorder %s26, %s42
    %p44 = scmp.eq.s32.totalorder %s18, 0
    %p45 = por %p43, %p44
    %s46 = ssub.s32 %s12, %s19
    %p47 = scmp.eq.s32.totalorder %s46, 0
    %s49 = sadd.s32 %s48, 1
    %s50 = scalar_select %p47, %s48, %s49
    %p53 = pneg %p47
    %p54 = scmp.eq.s32.totalorder %s12, 1
    %p55 = por %p53, %p54
    %p56 = scmp.ne.s32.totalorder %s48, %s51
    %p57 = scmp.eq.s32.totalorder %s12, 0
    %p58 = por %p56, %p57
    %p59 = scmp.ne.s32.totalorder %s48, %s51
    %p60 = scmp.eq.s32.totalorder %s17, 1
    %p61 = por %p59, %p60
    %p62 = scmp.ne.s32.totalorder %s51, %s52
    %p63 = scmp.eq.s32.totalorder %s17, 0
    %p64 = por %p62, %p63
    %p65 = scmp.ne.s32.totalorder %s51, %s52
    %p66 = scmp.eq.s32.totalorder %s18, 1
    %p67 = por %p65, %p66
    %p69 = scmp.ne.s32.totalorder %s52, %s68
    %p70 = scmp.eq.s32.totalorder %s18, 0
    %p71 = por %p69, %p70
    %s72 = ssub.s32 %s12, %s19
    %p73 = scmp.eq.s32.totalorder %s72, 0
    %s75 = sadd.s32 %s74, 1
    %s76 = scalar_select %p73, %s74, %s75
    %p79 = pneg %p73
    %p80 = scmp.eq.s32.totalorder %s12, 1
    %p81 = por %p79, %p80
    %p82 = scmp.ne.s32.totalorder %s74, %s77
    %p83 = scmp.eq.s32.totalorder %s12, 0
    %p84 = por %p82, %p83
    %p85 = scmp.ne.s32.totalorder %s74, %s77
    %p86 = scmp.eq.s32.totalorder %s17, 1
    %p87 = por %p85, %p86
    %p88 = scmp.ne.s32.totalorder %s77, %s78
    %p89 = scmp.eq.s32.totalorder %s17, 0
    %p90 = por %p88, %p89
    %p91 = scmp.ne.s32.totalorder %s77, %s78
    %p92 = scmp.eq.s32.totalorder %s18, 1
    %p93 = por %p91, %p92
    %p95 = scmp.ne.s32.totalorder %s78, %s94
    %p96 = scmp.eq.s32.totalorder %s18, 0
    %p97 = por %p95, %p96
    %s98 = ssub.s32 %s12, %s19
    %p99 = scmp.eq.s32.totalorder %s98, 0
    %s101 = sadd.s32 %s100, 1
    %s102 = scalar_select %p99, %s100, %s101
    %p105 = pneg %p99
    %p106 = scmp.eq.s32.totalorder %s12, 1
    %p107 = por %p105, %p106
    %p108 = scmp.ne.s32.totalorder %s100, %s103
    %p109 = scmp.eq.s32.totalorder %s12, 0
    %p110 = por %p108, %p109
    %p111 = scmp.ne.s32.totalorder %s100, %s103
    %p112 = scmp.eq.s32.totalorder %s17, 1
    %p113 = por %p111, %p112
    %p114 = scmp.ne.s32.totalorder %s103, %s104
    %p115 = scmp.eq.s32.totalorder %s17, 0
    %p116 = por %p114, %p115
    %p117 = scmp.ne.s32.totalorder %s103, %s104
    %p118 = scmp.eq.s32.totalorder %s18, 1
    %p119 = por %p117, %p118
    %p121 = scmp.ne.s32.totalorder %s104, %s120
    %p122 = scmp.eq.s32.totalorder %s18, 0
    %p123 = por %p121, %p122
    %s125 = sadd.s32 %s124, 1
    %p128 = scmp.eq.s32.totalorder %s12, 1
    %p129 = scmp.ne.s32.totalorder %s124, %s126
    %p130 = scmp.eq.s32.totalorder %s12, 0
    %p131 = por %p129, %p130
    %p132 = scmp.ne.s32.totalorder %s124, %s126
    %p133 = scmp.eq.s32.totalorder %s17, 1
    %p134 = por %p132, %p133
    %p135 = scmp.ne.s32.totalorder %s126, %s127
    %p136 = scmp.eq.s32.totalorder %s17, 0
    %p137 = por %p135, %p136
    %p138 = scmp.ne.s32.totalorder %s126, %s127
    %p139 = scmp.eq.s32.totalorder %s18, 1
    %p140 = por %p138, %p139
    %p142 = scmp.ne.s32.totalorder %s127, %s141
    %p143 = scmp.eq.s32.totalorder %s18, 0
    %p144 = por %p142, %p143
    %s146 = sadd.s32 %s145, 1
    %p149 = scmp.eq.s32.totalorder %s12, 1
    %p150 = scmp.ne.s32.totalorder %s145, %s147
    %p151 = scmp.eq.s32.totalorder %s12, 0
    %p152 = por %p150, %p151
    %p153 = scmp.ne.s32.totalorder %s145, %s147
    %p154 = scmp.eq.s32.totalorder %s17, 1
    %p155 = por %p153, %p154
    %p156 = scmp.ne.s32.totalorder %s147, %s148
    %p157 = scmp.eq.s32.totalorder %s17, 0
    %p158 = por %p156, %p157
    %p159 = scmp.ne.s32.totalorder %s147, %s148
    %p160 = scmp.eq.s32.totalorder %s18, 1
    %p161 = por %p159, %p160
    %p163 = scmp.ne.s32.totalorder %s148, %s162
    %p164 = scmp.eq.s32.totalorder %s18, 0
    %p165 = por %p163, %p164
    %s166 = ssub.s32 %s12, %s19
    %p167 = scmp.eq.s32.totalorder %s166, 0
    %s169 = sadd.s32 %s168, 1
    %s170 = scalar_select %p167, %s168, %s169
    %p173 = pneg %p167
    %p174 = scmp.eq.s32.totalorder %s12, 1
    %p175 = por %p173, %p174
    %p176 = scmp.ne.s32.totalorder %s168, %s171
    %p177 = scmp.eq.s32.totalorder %s12, 0
    %p178 = por %p176, %p177
    %p179 = scmp.ne.s32.totalorder %s168, %s171
    %p180 = scmp.eq.s32.totalorder %s17, 1
    %p181 = por %p179, %p180
    %p182 = scmp.ne.s32.totalorder %s171, %s172
    %p183 = scmp.eq.s32.totalorder %s17, 0
    %p184 = por %p182, %p183
    %p185 = scmp.ne.s32.totalorder %s171, %s172
    %p186 = scmp.eq.s32.totalorder %s18, 1
    %p187 = por %p185, %p186
    %p189 = scmp.ne.s32.totalorder %s172, %s188
    %p190 = scmp.eq.s32.totalorder %s18, 0
    %p191 = por %p189, %p190
    %p192 = scmp.le.s32.totalorder 1, %s12
    %p193 = scmp.lt.s32.totalorder %s12, 3
    %p194 = pnand %p192, %p193
    %p195 = pneg %p194
    // Predicated region
    $region9: #{source_forward.5} parent=5 // pred_check
      _
    $region10: #{source_forward.5} parent=5 // pred_check_branch
      %197 = sbr.rel (%p194) target = $region12
    $region11: #{source_forward.5} parent=5 // pred_region
      %s198 = ssub.s32 %s12, 1
      // Predicated region
      $region13: #{source_forward.5} parent=11 // pred_check
        %p199 = pneg %p137
      $region14: #{source_forward.5} parent=11 // pred_check_branch
        %201 = sbr.rel (%p199) target = $region16
      $region15: #{source_forward.5} parent=11 // pred_region
        _
      $region16: #{source_forward.5} parent=11 // pred_fallthru
        _
      // Predicated region
      $region17: #{source_forward.5} parent=11 // pred_check
        %p202 = pneg %p158
      $region18: #{source_forward.5} parent=11 // pred_check_branch
        %204 = sbr.rel (%p202) target = $region20
      $region19: #{source_forward.5} parent=11 // pred_region
        _
      $region20: #{source_forward.5} parent=11 // pred_fallthru
        _
    $region12: #{source_forward.5} parent=5 // pred_fallthru
      _
    %p205 = scmp.lt.s32.totalorder %s12, 2
    // Predicated region
    $region21: #{source_forward.5} parent=5 // pred_check
      %p206 = pneg %p205
    $region22: #{source_forward.5} parent=5 // pred_check_branch
      %208 = sbr.rel (%p206) target = $region24
    $region23: #{source_forward.5} parent=5 // pred_region
      // Predicated region
      $region25: #{source_forward.5} parent=23 // pred_check
        %p209 = pneg %p32
      $region26: #{source_forward.5} parent=23 // pred_check_branch
        %211 = sbr.rel (%p209) target = $region28
      $region27: #{source_forward.5} parent=23 // pred_region
        %s212 = smul.u32 32, %s12
        %p213 = scmp.lt.s32.totalorder %s212, 63
        %s214 = scalar_select %p213, %s212, 63
        %s215 = smul.addr %s214, 4
        %s216 = scalar_lea.vmem %s0, %s215
        %s217 = smul.u32 32, %s12
      $region28: #{source_forward.5} parent=23 // pred_fallthru
        _
      // Predicated region
      $region29: #{source_forward.5} parent=23 // pred_check
        %p218 = pneg %p58
      $region30: #{source_forward.5} parent=23 // pred_check_branch
        %220 = sbr.rel (%p218) target = $region32
      $region31: #{source_forward.5} parent=23 // pred_region
        %s221 = smul.u32 32, %s12
        %p222 = scmp.lt.s32.totalorder %s221, 63
        %s223 = scalar_select %p222, %s221, 63
        %s224 = smul.addr %s223, 4
        %s225 = scalar_lea.vmem %s1, %s224
        %s226 = smul.u32 32, %s12
      $region32: #{source_forward.5} parent=23 // pred_fallthru
        _
      // Predicated region
      $region33: #{source_forward.5} parent=23 // pred_check
        %p227 = pneg %p84
      $region34: #{source_forward.5} parent=23 // pred_check_branch
        %229 = sbr.rel (%p227) target = $region36
      $region35: #{source_forward.5} parent=23 // pred_region
        %s230 = smul.u32 32, %s12
        %p231 = scmp.lt.s32.totalorder %s230, 63
        %s232 = scalar_select %p231, %s230, 63
        %s233 = smul.addr %s232, 4
        %s234 = scalar_lea.vmem %s2, %s233
        %s235 = smul.u32 32, %s12
      $region36: #{source_forward.5} parent=23 // pred_fallthru
        _
      // Predicated region
      $region37: #{source_forward.5} parent=23 // pred_check
        %p236 = pneg %p110
      $region38: #{source_forward.5} parent=23 // pred_check_branch
        %238 = sbr.rel (%p236) target = $region40
      $region39: #{source_forward.5} parent=23 // pred_region
        %s239 = smul.u32 32, %s12
        %p240 = scmp.lt.s32.totalorder %s239, 63
        %s241 = scalar_select %p240, %s239, 63
        %s242 = smul.addr %s241, 4
        %s243 = scalar_lea.vmem %s3, %s242
        %s244 = smul.u32 32, %s12
      $region40: #{source_forward.5} parent=23 // pred_fallthru
        _
    $region24: #{source_forward.5} parent=5 // pred_fallthru
      _
    %p245 = scmp.le.s32.totalorder 1, %s12
    %p246 = scmp.lt.s32.totalorder %s12, 3
    %p247 = pnand %p245, %p246
    %p248 = pneg %p247
    // Predicated region
    $region41: #{source_forward.5} parent=5 // pred_check
      _
    $region42: #{source_forward.5} parent=5 // pred_check_branch
      %250 = sbr.rel (%p247) target = $region44
    $region43: #{source_forward.5} parent=5 // pred_region
      %s251 = ssub.s32 %s12, 1
      %s252 = smul.u32 32, %s17
      %p253 = scmp.lt.s32.totalorder %s252, 63
      %s254 = scalar_select %p253, %s252, 63
      %s255 = smul.addr %s254, 4
      %s256 = scalar_lea.vmem %s0, %s255
      %p257 = pneg %p38
      %p258 = pneg %p35
      %s259 = smul.u32 32, %s17
      %p260 = scmp.lt.s32.totalorder %s259, 63
      %s261 = scalar_select %p260, %s259, 63
      %s262 = smul.addr %s261, 4
      %s263 = scalar_lea.vmem %s1, %s262
      %p264 = pneg %p64
      %p265 = pneg %p61
      %s266 = smul.u32 32, %s17
      %p267 = scmp.lt.s32.totalorder %s266, 63
      %s268 = scalar_select %p267, %s266, 63
      %s269 = smul.addr %s268, 4
      %s270 = scalar_lea.vmem %s2, %s269
      %p271 = pneg %p90
      %p272 = pneg %p87
      %s273 = smul.u32 32, %s17
      %p274 = scmp.lt.s32.totalorder %s273, 63
      %s275 = scalar_select %p274, %s273, 63
      %s276 = smul.addr %s275, 4
      %s277 = scalar_lea.vmem %s3, %s276
      %p278 = pneg %p116
      %p279 = pneg %p113
      %p280 = pneg %p137
      %p281 = pneg %p134
      %p282 = pneg %p158
      %p283 = pneg %p155
      %p284 = pneg %p184
      %p285 = pneg %p181
      %s286 = smul.u32 32, %s17
      %p287 = scmp.lt.s32.totalorder %s286, 63
      %s288 = scalar_select %p287, %s286, 63
      %s289 = smul.addr %s288, 8
      %s290 = scalar_lea.vmem %s6, %s289
      %s291 = smul.u32 32, %s17
      %p292 = scmp.lt.s32.totalorder %s291, 63
      %s293 = scalar_select %p292, %s291, 63
      %s294 = smul.addr %s293, 4
      %s295 = scalar_lea.vmem %s0, %s294
      %s296 = smul.u32 32, %s17
      %s297 = smul.u32 32, %s17
      %p298 = scmp.lt.s32.totalorder %s297, 63
      %s299 = scalar_select %p298, %s297, 63
      %s300 = smul.addr %s299, 4
      %s301 = scalar_lea.vmem %s1, %s300
      %s302 = smul.u32 32, %s17
      %s303 = smul.u32 32, %s17
      %p304 = scmp.lt.s32.totalorder %s303, 63
      %s305 = scalar_select %p304, %s303, 63
      %s306 = smul.addr %s305, 4
      %s307 = scalar_lea.vmem %s2, %s306
      %s308 = smul.u32 32, %s17
      %s309 = smul.u32 32, %s17
      %p310 = scmp.lt.s32.totalorder %s309, 63
      %s311 = scalar_select %p310, %s309, 63
      %s312 = smul.addr %s311, 4
      %s313 = scalar_lea.vmem %s3, %s312
      %s314 = smul.u32 32, %s17
      %s315 = smul.u32 32, %s17
      %p316 = scmp.lt.s32.totalorder %s315, 63
      %s317 = scalar_select %p316, %s315, 63
      %s318 = smul.addr %s317, 8
      %s319 = scalar_lea.vmem %s6, %s318
      %s320 = smul.u32 32, %s17
      %v322 = vld [vmem:[%s4] sm:$0xf]
      %v323 = vld [vmem:[%s4 + $0x4] sm:$0xf]
      %v324 = vld [vmem:[%s4 + $0x8] sm:$0xf]
      %v325 = vld [vmem:[%s4 + $0xc] sm:$0xf]
      %v326 = vld [vmem:[%s4 + $0x10] sm:$0xf]
      %v327 = vld [vmem:[%s4 + $0x14] sm:$0xf]
      %v328 = vld [vmem:[%s4 + $0x18] sm:$0xf]
      %v329 = vld [vmem:[%s4 + $0x1c] sm:$0xf]
      %v330 = vld [vmem:[%s4 + $0x20] sm:$0xf]
      %v331 = vld [vmem:[%s4 + $0x24] sm:$0x3]
      %v332 = vld [vmem:[%s295] sm:$0xf]
      %v333 = vld [vmem:[%s295 + $0x4] sm:$0xf]
      %v334 = vld [vmem:[%s295 + $0x8] sm:$0xf]
      %v335 = vld [vmem:[%s295 + $0xc] sm:$0xf]
      %v336 = vld [vmem:[%s295 + $0x10] sm:$0xf]
      %v337 = vld [vmem:[%s295 + $0x14] sm:$0xf]
      %v338 = vld [vmem:[%s295 + $0x18] sm:$0xf]
      %v339 = vld [vmem:[%s295 + $0x1c] sm:$0xf]
      %v340 = vld [vmem:[%s295 + $0x20] sm:$0xf]
      %v341 = vld [vmem:[%s295 + $0x24] sm:$0xf]
      %v342 = vld [vmem:[%s295 + $0x28] sm:$0xf]
      %v343 = vld [vmem:[%s295 + $0x2c] sm:$0xf]
      %v344 = vld [vmem:[%s295 + $0x30] sm:$0xf]
      %v345 = vld [vmem:[%s295 + $0x34] sm:$0xf]
      %v346 = vld [vmem:[%s295 + $0x38] sm:$0xf]
      %v347 = vld [vmem:[%s295 + $0x3c] sm:$0xf]
      %v348 = vld [vmem:[%s295 + $0x40] sm:$0xf]
      %v349 = vld [vmem:[%s295 + $0x44] sm:$0xf]
      %v350 = vld [vmem:[%s295 + $0x48] sm:$0xf]
      %v351 = vld [vmem:[%s295 + $0x4c] sm:$0xf]
      %v352 = vld [vmem:[%s295 + $0x50] sm:$0xf]
      %v353 = vld [vmem:[%s295 + $0x54] sm:$0xf]
      %v354 = vld [vmem:[%s295 + $0x58] sm:$0xf]
      %v355 = vld [vmem:[%s295 + $0x5c] sm:$0xf]
      %v356 = vld [vmem:[%s295 + $0x60] sm:$0xf]
      %v357 = vld [vmem:[%s295 + $0x64] sm:$0xf]
      %v358 = vld [vmem:[%s295 + $0x68] sm:$0xf]
      %v359 = vld [vmem:[%s295 + $0x6c] sm:$0xf]
      %v360 = vld [vmem:[%s295 + $0x70] sm:$0xf]
      %v361 = vld [vmem:[%s295 + $0x74] sm:$0xf]
      %v362 = vld [vmem:[%s295 + $0x78] sm:$0xf]
      %v363 = vld [vmem:[%s295 + $0x7c] sm:$0xf]
      %v396 = vunpack.c.l.b16 %v332
      %v397 = vunpack.c.l.b16 %v333
      %v398 = vunpack.c.l.b16 %v334
      %v399 = vunpack.c.l.b16 %v335
      %v400 = vunpack.c.l.b16 %v336
      %v401 = vunpack.c.l.b16 %v337
      %v402 = vunpack.c.l.b16 %v338
      %v403 = vunpack.c.l.b16 %v339
      %v404 = vunpack.c.l.b16 %v340
      %v405 = vunpack.c.l.b16 %v341
      %v406 = vunpack.c.l.b16 %v342
      %v407 = vunpack.c.l.b16 %v343
      %v408 = vunpack.c.l.b16 %v344
      %v409 = vunpack.c.l.b16 %v345
      %v410 = vunpack.c.l.b16 %v346
      %v411 = vunpack.c.l.b16 %v347
      %v412 = vunpack.c.l.b16 %v348
      %v413 = vunpack.c.l.b16 %v349
      %v414 = vunpack.c.l.b16 %v350
      %v415 = vunpack.c.l.b16 %v351
      %v416 = vunpack.c.l.b16 %v352
      %v417 = vunpack.c.l.b16 %v353
      %v418 = vunpack.c.l.b16 %v354
      %v419 = vunpack.c.l.b16 %v355
      %v420 = vunpack.c.l.b16 %v356
      %v421 = vunpack.c.l.b16 %v357
      %v422 = vunpack.c.l.b16 %v358
      %v423 = vunpack.c.l.b16 %v359
      %v424 = vunpack.c.l.b16 %v360
      %v425 = vunpack.c.l.b16 %v361
      %v426 = vunpack.c.l.b16 %v362
      %v427 = vunpack.c.l.b16 %v363
      %v428 = vpack.c.b16 %v397, %v396
      %v429 = vpack.c.b16 %v399, %v398
      %v430 = vpack.c.b16 %v401, %v400
      %v431 = vpack.c.b16 %v403, %v402
      %v432 = vpack.c.b16 %v405, %v404
      %v433 = vpack.c.b16 %v407, %v406
      %v434 = vpack.c.b16 %v409, %v408
      %v435 = vpack.c.b16 %v411, %v410
      %v436 = vpack.c.b16 %v413, %v412
      %v437 = vpack.c.b16 %v415, %v414
      %v438 = vpack.c.b16 %v417, %v416
      %v439 = vpack.c.b16 %v419, %v418
      %v440 = vpack.c.b16 %v421, %v420
      %v441 = vpack.c.b16 %v423, %v422
      %v442 = vpack.c.b16 %v425, %v424
      %v443 = vpack.c.b16 %v427, %v426
      %v454 = vunpack.c.l.b16 %v322
      %v455 = vunpack.c.l.b16 %v323
      %v456 = vunpack.c.l.b16 %v324
      %v457 = vunpack.c.l.b16 %v325
      %v458 = vunpack.c.l.b16 %v326
      %v459 = vunpack.c.l.b16 %v327
      %v460 = vunpack.c.l.b16 %v328
      %v461 = vunpack.c.l.b16 %v329
      %v462 = vunpack.c.l.b16 %v330
      %v463 = vunpack.c.l.b16 %v331
      %v464 = vpack.c.b16 %v455, %v454
      %v465 = vpack.c.b16 %v457, %v456
      %v466 = vpack.c.b16 %v459, %v458
      %v467 = vpack.c.b16 %v461, %v460
      %v468 = vpack.c.b16 %v463, %v462
      %vm473 = vcmask 613376
      %v475 = vsel %vm473, %v428, 0
      %v478 = vsel %vm473, %v429, 0
      %v481 = vsel %vm473, %v430, 0
      %v484 = vsel %vm473, %v431, 0
      %v487 = vsel %vm473, %v432, 0
      %v490 = vsel %vm473, %v433, 0
      %v493 = vsel %vm473, %v434, 0
      %v496 = vsel %vm473, %v435, 0
      %v499 = vsel %vm473, %v436, 0
      %v502 = vsel %vm473, %v437, 0
      %v505 = vsel %vm473, %v438, 0
      %v508 = vsel %vm473, %v439, 0
      %v511 = vsel %vm473, %v440, 0
      %v514 = vsel %vm473, %v441, 0
      %v517 = vsel %vm473, %v442, 0
      %v520 = vsel %vm473, %v443, 0
      %vm522 = vcmask 1044480
      %vm523 = vcmask 1045504
      %v524 = vsel %vm522, 4294967295, 65535
      %v525 = vsel %vm523, %v524, 0
      %v527 = vand.u32 %v468, %v525
      %529 = vmatprep.subr.bf16.mxu0 0
      %530 = vmatpush1.bf16.msra.mxu0 %v464
      %531 = vmatprep.subr.bf16.mxu0 0
      %532 = vmatpush1.bf16.msra.mxu0 %v465
      %533 = vmatprep.subr.bf16.mxu0 0
      %534 = vmatpush1.bf16.msra.mxu0 %v466
      %535 = vmatprep.subr.bf16.mxu0 0
      %536 = vmatpush1.bf16.msra.mxu0 %v467
      %537 = vmatprep.subr.bf16.mxu0 0
      %538 = vmatpush1.bf16.msra.mxu0 %v527
      %539 = vmatprep.subr.bf16.mxu0 0
      %540 = vmatpush1.bf16.msra.mxu0 0
      %541 = vmatprep.subr.bf16.mxu0 0
      %542 = vmatpush1.bf16.msra.mxu0 0
      %543 = vmatprep.subr.bf16.mxu0 0
      %544 = vmatpush1.bf16.msra.mxu0 0
      %545 = vmatprep.subr.bf16.mxu0 0
      %546 = vmatpush1.bf16.msra.mxu0 0
      %547 = vmatprep.subr.bf16.mxu0 0
      %548 = vmatpush1.bf16.msra.mxu0 0
      %549 = vmatprep.subr.bf16.mxu0 0
      %550 = vmatpush1.bf16.msra.mxu0 0
      %551 = vmatprep.subr.bf16.mxu0 0
      %552 = vmatpush1.bf16.msra.mxu0 0
      %553 = vmatprep.subr.bf16.mxu0 0
      %554 = vmatpush1.bf16.msra.mxu0 0
      %555 = vmatprep.subr.bf16.mxu0 0
      %556 = vmatpush1.bf16.msra.mxu0 0
      %557 = vmatprep.subr.bf16.mxu0 0
      %558 = vmatpush1.bf16.msra.mxu0 0
      %559 = vmatprep.subr.bf16.mxu0 0
      %560 = vmatpush1.bf16.msra.mxu0 0
      %561 = vmatprep.mubr.bf16.mxu0 0
      %562 = vmatmul.mubr.bf16.gmra.mrb[0].mxu0 %v475
      %v563 = vpop.f32.mrb[0].mxu0
      %v564 = vadd.f32 0.0, %v563
      %v565 = vpop.f32.mrb[0].mxu0
      %v566 = vpop.f32.mrb[0].mxu0
      %v567 = vadd.f32 0.0, %v566
      %v568 = vpop.f32.mrb[0].mxu0
      %569 = vmatprep.mubr.bf16.mxu0 0
      %570 = vmatmul.mubr.bf16.gmra.mrb[0].mxu0 %v478
      %v571 = vpop.f32.mrb[0].mxu0
      %v572 = vadd.f32 0.0, %v571
      %v573 = vpop.f32.mrb[0].mxu0
      %v574 = vpop.f32.mrb[0].mxu0
      %v575 = vadd.f32 0.0, %v574
      %v576 = vpop.f32.mrb[0].mxu0
      %577 = vmatprep.mubr.bf16.mxu0 0
      %578 = vmatmul.mubr.bf16.gmra.mrb[0].mxu0 %v481
      %v579 = vpop.f32.mrb[0].mxu0
      %v580 = vadd.f32 0.0, %v579
      %v581 = vpop.f32.mrb[0].mxu0
      %v582 = vpop.f32.mrb[0].mxu0
      %v583 = vadd.f32 0.0, %v582
      %v584 = vpop.f32.mrb[0].mxu0
      %585 = vmatprep.mubr.bf16.mxu0 0
      %586 = vmatmul.mubr.bf16.gmra.mrb[0].mxu0 %v484
      %v587 = vpop.f32.mrb[0].mxu0
      %v588 = vadd.f32 0.0, %v587
      %v589 = vpop.f32.mrb[0].mxu0
      %v590 = vpop.f32.mrb[0].mxu0
      %v591 = vadd.f32 0.0, %v590
      %v592 = vpop.f32.mrb[0].mxu0
      %593 = vmatprep.mubr.bf16.mxu0 0
      %594 = vmatmul.mubr.bf16.gmra.mrb[0].mxu0 %v487
      %v595 = vpop.f32.mrb[0].mxu0
      %v596 = vadd.f32 0.0, %v595
      %v597 = vpop.f32.mrb[0].mxu0
      %v598 = vpop.f32.mrb[0].mxu0
      %v599 = vadd.f32 0.0, %v598
      %v600 = vpop.f32.mrb[0].mxu0
      %601 = vmatprep.mubr.bf16.mxu0 0
      %602 = vmatmul.mubr.bf16.gmra.mrb[0].mxu0 %v490
      %v603 = vpop.f32.mrb[0].mxu0
      %v604 = vadd.f32 0.0, %v603
      %v605 = vpop.f32.mrb[0].mxu0
      %v606 = vpop.f32.mrb[0].mxu0
      %v607 = vadd.f32 0.0, %v606
      %v608 = vpop.f32.mrb[0].mxu0
      %609 = vmatprep.mubr.bf16.mxu0 0
      %610 = vmatmul.mubr.bf16.gmra.mrb[0].mxu0 %v493
      %v611 = vpop.f32.mrb[0].mxu0
      %v612 = vadd.f32 0.0, %v611
      %v613 = vpop.f32.mrb[0].mxu0
      %v614 = vpop.f32.mrb[0].mxu0
      %v615 = vadd.f32 0.0, %v614
      %v616 = vpop.f32.mrb[0].mxu0
      %617 = vmatprep.mubr.bf16.mxu0 0
      %618 = vmatmul.mubr.bf16.gmra.mrb[0].mxu0 %v496
      %v619 = vpop.f32.mrb[0].mxu0
      %v620 = vadd.f32 0.0, %v619
      %v621 = vpop.f32.mrb[0].mxu0
      %v622 = vpop.f32.mrb[0].mxu0
      %v623 = vadd.f32 0.0, %v622
      %v624 = vpop.f32.mrb[0].mxu0
      %625 = vmatprep.mubr.bf16.mxu0 0
      %626 = vmatmul.mubr.bf16.gmra.mrb[0].mxu0 %v499
      %v627 = vpop.f32.mrb[0].mxu0
      %v628 = vadd.f32 0.0, %v627
      %v629 = vpop.f32.mrb[0].mxu0
      %v630 = vpop.f32.mrb[0].mxu0
      %v631 = vadd.f32 0.0, %v630
      %v632 = vpop.f32.mrb[0].mxu0
      %633 = vmatprep.mubr.bf16.mxu0 0
      %634 = vmatmul.mubr.bf16.gmra.mrb[0].mxu0 %v502
      %v635 = vpop.f32.mrb[0].mxu0
      %v636 = vadd.f32 0.0, %v635
      %v637 = vpop.f32.mrb[0].mxu0
      %v638 = vpop.f32.mrb[0].mxu0
      %v639 = vadd.f32 0.0, %v638
      %v640 = vpop.f32.mrb[0].mxu0
      %641 = vmatprep.mubr.bf16.mxu0 0
      %642 = vmatmul.mubr.bf16.gmra.mrb[0].mxu0 %v505
      %v643 = vpop.f32.mrb[0].mxu0
      %v644 = vadd.f32 0.0, %v643
      %v645 = vpop.f32.mrb[0].mxu0
      %v646 = vpop.f32.mrb[0].mxu0
      %v647 = vadd.f32 0.0, %v646
      %v648 = vpop.f32.mrb[0].mxu0
      %649 = vmatprep.mubr.bf16.mxu0 0
      %650 = vmatmul.mubr.bf16.gmra.mrb[0].mxu0 %v508
      %v651 = vpop.f32.mrb[0].mxu0
      %v652 = vadd.f32 0.0, %v651
      %v653 = vpop.f32.mrb[0].mxu0
      %v654 = vpop.f32.mrb[0].mxu0
      %v655 = vadd.f32 0.0, %v654
      %v656 = vpop.f32.mrb[0].mxu0
      %657 = vmatprep.mubr.bf16.mxu0 0
      %658 = vmatmul.mubr.bf16.gmra.mrb[0].mxu0 %v511
      %v659 = vpop.f32.mrb[0].mxu0
      %v660 = vadd.f32 0.0, %v659
      %v661 = vpop.f32.mrb[0].mxu0
      %v662 = vpop.f32.mrb[0].mxu0
      %v663 = vadd.f32 0.0, %v662
      %v664 = vpop.f32.mrb[0].mxu0
      %665 = vmatprep.mubr.bf16.mxu0 0
      %666 = vmatmul.mubr.bf16.gmra.mrb[0].mxu0 %v514
      %v667 = vpop.f32.mrb[0].mxu0
      %v668 = vadd.f32 0.0, %v667
      %v669 = vpop.f32.mrb[0].mxu0
      %v670 = vpop.f32.mrb[0].mxu0
      %v671 = vadd.f32 0.0, %v670
      %v672 = vpop.f32.mrb[0].mxu0
      %673 = vmatprep.mubr.bf16.mxu0 0
      %674 = vmatmul.mubr.bf16.gmra.mrb[0].mxu0 %v517
      %v675 = vpop.f32.mrb[0].mxu0
      %v676 = vadd.f32 0.0, %v675
      %v677 = vpop.f32.mrb[0].mxu0
      %v678 = vpop.f32.mrb[0].mxu0
      %v679 = vadd.f32 0.0, %v678
      %v680 = vpop.f32.mrb[0].mxu0
      %681 = vmatprep.mubr.bf16.mxu0 0
      %682 = vmatmul.mubr.bf16.gmra.mrb[0].mxu0 %v520
      %v683 = vpop.f32.mrb[0].mxu0
      %v684 = vadd.f32 0.0, %v683
      %v685 = vpop.f32.mrb[0].mxu0
      %v686 = vpop.f32.mrb[0].mxu0
      %v687 = vadd.f32 0.0, %v686
      %v688 = vpop.f32.mrb[0].mxu0
      %689 = vdwg.mxu0
      %v690 = vld [vmem:[%s301] sm:$0xf]
      %v691 = vld [vmem:[%s301 + $0x4] sm:$0xf]
      %v692 = vld [vmem:[%s301 + $0x8] sm:$0xf]
      %v693 = vld [vmem:[%s301 + $0xc] sm:$0xf]
      %v694 = vld [vmem:[%s301 + $0x10] sm:$0xf]
      %v695 = vld [vmem:[%s301 + $0x14] sm:$0xf]
      %v696 = vld [vmem:[%s301 + $0x18] sm:$0xf]
      %v697 = vld [vmem:[%s301 + $0x1c] sm:$0xf]
      %v698 = vld [vmem:[%s301 + $0x20] sm:$0xf]
      %v699 = vld [vmem:[%s301 + $0x24] sm:$0xf]
      %v700 = vld [vmem:[%s301 + $0x28] sm:$0xf]
      %v701 = vld [vmem:[%s301 + $0x2c] sm:$0xf]
      %v702 = vld [vmem:[%s301 + $0x30] sm:$0xf]
      %v703 = vld [vmem:[%s301 + $0x34] sm:$0xf]
      %v704 = vld [vmem:[%s301 + $0x38] sm:$0xf]
      %v705 = vld [vmem:[%s301 + $0x3c] sm:$0xf]
      %v706 = vld [vmem:[%s301 + $0x40] sm:$0xf]
      %v707 = vld [vmem:[%s301 + $0x44] sm:$0xf]
      %v708 = vld [vmem:[%s301 + $0x48] sm:$0xf]
      %v709 = vld [vmem:[%s301 + $0x4c] sm:$0xf]
      %v710 = vld [vmem:[%s301 + $0x50] sm:$0xf]
      %v711 = vld [vmem:[%s301 + $0x54] sm:$0xf]
      %v712 = vld [vmem:[%s301 + $0x58] sm:$0xf]
      %v713 = vld [vmem:[%s301 + $0x5c] sm:$0xf]
      %v714 = vld [vmem:[%s301 + $0x60] sm:$0xf]
      %v715 = vld [vmem:[%s301 + $0x64] sm:$0xf]
      %v716 = vld [vmem:[%s301 + $0x68] sm:$0xf]
      %v717 = vld [vmem:[%s301 + $0x6c] sm:$0xf]
      %v718 = vld [vmem:[%s301 + $0x70] sm:$0xf]
      %v719 = vld [vmem:[%s301 + $0x74] sm:$0xf]
      %v720 = vld [vmem:[%s301 + $0x78] sm:$0xf]
      %v721 = vld [vmem:[%s301 + $0x7c] sm:$0xf]
      %v754 = vunpack.c.l.b16 %v690
      %v755 = vunpack.c.l.b16 %v691
      %v756 = vunpack.c.l.b16 %v692
      %v757 = vunpack.c.l.b16 %v693
      %v758 = vunpack.c.l.b16 %v694
      %v759 = vunpack.c.l.b16 %v695
      %v760 = vunpack.c.l.b16 %v696
      %v761 = vunpack.c.l.b16 %v697
      %v762 = vunpack.c.l.b16 %v698
      %v763 = vunpack.c.l.b16 %v699
      %v764 = vunpack.c.l.b16 %v700
      %v765 = vunpack.c.l.b16 %v701
      %v766 = vunpack.c.l.b16 %v702
      %v767 = vunpack.c.l.b16 %v703
      %v768 = vunpack.c.l.b16 %v704
      %v769 = vunpack.c.l.b16 %v705
      %v770 = vunpack.c.l.b16 %v706
      %v771 = vunpack.c.l.b16 %v707
      %v772 = vunpack.c.l.b16 %v708
      %v773 = vunpack.c.l.b16 %v709
      %v774 = vunpack.c.l.b16 %v710
      %v775 = vunpack.c.l.b16 %v711
      %v776 = vunpack.c.l.b16 %v712
      %v777 = vunpack.c.l.b16 %v713
      %v778 = vunpack.c.l.b16 %v714
      %v779 = vunpack.c.l.b16 %v715
      %v780 = vunpack.c.l.b16 %v716
      %v781 = vunpack.c.l.b16 %v717
      %v782 = vunpack.c.l.b16 %v718
      %v783 = vunpack.c.l.b16 %v719
      %v784 = vunpack.c.l.b16 %v720
      %v785 = vunpack.c.l.b16 %v721
      %v786 = vpack.c.b16 %v755, %v754
      %v787 = vpack.c.b16 %v757, %v756
      %v788 = vpack.c.b16 %v759, %v758
      %v789 = vpack.c.b16 %v761, %v760
      %v790 = vpack.c.b16 %v763, %v762
      %v791 = vpack.c.b16 %v765, %v764
      %v792 = vpack.c.b16 %v767, %v766
      %v793 = vpack.c.b16 %v769, %v768
      %v794 = vpack.c.b16 %v771, %v770
      %v795 = vpack.c.b16 %v773, %v772
      %v796 = vpack.c.b16 %v775, %v774
      %v797 = vpack.c.b16 %v777, %v776
      %v798 = vpack.c.b16 %v779, %v778
      %v799 = vpack.c.b16 %v781, %v780
      %v800 = vpack.c.b16 %v783, %v782
      %v801 = vpack.c.b16 %v785, %v784
      %v803 = vsel %vm473, %v786, 0
      %v806 = vsel %vm473, %v787, 0
      %v809 = vsel %vm473, %v788, 0
      %v812 = vsel %vm473, %v789, 0
      %v815 = vsel %vm473, %v790, 0
      %v818 = vsel %vm473, %v791, 0
      %v821 = vsel %vm473, %v792, 0
      %v824 = vsel %vm473, %v793, 0
      %v827 = vsel %vm473, %v794, 0
      %v830 = vsel %vm473, %v795, 0
      %v833 = vsel %vm473, %v796, 0
      %v836 = vsel %vm473, %v797, 0
      %v839 = vsel %vm473, %v798, 0
      %v842 = vsel %vm473, %v799, 0
      %v845 = vsel %vm473, %v800, 0
      %v848 = vsel %vm473, %v801, 0
      %850 = vmatprep.subr.bf16.mxu0 0
      %851 = vmatpush1.bf16.msra.mxu0 %v464
      %852 = vmatprep.subr.bf16.mxu0 0
      %853 = vmatpush1.bf16.msra.mxu0 %v465
      %854 = vmatprep.subr.bf16.mxu0 0
      %855 = vmatpush1.bf16.msra.mxu0 %v466
      %856 = vmatprep.subr.bf16.mxu0 0
      %857 = vmatpush1.bf16.msra.mxu0 %v467
      %858 = vmatprep.subr.bf16.mxu0 0
      %859 = vmatpush1.bf16.msra.mxu0 %v527
      %860 = vmatprep.subr.bf16.mxu0 0
      %861 = vmatpush1.bf16.msra.mxu0 0
      %862 = vmatprep.subr.bf16.mxu0 0
      %863 = vmatpush1.bf16.msra.mxu0 0
      %864 = vmatprep.subr.bf16.mxu0 0
      %865 = vmatpush1.bf16.msra.mxu0 0
      %866 = vmatprep.subr.bf16.mxu0 0
      %867 = vmatpush1.bf16.msra.mxu0 0
      %868 = vmatprep.subr.bf16.mxu0 0
      %869 = vmatpush1.bf16.msra.mxu0 0
      %870 = vmatprep.subr.bf16.mxu0 0
      %871 = vmatpush1.bf16.msra.mxu0 0
      %872 = vmatprep.subr.bf16.mxu0 0
      %873 = vmatpush1.bf16.msra.mxu0 0
      %874 = vmatprep.subr.bf16.mxu0 0
      %875 = vmatpush1.bf16.msra.mxu0 0
      %876 = vmatprep.subr.bf16.mxu0 0
      %877 = vmatpush1.bf16.msra.mxu0 0
      %878 = vmatprep.subr.bf16.mxu0 0
      %879 = vmatpush1.bf16.msra.mxu0 0
      %880 = vmatprep.subr.bf16.mxu0 0
      %881 = vmatpush1.bf16.msra.mxu0 0
      %882 = vmatprep.mubr.bf16.mxu0 0
      %883 = vmatmul.mubr.bf16.gmra.mrb[0].mxu0 %v803
      %v884 = vpop.f32.mrb[0].mxu0
      %v885 = vadd.f32 0.0, %v884
      %v886 = vpop.f32.mrb[0].mxu0
      %v887 = vpop.f32.mrb[0].mxu0
      %v888 = vadd.f32 0.0, %v887
      %v889 = vpop.f32.mrb[0].mxu0
      %890 = vmatprep.mubr.bf16.mxu0 0
      %891 = vmatmul.mubr.bf16.gmra.mrb[0].mxu0 %v806
      %v892 = vpop.f32.mrb[0].mxu0
      %v893 = vadd.f32 0.0, %v892
      %v894 = vpop.f32.mrb[0].mxu0
      %v895 = vpop.f32.mrb[0].mxu0
      %v896 = vadd.f32 0.0, %v895
      %v897 = vpop.f32.mrb[0].mxu0
      %898 = vmatprep.mubr.bf16.mxu0 0
      %899 = vmatmul.mubr.bf16.gmra.mrb[0].mxu0 %v809
      %v900 = vpop.f32.mrb[0].mxu0
      %v901 = vadd.f32 0.0, %v900
      %v902 = vpop.f32.mrb[0].mxu0
      %v903 = vpop.f32.mrb[0].mxu0
      %v904 = vadd.f32 0.0, %v903
      %v905 = vpop.f32.mrb[0].mxu0
      %906 = vmatprep.mubr.bf16.mxu0 0
      %907 = vmatmul.mubr.bf16.gmra.mrb[0].mxu0 %v812
      %v908 = vpop.f32.mrb[0].mxu0
      %v909 = vadd.f32 0.0, %v908
      %v910 = vpop.f32.mrb[0].mxu0
      %v911 = vpop.f32.mrb[0].mxu0
      %v912 = vadd.f32 0.0, %v911
      %v913 = vpop.f32.mrb[0].mxu0
      %914 = vmatprep.mubr.bf16.mxu0 0
      %915 = vmatmul.mubr.bf16.gmra.mrb[0].mxu0 %v815
      %v916 = vpop.f32.mrb[0].mxu0
      %v917 = vadd.f32 0.0, %v916
      %v918 = vpop.f32.mrb[0].mxu0
      %v919 = vpop.f32.mrb[0].mxu0
      %v920 = vadd.f32 0.0, %v919
      %v921 = vpop.f32.mrb[0].mxu0
      %922 = vmatprep.mubr.bf16.mxu0 0
      %923 = vmatmul.mubr.bf16.gmra.mrb[0].mxu0 %v818
      %v924 = vpop.f32.mrb[0].mxu0
      %v925 = vadd.f32 0.0, %v924
      %v926 = vpop.f32.mrb[0].mxu0
      %v927 = vpop.f32.mrb[0].mxu0
      %v928 = vadd.f32 0.0, %v927
      %v929 = vpop.f32.mrb[0].mxu0
      %930 = vmatprep.mubr.bf16.mxu0 0
      %931 = vmatmul.mubr.bf16.gmra.mrb[0].mxu0 %v821
      %v932 = vpop.f32.mrb[0].mxu0
      %v933 = vadd.f32 0.0, %v932
      %v934 = vpop.f32.mrb[0].mxu0
      %v935 = vpop.f32.mrb[0].mxu0
      %v936 = vadd.f32 0.0, %v935
      %v937 = vpop.f32.mrb[0].mxu0
      %938 = vmatprep.mubr.bf16.mxu0 0
      %939 = vmatmul.mubr.bf16.gmra.mrb[0].mxu0 %v824
      %v940 = vpop.f32.mrb[0].mxu0
      %v941 = vadd.f32 0.0, %v940
      %v942 = vpop.f32.mrb[0].mxu0
      %v943 = vpop.f32.mrb[0].mxu0
      %v944 = vadd.f32 0.0, %v943
      %v945 = vpop.f32.mrb[0].mxu0
      %946 = vmatprep.mubr.bf16.mxu0 0
      %947 = vmatmul.mubr.bf16.gmra.mrb[0].mxu0 %v827
      %v948 = vpop.f32.mrb[0].mxu0
      %v949 = vadd.f32 0.0, %v948
      %v950 = vpop.f32.mrb[0].mxu0
      %v951 = vpop.f32.mrb[0].mxu0
      %v952 = vadd.f32 0.0, %v951
      %v953 = vpop.f32.mrb[0].mxu0
      %954 = vmatprep.mubr.bf16.mxu0 0
      %955 = vmatmul.mubr.bf16.gmra.mrb[0].mxu0 %v830
      %v956 = vpop.f32.mrb[0].mxu0
      %v957 = vadd.f32 0.0, %v956
      %v958 = vpop.f32.mrb[0].mxu0
      %v959 = vpop.f32.mrb[0].mxu0
      %v960 = vadd.f32 0.0, %v959
      %v961 = vpop.f32.mrb[0].mxu0
      %962 = vmatprep.mubr.bf16.mxu0 0
      %963 = vmatmul.mubr.bf16.gmra.mrb[0].mxu0 %v833
      %v964 = vpop.f32.mrb[0].mxu0
      %v965 = vadd.f32 0.0, %v964
      %v966 = vpop.f32.mrb[0].mxu0
      %v967 = vpop.f32.mrb[0].mxu0
      %v968 = vadd.f32 0.0, %v967
      %v969 = vpop.f32.mrb[0].mxu0
      %970 = vmatprep.mubr.bf16.mxu0 0
      %971 = vmatmul.mubr.bf16.gmra.mrb[0].mxu0 %v836
      %v972 = vpop.f32.mrb[0].mxu0
      %v973 = vadd.f32 0.0, %v972
      %v974 = vpop.f32.mrb[0].mxu0
      %v975 = vpop.f32.mrb[0].mxu0
      %v976 = vadd.f32 0.0, %v975
      %v977 = vpop.f32.mrb[0].mxu0
      %978 = vmatprep.mubr.bf16.mxu0 0
      %979 = vmatmul.mubr.bf16.gmra.mrb[0].mxu0 %v839
      %v980 = vpop.f32.mrb[0].mxu0
      %v981 = vadd.f32 0.0, %v980
      %v982 = vpop.f32.mrb[0].mxu0
      %v983 = vpop.f32.mrb[0].mxu0
      %v984 = vadd.f32 0.0, %v983
      %v985 = vpop.f32.mrb[0].mxu0
      %986 = vmatprep.mubr.bf16.mxu0 0
      %987 = vmatmul.mubr.bf16.gmra.mrb[0].mxu0 %v842
      %v988 = vpop.f32.mrb[0].mxu0
      %v989 = vadd.f32 0.0, %v988
      %v990 = vpop.f32.mrb[0].mxu0
      %v991 = vpop.f32.mrb[0].mxu0
      %v992 = vadd.f32 0.0, %v991
      %v993 = vpop.f32.mrb[0].mxu0
      %994 = vmatprep.mubr.bf16.mxu0 0
      %995 = vmatmul.mubr.bf16.gmra.mrb[0].mxu0 %v845
      %v996 = vpop.f32.mrb[0].mxu0
      %v997 = vadd.f32 0.0, %v996
      %v998 = vpop.f32.mrb[0].mxu0
      %v999 = vpop.f32.mrb[0].mxu0
      %v1000 = vadd.f32 0.0, %v999
      %v1001 = vpop.f32.mrb[0].mxu0
      %1002 = vmatprep.mubr.bf16.mxu0 0
      %1003 = vmatmul.mubr.bf16.gmra.mrb[0].mxu0 %v848
      %v1004 = vpop.f32.mrb[0].mxu0
      %v1005 = vadd.f32 0.0, %v1004
      %v1006 = vpop.f32.mrb[0].mxu0
      %v1007 = vpop.f32.mrb[0].mxu0
      %v1008 = vadd.f32 0.0, %v1007
      %v1009 = vpop.f32.mrb[0].mxu0
      %1010 = vdwg.mxu0
      %v1011 = vmax.f32 %v564, %v885
      %v1012 = vmax.f32 %v567, %v888
      %v1013 = vmax.f32 %v572, %v893
      %v1014 = vmax.f32 %v575, %v896
      %v1015 = vmax.f32 %v580, %v901
      %v1016 = vmax.f32 %v583, %v904
      %v1017 = vmax.f32 %v588, %v909
      %v1018 = vmax.f32 %v591, %v912
      %v1019 = vmax.f32 %v596, %v917
      %v1020 = vmax.f32 %v599, %v920
      %v1021 = vmax.f32 %v604, %v925
      %v1022 = vmax.f32 %v607, %v928
      %v1023 = vmax.f32 %v612, %v933
      %v1024 = vmax.f32 %v615, %v936
      %v1025 = vmax.f32 %v620, %v941
      %v1026 = vmax.f32 %v623, %v944
      %v1027 = vmax.f32 %v628, %v949
      %v1028 = vmax.f32 %v631, %v952
      %v1029 = vmax.f32 %v636, %v957
      %v1030 = vmax.f32 %v639, %v960
      %v1031 = vmax.f32 %v644, %v965
      %v1032 = vmax.f32 %v647, %v968
      %v1033 = vmax.f32 %v652, %v973
      %v1034 = vmax.f32 %v655, %v976
      %v1035 = vmax.f32 %v660, %v981
      %v1036 = vmax.f32 %v663, %v984
      %v1037 = vmax.f32 %v668, %v989
      %v1038 = vmax.f32 %v671, %v992
      %v1039 = vmax.f32 %v676, %v997
      %v1040 = vmax.f32 %v679, %v1000
      %v1041 = vmax.f32 %v684, %v1005
      %v1042 = vmax.f32 %v687, %v1008
      %v1043 = vld [vmem:[%s307] sm:$0xf]
      %v1044 = vld [vmem:[%s307 + $0x4] sm:$0xf]
      %v1045 = vld [vmem:[%s307 + $0x8] sm:$0xf]
      %v1046 = vld [vmem:[%s307 + $0xc] sm:$0xf]
      %v1047 = vld [vmem:[%s307 + $0x10] sm:$0xf]
      %v1048 = vld [vmem:[%s307 + $0x14] sm:$0xf]
      %v1049 = vld [vmem:[%s307 + $0x18] sm:$0xf]
      %v1050 = vld [vmem:[%s307 + $0x1c] sm:$0xf]
      %v1051 = vld [vmem:[%s307 + $0x20] sm:$0xf]
      %v1052 = vld [vmem:[%s307 + $0x24] sm:$0xf]
      %v1053 = vld [vmem:[%s307 + $0x28] sm:$0xf]
      %v1054 = vld [vmem:[%s307 + $0x2c] sm:$0xf]
      %v1055 = vld [vmem:[%s307 + $0x30] sm:$0xf]
      %v1056 = vld [vmem:[%s307 + $0x34] sm:$0xf]
      %v1057 = vld [vmem:[%s307 + $0x38] sm:$0xf]
      %v1058 = vld [vmem:[%s307 + $0x3c] sm:$0xf]
      %v1059 = vld [vmem:[%s307 + $0x40] sm:$0xf]
      %v1060 = vld [vmem:[%s307 + $0x44] sm:$0xf]
      %v1061 = vld [vmem:[%s307 + $0x48] sm:$0xf]
      %v1062 = vld [vmem:[%s307 + $0x4c] sm:$0xf]
      %v1063 = vld [vmem:[%s307 + $0x50] sm:$0xf]
      %v1064 = vld [vmem:[%s307 + $0x54] sm:$0xf]
      %v1065 = vld [vmem:[%s307 + $0x58] sm:$0xf]
      %v1066 = vld [vmem:[%s307 + $0x5c] sm:$0xf]
      %v1067 = vld [vmem:[%s307 + $0x60] sm:$0xf]
      %v1068 = vld [vmem:[%s307 + $0x64] sm:$0xf]
      %v1069 = vld [vmem:[%s307 + $0x68] sm:$0xf]
      %v1070 = vld [vmem:[%s307 + $0x6c] sm:$0xf]
      %v1071 = vld [vmem:[%s307 + $0x70] sm:$0xf]
      %v1072 = vld [vmem:[%s307 + $0x74] sm:$0xf]
      %v1073 = vld [vmem:[%s307 + $0x78] sm:$0xf]
      %v1074 = vld [vmem:[%s307 + $0x7c] sm:$0xf]
      %v1107 = vunpack.c.l.b16 %v1043
      %v1108 = vunpack.c.l.b16 %v1044
      %v1109 = vunpack.c.l.b16 %v1045
      %v1110 = vunpack.c.l.b16 %v1046
      %v1111 = vunpack.c.l.b16 %v1047
      %v1112 = vunpack.c.l.b16 %v1048
      %v1113 = vunpack.c.l.b16 %v1049
      %v1114 = vunpack.c.l.b16 %v1050
      %v1115 = vunpack.c.l.b16 %v1051
      %v1116 = vunpack.c.l.b16 %v1052
      %v1117 = vunpack.c.l.b16 %v1053
      %v1118 = vunpack.c.l.b16 %v1054
      %v1119 = vunpack.c.l.b16 %v1055
      %v1120 = vunpack.c.l.b16 %v1056
      %v1121 = vunpack.c.l.b16 %v1057
      %v1122 = vunpack.c.l.b16 %v1058
      %v1123 = vunpack.c.l.b16 %v1059
      %v1124 = vunpack.c.l.b16 %v1060
      %v1125 = vunpack.c.l.b16 %v1061
      %v1126 = vunpack.c.l.b16 %v1062
      %v1127 = vunpack.c.l.b16 %v1063
      %v1128 = vunpack.c.l.b16 %v1064
      %v1129 = vunpack.c.l.b16 %v1065
      %v1130 = vunpack.c.l.b16 %v1066
      %v1131 = vunpack.c.l.b16 %v1067
      %v1132 = vunpack.c.l.b16 %v1068
      %v1133 = vunpack.c.l.b16 %v1069
      %v1134 = vunpack.c.l.b16 %v1070
      %v1135 = vunpack.c.l.b16 %v1071
      %v1136 = vunpack.c.l.b16 %v1072
      %v1137 = vunpack.c.l.b16 %v1073
      %v1138 = vunpack.c.l.b16 %v1074
      %v1139 = vpack.c.b16 %v1108, %v1107
      %v1140 = vpack.c.b16 %v1110, %v1109
      %v1141 = vpack.c.b16 %v1112, %v1111
      %v1142 = vpack.c.b16 %v1114, %v1113
      %v1143 = vpack.c.b16 %v1116, %v1115
      %v1144 = vpack.c.b16 %v1118, %v1117
      %v1145 = vpack.c.b16 %v1120, %v1119
      %v1146 = vpack.c.b16 %v1122, %v1121
      %v1147 = vpack.c.b16 %v1124, %v1123
      %v1148 = vpack.c.b16 %v1126, %v1125
      %v1149 = vpack.c.b16 %v1128, %v1127
      %v1150 = vpack.c.b16 %v1130, %v1129
      %v1151 = vpack.c.b16 %v1132, %v1131
      %v1152 = vpack.c.b16 %v1134, %v1133
      %v1153 = vpack.c.b16 %v1136, %v1135
      %v1154 = vpack.c.b16 %v1138, %v1137
      %v1156 = vsel %vm473, %v1139, 0
      %v1159 = vsel %vm473, %v1140, 0
      %v1162 = vsel %vm473, %v1141, 0
      %v1165 = vsel %vm473, %v1142, 0
      %v1168 = vsel %vm473, %v1143, 0
      %v1171 = vsel %vm473, %v1144, 0
      %v1174 = vsel %vm473, %v1145, 0
      %v1177 = vsel %vm473, %v1146, 0
      %v1180 = vsel %vm473, %v1147, 0
      %v1183 = vsel %vm473, %v1148, 0
      %v1186 = vsel %vm473, %v1149, 0
      %v1189 = vsel %vm473, %v1150, 0
      %v1192 = vsel %vm473, %v1151, 0
      %v1195 = vsel %vm473, %v1152, 0
      %v1198 = vsel %vm473, %v1153, 0
      %v1201 = vsel %vm473, %v1154, 0
      %1203 = vmatprep.subr.bf16.mxu0 0
      %1204 = vmatpush1.bf16.msra.mxu0 %v464
      %1205 = vmatprep.subr.bf16.mxu0 0
      %1206 = vmatpush1.bf16.msra.mxu0 %v465
      %1207 = vmatprep.subr.bf16.mxu0 0
      %1208 = vmatpush1.bf16.msra.mxu0 %v466
      %1209 = vmatprep.subr.bf16.mxu0 0
      %1210 = vmatpush1.bf16.msra.mxu0 %v467
      %1211 = vmatprep.subr.bf16.mxu0 0
      %1212 = vmatpush1.bf16.msra.mxu0 %v527
      %1213 = vmatprep.subr.bf16.mxu0 0
      %1214 = vmatpush1.bf16.msra.mxu0 0
      %1215 = vmatprep.subr.bf16.mxu0 0
      %1216 = vmatpush1.bf16.msra.mxu0 0
      %1217 = vmatprep.subr.bf16.mxu0 0
      %1218 = vmatpush1.bf16.msra.mxu0 0
      %1219 = vmatprep.subr.bf16.mxu0 0
      %1220 = vmatpush1.bf16.msra.mxu0 0
      %1221 = vmatprep.subr.bf16.mxu0 0
      %1222 = vmatpush1.bf16.msra.mxu0 0
      %1223 = vmatprep.subr.bf16.mxu0 0
      %1224 = vmatpush1.bf16.msra.mxu0 0
      %1225 = vmatprep.subr.bf16.mxu0 0
      %1226 = vmatpush1.bf16.msra.mxu0 0
      %1227 = vmatprep.subr.bf16.mxu0 0
      %1228 = vmatpush1.bf16.msra.mxu0 0
      %1229 = vmatprep.subr.bf16.mxu0 0
      %1230 = vmatpush1.bf16.msra.mxu0 0
      %1231 = vmatprep.subr.bf16.mxu0 0
      %1232 = vmatpush1.bf16.msra.mxu0 0
      %1233 = vmatprep.subr.bf16.mxu0 0
      %1234 = vmatpush1.bf16.msra.mxu0 0
      %1235 = vmatprep.mubr.bf16.mxu0 0
      %1236 = vmatmul.mubr.bf16.gmra.mrb[0].mxu0 %v1156
      %v1237 = vpop.f32.mrb[0].mxu0
      %v1238 = vadd.f32 0.0, %v1237
      %v1239 = vpop.f32.mrb[0].mxu0
      %v1240 = vpop.f32.mrb[0].mxu0
      %v1241 = vadd.f32 0.0, %v1240
      %v1242 = vpop.f32.mrb[0].mxu0
      %1243 = vmatprep.mubr.bf16.mxu0 0
      %1244 = vmatmul.mubr.bf16.gmra.mrb[0].mxu0 %v1159
      %v1245 = vpop.f32.mrb[0].mxu0
      %v1246 = vadd.f32 0.0, %v1245
      %v1247 = vpop.f32.mrb[0].mxu0
      %v1248 = vpop.f32.mrb[0].mxu0
      %v1249 = vadd.f32 0.0, %v1248
      %v1250 = vpop.f32.mrb[0].mxu0
      %1251 = vmatprep.mubr.bf16.mxu0 0
      %1252 = vmatmul.mubr.bf16.gmra.mrb[0].mxu0 %v1162
      %v1253 = vpop.f32.mrb[0].mxu0
      %v1254 = vadd.f32 0.0, %v1253
      %v1255 = vpop.f32.mrb[0].mxu0
      %v1256 = vpop.f32.mrb[0].mxu0
      %v1257 = vadd.f32 0.0, %v1256
      %v1258 = vpop.f32.mrb[0].mxu0
      %1259 = vmatprep.mubr.bf16.mxu0 0
      %1260 = vmatmul.mubr.bf16.gmra.mrb[0].mxu0 %v1165
      %v1261 = vpop.f32.mrb[0].mxu0
      %v1262 = vadd.f32 0.0, %v1261
      %v1263 = vpop.f32.mrb[0].mxu0
      %v1264 = vpop.f32.mrb[0].mxu0
      %v1265 = vadd.f32 0.0, %v1264
      %v1266 = vpop.f32.mrb[0].mxu0
      %1267 = vmatprep.mubr.bf16.mxu0 0
      %1268 = vmatmul.mubr.bf16.gmra.mrb[0].mxu0 %v1168
      %v1269 = vpop.f32.mrb[0].mxu0
      %v1270 = vadd.f32 0.0, %v1269
      %v1271 = vpop.f32.mrb[0].mxu0
      %v1272 = vpop.f32.mrb[0].mxu0
      %v1273 = vadd.f32 0.0, %v1272
      %v1274 = vpop.f32.mrb[0].mxu0
      %1275 = vmatprep.mubr.bf16.mxu0 0
      %1276 = vmatmul.mubr.bf16.gmra.mrb[0].mxu0 %v1171
      %v1277 = vpop.f32.mrb[0].mxu0
      %v1278 = vadd.f32 0.0, %v1277
      %v1279 = vpop.f32.mrb[0].mxu0
      %v1280 = vpop.f32.mrb[0].mxu0
      %v1281 = vadd.f32 0.0, %v1280
      %v1282 = vpop.f32.mrb[0].mxu0
      %1283 = vmatprep.mubr.bf16.mxu0 0
      %1284 = vmatmul.mubr.bf16.gmra.mrb[0].mxu0 %v1174
      %v1285 = vpop.f32.mrb[0].mxu0
      %v1286 = vadd.f32 0.0, %v1285
      %v1287 = vpop.f32.mrb[0].mxu0
      %v1288 = vpop.f32.mrb[0].mxu0
      %v1289 = vadd.f32 0.0, %v1288
      %v1290 = vpop.f32.mrb[0].mxu0
      %1291 = vmatprep.mubr.bf16.mxu0 0
      %1292 = vmatmul.mubr.bf16.gmra.mrb[0].mxu0 %v1177
      %v1293 = vpop.f32.mrb[0].mxu0
      %v1294 = vadd.f32 0.0, %v1293
      %v1295 = vpop.f32.mrb[0].mxu0
      %v1296 = vpop.f32.mrb[0].mxu0
      %v1297 = vadd.f32 0.0, %v1296
      %v1298 = vpop.f32.mrb[0].mxu0
      %1299 = vmatprep.mubr.bf16.mxu0 0
      %1300 = vmatmul.mubr.bf16.gmra.mrb[0].mxu0 %v1180
      %v1301 = vpop.f32.mrb[0].mxu0
      %v1302 = vadd.f32 0.0, %v1301
      %v1303 = vpop.f32.mrb[0].mxu0
      %v1304 = vpop.f32.mrb[0].mxu0
      %v1305 = vadd.f32 0.0, %v1304
      %v1306 = vpop.f32.mrb[0].mxu0
      %1307 = vmatprep.mubr.bf16.mxu0 0
      %1308 = vmatmul.mubr.bf16.gmra.mrb[0].mxu0 %v1183
      %v1309 = vpop.f32.mrb[0].mxu0
      %v1310 = vadd.f32 0.0, %v1309
      %v1311 = vpop.f32.mrb[0].mxu0
      %v1312 = vpop.f32.mrb[0].mxu0
      %v1313 = vadd.f32 0.0, %v1312
      %v1314 = vpop.f32.mrb[0].mxu0
      %1315 = vmatprep.mubr.bf16.mxu0 0
      %1316 = vmatmul.mubr.bf16.gmra.mrb[0].mxu0 %v1186
      %v1317 = vpop.f32.mrb[0].mxu0
      %v1318 = vadd.f32 0.0, %v1317
      %v1319 = vpop.f32.mrb[0].mxu0
      %v1320 = vpop.f32.mrb[0].mxu0
      %v1321 = vadd.f32 0.0, %v1320
      %v1322 = vpop.f32.mrb[0].mxu0
      %1323 = vmatprep.mubr.bf16.mxu0 0
      %1324 = vmatmul.mubr.bf16.gmra.mrb[0].mxu0 %v1189
      %v1325 = vpop.f32.mrb[0].mxu0
      %v1326 = vadd.f32 0.0, %v1325
      %v1327 = vpop.f32.mrb[0].mxu0
      %v1328 = vpop.f32.mrb[0].mxu0
      %v1329 = vadd.f32 0.0, %v1328
      %v1330 = vpop.f32.mrb[0].mxu0
      %1331 = vmatprep.mubr.bf16.mxu0 0
      %1332 = vmatmul.mubr.bf16.gmra.mrb[0].mxu0 %v1192
      %v1333 = vpop.f32.mrb[0].mxu0
      %v1334 = vadd.f32 0.0, %v1333
      %v1335 = vpop.f32.mrb[0].mxu0
      %v1336 = vpop.f32.mrb[0].mxu0
      %v1337 = vadd.f32 0.0, %v1336
      %v1338 = vpop.f32.mrb[0].mxu0
      %1339 = vmatprep.mubr.bf16.mxu0 0
      %1340 = vmatmul.mubr.bf16.gmra.mrb[0].mxu0 %v1195
      %v1341 = vpop.f32.mrb[0].mxu0
      %v1342 = vadd.f32 0.0, %v1341
      %v1343 = vpop.f32.mrb[0].mxu0
      %v1344 = vpop.f32.mrb[0].mxu0
      %v1345 = vadd.f32 0.0, %v1344
      %v1346 = vpop.f32.mrb[0].mxu0
      %1347 = vmatprep.mubr.bf16.mxu0 0
      %1348 = vmatmul.mubr.bf16.gmra.mrb[0].mxu0 %v1198
      %v1349 = vpop.f32.mrb[0].mxu0
      %v1350 = vadd.f32 0.0, %v1349
      %v1351 = vpop.f32.mrb[0].mxu0
      %v1352 = vpop.f32.mrb[0].mxu0
      %v1353 = vadd.f32 0.0, %v1352
      %v1354 = vpop.f32.mrb[0].mxu0
      %1355 = vmatprep.mubr.bf16.mxu0 0
      %1356 = vmatmul.mubr.bf16.gmra.mrb[0].mxu0 %v1201
      %v1357 = vpop.f32.mrb[0].mxu0
      %v1358 = vadd.f32 0.0, %v1357
      %v1359 = vpop.f32.mrb[0].mxu0
      %v1360 = vpop.f32.mrb[0].mxu0
      %v1361 = vadd.f32 0.0, %v1360
      %v1362 = vpop.f32.mrb[0].mxu0
      %1363 = vdwg.mxu0
      %v1364 = vld [vmem:[%s313] sm:$0xf]
      %v1365 = vld [vmem:[%s313 + $0x4] sm:$0xf]
      %v1366 = vld [vmem:[%s313 + $0x8] sm:$0xf]
      %v1367 = vld [vmem:[%s313 + $0xc] sm:$0xf]
      %v1368 = vld [vmem:[%s313 + $0x10] sm:$0xf]
      %v1369 = vld [vmem:[%s313 + $0x14] sm:$0xf]
      %v1370 = vld [vmem:[%s313 + $0x18] sm:$0xf]
      %v1371 = vld [vmem:[%s313 + $0x1c] sm:$0xf]
      %v1372 = vld [vmem:[%s313 + $0x20] sm:$0xf]
      %v1373 = vld [vmem:[%s313 + $0x24] sm:$0xf]
      %v1374 = vld [vmem:[%s313 + $0x28] sm:$0xf]
      %v1375 = vld [vmem:[%s313 + $0x2c] sm:$0xf]
      %v1376 = vld [vmem:[%s313 + $0x30] sm:$0xf]
      %v1377 = vld [vmem:[%s313 + $0x34] sm:$0xf]
      %v1378 = vld [vmem:[%s313 + $0x38] sm:$0xf]
      %v1379 = vld [vmem:[%s313 + $0x3c] sm:$0xf]
      %v1380 = vld [vmem:[%s313 + $0x40] sm:$0xf]
      %v1381 = vld [vmem:[%s313 + $0x44] sm:$0xf]
      %v1382 = vld [vmem:[%s313 + $0x48] sm:$0xf]
      %v1383 = vld [vmem:[%s313 + $0x4c] sm:$0xf]
      %v1384 = vld [vmem:[%s313 + $0x50] sm:$0xf]
      %v1385 = vld [vmem:[%s313 + $0x54] sm:$0xf]
      %v1386 = vld [vmem:[%s313 + $0x58] sm:$0xf]
      %v1387 = vld [vmem:[%s313 + $0x5c] sm:$0xf]
      %v1388 = vld [vmem:[%s313 + $0x60] sm:$0xf]
      %v1389 = vld [vmem:[%s313 + $0x64] sm:$0xf]
      %v1390 = vld [vmem:[%s313 + $0x68] sm:$0xf]
      %v1391 = vld [vmem:[%s313 + $0x6c] sm:$0xf]
      %v1392 = vld [vmem:[%s313 + $0x70] sm:$0xf]
      %v1393 = vld [vmem:[%s313 + $0x74] sm:$0xf]
      %v1394 = vld [vmem:[%s313 + $0x78] sm:$0xf]
      %v1395 = vld [vmem:[%s313 + $0x7c] sm:$0xf]
      %v1428 = vunpack.c.l.b16 %v1364
      %v1429 = vunpack.c.l.b16 %v1365
      %v1430 = vunpack.c.l.b16 %v1366
      %v1431 = vunpack.c.l.b16 %v1367
      %v1432 = vunpack.c.l.b16 %v1368
      %v1433 = vunpack.c.l.b16 %v1369
      %v1434 = vunpack.c.l.b16 %v1370
      %v1435 = vunpack.c.l.b16 %v1371
      %v1436 = vunpack.c.l.b16 %v1372
      %v1437 = vunpack.c.l.b16 %v1373
      %v1438 = vunpack.c.l.b16 %v1374
      %v1439 = vunpack.c.l.b16 %v1375
      %v1440 = vunpack.c.l.b16 %v1376
      %v1441 = vunpack.c.l.b16 %v1377
      %v1442 = vunpack.c.l.b16 %v1378
      %v1443 = vunpack.c.l.b16 %v1379
      %v1444 = vunpack.c.l.b16 %v1380
      %v1445 = vunpack.c.l.b16 %v1381
      %v1446 = vunpack.c.l.b16 %v1382
      %v1447 = vunpack.c.l.b16 %v1383
      %v1448 = vunpack.c.l.b16 %v1384
      %v1449 = vunpack.c.l.b16 %v1385
      %v1450 = vunpack.c.l.b16 %v1386
      %v1451 = vunpack.c.l.b16 %v1387
      %v1452 = vunpack.c.l.b16 %v1388
      %v1453 = vunpack.c.l.b16 %v1389
      %v1454 = vunpack.c.l.b16 %v1390
      %v1455 = vunpack.c.l.b16 %v1391
      %v1456 = vunpack.c.l.b16 %v1392
      %v1457 = vunpack.c.l.b16 %v1393
      %v1458 = vunpack.c.l.b16 %v1394
      %v1459 = vunpack.c.l.b16 %v1395
      %v1460 = vpack.c.b16 %v1429, %v1428
      %v1461 = vpack.c.b16 %v1431, %v1430
      %v1462 = vpack.c.b16 %v1433, %v1432
      %v1463 = vpack.c.b16 %v1435, %v1434
      %v1464 = vpack.c.b16 %v1437, %v1436
      %v1465 = vpack.c.b16 %v1439, %v1438
      %v1466 = vpack.c.b16 %v1441, %v1440
      %v1467 = vpack.c.b16 %v1443, %v1442
      %v1468 = vpack.c.b16 %v1445, %v1444
      %v1469 = vpack.c.b16 %v1447, %v1446
      %v1470 = vpack.c.b16 %v1449, %v1448
      %v1471 = vpack.c.b16 %v1451, %v1450
      %v1472 = vpack.c.b16 %v1453, %v1452
      %v1473 = vpack.c.b16 %v1455, %v1454
      %v1474 = vpack.c.b16 %v1457, %v1456
      %v1475 = vpack.c.b16 %v1459, %v1458
      %v1477 = vsel %vm473, %v1460, 0
      %v1480 = vsel %vm473, %v1461, 0
      %v1483 = vsel %vm473, %v1462, 0
      %v1486 = vsel %vm473, %v1463, 0
      %v1489 = vsel %vm473, %v1464, 0
      %v1492 = vsel %vm473, %v1465, 0
      %v1495 = vsel %vm473, %v1466, 0
      %v1498 = vsel %vm473, %v1467, 0
      %v1501 = vsel %vm473, %v1468, 0
      %v1504 = vsel %vm473, %v1469, 0
      %v1507 = vsel %vm473, %v1470, 0
      %v1510 = vsel %vm473, %v1471, 0
      %v1513 = vsel %vm473, %v1472, 0
      %v1516 = vsel %vm473, %v1473, 0
      %v1519 = vsel %vm473, %v1474, 0
      %v1522 = vsel %vm473, %v1475, 0
      %1524 = vmatprep.subr.bf16.mxu0 0
      %1525 = vmatpush1.bf16.msra.mxu0 %v464
      %1526 = vmatprep.subr.bf16.mxu0 0
      %1527 = vmatpush1.bf16.msra.mxu0 %v465
      %1528 = vmatprep.subr.bf16.mxu0 0
      %1529 = vmatpush1.bf16.msra.mxu0 %v466
      %1530 = vmatprep.subr.bf16.mxu0 0
      %1531 = vmatpush1.bf16.msra.mxu0 %v467
      %1532 = vmatprep.subr.bf16.mxu0 0
      %1533 = vmatpush1.bf16.msra.mxu0 %v527
      %1534 = vmatprep.subr.bf16.mxu0 0
      %1535 = vmatpush1.bf16.msra.mxu0 0
      %1536 = vmatprep.subr.bf16.mxu0 0
      %1537 = vmatpush1.bf16.msra.mxu0 0
      %1538 = vmatprep.subr.bf16.mxu0 0
      %1539 = vmatpush1.bf16.msra.mxu0 0
      %1540 = vmatprep.subr.bf16.mxu0 0
      %1541 = vmatpush1.bf16.msra.mxu0 0
      %1542 = vmatprep.subr.bf16.mxu0 0
      %1543 = vmatpush1.bf16.msra.mxu0 0
      %1544 = vmatprep.subr.bf16.mxu0 0
      %1545 = vmatpush1.bf16.msra.mxu0 0
      %1546 = vmatprep.subr.bf16.mxu0 0
      %1547 = vmatpush1.bf16.msra.mxu0 0
      %1548 = vmatprep.subr.bf16.mxu0 0
      %1549 = vmatpush1.bf16.msra.mxu0 0
      %1550 = vmatprep.subr.bf16.mxu0 0
      %1551 = vmatpush1.bf16.msra.mxu0 0
      %1552 = vmatprep.subr.bf16.mxu0 0
      %1553 = vmatpush1.bf16.msra.mxu0 0
      %1554 = vmatprep.subr.bf16.mxu0 0
      %1555 = vmatpush1.bf16.msra.mxu0 0
      %1556 = vmatprep.mubr.bf16.mxu0 0
      %1557 = vmatmul.mubr.bf16.gmra.mrb[0].mxu0 %v1477
      %v1558 = vpop.f32.mrb[0].mxu0
      %v1559 = vadd.f32 0.0, %v1558
      %v1560 = vpop.f32.mrb[0].mxu0
      %v1561 = vpop.f32.mrb[0].mxu0
      %v1562 = vadd.f32 0.0, %v1561
      %v1563 = vpop.f32.mrb[0].mxu0
      %1564 = vmatprep.mubr.bf16.mxu0 0
      %1565 = vmatmul.mubr.bf16.gmra.mrb[0].mxu0 %v1480
      %v1566 = vpop.f32.mrb[0].mxu0
      %v1567 = vadd.f32 0.0, %v1566
      %v1568 = vpop.f32.mrb[0].mxu0
      %v1569 = vpop.f32.mrb[0].mxu0
      %v1570 = vadd.f32 0.0, %v1569
      %v1571 = vpop.f32.mrb[0].mxu0
      %1572 = vmatprep.mubr.bf16.mxu0 0
      %1573 = vmatmul.mubr.bf16.gmra.mrb[0].mxu0 %v1483
      %v1574 = vpop.f32.mrb[0].mxu0
      %v1575 = vadd.f32 0.0, %v1574
      %v1576 = vpop.f32.mrb[0].mxu0
      %v1577 = vpop.f32.mrb[0].mxu0
      %v1578 = vadd.f32 0.0, %v1577
      %v1579 = vpop.f32.mrb[0].mxu0
      %1580 = vmatprep.mubr.bf16.mxu0 0
      %1581 = vmatmul.mubr.bf16.gmra.mrb[0].mxu0 %v1486
      %v1582 = vpop.f32.mrb[0].mxu0
      %v1583 = vadd.f32 0.0, %v1582
      %v1584 = vpop.f32.mrb[0].mxu0
      %v1585 = vpop.f32.mrb[0].mxu0
      %v1586 = vadd.f32 0.0, %v1585
      %v1587 = vpop.f32.mrb[0].mxu0
      %1588 = vmatprep.mubr.bf16.mxu0 0
      %1589 = vmatmul.mubr.bf16.gmra.mrb[0].mxu0 %v1489
      %v1590 = vpop.f32.mrb[0].mxu0
      %v1591 = vadd.f32 0.0, %v1590
      %v1592 = vpop.f32.mrb[0].mxu0
      %v1593 = vpop.f32.mrb[0].mxu0
      %v1594 = vadd.f32 0.0, %v1593
      %v1595 = vpop.f32.mrb[0].mxu0
      %1596 = vmatprep.mubr.bf16.mxu0 0
      %1597 = vmatmul.mubr.bf16.gmra.mrb[0].mxu0 %v1492
      %v1598 = vpop.f32.mrb[0].mxu0
      %v1599 = vadd.f32 0.0, %v1598
      %v1600 = vpop.f32.mrb[0].mxu0
      %v1601 = vpop.f32.mrb[0].mxu0
      %v1602 = vadd.f32 0.0, %v1601
      %v1603 = vpop.f32.mrb[0].mxu0
      %1604 = vmatprep.mubr.bf16.mxu0 0
      %1605 = vmatmul.mubr.bf16.gmra.mrb[0].mxu0 %v1495
      %v1606 = vpop.f32.mrb[0].mxu0
      %v1607 = vadd.f32 0.0, %v1606
      %v1608 = vpop.f32.mrb[0].mxu0
      %v1609 = vpop.f32.mrb[0].mxu0
      %v1610 = vadd.f32 0.0, %v1609
      %v1611 = vpop.f32.mrb[0].mxu0
      %1612 = vmatprep.mubr.bf16.mxu0 0
      %1613 = vmatmul.mubr.bf16.gmra.mrb[0].mxu0 %v1498
      %v1614 = vpop.f32.mrb[0].mxu0
      %v1615 = vadd.f32 0.0, %v1614
      %v1616 = vpop.f32.mrb[0].mxu0
      %v1617 = vpop.f32.mrb[0].mxu0
      %v1618 = vadd.f32 0.0, %v1617
      %v1619 = vpop.f32.mrb[0].mxu0
      %1620 = vmatprep.mubr.bf16.mxu0 0
      %1621 = vmatmul.mubr.bf16.gmra.mrb[0].mxu0 %v1501
      %v1622 = vpop.f32.mrb[0].mxu0
      %v1623 = vadd.f32 0.0, %v1622
      %v1624 = vpop.f32.mrb[0].mxu0
      %v1625 = vpop.f32.mrb[0].mxu0
      %v1626 = vadd.f32 0.0, %v1625
      %v1627 = vpop.f32.mrb[0].mxu0
      %1628 = vmatprep.mubr.bf16.mxu0 0
      %1629 = vmatmul.mubr.bf16.gmra.mrb[0].mxu0 %v1504
      %v1630 = vpop.f32.mrb[0].mxu0
      %v1631 = vadd.f32 0.0, %v1630
      %v1632 = vpop.f32.mrb[0].mxu0
      %v1633 = vpop.f32.mrb[0].mxu0
      %v1634 = vadd.f32 0.0, %v1633
      %v1635 = vpop.f32.mrb[0].mxu0
      %1636 = vmatprep.mubr.bf16.mxu0 0
      %1637 = vmatmul.mubr.bf16.gmra.mrb[0].mxu0 %v1507
      %v1638 = vpop.f32.mrb[0].mxu0
      %v1639 = vadd.f32 0.0, %v1638
      %v1640 = vpop.f32.mrb[0].mxu0
      %v1641 = vpop.f32.mrb[0].mxu0
      %v1642 = vadd.f32 0.0, %v1641
      %v1643 = vpop.f32.mrb[0].mxu0
      %1644 = vmatprep.mubr.bf16.mxu0 0
      %1645 = vmatmul.mubr.bf16.gmra.mrb[0].mxu0 %v1510
      %v1646 = vpop.f32.mrb[0].mxu0
      %v1647 = vadd.f32 0.0, %v1646
      %v1648 = vpop.f32.mrb[0].mxu0
      %v1649 = vpop.f32.mrb[0].mxu0
      %v1650 = vadd.f32 0.0, %v1649
      %v1651 = vpop.f32.mrb[0].mxu0
      %1652 = vmatprep.mubr.bf16.mxu0 0
      %1653 = vmatmul.mubr.bf16.gmra.mrb[0].mxu0 %v1513
      %v1654 = vpop.f32.mrb[0].mxu0
      %v1655 = vadd.f32 0.0, %v1654
      %v1656 = vpop.f32.mrb[0].mxu0
      %v1657 = vpop.f32.mrb[0].mxu0
      %v1658 = vadd.f32 0.0, %v1657
      %v1659 = vpop.f32.mrb[0].mxu0
      %1660 = vmatprep.mubr.bf16.mxu0 0
      %1661 = vmatmul.mubr.bf16.gmra.mrb[0].mxu0 %v1516
      %v1662 = vpop.f32.mrb[0].mxu0
      %v1663 = vadd.f32 0.0, %v1662
      %v1664 = vpop.f32.mrb[0].mxu0
      %v1665 = vpop.f32.mrb[0].mxu0
      %v1666 = vadd.f32 0.0, %v1665
      %v1667 = vpop.f32.mrb[0].mxu0
      %1668 = vmatprep.mubr.bf16.mxu0 0
      %1669 = vmatmul.mubr.bf16.gmra.mrb[0].mxu0 %v1519
      %v1670 = vpop.f32.mrb[0].mxu0
      %v1671 = vadd.f32 0.0, %v1670
      %v1672 = vpop.f32.mrb[0].mxu0
      %v1673 = vpop.f32.mrb[0].mxu0
      %v1674 = vadd.f32 0.0, %v1673
      %v1675 = vpop.f32.mrb[0].mxu0
      %1676 = vmatprep.mubr.bf16.mxu0 0
      %1677 = vmatmul.mubr.bf16.gmra.mrb[0].mxu0 %v1522
      %v1678 = vpop.f32.mrb[0].mxu0
      %v1679 = vadd.f32 0.0, %v1678
      %v1680 = vpop.f32.mrb[0].mxu0
      %v1681 = vpop.f32.mrb[0].mxu0
      %v1682 = vadd.f32 0.0, %v1681
      %v1683 = vpop.f32.mrb[0].mxu0
      %1684 = vdwg.mxu0
      %v1685 = vmax.f32 %v1238, %v1559
      %v1686 = vmax.f32 %v1241, %v1562
      %v1687 = vmax.f32 %v1246, %v1567
      %v1688 = vmax.f32 %v1249, %v1570
      %v1689 = vmax.f32 %v1254, %v1575
      %v1690 = vmax.f32 %v1257, %v1578
      %v1691 = vmax.f32 %v1262, %v1583
      %v1692 = vmax.f32 %v1265, %v1586
      %v1693 = vmax.f32 %v1270, %v1591
      %v1694 = vmax.f32 %v1273, %v1594
      %v1695 = vmax.f32 %v1278, %v1599
      %v1696 = vmax.f32 %v1281, %v1602
      %v1697 = vmax.f32 %v1286, %v1607
      %v1698 = vmax.f32 %v1289, %v1610
      %v1699 = vmax.f32 %v1294, %v1615
      %v1700 = vmax.f32 %v1297, %v1618
      %v1701 = vmax.f32 %v1302, %v1623
      %v1702 = vmax.f32 %v1305, %v1626
      %v1703 = vmax.f32 %v1310, %v1631
      %v1704 = vmax.f32 %v1313, %v1634
      %v1705 = vmax.f32 %v1318, %v1639
      %v1706 = vmax.f32 %v1321, %v1642
      %v1707 = vmax.f32 %v1326, %v1647
      %v1708 = vmax.f32 %v1329, %v1650
      %v1709 = vmax.f32 %v1334, %v1655
      %v1710 = vmax.f32 %v1337, %v1658
      %v1711 = vmax.f32 %v1342, %v1663
      %v1712 = vmax.f32 %v1345, %v1666
      %v1713 = vmax.f32 %v1350, %v1671
      %v1714 = vmax.f32 %v1353, %v1674
      %v1715 = vmax.f32 %v1358, %v1679
      %v1716 = vmax.f32 %v1361, %v1682
      %v1717 = vmax.f32 %v1011, %v1685
      %v1718 = vmax.f32 %v1012, %v1686
      %v1719 = vmax.f32 %v1013, %v1687
      %v1720 = vmax.f32 %v1014, %v1688
      %v1721 = vmax.f32 %v1015, %v1689
      %v1722 = vmax.f32 %v1016, %v1690
      %v1723 = vmax.f32 %v1017, %v1691
      %v1724 = vmax.f32 %v1018, %v1692
      %v1725 = vmax.f32 %v1019, %v1693
      %v1726 = vmax.f32 %v1020, %v1694
      %v1727 = vmax.f32 %v1021, %v1695
      %v1728 = vmax.f32 %v1022, %v1696
      %v1729 = vmax.f32 %v1023, %v1697
      %v1730 = vmax.f32 %v1024, %v1698
      %v1731 = vmax.f32 %v1025, %v1699
      %v1732 = vmax.f32 %v1026, %v1700
      %v1733 = vmax.f32 %v1027, %v1701
      %v1734 = vmax.f32 %v1028, %v1702
      %v1735 = vmax.f32 %v1029, %v1703
      %v1736 = vmax.f32 %v1030, %v1704
      %v1737 = vmax.f32 %v1031, %v1705
      %v1738 = vmax.f32 %v1032, %v1706
      %v1739 = vmax.f32 %v1033, %v1707
      %v1740 = vmax.f32 %v1034, %v1708
      %v1741 = vmax.f32 %v1035, %v1709
      %v1742 = vmax.f32 %v1036, %v1710
      %v1743 = vmax.f32 %v1037, %v1711
      %v1744 = vmax.f32 %v1038, %v1712
      %v1745 = vmax.f32 %v1039, %v1713
      %v1746 = vmax.f32 %v1040, %v1714
      %v1747 = vmax.f32 %v1041, %v1715
      %v1748 = vmax.f32 %v1042, %v1716
      %v1749 = vld [vmem:[%s5] sm:$0x1]
      %v1751 = vlaneseq
      %v1752 = vshrl.u32 %v1751, 7
      %v1753 = vsub.s32 0, %v1752
      %v1754 = vrot.slane %v1749, %v1753
      %v1756 = vadd.f32 %v1717, %v1754
      %v1757 = vadd.f32 %v1718, %v1754
      %v1758 = vadd.f32 %v1719, %v1754
      %v1759 = vadd.f32 %v1720, %v1754
      %v1760 = vadd.f32 %v1721, %v1754
      %v1761 = vadd.f32 %v1722, %v1754
      %v1762 = vadd.f32 %v1723, %v1754
      %v1763 = vadd.f32 %v1724, %v1754
      %v1764 = vadd.f32 %v1725, %v1754
      %v1765 = vadd.f32 %v1726, %v1754
      %v1766 = vadd.f32 %v1727, %v1754
      %v1767 = vadd.f32 %v1728, %v1754
      %v1768 = vadd.f32 %v1729, %v1754
      %v1769 = vadd.f32 %v1730, %v1754
      %v1770 = vadd.f32 %v1731, %v1754
      %v1771 = vadd.f32 %v1732, %v1754
      %v1772 = vadd.f32 %v1733, %v1754
      %v1773 = vadd.f32 %v1734, %v1754
      %v1774 = vadd.f32 %v1735, %v1754
      %v1775 = vadd.f32 %v1736, %v1754
      %v1776 = vadd.f32 %v1737, %v1754
      %v1777 = vadd.f32 %v1738, %v1754
      %v1778 = vadd.f32 %v1739, %v1754
      %v1779 = vadd.f32 %v1740, %v1754
      %v1780 = vadd.f32 %v1741, %v1754
      %v1781 = vadd.f32 %v1742, %v1754
      %v1782 = vadd.f32 %v1743, %v1754
      %v1783 = vadd.f32 %v1744, %v1754
      %v1784 = vadd.f32 %v1745, %v1754
      %v1785 = vadd.f32 %v1746, %v1754
      %v1786 = vadd.f32 %v1747, %v1754
      %v1787 = vadd.f32 %v1748, %v1754
      %v1788 = vmax.f32 %v1756, 0.0
      %v1789 = vmax.f32 %v1757, 0.0
      %v1790 = vmax.f32 %v1758, 0.0
      %v1791 = vmax.f32 %v1759, 0.0
      %v1792 = vmax.f32 %v1760, 0.0
      %v1793 = vmax.f32 %v1761, 0.0
      %v1794 = vmax.f32 %v1762, 0.0
      %v1795 = vmax.f32 %v1763, 0.0
      %v1796 = vmax.f32 %v1764, 0.0
      %v1797 = vmax.f32 %v1765, 0.0
      %v1798 = vmax.f32 %v1766, 0.0
      %v1799 = vmax.f32 %v1767, 0.0
      %v1800 = vmax.f32 %v1768, 0.0
      %v1801 = vmax.f32 %v1769, 0.0
      %v1802 = vmax.f32 %v1770, 0.0
      %v1803 = vmax.f32 %v1771, 0.0
      %v1804 = vmax.f32 %v1772, 0.0
      %v1805 = vmax.f32 %v1773, 0.0
      %v1806 = vmax.f32 %v1774, 0.0
      %v1807 = vmax.f32 %v1775, 0.0
      %v1808 = vmax.f32 %v1776, 0.0
      %v1809 = vmax.f32 %v1777, 0.0
      %v1810 = vmax.f32 %v1778, 0.0
      %v1811 = vmax.f32 %v1779, 0.0
      %v1812 = vmax.f32 %v1780, 0.0
      %v1813 = vmax.f32 %v1781, 0.0
      %v1814 = vmax.f32 %v1782, 0.0
      %v1815 = vmax.f32 %v1783, 0.0
      %v1816 = vmax.f32 %v1784, 0.0
      %v1817 = vmax.f32 %v1785, 0.0
      %v1818 = vmax.f32 %v1786, 0.0
      %v1819 = vmax.f32 %v1787, 0.0
      %1820 = vst [vmem:[%s319] sm:$0xff] %v1788
      %1821 = vst [vmem:[%s319 + $0x8] sm:$0xff] %v1789
      %1822 = vst [vmem:[%s319 + $0x10] sm:$0xff] %v1790
      %1823 = vst [vmem:[%s319 + $0x18] sm:$0xff] %v1791
      %1824 = vst [vmem:[%s319 + $0x20] sm:$0xff] %v1792
      %1825 = vst [vmem:[%s319 + $0x28] sm:$0xff] %v1793
      %1826 = vst [vmem:[%s319 + $0x30] sm:$0xff] %v1794
      %1827 = vst [vmem:[%s319 + $0x38] sm:$0xff] %v1795
      %1828 = vst [vmem:[%s319 + $0x40] sm:$0xff] %v1796
      %1829 = vst [vmem:[%s319 + $0x48] sm:$0xff] %v1797
      %1830 = vst [vmem:[%s319 + $0x50] sm:$0xff] %v1798
      %1831 = vst [vmem:[%s319 + $0x58] sm:$0xff] %v1799
      %1832 = vst [vmem:[%s319 + $0x60] sm:$0xff] %v1800
      %1833 = vst [vmem:[%s319 + $0x68] sm:$0xff] %v1801
      %1834 = vst [vmem:[%s319 + $0x70] sm:$0xff] %v1802
      %1835 = vst [vmem:[%s319 + $0x78] sm:$0xff] %v1803
      %1836 = vst [vmem:[%s319 + $0x80] sm:$0xff] %v1804
      %1837 = vst [vmem:[%s319 + $0x88] sm:$0xff] %v1805
      %1838 = vst [vmem:[%s319 + $0x90] sm:$0xff] %v1806
      %1839 = vst [vmem:[%s319 + $0x98] sm:$0xff] %v1807
      %1840 = vst [vmem:[%s319 + $0xa0] sm:$0xff] %v1808
      %1841 = vst [vmem:[%s319 + $0xa8] sm:$0xff] %v1809
      %1842 = vst [vmem:[%s319 + $0xb0] sm:$0xff] %v1810
      %1843 = vst [vmem:[%s319 + $0xb8] sm:$0xff] %v1811
      %1844 = vst [vmem:[%s319 + $0xc0] sm:$0xff] %v1812
      %1845 = vst [vmem:[%s319 + $0xc8] sm:$0xff] %v1813
      %1846 = vst [vmem:[%s319 + $0xd0] sm:$0xff] %v1814
      %1847 = vst [vmem:[%s319 + $0xd8] sm:$0xff] %v1815
      %1848 = vst [vmem:[%s319 + $0xe0] sm:$0xff] %v1816
      %1849 = vst [vmem:[%s319 + $0xe8] sm:$0xff] %v1817
      %1850 = vst [vmem:[%s319 + $0xf0] sm:$0xff] %v1818
      %1851 = vst [vmem:[%s319 + $0xf8] sm:$0xff] %v1819
      %s1852 = smul.u32 32, %s17
      %p1853 = scmp.lt.s32.totalorder %s1852, 63
      %s1854 = scalar_select %p1853, %s1852, 63
      %s1855 = smul.addr %s1854, 8
      %s1856 = scalar_lea.vmem %s6, %s1855
      // Predicated region
      $region45: #{source_forward.5} parent=43 // pred_check
        %p1857 = pneg %p181
      $region46: #{source_forward.5} parent=43 // pred_check_branch
        %1859 = sbr.rel (%p1857) target = $region48
      $region47: #{source_forward.5} parent=43 // pred_region
        %s1860 = smul.u32 32, %s17
      $region48: #{source_forward.5} parent=43 // pred_fallthru
        _
    $region44: #{source_forward.5} parent=5 // pred_fallthru
      _
    %p1861 = scmp.le.s32.totalorder 2, %s12
    // Predicated region
    $region49: #{source_forward.5} parent=5 // pred_check
      %p1862 = pneg %p1861
    $region50: #{source_forward.5} parent=5 // pred_check_branch
      %1864 = sbr.rel (%p1862) target = $region52
    $region51: #{source_forward.5} parent=5 // pred_region
      %s1865 = ssub.s32 %s12, 2
      // Predicated region
      $region53: #{source_forward.5} parent=51 // pred_check
        %p1866 = pneg %p187
      $region54: #{source_forward.5} parent=51 // pred_check_branch
        %1868 = sbr.rel (%p1866) target = $region56
      $region55: #{source_forward.5} parent=51 // pred_region
        %s1869 = smul.u32 32, %s18
        %p1870 = scmp.lt.s32.totalorder %s1869, 63
        %s1871 = scalar_select %p1870, %s1869, 63
        %s1872 = smul.addr %s1871, 8
        %s1873 = scalar_lea.vmem %s6, %s1872
      $region56: #{source_forward.5} parent=51 // pred_fallthru
        _
    $region52: #{source_forward.5} parent=5 // pred_fallthru
      _
  $region6: #{source_forward.5} parent=0 // loop_footer
    %s16 = sadd.s32 1, %s12
  $region7: #{source_forward.5} parent=0 // loop_footer_branch
    %11 = sbr.rel target = $region3
  $region8: #{source_forward.5} parent=0 // loop_exit
    _

// kernel: source_forward.6
$region0: #{source_forward.6}
  #allocation0 [shape = 'u32[]', space=smem, size = 0x4, offset = 0x4, fixed_abs, tag = 'smem constant byte address 0x4 - core index']
  #allocation1 [shape = 'u32[144,128]{1,0:T(1,128)}', space=vmem, size = 0x12000, scoped, tag = 'internal scratch']
  %s0 = inlined_call_operand.vmem [shape: bf16[32,400], index: 0, kind: input, shape index: {}]
  %s1 = inlined_call_operand.vmem [shape: bf16[32,400], index: 1, kind: input, shape index: {}]
  %s2 = inlined_call_operand.vmem [shape: bf16[32,400], index: 2, kind: input, shape index: {}]
  %s3 = inlined_call_operand.vmem [shape: bf16[32,400], index: 3, kind: input, shape index: {}]
  %s4 = inlined_call_operand.vmem [shape: bf16[400,128], index: 4, kind: input, shape index: {}]
  %s5 = inlined_call_operand.vmem [shape: f32[1,128], index: 5, kind: input, shape index: {}]
  %s6 = inlined_call_operand.vmem [shape: f32[32,128], index: 6, kind: output, shape index: {}]
  %s7 = sld [smem:[#allocation0]]
  $region34: #{source_forward.6} parent=0
    _
  %s9 = ssub.s32 1, %s7
  %s10 = scalar_select 0, %s9, %s7
  // Predicated region
  $region2: #{source_forward.6} parent=0 // pred_check
    _
  $region3: #{source_forward.6} parent=0 // pred_check_branch
    %12 = sbr.rel (0) target = $region5
  $region4: #{source_forward.6} parent=0 // pred_region
    _
  $region5: #{source_forward.6} parent=0 // pred_fallthru
    _
  // Predicated region
  $region6: #{source_forward.6} parent=0 // pred_check
    _
  $region7: #{source_forward.6} parent=0 // pred_check_branch
    %14 = sbr.rel (0) target = $region9
  $region8: #{source_forward.6} parent=0 // pred_region
    _
  $region9: #{source_forward.6} parent=0 // pred_fallthru
    _
  // Predicated region
  $region10: #{source_forward.6} parent=0 // pred_check
    _
  $region11: #{source_forward.6} parent=0 // pred_check_branch
    %16 = sbr.rel (0) target = $region13
  $region12: #{source_forward.6} parent=0 // pred_region
    _
  $region13: #{source_forward.6} parent=0 // pred_fallthru
    _
  // Predicated region
  $region14: #{source_forward.6} parent=0 // pred_check
    _
  $region15: #{source_forward.6} parent=0 // pred_check_branch
    %18 = sbr.rel (0) target = $region17
  $region16: #{source_forward.6} parent=0 // pred_region
    _
  $region17: #{source_forward.6} parent=0 // pred_fallthru
    _
  // Predicated region
  $region18: #{source_forward.6} parent=0 // pred_check
    _
  $region19: #{source_forward.6} parent=0 // pred_check_branch
    %20 = sbr.rel (0) target = $region21
  $region20: #{source_forward.6} parent=0 // pred_region
    _
  $region21: #{source_forward.6} parent=0 // pred_fallthru
    _
  // Predicated region
  $region22: #{source_forward.6} parent=0 // pred_check
    _
  $region23: #{source_forward.6} parent=0 // pred_check_branch
    %22 = sbr.rel (0) target = $region25
  $region24: #{source_forward.6} parent=0 // pred_region
    _
  $region25: #{source_forward.6} parent=0 // pred_fallthru
    _
  %v24 = vld [vmem:[%s4] sm:$0xf]
  %v25 = vld [vmem:[%s4 + $0x4] sm:$0xf]
  %v26 = vld [vmem:[%s4 + $0x8] sm:$0xf]
  %v27 = vld [vmem:[%s4 + $0xc] sm:$0xf]
  %v28 = vld [vmem:[%s4 + $0x10] sm:$0xf]
  %v29 = vld [vmem:[%s4 + $0x14] sm:$0xf]
  %v30 = vld [vmem:[%s4 + $0x18] sm:$0xf]
  %v31 = vld [vmem:[%s4 + $0x1c] sm:$0xf]
  %v32 = vld [vmem:[%s4 + $0x20] sm:$0xf]
  %v33 = vld [vmem:[%s4 + $0x24] sm:$0xf]
  %v34 = vld [vmem:[%s4 + $0x28] sm:$0xf]
  %v35 = vld [vmem:[%s4 + $0x2c] sm:$0xf]
  %v36 = vld [vmem:[%s4 + $0x30] sm:$0xf]
  %v37 = vld [vmem:[%s4 + $0x34] sm:$0xf]
  %v38 = vld [vmem:[%s4 + $0x38] sm:$0xf]
  %v39 = vld [vmem:[%s4 + $0x3c] sm:$0xf]
  %v40 = vld [vmem:[%s4 + $0x40] sm:$0xf]
  %v41 = vld [vmem:[%s4 + $0x44] sm:$0xf]
  %v42 = vld [vmem:[%s4 + $0x48] sm:$0xf]
  %v43 = vld [vmem:[%s4 + $0x4c] sm:$0xf]
  %v44 = vld [vmem:[%s4 + $0x50] sm:$0xf]
  %v45 = vld [vmem:[%s4 + $0x54] sm:$0xf]
  %v46 = vld [vmem:[%s4 + $0x58] sm:$0xf]
  %v47 = vld [vmem:[%s4 + $0x5c] sm:$0xf]
  %v48 = vld [vmem:[%s4 + $0x60] sm:$0xf]
  %v49 = vld [vmem:[%s4 + $0x64] sm:$0xf]
  %v50 = vld [vmem:[%s4 + $0x68] sm:$0xf]
  %v51 = vld [vmem:[%s4 + $0x6c] sm:$0xf]
  %v52 = vld [vmem:[%s4 + $0x70] sm:$0xf]
  %v53 = vld [vmem:[%s4 + $0x74] sm:$0xf]
  %v54 = vld [vmem:[%s4 + $0x78] sm:$0xf]
  %v55 = vld [vmem:[%s4 + $0x7c] sm:$0xf]
  %v56 = vld [vmem:[%s4 + $0x80] sm:$0xf]
  %v57 = vld [vmem:[%s4 + $0x84] sm:$0xf]
  %v58 = vld [vmem:[%s4 + $0x88] sm:$0xf]
  %v59 = vld [vmem:[%s4 + $0x8c] sm:$0xf]
  %v60 = vld [vmem:[%s4 + $0x90] sm:$0xf]
  %v61 = vld [vmem:[%s4 + $0x94] sm:$0xf]
  %v62 = vld [vmem:[%s4 + $0x98] sm:$0xf]
  %v63 = vld [vmem:[%s4 + $0x9c] sm:$0xf]
  %v64 = vld [vmem:[%s4 + $0xa0] sm:$0xf]
  %v65 = vld [vmem:[%s4 + $0xa4] sm:$0xf]
  %v66 = vld [vmem:[%s4 + $0xa8] sm:$0xf]
  %v67 = vld [vmem:[%s4 + $0xac] sm:$0xf]
  %v68 = vld [vmem:[%s4 + $0xb0] sm:$0xf]
  %v69 = vld [vmem:[%s4 + $0xb4] sm:$0xf]
  %v70 = vld [vmem:[%s4 + $0xb8] sm:$0xf]
  %v71 = vld [vmem:[%s4 + $0xbc] sm:$0xf]
  %v72 = vld [vmem:[%s4 + $0xc0] sm:$0xf]
  %v73 = vld [vmem:[%s4 + $0xc4] sm:$0xf]
  %v74 = vld [vmem:[%s0] sm:$0xff]
  %v75 = vld [vmem:[%s0 + $0x8] sm:$0xff]
  %v76 = vld [vmem:[%s0 + $0x10] sm:$0xff]
  %v77 = vld [vmem:[%s0 + $0x18] sm:$0xff]
  %v78 = vld [vmem:[%s0 + $0x20] sm:$0xff]
  %v79 = vld [vmem:[%s0 + $0x28] sm:$0xff]
  %v80 = vld [vmem:[%s0 + $0x30] sm:$0xff]
  %v81 = vld [vmem:[%s0 + $0x38] sm:$0xff]
  %v90 = vunpack.c.l.b16 %v74
  %v91 = vunpack.c.h.b16 %v74
  %v92 = vunpack.c.l.b16 %v75
  %v93 = vunpack.c.h.b16 %v75
  %v94 = vunpack.c.l.b16 %v76
  %v95 = vunpack.c.h.b16 %v76
  %v96 = vunpack.c.l.b16 %v77
  %v97 = vunpack.c.h.b16 %v77
  %v98 = vunpack.c.l.b16 %v78
  %v99 = vunpack.c.h.b16 %v78
  %v100 = vunpack.c.l.b16 %v79
  %v101 = vunpack.c.h.b16 %v79
  %v102 = vunpack.c.l.b16 %v80
  %v103 = vunpack.c.h.b16 %v80
  %v104 = vunpack.c.l.b16 %v81
  %v105 = vunpack.c.h.b16 %v81
  %v106 = vpack.c.b16 %v94, %v90
  %v107 = vpack.c.b16 %v95, %v91
  %v108 = vpack.c.b16 %v96, %v92
  %v109 = vpack.c.b16 %v97, %v93
  %v110 = vpack.c.b16 %v102, %v98
  %v111 = vpack.c.b16 %v103, %v99
  %v112 = vpack.c.b16 %v104, %v100
  %v113 = vpack.c.b16 %v105, %v101
  %v170 = vunpack.c.l.b16 %v24
  %v171 = vunpack.c.l.b16 %v25
  %v172 = vunpack.c.l.b16 %v26
  %v173 = vunpack.c.l.b16 %v27
  %v174 = vunpack.c.l.b16 %v28
  %v175 = vunpack.c.l.b16 %v29
  %v176 = vunpack.c.l.b16 %v30
  %v177 = vunpack.c.l.b16 %v31
  %v178 = vunpack.c.l.b16 %v32
  %v179 = vunpack.c.l.b16 %v33
  %v180 = vunpack.c.l.b16 %v34
  %v181 = vunpack.c.l.b16 %v35
  %v182 = vunpack.c.l.b16 %v36
  %v183 = vunpack.c.l.b16 %v37
  %v184 = vunpack.c.l.b16 %v38
  %v185 = vunpack.c.l.b16 %v39
  %v186 = vunpack.c.l.b16 %v40
  %v187 = vunpack.c.l.b16 %v41
  %v188 = vunpack.c.l.b16 %v42
  %v189 = vunpack.c.l.b16 %v43
  %v190 = vunpack.c.l.b16 %v44
  %v191 = vunpack.c.l.b16 %v45
  %v192 = vunpack.c.l.b16 %v46
  %v193 = vunpack.c.l.b16 %v47
  %v194 = vunpack.c.l.b16 %v48
  %v195 = vunpack.c.l.b16 %v49
  %v196 = vunpack.c.l.b16 %v50
  %v197 = vunpack.c.l.b16 %v51
  %v198 = vunpack.c.l.b16 %v52
  %v199 = vunpack.c.l.b16 %v53
  %v200 = vunpack.c.l.b16 %v54
  %v201 = vunpack.c.l.b16 %v55
  %v202 = vunpack.c.l.b16 %v56
  %v203 = vunpack.c.l.b16 %v57
  %v204 = vunpack.c.l.b16 %v58
  %v205 = vunpack.c.l.b16 %v59
  %v206 = vunpack.c.l.b16 %v60
  %v207 = vunpack.c.l.b16 %v61
  %v208 = vunpack.c.l.b16 %v62
  %v209 = vunpack.c.l.b16 %v63
  %v210 = vunpack.c.l.b16 %v64
  %v211 = vunpack.c.l.b16 %v65
  %v212 = vunpack.c.l.b16 %v66
  %v213 = vunpack.c.l.b16 %v67
  %v214 = vunpack.c.l.b16 %v68
  %v215 = vunpack.c.l.b16 %v69
  %v216 = vunpack.c.l.b16 %v70
  %v217 = vunpack.c.l.b16 %v71
  %v218 = vunpack.c.l.b16 %v72
  %v219 = vunpack.c.l.b16 %v73
  %v220 = vpack.c.b16 %v171, %v170
  %v221 = vpack.c.b16 %v173, %v172
  %v222 = vpack.c.b16 %v175, %v174
  %v223 = vpack.c.b16 %v177, %v176
  %v224 = vpack.c.b16 %v179, %v178
  %v225 = vpack.c.b16 %v181, %v180
  %v226 = vpack.c.b16 %v183, %v182
  %v227 = vpack.c.b16 %v185, %v184
  %v228 = vpack.c.b16 %v187, %v186
  %v229 = vpack.c.b16 %v189, %v188
  %v230 = vpack.c.b16 %v191, %v190
  %v231 = vpack.c.b16 %v193, %v192
  %v232 = vpack.c.b16 %v195, %v194
  %v233 = vpack.c.b16 %v197, %v196
  %v234 = vpack.c.b16 %v199, %v198
  %v235 = vpack.c.b16 %v201, %v200
  %v236 = vpack.c.b16 %v203, %v202
  %v237 = vpack.c.b16 %v205, %v204
  %v238 = vpack.c.b16 %v207, %v206
  %v239 = vpack.c.b16 %v209, %v208
  %v240 = vpack.c.b16 %v211, %v210
  %v241 = vpack.c.b16 %v213, %v212
  %v242 = vpack.c.b16 %v215, %v214
  %v243 = vpack.c.b16 %v217, %v216
  %v244 = vpack.c.b16 %v219, %v218
  %vm270 = vcmask 130048
  %v272 = vsel %vm270, %v109, 0
  %v275 = vsel %vm270, %v113, 0
  %277 = vmatprep.subr.bf16.mxu0 0
  %278 = vmatpush1.bf16.msra.mxu0 %v220
  %279 = vmatprep.subr.bf16.mxu0 0
  %280 = vmatpush1.bf16.msra.mxu0 %v221
  %281 = vmatprep.subr.bf16.mxu0 0
  %282 = vmatpush1.bf16.msra.mxu0 %v222
  %283 = vmatprep.subr.bf16.mxu0 0
  %284 = vmatpush1.bf16.msra.mxu0 %v223
  %285 = vmatprep.subr.bf16.mxu0 0
  %286 = vmatpush1.bf16.msra.mxu0 %v224
  %287 = vmatprep.subr.bf16.mxu0 0
  %288 = vmatpush1.bf16.msra.mxu0 %v225
  %289 = vmatprep.subr.bf16.mxu0 0
  %290 = vmatpush1.bf16.msra.mxu0 %v226
  %291 = vmatprep.subr.bf16.mxu0 0
  %292 = vmatpush1.bf16.msra.mxu0 %v227
  %293 = vmatprep.subr.bf16.mxu0 0
  %294 = vmatpush1.bf16.msra.mxu0 %v228
  %295 = vmatprep.subr.bf16.mxu0 0
  %296 = vmatpush1.bf16.msra.mxu0 %v229
  %297 = vmatprep.subr.bf16.mxu0 0
  %298 = vmatpush1.bf16.msra.mxu0 %v230
  %299 = vmatprep.subr.bf16.mxu0 0
  %300 = vmatpush1.bf16.msra.mxu0 %v231
  %301 = vmatprep.subr.bf16.mxu0 0
  %302 = vmatpush1.bf16.msra.mxu0 %v232
  %303 = vmatprep.subr.bf16.mxu0 0
  %304 = vmatpush1.bf16.msra.mxu0 %v233
  %305 = vmatprep.subr.bf16.mxu0 0
  %306 = vmatpush1.bf16.msra.mxu0 %v234
  %307 = vmatprep.subr.bf16.mxu0 0
  %308 = vmatpush1.bf16.msra.mxu0 %v235
  %309 = vmatprep.mubr.bf16.mxu0 %v107
  %310 = vmatmul.mubr.bf16.gmra.mrb[0].mxu0 %v106
  %v311 = vpop.f32.mrb[0].mxu0
  %v312 = vadd.f32 0.0, %v311
  %v313 = vpop.f32.mrb[0].mxu0
  %v314 = vpop.f32.mrb[0].mxu0
  %v315 = vadd.f32 0.0, %v314
  %v316 = vpop.f32.mrb[0].mxu0
  %317 = vmatprep.mubr.bf16.mxu0 %v111
  %318 = vmatmul.mubr.bf16.gmra.mrb[0].mxu0 %v110
  %v319 = vpop.f32.mrb[0].mxu0
  %v320 = vadd.f32 0.0, %v319
  %v321 = vpop.f32.mrb[0].mxu0
  %v322 = vpop.f32.mrb[0].mxu0
  %v323 = vadd.f32 0.0, %v322
  %v324 = vpop.f32.mrb[0].mxu0
  %325 = vdwg.mxu0
  %326 = vmatprep.subr.bf16.mxu0 0
  %327 = vmatpush1.bf16.msra.mxu0 %v236
  %328 = vmatprep.subr.bf16.mxu0 0
  %329 = vmatpush1.bf16.msra.mxu0 %v237
  %330 = vmatprep.subr.bf16.mxu0 0
  %331 = vmatpush1.bf16.msra.mxu0 %v238
  %332 = vmatprep.subr.bf16.mxu0 0
  %333 = vmatpush1.bf16.msra.mxu0 %v239
  %334 = vmatprep.subr.bf16.mxu0 0
  %335 = vmatpush1.bf16.msra.mxu0 %v240
  %336 = vmatprep.subr.bf16.mxu0 0
  %337 = vmatpush1.bf16.msra.mxu0 %v241
  %338 = vmatprep.subr.bf16.mxu0 0
  %339 = vmatpush1.bf16.msra.mxu0 %v242
  %340 = vmatprep.subr.bf16.mxu0 0
  %341 = vmatpush1.bf16.msra.mxu0 %v243
  %342 = vmatprep.subr.bf16.mxu0 0
  %343 = vmatpush1.bf16.msra.mxu0 %v244
  %344 = vmatprep.subr.bf16.mxu0 0
  %345 = vmatpush1.bf16.msra.mxu0 0
  %346 = vmatprep.subr.bf16.mxu0 0
  %347 = vmatpush1.bf16.msra.mxu0 0
  %348 = vmatprep.subr.bf16.mxu0 0
  %349 = vmatpush1.bf16.msra.mxu0 0
  %350 = vmatprep.subr.bf16.mxu0 0
  %351 = vmatpush1.bf16.msra.mxu0 0
  %352 = vmatprep.subr.bf16.mxu0 0
  %353 = vmatpush1.bf16.msra.mxu0 0
  %354 = vmatprep.subr.bf16.mxu0 0
  %355 = vmatpush1.bf16.msra.mxu0 0
  %356 = vmatprep.subr.bf16.mxu0 0
  %357 = vmatpush1.bf16.msra.mxu0 0
  %358 = vmatprep.mubr.bf16.mxu0 %v272
  %359 = vmatmul.mubr.bf16.gmra.mrb[0].mxu0 %v108
  %v360 = vpop.f32.mrb[0].mxu0
  %v361 = vadd.f32 %v312, %v360
  %v362 = vpop.f32.mrb[0].mxu0
  %v363 = vpop.f32.mrb[0].mxu0
  %v364 = vadd.f32 %v315, %v363
  %v365 = vpop.f32.mrb[0].mxu0
  %366 = vmatprep.mubr.bf16.mxu0 %v275
  %367 = vmatmul.mubr.bf16.gmra.mrb[0].mxu0 %v112
  %v368 = vpop.f32.mrb[0].mxu0
  %v369 = vadd.f32 %v320, %v368
  %v370 = vpop.f32.mrb[0].mxu0
  %v371 = vpop.f32.mrb[0].mxu0
  %v372 = vadd.f32 %v323, %v371
  %v373 = vpop.f32.mrb[0].mxu0
  %374 = vdwg.mxu0
  %v375 = vld [vmem:[%s1] sm:$0xff]
  %v376 = vld [vmem:[%s1 + $0x8] sm:$0xff]
  %v377 = vld [vmem:[%s1 + $0x10] sm:$0xff]
  %v378 = vld [vmem:[%s1 + $0x18] sm:$0xff]
  %v379 = vld [vmem:[%s1 + $0x20] sm:$0xff]
  %v380 = vld [vmem:[%s1 + $0x28] sm:$0xff]
  %v381 = vld [vmem:[%s1 + $0x30] sm:$0xff]
  %v382 = vld [vmem:[%s1 + $0x38] sm:$0xff]
  %v391 = vunpack.c.l.b16 %v375
  %v392 = vunpack.c.h.b16 %v375
  %v393 = vunpack.c.l.b16 %v376
  %v394 = vunpack.c.h.b16 %v376
  %v395 = vunpack.c.l.b16 %v377
  %v396 = vunpack.c.h.b16 %v377
  %v397 = vunpack.c.l.b16 %v378
  %v398 = vunpack.c.h.b16 %v378
  %v399 = vunpack.c.l.b16 %v379
  %v400 = vunpack.c.h.b16 %v379
  %v401 = vunpack.c.l.b16 %v380
  %v402 = vunpack.c.h.b16 %v380
  %v403 = vunpack.c.l.b16 %v381
  %v404 = vunpack.c.h.b16 %v381
  %v405 = vunpack.c.l.b16 %v382
  %v406 = vunpack.c.h.b16 %v382
  %v407 = vpack.c.b16 %v395, %v391
  %v408 = vpack.c.b16 %v396, %v392
  %v409 = vpack.c.b16 %v397, %v393
  %v410 = vpack.c.b16 %v398, %v394
  %v411 = vpack.c.b16 %v403, %v399
  %v412 = vpack.c.b16 %v404, %v400
  %v413 = vpack.c.b16 %v405, %v401
  %v414 = vpack.c.b16 %v406, %v402
  %v422 = vsel %vm270, %v410, 0
  %v425 = vsel %vm270, %v414, 0
  %427 = vmatprep.subr.bf16.mxu0 0
  %428 = vmatpush1.bf16.msra.mxu0 %v220
  %429 = vmatprep.subr.bf16.mxu0 0
  %430 = vmatpush1.bf16.msra.mxu0 %v221
  %431 = vmatprep.subr.bf16.mxu0 0
  %432 = vmatpush1.bf16.msra.mxu0 %v222
  %433 = vmatprep.subr.bf16.mxu0 0
  %434 = vmatpush1.bf16.msra.mxu0 %v223
  %435 = vmatprep.subr.bf16.mxu0 0
  %436 = vmatpush1.bf16.msra.mxu0 %v224
  %437 = vmatprep.subr.bf16.mxu0 0
  %438 = vmatpush1.bf16.msra.mxu0 %v225
  %439 = vmatprep.subr.bf16.mxu0 0
  %440 = vmatpush1.bf16.msra.mxu0 %v226
  %441 = vmatprep.subr.bf16.mxu0 0
  %442 = vmatpush1.bf16.msra.mxu0 %v227
  %443 = vmatprep.subr.bf16.mxu0 0
  %444 = vmatpush1.bf16.msra.mxu0 %v228
  %445 = vmatprep.subr.bf16.mxu0 0
  %446 = vmatpush1.bf16.msra.mxu0 %v229
  %447 = vmatprep.subr.bf16.mxu0 0
  %448 = vmatpush1.bf16.msra.mxu0 %v230
  %449 = vmatprep.subr.bf16.mxu0 0
  %450 = vmatpush1.bf16.msra.mxu0 %v231
  %451 = vmatprep.subr.bf16.mxu0 0
  %452 = vmatpush1.bf16.msra.mxu0 %v232
  %453 = vmatprep.subr.bf16.mxu0 0
  %454 = vmatpush1.bf16.msra.mxu0 %v233
  %455 = vmatprep.subr.bf16.mxu0 0
  %456 = vmatpush1.bf16.msra.mxu0 %v234
  %457 = vmatprep.subr.bf16.mxu0 0
  %458 = vmatpush1.bf16.msra.mxu0 %v235
  %459 = vmatprep.mubr.bf16.mxu0 %v408
  %460 = vmatmul.mubr.bf16.gmra.mrb[0].mxu0 %v407
  %v461 = vpop.f32.mrb[0].mxu0
  %v462 = vadd.f32 0.0, %v461
  %v463 = vpop.f32.mrb[0].mxu0
  %v464 = vpop.f32.mrb[0].mxu0
  %v465 = vadd.f32 0.0, %v464
  %v466 = vpop.f32.mrb[0].mxu0
  %467 = vmatprep.mubr.bf16.mxu0 %v412
  %468 = vmatmul.mubr.bf16.gmra.mrb[0].mxu0 %v411
  %v469 = vpop.f32.mrb[0].mxu0
  %v470 = vadd.f32 0.0, %v469
  %v471 = vpop.f32.mrb[0].mxu0
  %v472 = vpop.f32.mrb[0].mxu0
  %v473 = vadd.f32 0.0, %v472
  %v474 = vpop.f32.mrb[0].mxu0
  %475 = vdwg.mxu0
  %476 = vmatprep.subr.bf16.mxu0 0
  %477 = vmatpush1.bf16.msra.mxu0 %v236
  %478 = vmatprep.subr.bf16.mxu0 0
  %479 = vmatpush1.bf16.msra.mxu0 %v237
  %480 = vmatprep.subr.bf16.mxu0 0
  %481 = vmatpush1.bf16.msra.mxu0 %v238
  %482 = vmatprep.subr.bf16.mxu0 0
  %483 = vmatpush1.bf16.msra.mxu0 %v239
  %484 = vmatprep.subr.bf16.mxu0 0
  %485 = vmatpush1.bf16.msra.mxu0 %v240
  %486 = vmatprep.subr.bf16.mxu0 0
  %487 = vmatpush1.bf16.msra.mxu0 %v241
  %488 = vmatprep.subr.bf16.mxu0 0
  %489 = vmatpush1.bf16.msra.mxu0 %v242
  %490 = vmatprep.subr.bf16.mxu0 0
  %491 = vmatpush1.bf16.msra.mxu0 %v243
  %492 = vmatprep.subr.bf16.mxu0 0
  %493 = vmatpush1.bf16.msra.mxu0 %v244
  %494 = vmatprep.subr.bf16.mxu0 0
  %495 = vmatpush1.bf16.msra.mxu0 0
  %496 = vmatprep.subr.bf16.mxu0 0
  %497 = vmatpush1.bf16.msra.mxu0 0
  %498 = vmatprep.subr.bf16.mxu0 0
  %499 = vmatpush1.bf16.msra.mxu0 0
  %500 = vmatprep.subr.bf16.mxu0 0
  %501 = vmatpush1.bf16.msra.mxu0 0
  %502 = vmatprep.subr.bf16.mxu0 0
  %503 = vmatpush1.bf16.msra.mxu0 0
  %504 = vmatprep.subr.bf16.mxu0 0
  %505 = vmatpush1.bf16.msra.mxu0 0
  %506 = vmatprep.subr.bf16.mxu0 0
  %507 = vmatpush1.bf16.msra.mxu0 0
  %508 = vmatprep.mubr.bf16.mxu0 %v422
  %509 = vmatmul.mubr.bf16.gmra.mrb[0].mxu0 %v409
  %v510 = vpop.f32.mrb[0].mxu0
  %v511 = vadd.f32 %v462, %v510
  %v512 = vpop.f32.mrb[0].mxu0
  %v513 = vpop.f32.mrb[0].mxu0
  %v514 = vadd.f32 %v465, %v513
  %v515 = vpop.f32.mrb[0].mxu0
  %516 = vmatprep.mubr.bf16.mxu0 %v425
  %517 = vmatmul.mubr.bf16.gmra.mrb[0].mxu0 %v413
  %v518 = vpop.f32.mrb[0].mxu0
  %v519 = vadd.f32 %v470, %v518
  %v520 = vpop.f32.mrb[0].mxu0
  %v521 = vpop.f32.mrb[0].mxu0
  %v522 = vadd.f32 %v473, %v521
  %v523 = vpop.f32.mrb[0].mxu0
  %524 = vdwg.mxu0
  %v525 = vmax.f32 %v361, %v511
  %v526 = vmax.f32 %v364, %v514
  %v527 = vmax.f32 %v369, %v519
  %v528 = vmax.f32 %v372, %v522
  %v529 = vld [vmem:[%s2] sm:$0xff]
  %v530 = vld [vmem:[%s2 + $0x8] sm:$0xff]
  %v531 = vld [vmem:[%s2 + $0x10] sm:$0xff]
  %v532 = vld [vmem:[%s2 + $0x18] sm:$0xff]
  %v533 = vld [vmem:[%s2 + $0x20] sm:$0xff]
  %v534 = vld [vmem:[%s2 + $0x28] sm:$0xff]
  %v535 = vld [vmem:[%s2 + $0x30] sm:$0xff]
  %v536 = vld [vmem:[%s2 + $0x38] sm:$0xff]
  %v545 = vunpack.c.l.b16 %v529
  %v546 = vunpack.c.h.b16 %v529
  %v547 = vunpack.c.l.b16 %v530
  %v548 = vunpack.c.h.b16 %v530
  %v549 = vunpack.c.l.b16 %v531
  %v550 = vunpack.c.h.b16 %v531
  %v551 = vunpack.c.l.b16 %v532
  %v552 = vunpack.c.h.b16 %v532
  %v553 = vunpack.c.l.b16 %v533
  %v554 = vunpack.c.h.b16 %v533
  %v555 = vunpack.c.l.b16 %v534
  %v556 = vunpack.c.h.b16 %v534
  %v557 = vunpack.c.l.b16 %v535
  %v558 = vunpack.c.h.b16 %v535
  %v559 = vunpack.c.l.b16 %v536
  %v560 = vunpack.c.h.b16 %v536
  %v561 = vpack.c.b16 %v549, %v545
  %v562 = vpack.c.b16 %v550, %v546
  %v563 = vpack.c.b16 %v551, %v547
  %v564 = vpack.c.b16 %v552, %v548
  %v565 = vpack.c.b16 %v557, %v553
  %v566 = vpack.c.b16 %v558, %v554
  %v567 = vpack.c.b16 %v559, %v555
  %v568 = vpack.c.b16 %v560, %v556
  %v576 = vsel %vm270, %v564, 0
  %v579 = vsel %vm270, %v568, 0
  %581 = vmatprep.subr.bf16.mxu0 0
  %582 = vmatpush1.bf16.msra.mxu0 %v220
  %583 = vmatprep.subr.bf16.mxu0 0
  %584 = vmatpush1.bf16.msra.mxu0 %v221
  %585 = vmatprep.subr.bf16.mxu0 0
  %586 = vmatpush1.bf16.msra.mxu0 %v222
  %587 = vmatprep.subr.bf16.mxu0 0
  %588 = vmatpush1.bf16.msra.mxu0 %v223
  %589 = vmatprep.subr.bf16.mxu0 0
  %590 = vmatpush1.bf16.msra.mxu0 %v224
  %591 = vmatprep.subr.bf16.mxu0 0
  %592 = vmatpush1.bf16.msra.mxu0 %v225
  %593 = vmatprep.subr.bf16.mxu0 0
  %594 = vmatpush1.bf16.msra.mxu0 %v226
  %595 = vmatprep.subr.bf16.mxu0 0
  %596 = vmatpush1.bf16.msra.mxu0 %v227
  %597 = vmatprep.subr.bf16.mxu0 0
  %598 = vmatpush1.bf16.msra.mxu0 %v228
  %599 = vmatprep.subr.bf16.mxu0 0
  %600 = vmatpush1.bf16.msra.mxu0 %v229
  %601 = vmatprep.subr.bf16.mxu0 0
  %602 = vmatpush1.bf16.msra.mxu0 %v230
  %603 = vmatprep.subr.bf16.mxu0 0
  %604 = vmatpush1.bf16.msra.mxu0 %v231
  %605 = vmatprep.subr.bf16.mxu0 0
  %606 = vmatpush1.bf16.msra.mxu0 %v232
  %607 = vmatprep.subr.bf16.mxu0 0
  %608 = vmatpush1.bf16.msra.mxu0 %v233
  %609 = vmatprep.subr.bf16.mxu0 0
  %610 = vmatpush1.bf16.msra.mxu0 %v234
  %611 = vmatprep.subr.bf16.mxu0 0
  %612 = vmatpush1.bf16.msra.mxu0 %v235
  %613 = vmatprep.mubr.bf16.mxu0 %v562
  %614 = vmatmul.mubr.bf16.gmra.mrb[0].mxu0 %v561
  %v615 = vpop.f32.mrb[0].mxu0
  %v616 = vadd.f32 0.0, %v615
  %v617 = vpop.f32.mrb[0].mxu0
  %v618 = vpop.f32.mrb[0].mxu0
  %v619 = vadd.f32 0.0, %v618
  %v620 = vpop.f32.mrb[0].mxu0
  %621 = vmatprep.mubr.bf16.mxu0 %v566
  %622 = vmatmul.mubr.bf16.gmra.mrb[0].mxu0 %v565
  %v623 = vpop.f32.mrb[0].mxu0
  %v624 = vadd.f32 0.0, %v623
  %v625 = vpop.f32.mrb[0].mxu0
  %v626 = vpop.f32.mrb[0].mxu0
  %v627 = vadd.f32 0.0, %v626
  %v628 = vpop.f32.mrb[0].mxu0
  %629 = vdwg.mxu0
  %630 = vmatprep.subr.bf16.mxu0 0
  %631 = vmatpush1.bf16.msra.mxu0 %v236
  %632 = vmatprep.subr.bf16.mxu0 0
  %633 = vmatpush1.bf16.msra.mxu0 %v237
  %634 = vmatprep.subr.bf16.mxu0 0
  %635 = vmatpush1.bf16.msra.mxu0 %v238
  %636 = vmatprep.subr.bf16.mxu0 0
  %637 = vmatpush1.bf16.msra.mxu0 %v239
  %638 = vmatprep.subr.bf16.mxu0 0
  %639 = vmatpush1.bf16.msra.mxu0 %v240
  %640 = vmatprep.subr.bf16.mxu0 0
  %641 = vmatpush1.bf16.msra.mxu0 %v241
  %642 = vmatprep.subr.bf16.mxu0 0
  %643 = vmatpush1.bf16.msra.mxu0 %v242
  %644 = vmatprep.subr.bf16.mxu0 0
  %645 = vmatpush1.bf16.msra.mxu0 %v243
  %646 = vmatprep.subr.bf16.mxu0 0
  %647 = vmatpush1.bf16.msra.mxu0 %v244
  %648 = vmatprep.subr.bf16.mxu0 0
  %649 = vmatpush1.bf16.msra.mxu0 0
  %650 = vmatprep.subr.bf16.mxu0 0
  %651 = vmatpush1.bf16.msra.mxu0 0
  %652 = vmatprep.subr.bf16.mxu0 0
  %653 = vmatpush1.bf16.msra.mxu0 0
  %654 = vmatprep.subr.bf16.mxu0 0
  %655 = vmatpush1.bf16.msra.mxu0 0
  %656 = vmatprep.subr.bf16.mxu0 0
  %657 = vmatpush1.bf16.msra.mxu0 0
  %658 = vmatprep.subr.bf16.mxu0 0
  %659 = vmatpush1.bf16.msra.mxu0 0
  %660 = vmatprep.subr.bf16.mxu0 0
  %661 = vmatpush1.bf16.msra.mxu0 0
  %662 = vmatprep.mubr.bf16.mxu0 %v576
  %663 = vmatmul.mubr.bf16.gmra.mrb[0].mxu0 %v563
  %v664 = vpop.f32.mrb[0].mxu0
  %v665 = vadd.f32 %v616, %v664
  %v666 = vpop.f32.mrb[0].mxu0
  %v667 = vpop.f32.mrb[0].mxu0
  %v668 = vadd.f32 %v619, %v667
  %v669 = vpop.f32.mrb[0].mxu0
  %670 = vmatprep.mubr.bf16.mxu0 %v579
  %671 = vmatmul.mubr.bf16.gmra.mrb[0].mxu0 %v567
  %v672 = vpop.f32.mrb[0].mxu0
  %v673 = vadd.f32 %v624, %v672
  %v674 = vpop.f32.mrb[0].mxu0
  %v675 = vpop.f32.mrb[0].mxu0
  %v676 = vadd.f32 %v627, %v675
  %v677 = vpop.f32.mrb[0].mxu0
  %678 = vdwg.mxu0
  %v679 = vld [vmem:[%s3] sm:$0xff]
  %v680 = vld [vmem:[%s3 + $0x8] sm:$0xff]
  %v681 = vld [vmem:[%s3 + $0x10] sm:$0xff]
  %v682 = vld [vmem:[%s3 + $0x18] sm:$0xff]
  %v683 = vld [vmem:[%s3 + $0x20] sm:$0xff]
  %v684 = vld [vmem:[%s3 + $0x28] sm:$0xff]
  %v685 = vld [vmem:[%s3 + $0x30] sm:$0xff]
  %v686 = vld [vmem:[%s3 + $0x38] sm:$0xff]
  %v695 = vunpack.c.l.b16 %v679
  %v696 = vunpack.c.h.b16 %v679
  %v697 = vunpack.c.l.b16 %v680
  %v698 = vunpack.c.h.b16 %v680
  %v699 = vunpack.c.l.b16 %v681
  %v700 = vunpack.c.h.b16 %v681
  %v701 = vunpack.c.l.b16 %v682
  %v702 = vunpack.c.h.b16 %v682
  %v703 = vunpack.c.l.b16 %v683
  %v704 = vunpack.c.h.b16 %v683
  %v705 = vunpack.c.l.b16 %v684
  %v706 = vunpack.c.h.b16 %v684
  %v707 = vunpack.c.l.b16 %v685
  %v708 = vunpack.c.h.b16 %v685
  %v709 = vunpack.c.l.b16 %v686
  %v710 = vunpack.c.h.b16 %v686
  %v711 = vpack.c.b16 %v699, %v695
  %v712 = vpack.c.b16 %v700, %v696
  %v713 = vpack.c.b16 %v701, %v697
  %v714 = vpack.c.b16 %v702, %v698
  %v715 = vpack.c.b16 %v707, %v703
  %v716 = vpack.c.b16 %v708, %v704
  %v717 = vpack.c.b16 %v709, %v705
  %v718 = vpack.c.b16 %v710, %v706
  %v726 = vsel %vm270, %v714, 0
  %v729 = vsel %vm270, %v718, 0
  %731 = vmatprep.subr.bf16.mxu0 0
  %732 = vmatpush1.bf16.msra.mxu0 %v220
  %733 = vmatprep.subr.bf16.mxu0 0
  %734 = vmatpush1.bf16.msra.mxu0 %v221
  %735 = vmatprep.subr.bf16.mxu0 0
  %736 = vmatpush1.bf16.msra.mxu0 %v222
  %737 = vmatprep.subr.bf16.mxu0 0
  %738 = vmatpush1.bf16.msra.mxu0 %v223
  %739 = vmatprep.subr.bf16.mxu0 0
  %740 = vmatpush1.bf16.msra.mxu0 %v224
  %741 = vmatprep.subr.bf16.mxu0 0
  %742 = vmatpush1.bf16.msra.mxu0 %v225
  %743 = vmatprep.subr.bf16.mxu0 0
  %744 = vmatpush1.bf16.msra.mxu0 %v226
  %745 = vmatprep.subr.bf16.mxu0 0
  %746 = vmatpush1.bf16.msra.mxu0 %v227
  %747 = vmatprep.subr.bf16.mxu0 0
  %748 = vmatpush1.bf16.msra.mxu0 %v228
  %749 = vmatprep.subr.bf16.mxu0 0
  %750 = vmatpush1.bf16.msra.mxu0 %v229
  %751 = vmatprep.subr.bf16.mxu0 0
  %752 = vmatpush1.bf16.msra.mxu0 %v230
  %753 = vmatprep.subr.bf16.mxu0 0
  %754 = vmatpush1.bf16.msra.mxu0 %v231
  %755 = vmatprep.subr.bf16.mxu0 0
  %756 = vmatpush1.bf16.msra.mxu0 %v232
  %757 = vmatprep.subr.bf16.mxu0 0
  %758 = vmatpush1.bf16.msra.mxu0 %v233
  %759 = vmatprep.subr.bf16.mxu0 0
  %760 = vmatpush1.bf16.msra.mxu0 %v234
  %761 = vmatprep.subr.bf16.mxu0 0
  %762 = vmatpush1.bf16.msra.mxu0 %v235
  %763 = vmatprep.mubr.bf16.mxu0 %v712
  %764 = vmatmul.mubr.bf16.gmra.mrb[0].mxu0 %v711
  %v765 = vpop.f32.mrb[0].mxu0
  %v766 = vadd.f32 0.0, %v765
  %v767 = vpop.f32.mrb[0].mxu0
  %v768 = vpop.f32.mrb[0].mxu0
  %v769 = vadd.f32 0.0, %v768
  %v770 = vpop.f32.mrb[0].mxu0
  %771 = vmatprep.mubr.bf16.mxu0 %v716
  %772 = vmatmul.mubr.bf16.gmra.mrb[0].mxu0 %v715
  %v773 = vpop.f32.mrb[0].mxu0
  %v774 = vadd.f32 0.0, %v773
  %v775 = vpop.f32.mrb[0].mxu0
  %v776 = vpop.f32.mrb[0].mxu0
  %v777 = vadd.f32 0.0, %v776
  %v778 = vpop.f32.mrb[0].mxu0
  %779 = vdwg.mxu0
  %780 = vmatprep.subr.bf16.mxu0 0
  %781 = vmatpush1.bf16.msra.mxu0 %v236
  %782 = vmatprep.subr.bf16.mxu0 0
  %783 = vmatpush1.bf16.msra.mxu0 %v237
  %784 = vmatprep.subr.bf16.mxu0 0
  %785 = vmatpush1.bf16.msra.mxu0 %v238
  %786 = vmatprep.subr.bf16.mxu0 0
  %787 = vmatpush1.bf16.msra.mxu0 %v239
  %788 = vmatprep.subr.bf16.mxu0 0
  %789 = vmatpush1.bf16.msra.mxu0 %v240
  %790 = vmatprep.subr.bf16.mxu0 0
  %791 = vmatpush1.bf16.msra.mxu0 %v241
  %792 = vmatprep.subr.bf16.mxu0 0
  %793 = vmatpush1.bf16.msra.mxu0 %v242
  %794 = vmatprep.subr.bf16.mxu0 0
  %795 = vmatpush1.bf16.msra.mxu0 %v243
  %796 = vmatprep.subr.bf16.mxu0 0
  %797 = vmatpush1.bf16.msra.mxu0 %v244
  %798 = vmatprep.subr.bf16.mxu0 0
  %799 = vmatpush1.bf16.msra.mxu0 0
  %800 = vmatprep.subr.bf16.mxu0 0
  %801 = vmatpush1.bf16.msra.mxu0 0
  %802 = vmatprep.subr.bf16.mxu0 0
  %803 = vmatpush1.bf16.msra.mxu0 0
  %804 = vmatprep.subr.bf16.mxu0 0
  %805 = vmatpush1.bf16.msra.mxu0 0
  %806 = vmatprep.subr.bf16.mxu0 0
  %807 = vmatpush1.bf16.msra.mxu0 0
  %808 = vmatprep.subr.bf16.mxu0 0
  %809 = vmatpush1.bf16.msra.mxu0 0
  %810 = vmatprep.subr.bf16.mxu0 0
  %811 = vmatpush1.bf16.msra.mxu0 0
  %812 = vmatprep.mubr.bf16.mxu0 %v726
  %813 = vmatmul.mubr.bf16.gmra.mrb[0].mxu0 %v713
  %v814 = vpop.f32.mrb[0].mxu0
  %v815 = vadd.f32 %v766, %v814
  %v816 = vpop.f32.mrb[0].mxu0
  %v817 = vpop.f32.mrb[0].mxu0
  %v818 = vadd.f32 %v769, %v817
  %v819 = vpop.f32.mrb[0].mxu0
  %820 = vmatprep.mubr.bf16.mxu0 %v729
  %821 = vmatmul.mubr.bf16.gmra.mrb[0].mxu0 %v717
  %v822 = vpop.f32.mrb[0].mxu0
  %v823 = vadd.f32 %v774, %v822
  %v824 = vpop.f32.mrb[0].mxu0
  %v825 = vpop.f32.mrb[0].mxu0
  %v826 = vadd.f32 %v777, %v825
  %v827 = vpop.f32.mrb[0].mxu0
  %828 = vdwg.mxu0
  %v829 = vmax.f32 %v665, %v815
  %v830 = vmax.f32 %v668, %v818
  %v831 = vmax.f32 %v673, %v823
  %v832 = vmax.f32 %v676, %v826
  %v833 = vmax.f32 %v525, %v829
  %v834 = vmax.f32 %v526, %v830
  %v835 = vmax.f32 %v527, %v831
  %v836 = vmax.f32 %v528, %v832
  %v837 = vld [vmem:[%s5] sm:$0x1]
  %v839 = vlaneseq
  %v840 = vshrl.u32 %v839, 7
  %v841 = vsub.s32 0, %v840
  %v842 = vrot.slane %v837, %v841
  %v844 = vadd.f32 %v833, %v842
  %v845 = vadd.f32 %v834, %v842
  %v846 = vadd.f32 %v835, %v842
  %v847 = vadd.f32 %v836, %v842
  %v848 = vmax.f32 %v844, 0.0
  %v849 = vmax.f32 %v845, 0.0
  %v850 = vmax.f32 %v846, 0.0
  %v851 = vmax.f32 %v847, 0.0
  %852 = vst [vmem:[%s6] sm:$0xff] %v848
  %853 = vst [vmem:[%s6 + $0x8] sm:$0xff] %v849
  %854 = vst [vmem:[%s6 + $0x10] sm:$0xff] %v850
  %855 = vst [vmem:[%s6 + $0x18] sm:$0xff] %v851
  // Predicated region
  $region26: #{source_forward.6} parent=0 // pred_check
    _
  $region27: #{source_forward.6} parent=0 // pred_check_branch
    %857 = sbr.rel (0) target = $region29
  $region28: #{source_forward.6} parent=0 // pred_region
    _
  $region29: #{source_forward.6} parent=0 // pred_fallthru
    _
  // Predicated region
  $region30: #{source_forward.6} parent=0 // pred_check
    _
  $region31: #{source_forward.6} parent=0 // pred_check_branch
    %859 = sbr.rel (0) target = $region33
  $region32: #{source_forward.6} parent=0 // pred_region
    _
  $region33: #{source_forward.6} parent=0 // pred_fallthru
    _

// kernel: source_forward.7
$region0: #{source_forward.7}
  #allocation0 [shape = 'u32[]', space=smem, size = 0x4, offset = 0x4, fixed_abs, tag = 'smem constant byte address 0x4 - core index']
  #allocation1 [shape = 'u32[144,128]{1,0:T(1,128)}', space=vmem, size = 0x12000, scoped, tag = 'internal scratch']
  %s0 = inlined_call_operand.vmem [shape: bf16[2,1600], index: 0, kind: input, shape index: {}]
  %s1 = inlined_call_operand.vmem [shape: bf16[2,1600], index: 1, kind: input, shape index: {}]
  %s2 = inlined_call_operand.vmem [shape: bf16[2,1600], index: 2, kind: input, shape index: {}]
  %s3 = inlined_call_operand.vmem [shape: bf16[2,1600], index: 3, kind: input, shape index: {}]
  %s4 = inlined_call_operand.vmem [shape: bf16[1600,128], index: 4, kind: input, shape index: {}]
  %s5 = inlined_call_operand.vmem [shape: f32[1,128], index: 5, kind: input, shape index: {}]
  %s6 = inlined_call_operand.vmem [shape: f32[2,128], index: 6, kind: output, shape index: {}]
  %s7 = sld [smem:[#allocation0]]
  $region34: #{source_forward.7} parent=0
    _
  %s9 = ssub.s32 1, %s7
  %s10 = scalar_select 0, %s9, %s7
  // Predicated region
  $region2: #{source_forward.7} parent=0 // pred_check
    _
  $region3: #{source_forward.7} parent=0 // pred_check_branch
    %12 = sbr.rel (0) target = $region5
  $region4: #{source_forward.7} parent=0 // pred_region
    _
  $region5: #{source_forward.7} parent=0 // pred_fallthru
    _
  // Predicated region
  $region6: #{source_forward.7} parent=0 // pred_check
    _
  $region7: #{source_forward.7} parent=0 // pred_check_branch
    %14 = sbr.rel (0) target = $region9
  $region8: #{source_forward.7} parent=0 // pred_region
    _
  $region9: #{source_forward.7} parent=0 // pred_fallthru
    _
  // Predicated region
  $region10: #{source_forward.7} parent=0 // pred_check
    _
  $region11: #{source_forward.7} parent=0 // pred_check_branch
    %16 = sbr.rel (0) target = $region13
  $region12: #{source_forward.7} parent=0 // pred_region
    _
  $region13: #{source_forward.7} parent=0 // pred_fallthru
    _
  // Predicated region
  $region14: #{source_forward.7} parent=0 // pred_check
    _
  $region15: #{source_forward.7} parent=0 // pred_check_branch
    %18 = sbr.rel (0) target = $region17
  $region16: #{source_forward.7} parent=0 // pred_region
    _
  $region17: #{source_forward.7} parent=0 // pred_fallthru
    _
  // Predicated region
  $region18: #{source_forward.7} parent=0 // pred_check
    _
  $region19: #{source_forward.7} parent=0 // pred_check_branch
    %20 = sbr.rel (0) target = $region21
  $region20: #{source_forward.7} parent=0 // pred_region
    _
  $region21: #{source_forward.7} parent=0 // pred_fallthru
    _
  // Predicated region
  $region22: #{source_forward.7} parent=0 // pred_check
    _
  $region23: #{source_forward.7} parent=0 // pred_check_branch
    %22 = sbr.rel (0) target = $region25
  $region24: #{source_forward.7} parent=0 // pred_region
    _
  $region25: #{source_forward.7} parent=0 // pred_fallthru
    _
  %v24 = vld [vmem:[%s4] sm:$0xf]
  %v25 = vld [vmem:[%s4 + $0x4] sm:$0xf]
  %v26 = vld [vmem:[%s4 + $0x8] sm:$0xf]
  %v27 = vld [vmem:[%s4 + $0xc] sm:$0xf]
  %v28 = vld [vmem:[%s4 + $0x10] sm:$0xf]
  %v29 = vld [vmem:[%s4 + $0x14] sm:$0xf]
  %v30 = vld [vmem:[%s4 + $0x18] sm:$0xf]
  %v31 = vld [vmem:[%s4 + $0x1c] sm:$0xf]
  %v32 = vld [vmem:[%s4 + $0x20] sm:$0xf]
  %v33 = vld [vmem:[%s4 + $0x24] sm:$0xf]
  %v34 = vld [vmem:[%s4 + $0x28] sm:$0xf]
  %v35 = vld [vmem:[%s4 + $0x2c] sm:$0xf]
  %v36 = vld [vmem:[%s4 + $0x30] sm:$0xf]
  %v37 = vld [vmem:[%s4 + $0x34] sm:$0xf]
  %v38 = vld [vmem:[%s4 + $0x38] sm:$0xf]
  %v39 = vld [vmem:[%s4 + $0x3c] sm:$0xf]
  %v40 = vld [vmem:[%s4 + $0x40] sm:$0xf]
  %v41 = vld [vmem:[%s4 + $0x44] sm:$0xf]
  %v42 = vld [vmem:[%s4 + $0x48] sm:$0xf]
  %v43 = vld [vmem:[%s4 + $0x4c] sm:$0xf]
  %v44 = vld [vmem:[%s4 + $0x50] sm:$0xf]
  %v45 = vld [vmem:[%s4 + $0x54] sm:$0xf]
  %v46 = vld [vmem:[%s4 + $0x58] sm:$0xf]
  %v47 = vld [vmem:[%s4 + $0x5c] sm:$0xf]
  %v48 = vld [vmem:[%s4 + $0x60] sm:$0xf]
  %v49 = vld [vmem:[%s4 + $0x64] sm:$0xf]
  %v50 = vld [vmem:[%s4 + $0x68] sm:$0xf]
  %v51 = vld [vmem:[%s4 + $0x6c] sm:$0xf]
  %v52 = vld [vmem:[%s4 + $0x70] sm:$0xf]
  %v53 = vld [vmem:[%s4 + $0x74] sm:$0xf]
  %v54 = vld [vmem:[%s4 + $0x78] sm:$0xf]
  %v55 = vld [vmem:[%s4 + $0x7c] sm:$0xf]
  %v56 = vld [vmem:[%s4 + $0x80] sm:$0xf]
  %v57 = vld [vmem:[%s4 + $0x84] sm:$0xf]
  %v58 = vld [vmem:[%s4 + $0x88] sm:$0xf]
  %v59 = vld [vmem:[%s4 + $0x8c] sm:$0xf]
  %v60 = vld [vmem:[%s4 + $0x90] sm:$0xf]
  %v61 = vld [vmem:[%s4 + $0x94] sm:$0xf]
  %v62 = vld [vmem:[%s4 + $0x98] sm:$0xf]
  %v63 = vld [vmem:[%s4 + $0x9c] sm:$0xf]
  %v64 = vld [vmem:[%s4 + $0xa0] sm:$0xf]
  %v65 = vld [vmem:[%s4 + $0xa4] sm:$0xf]
  %v66 = vld [vmem:[%s4 + $0xa8] sm:$0xf]
  %v67 = vld [vmem:[%s4 + $0xac] sm:$0xf]
  %v68 = vld [vmem:[%s4 + $0xb0] sm:$0xf]
  %v69 = vld [vmem:[%s4 + $0xb4] sm:$0xf]
  %v70 = vld [vmem:[%s4 + $0xb8] sm:$0xf]
  %v71 = vld [vmem:[%s4 + $0xbc] sm:$0xf]
  %v72 = vld [vmem:[%s4 + $0xc0] sm:$0xf]
  %v73 = vld [vmem:[%s4 + $0xc4] sm:$0xf]
  %v74 = vld [vmem:[%s4 + $0xc8] sm:$0xf]
  %v75 = vld [vmem:[%s4 + $0xcc] sm:$0xf]
  %v76 = vld [vmem:[%s4 + $0xd0] sm:$0xf]
  %v77 = vld [vmem:[%s4 + $0xd4] sm:$0xf]
  %v78 = vld [vmem:[%s4 + $0xd8] sm:$0xf]
  %v79 = vld [vmem:[%s4 + $0xdc] sm:$0xf]
  %v80 = vld [vmem:[%s4 + $0xe0] sm:$0xf]
  %v81 = vld [vmem:[%s4 + $0xe4] sm:$0xf]
  %v82 = vld [vmem:[%s4 + $0xe8] sm:$0xf]
  %v83 = vld [vmem:[%s4 + $0xec] sm:$0xf]
  %v84 = vld [vmem:[%s4 + $0xf0] sm:$0xf]
  %v85 = vld [vmem:[%s4 + $0xf4] sm:$0xf]
  %v86 = vld [vmem:[%s4 + $0xf8] sm:$0xf]
  %v87 = vld [vmem:[%s4 + $0xfc] sm:$0xf]
  %v88 = vld [vmem:[%s4 + $0x100] sm:$0xf]
  %v89 = vld [vmem:[%s4 + $0x104] sm:$0xf]
  %v90 = vld [vmem:[%s4 + $0x108] sm:$0xf]
  %v91 = vld [vmem:[%s4 + $0x10c] sm:$0xf]
  %v92 = vld [vmem:[%s4 + $0x110] sm:$0xf]
  %v93 = vld [vmem:[%s4 + $0x114] sm:$0xf]
  %v94 = vld [vmem:[%s4 + $0x118] sm:$0xf]
  %v95 = vld [vmem:[%s4 + $0x11c] sm:$0xf]
  %v96 = vld [vmem:[%s4 + $0x120] sm:$0xf]
  %v97 = vld [vmem:[%s4 + $0x124] sm:$0xf]
  %v98 = vld [vmem:[%s4 + $0x128] sm:$0xf]
  %v99 = vld [vmem:[%s4 + $0x12c] sm:$0xf]
  %v100 = vld [vmem:[%s4 + $0x130] sm:$0xf]
  %v101 = vld [vmem:[%s4 + $0x134] sm:$0xf]
  %v102 = vld [vmem:[%s4 + $0x138] sm:$0xf]
  %v103 = vld [vmem:[%s4 + $0x13c] sm:$0xf]
  %v104 = vld [vmem:[%s4 + $0x140] sm:$0xf]
  %v105 = vld [vmem:[%s4 + $0x144] sm:$0xf]
  %v106 = vld [vmem:[%s4 + $0x148] sm:$0xf]
  %v107 = vld [vmem:[%s4 + $0x14c] sm:$0xf]
  %v108 = vld [vmem:[%s4 + $0x150] sm:$0xf]
  %v109 = vld [vmem:[%s4 + $0x154] sm:$0xf]
  %v110 = vld [vmem:[%s4 + $0x158] sm:$0xf]
  %v111 = vld [vmem:[%s4 + $0x15c] sm:$0xf]
  %v112 = vld [vmem:[%s4 + $0x160] sm:$0xf]
  %v113 = vld [vmem:[%s4 + $0x164] sm:$0xf]
  %v114 = vld [vmem:[%s4 + $0x168] sm:$0xf]
  %v115 = vld [vmem:[%s4 + $0x16c] sm:$0xf]
  %v116 = vld [vmem:[%s4 + $0x170] sm:$0xf]
  %v117 = vld [vmem:[%s4 + $0x174] sm:$0xf]
  %v118 = vld [vmem:[%s4 + $0x178] sm:$0xf]
  %v119 = vld [vmem:[%s4 + $0x17c] sm:$0xf]
  %v120 = vld [vmem:[%s4 + $0x180] sm:$0xf]
  %v121 = vld [vmem:[%s4 + $0x184] sm:$0xf]
  %v122 = vld [vmem:[%s4 + $0x188] sm:$0xf]
  %v123 = vld [vmem:[%s4 + $0x18c] sm:$0xf]
  %v124 = vld [vmem:[%s4 + $0x190] sm:$0xf]
  %v125 = vld [vmem:[%s4 + $0x194] sm:$0xf]
  %v126 = vld [vmem:[%s4 + $0x198] sm:$0xf]
  %v127 = vld [vmem:[%s4 + $0x19c] sm:$0xf]
  %v128 = vld [vmem:[%s4 + $0x1a0] sm:$0xf]
  %v129 = vld [vmem:[%s4 + $0x1a4] sm:$0xf]
  %v130 = vld [vmem:[%s4 + $0x1a8] sm:$0xf]
  %v131 = vld [vmem:[%s4 + $0x1ac] sm:$0xf]
  %v132 = vld [vmem:[%s4 + $0x1b0] sm:$0xf]
  %v133 = vld [vmem:[%s4 + $0x1b4] sm:$0xf]
  %v134 = vld [vmem:[%s4 + $0x1b8] sm:$0xf]
  %v135 = vld [vmem:[%s4 + $0x1bc] sm:$0xf]
  %v136 = vld [vmem:[%s4 + $0x1c0] sm:$0xf]
  %v137 = vld [vmem:[%s4 + $0x1c4] sm:$0xf]
  %v138 = vld [vmem:[%s4 + $0x1c8] sm:$0xf]
  %v139 = vld [vmem:[%s4 + $0x1cc] sm:$0xf]
  %v140 = vld [vmem:[%s4 + $0x1d0] sm:$0xf]
  %v141 = vld [vmem:[%s4 + $0x1d4] sm:$0xf]
  %v142 = vld [vmem:[%s4 + $0x1d8] sm:$0xf]
  %v143 = vld [vmem:[%s4 + $0x1dc] sm:$0xf]
  %v144 = vld [vmem:[%s4 + $0x1e0] sm:$0xf]
  %v145 = vld [vmem:[%s4 + $0x1e4] sm:$0xf]
  %v146 = vld [vmem:[%s4 + $0x1e8] sm:$0xf]
  %v147 = vld [vmem:[%s4 + $0x1ec] sm:$0xf]
  %v148 = vld [vmem:[%s4 + $0x1f0] sm:$0xf]
  %v149 = vld [vmem:[%s4 + $0x1f4] sm:$0xf]
  %v150 = vld [vmem:[%s4 + $0x1f8] sm:$0xf]
  %v151 = vld [vmem:[%s4 + $0x1fc] sm:$0xf]
  %v152 = vld [vmem:[%s4 + $0x200] sm:$0xf]
  %v153 = vld [vmem:[%s4 + $0x204] sm:$0xf]
  %v154 = vld [vmem:[%s4 + $0x208] sm:$0xf]
  %v155 = vld [vmem:[%s4 + $0x20c] sm:$0xf]
  %v156 = vld [vmem:[%s4 + $0x210] sm:$0xf]
  %v157 = vld [vmem:[%s4 + $0x214] sm:$0xf]
  %v158 = vld [vmem:[%s4 + $0x218] sm:$0xf]
  %v159 = vld [vmem:[%s4 + $0x21c] sm:$0xf]
  %v160 = vld [vmem:[%s4 + $0x220] sm:$0xf]
  %v161 = vld [vmem:[%s4 + $0x224] sm:$0xf]
  %v162 = vld [vmem:[%s4 + $0x228] sm:$0xf]
  %v163 = vld [vmem:[%s4 + $0x22c] sm:$0xf]
  %v164 = vld [vmem:[%s4 + $0x230] sm:$0xf]
  %v165 = vld [vmem:[%s4 + $0x234] sm:$0xf]
  %v166 = vld [vmem:[%s4 + $0x238] sm:$0xf]
  %v167 = vld [vmem:[%s4 + $0x23c] sm:$0xf]
  %v168 = vld [vmem:[%s4 + $0x240] sm:$0xf]
  %v169 = vld [vmem:[%s4 + $0x244] sm:$0xf]
  %v170 = vld [vmem:[%s4 + $0x248] sm:$0xf]
  %v171 = vld [vmem:[%s4 + $0x24c] sm:$0xf]
  %v172 = vld [vmem:[%s4 + $0x250] sm:$0xf]
  %v173 = vld [vmem:[%s4 + $0x254] sm:$0xf]
  %v174 = vld [vmem:[%s4 + $0x258] sm:$0xf]
  %v175 = vld [vmem:[%s4 + $0x25c] sm:$0xf]
  %v176 = vld [vmem:[%s4 + $0x260] sm:$0xf]
  %v177 = vld [vmem:[%s4 + $0x264] sm:$0xf]
  %v178 = vld [vmem:[%s4 + $0x268] sm:$0xf]
  %v179 = vld [vmem:[%s4 + $0x26c] sm:$0xf]
  %v180 = vld [vmem:[%s4 + $0x270] sm:$0xf]
  %v181 = vld [vmem:[%s4 + $0x274] sm:$0xf]
  %v182 = vld [vmem:[%s4 + $0x278] sm:$0xf]
  %v183 = vld [vmem:[%s4 + $0x27c] sm:$0xf]
  %v184 = vld [vmem:[%s4 + $0x280] sm:$0xf]
  %v185 = vld [vmem:[%s4 + $0x284] sm:$0xf]
  %v186 = vld [vmem:[%s4 + $0x288] sm:$0xf]
  %v187 = vld [vmem:[%s4 + $0x28c] sm:$0xf]
  %v188 = vld [vmem:[%s4 + $0x290] sm:$0xf]
  %v189 = vld [vmem:[%s4 + $0x294] sm:$0xf]
  %v190 = vld [vmem:[%s4 + $0x298] sm:$0xf]
  %v191 = vld [vmem:[%s4 + $0x29c] sm:$0xf]
  %v192 = vld [vmem:[%s4 + $0x2a0] sm:$0xf]
  %v193 = vld [vmem:[%s4 + $0x2a4] sm:$0xf]
  %v194 = vld [vmem:[%s4 + $0x2a8] sm:$0xf]
  %v195 = vld [vmem:[%s4 + $0x2ac] sm:$0xf]
  %v196 = vld [vmem:[%s4 + $0x2b0] sm:$0xf]
  %v197 = vld [vmem:[%s4 + $0x2b4] sm:$0xf]
  %v198 = vld [vmem:[%s4 + $0x2b8] sm:$0xf]
  %v199 = vld [vmem:[%s4 + $0x2bc] sm:$0xf]
  %v200 = vld [vmem:[%s4 + $0x2c0] sm:$0xf]
  %v201 = vld [vmem:[%s4 + $0x2c4] sm:$0xf]
  %v202 = vld [vmem:[%s4 + $0x2c8] sm:$0xf]
  %v203 = vld [vmem:[%s4 + $0x2cc] sm:$0xf]
  %v204 = vld [vmem:[%s4 + $0x2d0] sm:$0xf]
  %v205 = vld [vmem:[%s4 + $0x2d4] sm:$0xf]
  %v206 = vld [vmem:[%s4 + $0x2d8] sm:$0xf]
  %v207 = vld [vmem:[%s4 + $0x2dc] sm:$0xf]
  %v208 = vld [vmem:[%s4 + $0x2e0] sm:$0xf]
  %v209 = vld [vmem:[%s4 + $0x2e4] sm:$0xf]
  %v210 = vld [vmem:[%s4 + $0x2e8] sm:$0xf]
  %v211 = vld [vmem:[%s4 + $0x2ec] sm:$0xf]
  %v212 = vld [vmem:[%s4 + $0x2f0] sm:$0xf]
  %v213 = vld [vmem:[%s4 + $0x2f4] sm:$0xf]
  %v214 = vld [vmem:[%s4 + $0x2f8] sm:$0xf]
  %v215 = vld [vmem:[%s4 + $0x2fc] sm:$0xf]
  %v216 = vld [vmem:[%s4 + $0x300] sm:$0xf]
  %v217 = vld [vmem:[%s4 + $0x304] sm:$0xf]
  %v218 = vld [vmem:[%s4 + $0x308] sm:$0xf]
  %v219 = vld [vmem:[%s4 + $0x30c] sm:$0xf]
  %v220 = vld [vmem:[%s4 + $0x310] sm:$0xf]
  %v221 = vld [vmem:[%s4 + $0x314] sm:$0xf]
  %v222 = vld [vmem:[%s4 + $0x318] sm:$0xf]
  %v223 = vld [vmem:[%s4 + $0x31c] sm:$0xf]
  %v224 = vld [vmem:[%s0] sm:$0xff]
  %v225 = vld [vmem:[%s0 + $0x8] sm:$0x1f]
  %v228 = vcombine.high %v224, %v224
  %v230 = vunpack.c.l.s4 1966171168
  %v231 = vunpack.c.0.s8 %v230
  %v232 = vlaneseq
  %v233 = vshrl.u32 %v232, 7
  %v234 = vsub.s32 %v231, %v233
  %v235 = vrot.slane %v224, %v234
  %v237 = vunpack.c.l.s4 1966171168
  %v238 = vunpack.c.0.s8 %v237
  %v239 = vlaneseq
  %v240 = vshrl.u32 %v239, 7
  %v241 = vsub.s32 %v238, %v240
  %v242 = vrot.slane %v228, %v241
  %v243 = vcombine.high %v235, %v235
  %v244 = vcombine.high %v242, %v242
  %v246 = vunpack.c.l.s4 1966171168
  %v247 = vunpack.c.0.s8 %v246
  %v248 = vlaneseq
  %v249 = vshrl.u32 %v248, 7
  %v250 = vsub.s32 %v247, %v249
  %v251 = vrot.slane %v235, %v250
  %v253 = vunpack.c.l.s4 1966171168
  %v254 = vunpack.c.0.s8 %v253
  %v255 = vlaneseq
  %v256 = vshrl.u32 %v255, 7
  %v257 = vsub.s32 %v254, %v256
  %v258 = vrot.slane %v242, %v257
  %v260 = vunpack.c.l.s4 1966171168
  %v261 = vunpack.c.0.s8 %v260
  %v262 = vlaneseq
  %v263 = vshrl.u32 %v262, 7
  %v264 = vsub.s32 %v261, %v263
  %v265 = vrot.slane %v243, %v264
  %v267 = vunpack.c.l.s4 1966171168
  %v268 = vunpack.c.0.s8 %v267
  %v269 = vlaneseq
  %v270 = vshrl.u32 %v269, 7
  %v271 = vsub.s32 %v268, %v270
  %v272 = vrot.slane %v244, %v271
  %v273 = vcombine.high %v251, %v251
  %v274 = vcombine.high %v258, %v258
  %v275 = vcombine.high %v265, %v265
  %v276 = vcombine.high %v272, %v272
  %v277 = vcombine.high %v225, %v225
  %v279 = vunpack.c.l.s4 1966171168
  %v280 = vunpack.c.0.s8 %v279
  %v281 = vlaneseq
  %v282 = vshrl.u32 %v281, 7
  %v283 = vsub.s32 %v280, %v282
  %v284 = vrot.slane %v225, %v283
  %v286 = vunpack.c.l.s4 1966171168
  %v287 = vunpack.c.0.s8 %v286
  %v288 = vlaneseq
  %v289 = vshrl.u32 %v288, 7
  %v290 = vsub.s32 %v287, %v289
  %v291 = vrot.slane %v277, %v290
  %v292 = vcombine.high %v284, %v284
  %v294 = vunpack.c.l.s4 1966171168
  %v295 = vunpack.c.0.s8 %v294
  %v296 = vlaneseq
  %v297 = vshrl.u32 %v296, 7
  %v298 = vsub.s32 %v295, %v297
  %v299 = vrot.slane %v284, %v298
  %v301 = vunpack.c.l.s4 1966171168
  %v302 = vunpack.c.0.s8 %v301
  %v303 = vlaneseq
  %v304 = vshrl.u32 %v303, 7
  %v305 = vsub.s32 %v302, %v304
  %v306 = vrot.slane %v291, %v305
  %v308 = vunpack.c.l.s4 1966171168
  %v309 = vunpack.c.0.s8 %v308
  %v310 = vlaneseq
  %v311 = vshrl.u32 %v310, 7
  %v312 = vsub.s32 %v309, %v311
  %v313 = vrot.slane %v292, %v312
  %v314 = vcombine.high %v299, %v299
  %v315 = vcombine.high %v313, %v313
  %v528 = vunpack.c.l.b16 %v24
  %v529 = vunpack.c.l.b16 %v25
  %v530 = vunpack.c.l.b16 %v26
  %v531 = vunpack.c.l.b16 %v27
  %v532 = vunpack.c.l.b16 %v28
  %v533 = vunpack.c.l.b16 %v29
  %v534 = vunpack.c.l.b16 %v30
  %v535 = vunpack.c.l.b16 %v31
  %v536 = vunpack.c.l.b16 %v32
  %v537 = vunpack.c.l.b16 %v33
  %v538 = vunpack.c.l.b16 %v34
  %v539 = vunpack.c.l.b16 %v35
  %v540 = vunpack.c.l.b16 %v36
  %v541 = vunpack.c.l.b16 %v37
  %v542 = vunpack.c.l.b16 %v38
  %v543 = vunpack.c.l.b16 %v39
  %v544 = vunpack.c.l.b16 %v40
  %v545 = vunpack.c.l.b16 %v41
  %v546 = vunpack.c.l.b16 %v42
  %v547 = vunpack.c.l.b16 %v43
  %v548 = vunpack.c.l.b16 %v44
  %v549 = vunpack.c.l.b16 %v45
  %v550 = vunpack.c.l.b16 %v46
  %v551 = vunpack.c.l.b16 %v47
  %v552 = vunpack.c.l.b16 %v48
  %v553 = vunpack.c.l.b16 %v49
  %v554 = vunpack.c.l.b16 %v50
  %v555 = vunpack.c.l.b16 %v51
  %v556 = vunpack.c.l.b16 %v52
  %v557 = vunpack.c.l.b16 %v53
  %v558 = vunpack.c.l.b16 %v54
  %v559 = vunpack.c.l.b16 %v55
  %v560 = vunpack.c.l.b16 %v56
  %v561 = vunpack.c.l.b16 %v57
  %v562 = vunpack.c.l.b16 %v58
  %v563 = vunpack.c.l.b16 %v59
  %v564 = vunpack.c.l.b16 %v60
  %v565 = vunpack.c.l.b16 %v61
  %v566 = vunpack.c.l.b16 %v62
  %v567 = vunpack.c.l.b16 %v63
  %v568 = vunpack.c.l.b16 %v64
  %v569 = vunpack.c.l.b16 %v65
  %v570 = vunpack.c.l.b16 %v66
  %v571 = vunpack.c.l.b16 %v67
  %v572 = vunpack.c.l.b16 %v68
  %v573 = vunpack.c.l.b16 %v69
  %v574 = vunpack.c.l.b16 %v70
  %v575 = vunpack.c.l.b16 %v71
  %v576 = vunpack.c.l.b16 %v72
  %v577 = vunpack.c.l.b16 %v73
  %v578 = vunpack.c.l.b16 %v74
  %v579 = vunpack.c.l.b16 %v75
  %v580 = vunpack.c.l.b16 %v76
  %v581 = vunpack.c.l.b16 %v77
  %v582 = vunpack.c.l.b16 %v78
  %v583 = vunpack.c.l.b16 %v79
  %v584 = vunpack.c.l.b16 %v80
  %v585 = vunpack.c.l.b16 %v81
  %v586 = vunpack.c.l.b16 %v82
  %v587 = vunpack.c.l.b16 %v83
  %v588 = vunpack.c.l.b16 %v84
  %v589 = vunpack.c.l.b16 %v85
  %v590 = vunpack.c.l.b16 %v86
  %v591 = vunpack.c.l.b16 %v87
  %v592 = vunpack.c.l.b16 %v88
  %v593 = vunpack.c.l.b16 %v89
  %v594 = vunpack.c.l.b16 %v90
  %v595 = vunpack.c.l.b16 %v91
  %v596 = vunpack.c.l.b16 %v92
  %v597 = vunpack.c.l.b16 %v93
  %v598 = vunpack.c.l.b16 %v94
  %v599 = vunpack.c.l.b16 %v95
  %v600 = vunpack.c.l.b16 %v96
  %v601 = vunpack.c.l.b16 %v97
  %v602 = vunpack.c.l.b16 %v98
  %v603 = vunpack.c.l.b16 %v99
  %v604 = vunpack.c.l.b16 %v100
  %v605 = vunpack.c.l.b16 %v101
  %v606 = vunpack.c.l.b16 %v102
  %v607 = vunpack.c.l.b16 %v103
  %v608 = vunpack.c.l.b16 %v104
  %v609 = vunpack.c.l.b16 %v105
  %v610 = vunpack.c.l.b16 %v106
  %v611 = vunpack.c.l.b16 %v107
  %v612 = vunpack.c.l.b16 %v108
  %v613 = vunpack.c.l.b16 %v109
  %v614 = vunpack.c.l.b16 %v110
  %v615 = vunpack.c.l.b16 %v111
  %v616 = vunpack.c.l.b16 %v112
  %v617 = vunpack.c.l.b16 %v113
  %v618 = vunpack.c.l.b16 %v114
  %v619 = vunpack.c.l.b16 %v115
  %v620 = vunpack.c.l.b16 %v116
  %v621 = vunpack.c.l.b16 %v117
  %v622 = vunpack.c.l.b16 %v118
  %v623 = vunpack.c.l.b16 %v119
  %v624 = vunpack.c.l.b16 %v120
  %v625 = vunpack.c.l.b16 %v121
  %v626 = vunpack.c.l.b16 %v122
  %v627 = vunpack.c.l.b16 %v123
  %v628 = vunpack.c.l.b16 %v124
  %v629 = vunpack.c.l.b16 %v125
  %v630 = vunpack.c.l.b16 %v126
  %v631 = vunpack.c.l.b16 %v127
  %v632 = vunpack.c.l.b16 %v128
  %v633 = vunpack.c.l.b16 %v129
  %v634 = vunpack.c.l.b16 %v130
  %v635 = vunpack.c.l.b16 %v131
  %v636 = vunpack.c.l.b16 %v132
  %v637 = vunpack.c.l.b16 %v133
  %v638 = vunpack.c.l.b16 %v134
  %v639 = vunpack.c.l.b16 %v135
  %v640 = vunpack.c.l.b16 %v136
  %v641 = vunpack.c.l.b16 %v137
  %v642 = vunpack.c.l.b16 %v138
  %v643 = vunpack.c.l.b16 %v139
  %v644 = vunpack.c.l.b16 %v140
  %v645 = vunpack.c.l.b16 %v141
  %v646 = vunpack.c.l.b16 %v142
  %v647 = vunpack.c.l.b16 %v143
  %v648 = vunpack.c.l.b16 %v144
  %v649 = vunpack.c.l.b16 %v145
  %v650 = vunpack.c.l.b16 %v146
  %v651 = vunpack.c.l.b16 %v147
  %v652 = vunpack.c.l.b16 %v148
  %v653 = vunpack.c.l.b16 %v149
  %v654 = vunpack.c.l.b16 %v150
  %v655 = vunpack.c.l.b16 %v151
  %v656 = vunpack.c.l.b16 %v152
  %v657 = vunpack.c.l.b16 %v153
  %v658 = vunpack.c.l.b16 %v154
  %v659 = vunpack.c.l.b16 %v155
  %v660 = vunpack.c.l.b16 %v156
  %v661 = vunpack.c.l.b16 %v157
  %v662 = vunpack.c.l.b16 %v158
  %v663 = vunpack.c.l.b16 %v159
  %v664 = vunpack.c.l.b16 %v160
  %v665 = vunpack.c.l.b16 %v161
  %v666 = vunpack.c.l.b16 %v162
  %v667 = vunpack.c.l.b16 %v163
  %v668 = vunpack.c.l.b16 %v164
  %v669 = vunpack.c.l.b16 %v165
  %v670 = vunpack.c.l.b16 %v166
  %v671 = vunpack.c.l.b16 %v167
  %v672 = vunpack.c.l.b16 %v168
  %v673 = vunpack.c.l.b16 %v169
  %v674 = vunpack.c.l.b16 %v170
  %v675 = vunpack.c.l.b16 %v171
  %v676 = vunpack.c.l.b16 %v172
  %v677 = vunpack.c.l.b16 %v173
  %v678 = vunpack.c.l.b16 %v174
  %v679 = vunpack.c.l.b16 %v175
  %v680 = vunpack.c.l.b16 %v176
  %v681 = vunpack.c.l.b16 %v177
  %v682 = vunpack.c.l.b16 %v178
  %v683 = vunpack.c.l.b16 %v179
  %v684 = vunpack.c.l.b16 %v180
  %v685 = vunpack.c.l.b16 %v181
  %v686 = vunpack.c.l.b16 %v182
  %v687 = vunpack.c.l.b16 %v183
  %v688 = vunpack.c.l.b16 %v184
  %v689 = vunpack.c.l.b16 %v185
  %v690 = vunpack.c.l.b16 %v186
  %v691 = vunpack.c.l.b16 %v187
  %v692 = vunpack.c.l.b16 %v188
  %v693 = vunpack.c.l.b16 %v189
  %v694 = vunpack.c.l.b16 %v190
  %v695 = vunpack.c.l.b16 %v191
  %v696 = vunpack.c.l.b16 %v192
  %v697 = vunpack.c.l.b16 %v193
  %v698 = vunpack.c.l.b16 %v194
  %v699 = vunpack.c.l.b16 %v195
  %v700 = vunpack.c.l.b16 %v196
  %v701 = vunpack.c.l.b16 %v197
  %v702 = vunpack.c.l.b16 %v198
  %v703 = vunpack.c.l.b16 %v199
  %v704 = vunpack.c.l.b16 %v200
  %v705 = vunpack.c.l.b16 %v201
  %v706 = vunpack.c.l.b16 %v202
  %v707 = vunpack.c.l.b16 %v203
  %v708 = vunpack.c.l.b16 %v204
  %v709 = vunpack.c.l.b16 %v205
  %v710 = vunpack.c.l.b16 %v206
  %v711 = vunpack.c.l.b16 %v207
  %v712 = vunpack.c.l.b16 %v208
  %v713 = vunpack.c.l.b16 %v209
  %v714 = vunpack.c.l.b16 %v210
  %v715 = vunpack.c.l.b16 %v211
  %v716 = vunpack.c.l.b16 %v212
  %v717 = vunpack.c.l.b16 %v213
  %v718 = vunpack.c.l.b16 %v214
  %v719 = vunpack.c.l.b16 %v215
  %v720 = vunpack.c.l.b16 %v216
  %v721 = vunpack.c.l.b16 %v217
  %v722 = vunpack.c.l.b16 %v218
  %v723 = vunpack.c.l.b16 %v219
  %v724 = vunpack.c.l.b16 %v220
  %v725 = vunpack.c.l.b16 %v221
  %v726 = vunpack.c.l.b16 %v222
  %v727 = vunpack.c.l.b16 %v223
  %v728 = vpack.c.b16 %v529, %v528
  %v729 = vpack.c.b16 %v531, %v530
  %v730 = vpack.c.b16 %v533, %v532
  %v731 = vpack.c.b16 %v535, %v534
  %v732 = vpack.c.b16 %v537, %v536
  %v733 = vpack.c.b16 %v539, %v538
  %v734 = vpack.c.b16 %v541, %v540
  %v735 = vpack.c.b16 %v543, %v542
  %v736 = vpack.c.b16 %v545, %v544
  %v737 = vpack.c.b16 %v547, %v546
  %v738 = vpack.c.b16 %v549, %v548
  %v739 = vpack.c.b16 %v551, %v550
  %v740 = vpack.c.b16 %v553, %v552
  %v741 = vpack.c.b16 %v555, %v554
  %v742 = vpack.c.b16 %v557, %v556
  %v743 = vpack.c.b16 %v559, %v558
  %v744 = vpack.c.b16 %v561, %v560
  %v745 = vpack.c.b16 %v563, %v562
  %v746 = vpack.c.b16 %v565, %v564
  %v747 = vpack.c.b16 %v567, %v566
  %v748 = vpack.c.b16 %v569, %v568
  %v749 = vpack.c.b16 %v571, %v570
  %v750 = vpack.c.b16 %v573, %v572
  %v751 = vpack.c.b16 %v575, %v574
  %v752 = vpack.c.b16 %v577, %v576
  %v753 = vpack.c.b16 %v579, %v578
  %v754 = vpack.c.b16 %v581, %v580
  %v755 = vpack.c.b16 %v583, %v582
  %v756 = vpack.c.b16 %v585, %v584
  %v757 = vpack.c.b16 %v587, %v586
  %v758 = vpack.c.b16 %v589, %v588
  %v759 = vpack.c.b16 %v591, %v590
  %v760 = vpack.c.b16 %v593, %v592
  %v761 = vpack.c.b16 %v595, %v594
  %v762 = vpack.c.b16 %v597, %v596
  %v763 = vpack.c.b16 %v599, %v598
  %v764 = vpack.c.b16 %v601, %v600
  %v765 = vpack.c.b16 %v603, %v602
  %v766 = vpack.c.b16 %v605, %v604
  %v767 = vpack.c.b16 %v607, %v606
  %v768 = vpack.c.b16 %v609, %v608
  %v769 = vpack.c.b16 %v611, %v610
  %v770 = vpack.c.b16 %v613, %v612
  %v771 = vpack.c.b16 %v615, %v614
  %v772 = vpack.c.b16 %v617, %v616
  %v773 = vpack.c.b16 %v619, %v618
  %v774 = vpack.c.b16 %v621, %v620
  %v775 = vpack.c.b16 %v623, %v622
  %v776 = vpack.c.b16 %v625, %v624
  %v777 = vpack.c.b16 %v627, %v626
  %v778 = vpack.c.b16 %v629, %v628
  %v779 = vpack.c.b16 %v631, %v630
  %v780 = vpack.c.b16 %v633, %v632
  %v781 = vpack.c.b16 %v635, %v634
  %v782 = vpack.c.b16 %v637, %v636
  %v783 = vpack.c.b16 %v639, %v638
  %v784 = vpack.c.b16 %v641, %v640
  %v785 = vpack.c.b16 %v643, %v642
  %v786 = vpack.c.b16 %v645, %v644
  %v787 = vpack.c.b16 %v647, %v646
  %v788 = vpack.c.b16 %v649, %v648
  %v789 = vpack.c.b16 %v651, %v650
  %v790 = vpack.c.b16 %v653, %v652
  %v791 = vpack.c.b16 %v655, %v654
  %v792 = vpack.c.b16 %v657, %v656
  %v793 = vpack.c.b16 %v659, %v658
  %v794 = vpack.c.b16 %v661, %v660
  %v795 = vpack.c.b16 %v663, %v662
  %v796 = vpack.c.b16 %v665, %v664
  %v797 = vpack.c.b16 %v667, %v666
  %v798 = vpack.c.b16 %v669, %v668
  %v799 = vpack.c.b16 %v671, %v670
  %v800 = vpack.c.b16 %v673, %v672
  %v801 = vpack.c.b16 %v675, %v674
  %v802 = vpack.c.b16 %v677, %v676
  %v803 = vpack.c.b16 %v679, %v678
  %v804 = vpack.c.b16 %v681, %v680
  %v805 = vpack.c.b16 %v683, %v682
  %v806 = vpack.c.b16 %v685, %v684
  %v807 = vpack.c.b16 %v687, %v686
  %v808 = vpack.c.b16 %v689, %v688
  %v809 = vpack.c.b16 %v691, %v690
  %v810 = vpack.c.b16 %v693, %v692
  %v811 = vpack.c.b16 %v695, %v694
  %v812 = vpack.c.b16 %v697, %v696
  %v813 = vpack.c.b16 %v699, %v698
  %v814 = vpack.c.b16 %v701, %v700
  %v815 = vpack.c.b16 %v703, %v702
  %v816 = vpack.c.b16 %v705, %v704
  %v817 = vpack.c.b16 %v707, %v706
  %v818 = vpack.c.b16 %v709, %v708
  %v819 = vpack.c.b16 %v711, %v710
  %v820 = vpack.c.b16 %v713, %v712
  %v821 = vpack.c.b16 %v715, %v714
  %v822 = vpack.c.b16 %v717, %v716
  %v823 = vpack.c.b16 %v719, %v718
  %v824 = vpack.c.b16 %v721, %v720
  %v825 = vpack.c.b16 %v723, %v722
  %v826 = vpack.c.b16 %v725, %v724
  %v827 = vpack.c.b16 %v727, %v726
  %vm928 = vcmask 523264
  %v930 = vsel %vm928, %v306, 0
  %932 = vmatprep.subr.bf16.mxu0 0
  %933 = vmatpush1.bf16.msra.mxu0 %v728
  %934 = vmatprep.subr.bf16.mxu0 0
  %935 = vmatpush1.bf16.msra.mxu0 %v729
  %936 = vmatprep.subr.bf16.mxu0 0
  %937 = vmatpush1.bf16.msra.mxu0 %v730
  %938 = vmatprep.subr.bf16.mxu0 0
  %939 = vmatpush1.bf16.msra.mxu0 %v731
  %940 = vmatprep.subr.bf16.mxu0 0
  %941 = vmatpush1.bf16.msra.mxu0 %v732
  %942 = vmatprep.subr.bf16.mxu0 0
  %943 = vmatpush1.bf16.msra.mxu0 %v733
  %944 = vmatprep.subr.bf16.mxu0 0
  %945 = vmatpush1.bf16.msra.mxu0 %v734
  %946 = vmatprep.subr.bf16.mxu0 0
  %947 = vmatpush1.bf16.msra.mxu0 %v735
  %948 = vmatprep.subr.bf16.mxu0 0
  %949 = vmatpush1.bf16.msra.mxu0 %v736
  %950 = vmatprep.subr.bf16.mxu0 0
  %951 = vmatpush1.bf16.msra.mxu0 %v737
  %952 = vmatprep.subr.bf16.mxu0 0
  %953 = vmatpush1.bf16.msra.mxu0 %v738
  %954 = vmatprep.subr.bf16.mxu0 0
  %955 = vmatpush1.bf16.msra.mxu0 %v739
  %956 = vmatprep.subr.bf16.mxu0 0
  %957 = vmatpush1.bf16.msra.mxu0 %v740
  %958 = vmatprep.subr.bf16.mxu0 0
  %959 = vmatpush1.bf16.msra.mxu0 %v741
  %960 = vmatprep.subr.bf16.mxu0 0
  %961 = vmatpush1.bf16.msra.mxu0 %v742
  %962 = vmatprep.subr.bf16.mxu0 0
  %963 = vmatpush1.bf16.msra.mxu0 %v743
  %964 = vmatprep.mubr.bf16.mxu0 %v265
  %965 = vmatmul.mubr.bf16.gmra.mrb[0].mxu0 %v251
  %v966 = vpop.f32.mrb[0].mxu0
  %v967 = vadd.f32 0.0, %v966
  %v968 = vpop.f32.mrb[0].mxu0
  %v969 = vpop.f32.mrb[0].mxu0
  %v970 = vpop.f32.mrb[0].mxu0
  %971 = vdwg.mxu0
  %972 = vmatprep.subr.bf16.mxu0 0
  %973 = vmatpush1.bf16.msra.mxu0 %v744
  %974 = vmatprep.subr.bf16.mxu0 0
  %975 = vmatpush1.bf16.msra.mxu0 %v745
  %976 = vmatprep.subr.bf16.mxu0 0
  %977 = vmatpush1.bf16.msra.mxu0 %v746
  %978 = vmatprep.subr.bf16.mxu0 0
  %979 = vmatpush1.bf16.msra.mxu0 %v747
  %980 = vmatprep.subr.bf16.mxu0 0
  %981 = vmatpush1.bf16.msra.mxu0 %v748
  %982 = vmatprep.subr.bf16.mxu0 0
  %983 = vmatpush1.bf16.msra.mxu0 %v749
  %984 = vmatprep.subr.bf16.mxu0 0
  %985 = vmatpush1.bf16.msra.mxu0 %v750
  %986 = vmatprep.subr.bf16.mxu0 0
  %987 = vmatpush1.bf16.msra.mxu0 %v751
  %988 = vmatprep.subr.bf16.mxu0 0
  %989 = vmatpush1.bf16.msra.mxu0 %v752
  %990 = vmatprep.subr.bf16.mxu0 0
  %991 = vmatpush1.bf16.msra.mxu0 %v753
  %992 = vmatprep.subr.bf16.mxu0 0
  %993 = vmatpush1.bf16.msra.mxu0 %v754
  %994 = vmatprep.subr.bf16.mxu0 0
  %995 = vmatpush1.bf16.msra.mxu0 %v755
  %996 = vmatprep.subr.bf16.mxu0 0
  %997 = vmatpush1.bf16.msra.mxu0 %v756
  %998 = vmatprep.subr.bf16.mxu0 0
  %999 = vmatpush1.bf16.msra.mxu0 %v757
  %1000 = vmatprep.subr.bf16.mxu0 0
  %1001 = vmatpush1.bf16.msra.mxu0 %v758
  %1002 = vmatprep.subr.bf16.mxu0 0
  %1003 = vmatpush1.bf16.msra.mxu0 %v759
  %1004 = vmatprep.mubr.bf16.mxu0 %v275
  %1005 = vmatmul.mubr.bf16.gmra.mrb[0].mxu0 %v273
  %v1006 = vpop.f32.mrb[0].mxu0
  %v1007 = vadd.f32 %v967, %v1006
  %v1008 = vpop.f32.mrb[0].mxu0
  %v1009 = vpop.f32.mrb[0].mxu0
  %v1010 = vpop.f32.mrb[0].mxu0
  %1011 = vdwg.mxu0
  %1012 = vmatprep.subr.bf16.mxu0 0
  %1013 = vmatpush1.bf16.msra.mxu0 %v760
  %1014 = vmatprep.subr.bf16.mxu0 0
  %1015 = vmatpush1.bf16.msra.mxu0 %v761
  %1016 = vmatprep.subr.bf16.mxu0 0
  %1017 = vmatpush1.bf16.msra.mxu0 %v762
  %1018 = vmatprep.subr.bf16.mxu0 0
  %1019 = vmatpush1.bf16.msra.mxu0 %v763
  %1020 = vmatprep.subr.bf16.mxu0 0
  %1021 = vmatpush1.bf16.msra.mxu0 %v764
  %1022 = vmatprep.subr.bf16.mxu0 0
  %1023 = vmatpush1.bf16.msra.mxu0 %v765
  %1024 = vmatprep.subr.bf16.mxu0 0
  %1025 = vmatpush1.bf16.msra.mxu0 %v766
  %1026 = vmatprep.subr.bf16.mxu0 0
  %1027 = vmatpush1.bf16.msra.mxu0 %v767
  %1028 = vmatprep.subr.bf16.mxu0 0
  %1029 = vmatpush1.bf16.msra.mxu0 %v768
  %1030 = vmatprep.subr.bf16.mxu0 0
  %1031 = vmatpush1.bf16.msra.mxu0 %v769
  %1032 = vmatprep.subr.bf16.mxu0 0
  %1033 = vmatpush1.bf16.msra.mxu0 %v770
  %1034 = vmatprep.subr.bf16.mxu0 0
  %1035 = vmatpush1.bf16.msra.mxu0 %v771
  %1036 = vmatprep.subr.bf16.mxu0 0
  %1037 = vmatpush1.bf16.msra.mxu0 %v772
  %1038 = vmatprep.subr.bf16.mxu0 0
  %1039 = vmatpush1.bf16.msra.mxu0 %v773
  %1040 = vmatprep.subr.bf16.mxu0 0
  %1041 = vmatpush1.bf16.msra.mxu0 %v774
  %1042 = vmatprep.subr.bf16.mxu0 0
  %1043 = vmatpush1.bf16.msra.mxu0 %v775
  %1044 = vmatprep.mubr.bf16.mxu0 %v272
  %1045 = vmatmul.mubr.bf16.gmra.mrb[0].mxu0 %v258
  %v1046 = vpop.f32.mrb[0].mxu0
  %v1047 = vadd.f32 %v1007, %v1046
  %v1048 = vpop.f32.mrb[0].mxu0
  %v1049 = vpop.f32.mrb[0].mxu0
  %v1050 = vpop.f32.mrb[0].mxu0
  %1051 = vdwg.mxu0
  %1052 = vmatprep.subr.bf16.mxu0 0
  %1053 = vmatpush1.bf16.msra.mxu0 %v776
  %1054 = vmatprep.subr.bf16.mxu0 0
  %1055 = vmatpush1.bf16.msra.mxu0 %v777
  %1056 = vmatprep.subr.bf16.mxu0 0
  %1057 = vmatpush1.bf16.msra.mxu0 %v778
  %1058 = vmatprep.subr.bf16.mxu0 0
  %1059 = vmatpush1.bf16.msra.mxu0 %v779
  %1060 = vmatprep.subr.bf16.mxu0 0
  %1061 = vmatpush1.bf16.msra.mxu0 %v780
  %1062 = vmatprep.subr.bf16.mxu0 0
  %1063 = vmatpush1.bf16.msra.mxu0 %v781
  %1064 = vmatprep.subr.bf16.mxu0 0
  %1065 = vmatpush1.bf16.msra.mxu0 %v782
  %1066 = vmatprep.subr.bf16.mxu0 0
  %1067 = vmatpush1.bf16.msra.mxu0 %v783
  %1068 = vmatprep.subr.bf16.mxu0 0
  %1069 = vmatpush1.bf16.msra.mxu0 %v784
  %1070 = vmatprep.subr.bf16.mxu0 0
  %1071 = vmatpush1.bf16.msra.mxu0 %v785
  %1072 = vmatprep.subr.bf16.mxu0 0
  %1073 = vmatpush1.bf16.msra.mxu0 %v786
  %1074 = vmatprep.subr.bf16.mxu0 0
  %1075 = vmatpush1.bf16.msra.mxu0 %v787
  %1076 = vmatprep.subr.bf16.mxu0 0
  %1077 = vmatpush1.bf16.msra.mxu0 %v788
  %1078 = vmatprep.subr.bf16.mxu0 0
  %1079 = vmatpush1.bf16.msra.mxu0 %v789
  %1080 = vmatprep.subr.bf16.mxu0 0
  %1081 = vmatpush1.bf16.msra.mxu0 %v790
  %1082 = vmatprep.subr.bf16.mxu0 0
  %1083 = vmatpush1.bf16.msra.mxu0 %v791
  %1084 = vmatprep.mubr.bf16.mxu0 %v276
  %1085 = vmatmul.mubr.bf16.gmra.mrb[0].mxu0 %v274
  %v1086 = vpop.f32.mrb[0].mxu0
  %v1087 = vadd.f32 %v1047, %v1086
  %v1088 = vpop.f32.mrb[0].mxu0
  %v1089 = vpop.f32.mrb[0].mxu0
  %v1090 = vpop.f32.mrb[0].mxu0
  %1091 = vdwg.mxu0
  %1092 = vmatprep.subr.bf16.mxu0 0
  %1093 = vmatpush1.bf16.msra.mxu0 %v792
  %1094 = vmatprep.subr.bf16.mxu0 0
  %1095 = vmatpush1.bf16.msra.mxu0 %v793
  %1096 = vmatprep.subr.bf16.mxu0 0
  %1097 = vmatpush1.bf16.msra.mxu0 %v794
  %1098 = vmatprep.subr.bf16.mxu0 0
  %1099 = vmatpush1.bf16.msra.mxu0 %v795
  %1100 = vmatprep.subr.bf16.mxu0 0
  %1101 = vmatpush1.bf16.msra.mxu0 %v796
  %1102 = vmatprep.subr.bf16.mxu0 0
  %1103 = vmatpush1.bf16.msra.mxu0 %v797
  %1104 = vmatprep.subr.bf16.mxu0 0
  %1105 = vmatpush1.bf16.msra.mxu0 %v798
  %1106 = vmatprep.subr.bf16.mxu0 0
  %1107 = vmatpush1.bf16.msra.mxu0 %v799
  %1108 = vmatprep.subr.bf16.mxu0 0
  %1109 = vmatpush1.bf16.msra.mxu0 %v800
  %1110 = vmatprep.subr.bf16.mxu0 0
  %1111 = vmatpush1.bf16.msra.mxu0 %v801
  %1112 = vmatprep.subr.bf16.mxu0 0
  %1113 = vmatpush1.bf16.msra.mxu0 %v802
  %1114 = vmatprep.subr.bf16.mxu0 0
  %1115 = vmatpush1.bf16.msra.mxu0 %v803
  %1116 = vmatprep.subr.bf16.mxu0 0
  %1117 = vmatpush1.bf16.msra.mxu0 %v804
  %1118 = vmatprep.subr.bf16.mxu0 0
  %1119 = vmatpush1.bf16.msra.mxu0 %v805
  %1120 = vmatprep.subr.bf16.mxu0 0
  %1121 = vmatpush1.bf16.msra.mxu0 %v806
  %1122 = vmatprep.subr.bf16.mxu0 0
  %1123 = vmatpush1.bf16.msra.mxu0 %v807
  %1124 = vmatprep.mubr.bf16.mxu0 %v313
  %1125 = vmatmul.mubr.bf16.gmra.mrb[0].mxu0 %v299
  %v1126 = vpop.f32.mrb[0].mxu0
  %v1127 = vadd.f32 %v1087, %v1126
  %v1128 = vpop.f32.mrb[0].mxu0
  %v1129 = vpop.f32.mrb[0].mxu0
  %v1130 = vpop.f32.mrb[0].mxu0
  %1131 = vdwg.mxu0
  %1132 = vmatprep.subr.bf16.mxu0 0
  %1133 = vmatpush1.bf16.msra.mxu0 %v808
  %1134 = vmatprep.subr.bf16.mxu0 0
  %1135 = vmatpush1.bf16.msra.mxu0 %v809
  %1136 = vmatprep.subr.bf16.mxu0 0
  %1137 = vmatpush1.bf16.msra.mxu0 %v810
  %1138 = vmatprep.subr.bf16.mxu0 0
  %1139 = vmatpush1.bf16.msra.mxu0 %v811
  %1140 = vmatprep.subr.bf16.mxu0 0
  %1141 = vmatpush1.bf16.msra.mxu0 %v812
  %1142 = vmatprep.subr.bf16.mxu0 0
  %1143 = vmatpush1.bf16.msra.mxu0 %v813
  %1144 = vmatprep.subr.bf16.mxu0 0
  %1145 = vmatpush1.bf16.msra.mxu0 %v814
  %1146 = vmatprep.subr.bf16.mxu0 0
  %1147 = vmatpush1.bf16.msra.mxu0 %v815
  %1148 = vmatprep.subr.bf16.mxu0 0
  %1149 = vmatpush1.bf16.msra.mxu0 %v816
  %1150 = vmatprep.subr.bf16.mxu0 0
  %1151 = vmatpush1.bf16.msra.mxu0 %v817
  %1152 = vmatprep.subr.bf16.mxu0 0
  %1153 = vmatpush1.bf16.msra.mxu0 %v818
  %1154 = vmatprep.subr.bf16.mxu0 0
  %1155 = vmatpush1.bf16.msra.mxu0 %v819
  %1156 = vmatprep.subr.bf16.mxu0 0
  %1157 = vmatpush1.bf16.msra.mxu0 %v820
  %1158 = vmatprep.subr.bf16.mxu0 0
  %1159 = vmatpush1.bf16.msra.mxu0 %v821
  %1160 = vmatprep.subr.bf16.mxu0 0
  %1161 = vmatpush1.bf16.msra.mxu0 %v822
  %1162 = vmatprep.subr.bf16.mxu0 0
  %1163 = vmatpush1.bf16.msra.mxu0 %v823
  %1164 = vmatprep.mubr.bf16.mxu0 %v315
  %1165 = vmatmul.mubr.bf16.gmra.mrb[0].mxu0 %v314
  %v1166 = vpop.f32.mrb[0].mxu0
  %v1167 = vadd.f32 %v1127, %v1166
  %v1168 = vpop.f32.mrb[0].mxu0
  %v1169 = vpop.f32.mrb[0].mxu0
  %v1170 = vpop.f32.mrb[0].mxu0
  %1171 = vdwg.mxu0
  %1172 = vmatprep.subr.bf16.mxu0 0
  %1173 = vmatpush1.bf16.msra.mxu0 %v824
  %1174 = vmatprep.subr.bf16.mxu0 0
  %1175 = vmatpush1.bf16.msra.mxu0 %v825
  %1176 = vmatprep.subr.bf16.mxu0 0
  %1177 = vmatpush1.bf16.msra.mxu0 %v826
  %1178 = vmatprep.subr.bf16.mxu0 0
  %1179 = vmatpush1.bf16.msra.mxu0 %v827
  %1180 = vmatprep.subr.bf16.mxu0 0
  %1181 = vmatpush1.bf16.msra.mxu0 0
  %1182 = vmatprep.subr.bf16.mxu0 0
  %1183 = vmatpush1.bf16.msra.mxu0 0
  %1184 = vmatprep.subr.bf16.mxu0 0
  %1185 = vmatpush1.bf16.msra.mxu0 0
  %1186 = vmatprep.subr.bf16.mxu0 0
  %1187 = vmatpush1.bf16.msra.mxu0 0
  %1188 = vmatprep.subr.bf16.mxu0 0
  %1189 = vmatpush1.bf16.msra.mxu0 0
  %1190 = vmatprep.subr.bf16.mxu0 0
  %1191 = vmatpush1.bf16.msra.mxu0 0
  %1192 = vmatprep.subr.bf16.mxu0 0
  %1193 = vmatpush1.bf16.msra.mxu0 0
  %1194 = vmatprep.subr.bf16.mxu0 0
  %1195 = vmatpush1.bf16.msra.mxu0 0
  %1196 = vmatprep.subr.bf16.mxu0 0
  %1197 = vmatpush1.bf16.msra.mxu0 0
  %1198 = vmatprep.subr.bf16.mxu0 0
  %1199 = vmatpush1.bf16.msra.mxu0 0
  %1200 = vmatprep.subr.bf16.mxu0 0
  %1201 = vmatpush1.bf16.msra.mxu0 0
  %1202 = vmatprep.subr.bf16.mxu0 0
  %1203 = vmatpush1.bf16.msra.mxu0 0
  %1204 = vmatprep.mubr.bf16.mxu0 0
  %1205 = vmatmul.mubr.bf16.gmra.mrb[0].mxu0 %v930
  %v1206 = vpop.f32.mrb[0].mxu0
  %v1207 = vadd.f32 %v1167, %v1206
  %v1208 = vpop.f32.mrb[0].mxu0
  %v1209 = vpop.f32.mrb[0].mxu0
  %v1210 = vpop.f32.mrb[0].mxu0
  %1211 = vdwg.mxu0
  %v1212 = vld [vmem:[%s1] sm:$0xff]
  %v1213 = vld [vmem:[%s1 + $0x8] sm:$0x1f]
  %v1216 = vcombine.high %v1212, %v1212
  %v1218 = vunpack.c.l.s4 1966171168
  %v1219 = vunpack.c.0.s8 %v1218
  %v1220 = vlaneseq
  %v1221 = vshrl.u32 %v1220, 7
  %v1222 = vsub.s32 %v1219, %v1221
  %v1223 = vrot.slane %v1212, %v1222
  %v1225 = vunpack.c.l.s4 1966171168
  %v1226 = vunpack.c.0.s8 %v1225
  %v1227 = vlaneseq
  %v1228 = vshrl.u32 %v1227, 7
  %v1229 = vsub.s32 %v1226, %v1228
  %v1230 = vrot.slane %v1216, %v1229
  %v1231 = vcombine.high %v1223, %v1223
  %v1232 = vcombine.high %v1230, %v1230
  %v1234 = vunpack.c.l.s4 1966171168
  %v1235 = vunpack.c.0.s8 %v1234
  %v1236 = vlaneseq
  %v1237 = vshrl.u32 %v1236, 7
  %v1238 = vsub.s32 %v1235, %v1237
  %v1239 = vrot.slane %v1223, %v1238
  %v1241 = vunpack.c.l.s4 1966171168
  %v1242 = vunpack.c.0.s8 %v1241
  %v1243 = vlaneseq
  %v1244 = vshrl.u32 %v1243, 7
  %v1245 = vsub.s32 %v1242, %v1244
  %v1246 = vrot.slane %v1230, %v1245
  %v1248 = vunpack.c.l.s4 1966171168
  %v1249 = vunpack.c.0.s8 %v1248
  %v1250 = vlaneseq
  %v1251 = vshrl.u32 %v1250, 7
  %v1252 = vsub.s32 %v1249, %v1251
  %v1253 = vrot.slane %v1231, %v1252
  %v1255 = vunpack.c.l.s4 1966171168
  %v1256 = vunpack.c.0.s8 %v1255
  %v1257 = vlaneseq
  %v1258 = vshrl.u32 %v1257, 7
  %v1259 = vsub.s32 %v1256, %v1258
  %v1260 = vrot.slane %v1232, %v1259
  %v1261 = vcombine.high %v1239, %v1239
  %v1262 = vcombine.high %v1246, %v1246
  %v1263 = vcombine.high %v1253, %v1253
  %v1264 = vcombine.high %v1260, %v1260
  %v1265 = vcombine.high %v1213, %v1213
  %v1267 = vunpack.c.l.s4 1966171168
  %v1268 = vunpack.c.0.s8 %v1267
  %v1269 = vlaneseq
  %v1270 = vshrl.u32 %v1269, 7
  %v1271 = vsub.s32 %v1268, %v1270
  %v1272 = vrot.slane %v1213, %v1271
  %v1274 = vunpack.c.l.s4 1966171168
  %v1275 = vunpack.c.0.s8 %v1274
  %v1276 = vlaneseq
  %v1277 = vshrl.u32 %v1276, 7
  %v1278 = vsub.s32 %v1275, %v1277
  %v1279 = vrot.slane %v1265, %v1278
  %v1280 = vcombine.high %v1272, %v1272
  %v1282 = vunpack.c.l.s4 1966171168
  %v1283 = vunpack.c.0.s8 %v1282
  %v1284 = vlaneseq
  %v1285 = vshrl.u32 %v1284, 7
  %v1286 = vsub.s32 %v1283, %v1285
  %v1287 = vrot.slane %v1272, %v1286
  %v1289 = vunpack.c.l.s4 1966171168
  %v1290 = vunpack.c.0.s8 %v1289
  %v1291 = vlaneseq
  %v1292 = vshrl.u32 %v1291, 7
  %v1293 = vsub.s32 %v1290, %v1292
  %v1294 = vrot.slane %v1279, %v1293
  %v1296 = vunpack.c.l.s4 1966171168
  %v1297 = vunpack.c.0.s8 %v1296
  %v1298 = vlaneseq
  %v1299 = vshrl.u32 %v1298, 7
  %v1300 = vsub.s32 %v1297, %v1299
  %v1301 = vrot.slane %v1280, %v1300
  %v1302 = vcombine.high %v1287, %v1287
  %v1303 = vcombine.high %v1301, %v1301
  %v1317 = vsel %vm928, %v1294, 0
  %1319 = vmatprep.subr.bf16.mxu0 0
  %1320 = vmatpush1.bf16.msra.mxu0 %v728
  %1321 = vmatprep.subr.bf16.mxu0 0
  %1322 = vmatpush1.bf16.msra.mxu0 %v729
  %1323 = vmatprep.subr.bf16.mxu0 0
  %1324 = vmatpush1.bf16.msra.mxu0 %v730
  %1325 = vmatprep.subr.bf16.mxu0 0
  %1326 = vmatpush1.bf16.msra.mxu0 %v731
  %1327 = vmatprep.subr.bf16.mxu0 0
  %1328 = vmatpush1.bf16.msra.mxu0 %v732
  %1329 = vmatprep.subr.bf16.mxu0 0
  %1330 = vmatpush1.bf16.msra.mxu0 %v733
  %1331 = vmatprep.subr.bf16.mxu0 0
  %1332 = vmatpush1.bf16.msra.mxu0 %v734
  %1333 = vmatprep.subr.bf16.mxu0 0
  %1334 = vmatpush1.bf16.msra.mxu0 %v735
  %1335 = vmatprep.subr.bf16.mxu0 0
  %1336 = vmatpush1.bf16.msra.mxu0 %v736
  %1337 = vmatprep.subr.bf16.mxu0 0
  %1338 = vmatpush1.bf16.msra.mxu0 %v737
  %1339 = vmatprep.subr.bf16.mxu0 0
  %1340 = vmatpush1.bf16.msra.mxu0 %v738
  %1341 = vmatprep.subr.bf16.mxu0 0
  %1342 = vmatpush1.bf16.msra.mxu0 %v739
  %1343 = vmatprep.subr.bf16.mxu0 0
  %1344 = vmatpush1.bf16.msra.mxu0 %v740
  %1345 = vmatprep.subr.bf16.mxu0 0
  %1346 = vmatpush1.bf16.msra.mxu0 %v741
  %1347 = vmatprep.subr.bf16.mxu0 0
  %1348 = vmatpush1.bf16.msra.mxu0 %v742
  %1349 = vmatprep.subr.bf16.mxu0 0
  %1350 = vmatpush1.bf16.msra.mxu0 %v743
  %1351 = vmatprep.mubr.bf16.mxu0 %v1253
  %1352 = vmatmul.mubr.bf16.gmra.mrb[0].mxu0 %v1239
  %v1353 = vpop.f32.mrb[0].mxu0
  %v1354 = vadd.f32 0.0, %v1353
  %v1355 = vpop.f32.mrb[0].mxu0
  %v1356 = vpop.f32.mrb[0].mxu0
  %v1357 = vpop.f32.mrb[0].mxu0
  %1358 = vdwg.mxu0
  %1359 = vmatprep.subr.bf16.mxu0 0
  %1360 = vmatpush1.bf16.msra.mxu0 %v744
  %1361 = vmatprep.subr.bf16.mxu0 0
  %1362 = vmatpush1.bf16.msra.mxu0 %v745
  %1363 = vmatprep.subr.bf16.mxu0 0
  %1364 = vmatpush1.bf16.msra.mxu0 %v746
  %1365 = vmatprep.subr.bf16.mxu0 0
  %1366 = vmatpush1.bf16.msra.mxu0 %v747
  %1367 = vmatprep.subr.bf16.mxu0 0
  %1368 = vmatpush1.bf16.msra.mxu0 %v748
  %1369 = vmatprep.subr.bf16.mxu0 0
  %1370 = vmatpush1.bf16.msra.mxu0 %v749
  %1371 = vmatprep.subr.bf16.mxu0 0
  %1372 = vmatpush1.bf16.msra.mxu0 %v750
  %1373 = vmatprep.subr.bf16.mxu0 0
  %1374 = vmatpush1.bf16.msra.mxu0 %v751
  %1375 = vmatprep.subr.bf16.mxu0 0
  %1376 = vmatpush1.bf16.msra.mxu0 %v752
  %1377 = vmatprep.subr.bf16.mxu0 0
  %1378 = vmatpush1.bf16.msra.mxu0 %v753
  %1379 = vmatprep.subr.bf16.mxu0 0
  %1380 = vmatpush1.bf16.msra.mxu0 %v754
  %1381 = vmatprep.subr.bf16.mxu0 0
  %1382 = vmatpush1.bf16.msra.mxu0 %v755
  %1383 = vmatprep.subr.bf16.mxu0 0
  %1384 = vmatpush1.bf16.msra.mxu0 %v756
  %1385 = vmatprep.subr.bf16.mxu0 0
  %1386 = vmatpush1.bf16.msra.mxu0 %v757
  %1387 = vmatprep.subr.bf16.mxu0 0
  %1388 = vmatpush1.bf16.msra.mxu0 %v758
  %1389 = vmatprep.subr.bf16.mxu0 0
  %1390 = vmatpush1.bf16.msra.mxu0 %v759
  %1391 = vmatprep.mubr.bf16.mxu0 %v1263
  %1392 = vmatmul.mubr.bf16.gmra.mrb[0].mxu0 %v1261
  %v1393 = vpop.f32.mrb[0].mxu0
  %v1394 = vadd.f32 %v1354, %v1393
  %v1395 = vpop.f32.mrb[0].mxu0
  %v1396 = vpop.f32.mrb[0].mxu0
  %v1397 = vpop.f32.mrb[0].mxu0
  %1398 = vdwg.mxu0
  %1399 = vmatprep.subr.bf16.mxu0 0
  %1400 = vmatpush1.bf16.msra.mxu0 %v760
  %1401 = vmatprep.subr.bf16.mxu0 0
  %1402 = vmatpush1.bf16.msra.mxu0 %v761
  %1403 = vmatprep.subr.bf16.mxu0 0
  %1404 = vmatpush1.bf16.msra.mxu0 %v762
  %1405 = vmatprep.subr.bf16.mxu0 0
  %1406 = vmatpush1.bf16.msra.mxu0 %v763
  %1407 = vmatprep.subr.bf16.mxu0 0
  %1408 = vmatpush1.bf16.msra.mxu0 %v764
  %1409 = vmatprep.subr.bf16.mxu0 0
  %1410 = vmatpush1.bf16.msra.mxu0 %v765
  %1411 = vmatprep.subr.bf16.mxu0 0
  %1412 = vmatpush1.bf16.msra.mxu0 %v766
  %1413 = vmatprep.subr.bf16.mxu0 0
  %1414 = vmatpush1.bf16.msra.mxu0 %v767
  %1415 = vmatprep.subr.bf16.mxu0 0
  %1416 = vmatpush1.bf16.msra.mxu0 %v768
  %1417 = vmatprep.subr.bf16.mxu0 0
  %1418 = vmatpush1.bf16.msra.mxu0 %v769
  %1419 = vmatprep.subr.bf16.mxu0 0
  %1420 = vmatpush1.bf16.msra.mxu0 %v770
  %1421 = vmatprep.subr.bf16.mxu0 0
  %1422 = vmatpush1.bf16.msra.mxu0 %v771
  %1423 = vmatprep.subr.bf16.mxu0 0
  %1424 = vmatpush1.bf16.msra.mxu0 %v772
  %1425 = vmatprep.subr.bf16.mxu0 0
  %1426 = vmatpush1.bf16.msra.mxu0 %v773
  %1427 = vmatprep.subr.bf16.mxu0 0
  %1428 = vmatpush1.bf16.msra.mxu0 %v774
  %1429 = vmatprep.subr.bf16.mxu0 0
  %1430 = vmatpush1.bf16.msra.mxu0 %v775
  %1431 = vmatprep.mubr.bf16.mxu0 %v1260
  %1432 = vmatmul.mubr.bf16.gmra.mrb[0].mxu0 %v1246
  %v1433 = vpop.f32.mrb[0].mxu0
  %v1434 = vadd.f32 %v1394, %v1433
  %v1435 = vpop.f32.mrb[0].mxu0
  %v1436 = vpop.f32.mrb[0].mxu0
  %v1437 = vpop.f32.mrb[0].mxu0
  %1438 = vdwg.mxu0
  %1439 = vmatprep.subr.bf16.mxu0 0
  %1440 = vmatpush1.bf16.msra.mxu0 %v776
  %1441 = vmatprep.subr.bf16.mxu0 0
  %1442 = vmatpush1.bf16.msra.mxu0 %v777
  %1443 = vmatprep.subr.bf16.mxu0 0
  %1444 = vmatpush1.bf16.msra.mxu0 %v778
  %1445 = vmatprep.subr.bf16.mxu0 0
  %1446 = vmatpush1.bf16.msra.mxu0 %v779
  %1447 = vmatprep.subr.bf16.mxu0 0
  %1448 = vmatpush1.bf16.msra.mxu0 %v780
  %1449 = vmatprep.subr.bf16.mxu0 0
  %1450 = vmatpush1.bf16.msra.mxu0 %v781
  %1451 = vmatprep.subr.bf16.mxu0 0
  %1452 = vmatpush1.bf16.msra.mxu0 %v782
  %1453 = vmatprep.subr.bf16.mxu0 0
  %1454 = vmatpush1.bf16.msra.mxu0 %v783
  %1455 = vmatprep.subr.bf16.mxu0 0
  %1456 = vmatpush1.bf16.msra.mxu0 %v784
  %1457 = vmatprep.subr.bf16.mxu0 0
  %1458 = vmatpush1.bf16.msra.mxu0 %v785
  %1459 = vmatprep.subr.bf16.mxu0 0
  %1460 = vmatpush1.bf16.msra.mxu0 %v786
  %1461 = vmatprep.subr.bf16.mxu0 0
  %1462 = vmatpush1.bf16.msra.mxu0 %v787
  %1463 = vmatprep.subr.bf16.mxu0 0
  %1464 = vmatpush1.bf16.msra.mxu0 %v788
  %1465 = vmatprep.subr.bf16.mxu0 0
  %1466 = vmatpush1.bf16.msra.mxu0 %v789
  %1467 = vmatprep.subr.bf16.mxu0 0
  %1468 = vmatpush1.bf16.msra.mxu0 %v790
  %1469 = vmatprep.subr.bf16.mxu0 0
  %1470 = vmatpush1.bf16.msra.mxu0 %v791
  %1471 = vmatprep.mubr.bf16.mxu0 %v1264
  %1472 = vmatmul.mubr.bf16.gmra.mrb[0].mxu0 %v1262
  %v1473 = vpop.f32.mrb[0].mxu0
  %v1474 = vadd.f32 %v1434, %v1473
  %v1475 = vpop.f32.mrb[0].mxu0
  %v1476 = vpop.f32.mrb[0].mxu0
  %v1477 = vpop.f32.mrb[0].mxu0
  %1478 = vdwg.mxu0
  %1479 = vmatprep.subr.bf16.mxu0 0
  %1480 = vmatpush1.bf16.msra.mxu0 %v792
  %1481 = vmatprep.subr.bf16.mxu0 0
  %1482 = vmatpush1.bf16.msra.mxu0 %v793
  %1483 = vmatprep.subr.bf16.mxu0 0
  %1484 = vmatpush1.bf16.msra.mxu0 %v794
  %1485 = vmatprep.subr.bf16.mxu0 0
  %1486 = vmatpush1.bf16.msra.mxu0 %v795
  %1487 = vmatprep.subr.bf16.mxu0 0
  %1488 = vmatpush1.bf16.msra.mxu0 %v796
  %1489 = vmatprep.subr.bf16.mxu0 0
  %1490 = vmatpush1.bf16.msra.mxu0 %v797
  %1491 = vmatprep.subr.bf16.mxu0 0
  %1492 = vmatpush1.bf16.msra.mxu0 %v798
  %1493 = vmatprep.subr.bf16.mxu0 0
  %1494 = vmatpush1.bf16.msra.mxu0 %v799
  %1495 = vmatprep.subr.bf16.mxu0 0
  %1496 = vmatpush1.bf16.msra.mxu0 %v800
  %1497 = vmatprep.subr.bf16.mxu0 0
  %1498 = vmatpush1.bf16.msra.mxu0 %v801
  %1499 = vmatprep.subr.bf16.mxu0 0
  %1500 = vmatpush1.bf16.msra.mxu0 %v802
  %1501 = vmatprep.subr.bf16.mxu0 0
  %1502 = vmatpush1.bf16.msra.mxu0 %v803
  %1503 = vmatprep.subr.bf16.mxu0 0
  %1504 = vmatpush1.bf16.msra.mxu0 %v804
  %1505 = vmatprep.subr.bf16.mxu0 0
  %1506 = vmatpush1.bf16.msra.mxu0 %v805
  %1507 = vmatprep.subr.bf16.mxu0 0
  %1508 = vmatpush1.bf16.msra.mxu0 %v806
  %1509 = vmatprep.subr.bf16.mxu0 0
  %1510 = vmatpush1.bf16.msra.mxu0 %v807
  %1511 = vmatprep.mubr.bf16.mxu0 %v1301
  %1512 = vmatmul.mubr.bf16.gmra.mrb[0].mxu0 %v1287
  %v1513 = vpop.f32.mrb[0].mxu0
  %v1514 = vadd.f32 %v1474, %v1513
  %v1515 = vpop.f32.mrb[0].mxu0
  %v1516 = vpop.f32.mrb[0].mxu0
  %v1517 = vpop.f32.mrb[0].mxu0
  %1518 = vdwg.mxu0
  %1519 = vmatprep.subr.bf16.mxu0 0
  %1520 = vmatpush1.bf16.msra.mxu0 %v808
  %1521 = vmatprep.subr.bf16.mxu0 0
  %1522 = vmatpush1.bf16.msra.mxu0 %v809
  %1523 = vmatprep.subr.bf16.mxu0 0
  %1524 = vmatpush1.bf16.msra.mxu0 %v810
  %1525 = vmatprep.subr.bf16.mxu0 0
  %1526 = vmatpush1.bf16.msra.mxu0 %v811
  %1527 = vmatprep.subr.bf16.mxu0 0
  %1528 = vmatpush1.bf16.msra.mxu0 %v812
  %1529 = vmatprep.subr.bf16.mxu0 0
  %1530 = vmatpush1.bf16.msra.mxu0 %v813
  %1531 = vmatprep.subr.bf16.mxu0 0
  %1532 = vmatpush1.bf16.msra.mxu0 %v814
  %1533 = vmatprep.subr.bf16.mxu0 0
  %1534 = vmatpush1.bf16.msra.mxu0 %v815
  %1535 = vmatprep.subr.bf16.mxu0 0
  %1536 = vmatpush1.bf16.msra.mxu0 %v816
  %1537 = vmatprep.subr.bf16.mxu0 0
  %1538 = vmatpush1.bf16.msra.mxu0 %v817
  %1539 = vmatprep.subr.bf16.mxu0 0
  %1540 = vmatpush1.bf16.msra.mxu0 %v818
  %1541 = vmatprep.subr.bf16.mxu0 0
  %1542 = vmatpush1.bf16.msra.mxu0 %v819
  %1543 = vmatprep.subr.bf16.mxu0 0
  %1544 = vmatpush1.bf16.msra.mxu0 %v820
  %1545 = vmatprep.subr.bf16.mxu0 0
  %1546 = vmatpush1.bf16.msra.mxu0 %v821
  %1547 = vmatprep.subr.bf16.mxu0 0
  %1548 = vmatpush1.bf16.msra.mxu0 %v822
  %1549 = vmatprep.subr.bf16.mxu0 0
  %1550 = vmatpush1.bf16.msra.mxu0 %v823
  %1551 = vmatprep.mubr.bf16.mxu0 %v1303
  %1552 = vmatmul.mubr.bf16.gmra.mrb[0].mxu0 %v1302
  %v1553 = vpop.f32.mrb[0].mxu0
  %v1554 = vadd.f32 %v1514, %v1553
  %v1555 = vpop.f32.mrb[0].mxu0
  %v1556 = vpop.f32.mrb[0].mxu0
  %v1557 = vpop.f32.mrb[0].mxu0
  %1558 = vdwg.mxu0
  %1559 = vmatprep.subr.bf16.mxu0 0
  %1560 = vmatpush1.bf16.msra.mxu0 %v824
  %1561 = vmatprep.subr.bf16.mxu0 0
  %1562 = vmatpush1.bf16.msra.mxu0 %v825
  %1563 = vmatprep.subr.bf16.mxu0 0
  %1564 = vmatpush1.bf16.msra.mxu0 %v826
  %1565 = vmatprep.subr.bf16.mxu0 0
  %1566 = vmatpush1.bf16.msra.mxu0 %v827
  %1567 = vmatprep.subr.bf16.mxu0 0
  %1568 = vmatpush1.bf16.msra.mxu0 0
  %1569 = vmatprep.subr.bf16.mxu0 0
  %1570 = vmatpush1.bf16.msra.mxu0 0
  %1571 = vmatprep.subr.bf16.mxu0 0
  %1572 = vmatpush1.bf16.msra.mxu0 0
  %1573 = vmatprep.subr.bf16.mxu0 0
  %1574 = vmatpush1.bf16.msra.mxu0 0
  %1575 = vmatprep.subr.bf16.mxu0 0
  %1576 = vmatpush1.bf16.msra.mxu0 0
  %1577 = vmatprep.subr.bf16.mxu0 0
  %1578 = vmatpush1.bf16.msra.mxu0 0
  %1579 = vmatprep.subr.bf16.mxu0 0
  %1580 = vmatpush1.bf16.msra.mxu0 0
  %1581 = vmatprep.subr.bf16.mxu0 0
  %1582 = vmatpush1.bf16.msra.mxu0 0
  %1583 = vmatprep.subr.bf16.mxu0 0
  %1584 = vmatpush1.bf16.msra.mxu0 0
  %1585 = vmatprep.subr.bf16.mxu0 0
  %1586 = vmatpush1.bf16.msra.mxu0 0
  %1587 = vmatprep.subr.bf16.mxu0 0
  %1588 = vmatpush1.bf16.msra.mxu0 0
  %1589 = vmatprep.subr.bf16.mxu0 0
  %1590 = vmatpush1.bf16.msra.mxu0 0
  %1591 = vmatprep.mubr.bf16.mxu0 0
  %1592 = vmatmul.mubr.bf16.gmra.mrb[0].mxu0 %v1317
  %v1593 = vpop.f32.mrb[0].mxu0
  %v1594 = vadd.f32 %v1554, %v1593
  %v1595 = vpop.f32.mrb[0].mxu0
  %v1596 = vpop.f32.mrb[0].mxu0
  %v1597 = vpop.f32.mrb[0].mxu0
  %1598 = vdwg.mxu0
  %v1599 = vmax.f32 %v1207, %v1594
  %v1600 = vld [vmem:[%s2] sm:$0xff]
  %v1601 = vld [vmem:[%s2 + $0x8] sm:$0x1f]
  %v1604 = vcombine.high %v1600, %v1600
  %v1606 = vunpack.c.l.s4 1966171168
  %v1607 = vunpack.c.0.s8 %v1606
  %v1608 = vlaneseq
  %v1609 = vshrl.u32 %v1608, 7
  %v1610 = vsub.s32 %v1607, %v1609
  %v1611 = vrot.slane %v1600, %v1610
  %v1613 = vunpack.c.l.s4 1966171168
  %v1614 = vunpack.c.0.s8 %v1613
  %v1615 = vlaneseq
  %v1616 = vshrl.u32 %v1615, 7
  %v1617 = vsub.s32 %v1614, %v1616
  %v1618 = vrot.slane %v1604, %v1617
  %v1619 = vcombine.high %v1611, %v1611
  %v1620 = vcombine.high %v1618, %v1618
  %v1622 = vunpack.c.l.s4 1966171168
  %v1623 = vunpack.c.0.s8 %v1622
  %v1624 = vlaneseq
  %v1625 = vshrl.u32 %v1624, 7
  %v1626 = vsub.s32 %v1623, %v1625
  %v1627 = vrot.slane %v1611, %v1626
  %v1629 = vunpack.c.l.s4 1966171168
  %v1630 = vunpack.c.0.s8 %v1629
  %v1631 = vlaneseq
  %v1632 = vshrl.u32 %v1631, 7
  %v1633 = vsub.s32 %v1630, %v1632
  %v1634 = vrot.slane %v1618, %v1633
  %v1636 = vunpack.c.l.s4 1966171168
  %v1637 = vunpack.c.0.s8 %v1636
  %v1638 = vlaneseq
  %v1639 = vshrl.u32 %v1638, 7
  %v1640 = vsub.s32 %v1637, %v1639
  %v1641 = vrot.slane %v1619, %v1640
  %v1643 = vunpack.c.l.s4 1966171168
  %v1644 = vunpack.c.0.s8 %v1643
  %v1645 = vlaneseq
  %v1646 = vshrl.u32 %v1645, 7
  %v1647 = vsub.s32 %v1644, %v1646
  %v1648 = vrot.slane %v1620, %v1647
  %v1649 = vcombine.high %v1627, %v1627
  %v1650 = vcombine.high %v1634, %v1634
  %v1651 = vcombine.high %v1641, %v1641
  %v1652 = vcombine.high %v1648, %v1648
  %v1653 = vcombine.high %v1601, %v1601
  %v1655 = vunpack.c.l.s4 1966171168
  %v1656 = vunpack.c.0.s8 %v1655
  %v1657 = vlaneseq
  %v1658 = vshrl.u32 %v1657, 7
  %v1659 = vsub.s32 %v1656, %v1658
  %v1660 = vrot.slane %v1601, %v1659
  %v1662 = vunpack.c.l.s4 1966171168
  %v1663 = vunpack.c.0.s8 %v1662
  %v1664 = vlaneseq
  %v1665 = vshrl.u32 %v1664, 7
  %v1666 = vsub.s32 %v1663, %v1665
  %v1667 = vrot.slane %v1653, %v1666
  %v1668 = vcombine.high %v1660, %v1660
  %v1670 = vunpack.c.l.s4 1966171168
  %v1671 = vunpack.c.0.s8 %v1670
  %v1672 = vlaneseq
  %v1673 = vshrl.u32 %v1672, 7
  %v1674 = vsub.s32 %v1671, %v1673
  %v1675 = vrot.slane %v1660, %v1674
  %v1677 = vunpack.c.l.s4 1966171168
  %v1678 = vunpack.c.0.s8 %v1677
  %v1679 = vlaneseq
  %v1680 = vshrl.u32 %v1679, 7
  %v1681 = vsub.s32 %v1678, %v1680
  %v1682 = vrot.slane %v1667, %v1681
  %v1684 = vunpack.c.l.s4 1966171168
  %v1685 = vunpack.c.0.s8 %v1684
  %v1686 = vlaneseq
  %v1687 = vshrl.u32 %v1686, 7
  %v1688 = vsub.s32 %v1685, %v1687
  %v1689 = vrot.slane %v1668, %v1688
  %v1690 = vcombine.high %v1675, %v1675
  %v1691 = vcombine.high %v1689, %v1689
  %v1705 = vsel %vm928, %v1682, 0
  %1707 = vmatprep.subr.bf16.mxu0 0
  %1708 = vmatpush1.bf16.msra.mxu0 %v728
  %1709 = vmatprep.subr.bf16.mxu0 0
  %1710 = vmatpush1.bf16.msra.mxu0 %v729
  %1711 = vmatprep.subr.bf16.mxu0 0
  %1712 = vmatpush1.bf16.msra.mxu0 %v730
  %1713 = vmatprep.subr.bf16.mxu0 0
  %1714 = vmatpush1.bf16.msra.mxu0 %v731
  %1715 = vmatprep.subr.bf16.mxu0 0
  %1716 = vmatpush1.bf16.msra.mxu0 %v732
  %1717 = vmatprep.subr.bf16.mxu0 0
  %1718 = vmatpush1.bf16.msra.mxu0 %v733
  %1719 = vmatprep.subr.bf16.mxu0 0
  %1720 = vmatpush1.bf16.msra.mxu0 %v734
  %1721 = vmatprep.subr.bf16.mxu0 0
  %1722 = vmatpush1.bf16.msra.mxu0 %v735
  %1723 = vmatprep.subr.bf16.mxu0 0
  %1724 = vmatpush1.bf16.msra.mxu0 %v736
  %1725 = vmatprep.subr.bf16.mxu0 0
  %1726 = vmatpush1.bf16.msra.mxu0 %v737
  %1727 = vmatprep.subr.bf16.mxu0 0
  %1728 = vmatpush1.bf16.msra.mxu0 %v738
  %1729 = vmatprep.subr.bf16.mxu0 0
  %1730 = vmatpush1.bf16.msra.mxu0 %v739
  %1731 = vmatprep.subr.bf16.mxu0 0
  %1732 = vmatpush1.bf16.msra.mxu0 %v740
  %1733 = vmatprep.subr.bf16.mxu0 0
  %1734 = vmatpush1.bf16.msra.mxu0 %v741
  %1735 = vmatprep.subr.bf16.mxu0 0
  %1736 = vmatpush1.bf16.msra.mxu0 %v742
  %1737 = vmatprep.subr.bf16.mxu0 0
  %1738 = vmatpush1.bf16.msra.mxu0 %v743
  %1739 = vmatprep.mubr.bf16.mxu0 %v1641
  %1740 = vmatmul.mubr.bf16.gmra.mrb[0].mxu0 %v1627
  %v1741 = vpop.f32.mrb[0].mxu0
  %v1742 = vadd.f32 0.0, %v1741
  %v1743 = vpop.f32.mrb[0].mxu0
  %v1744 = vpop.f32.mrb[0].mxu0
  %v1745 = vpop.f32.mrb[0].mxu0
  %1746 = vdwg.mxu0
  %1747 = vmatprep.subr.bf16.mxu0 0
  %1748 = vmatpush1.bf16.msra.mxu0 %v744
  %1749 = vmatprep.subr.bf16.mxu0 0
  %1750 = vmatpush1.bf16.msra.mxu0 %v745
  %1751 = vmatprep.subr.bf16.mxu0 0
  %1752 = vmatpush1.bf16.msra.mxu0 %v746
  %1753 = vmatprep.subr.bf16.mxu0 0
  %1754 = vmatpush1.bf16.msra.mxu0 %v747
  %1755 = vmatprep.subr.bf16.mxu0 0
  %1756 = vmatpush1.bf16.msra.mxu0 %v748
  %1757 = vmatprep.subr.bf16.mxu0 0
  %1758 = vmatpush1.bf16.msra.mxu0 %v749
  %1759 = vmatprep.subr.bf16.mxu0 0
  %1760 = vmatpush1.bf16.msra.mxu0 %v750
  %1761 = vmatprep.subr.bf16.mxu0 0
  %1762 = vmatpush1.bf16.msra.mxu0 %v751
  %1763 = vmatprep.subr.bf16.mxu0 0
  %1764 = vmatpush1.bf16.msra.mxu0 %v752
  %1765 = vmatprep.subr.bf16.mxu0 0
  %1766 = vmatpush1.bf16.msra.mxu0 %v753
  %1767 = vmatprep.subr.bf16.mxu0 0
  %1768 = vmatpush1.bf16.msra.mxu0 %v754
  %1769 = vmatprep.subr.bf16.mxu0 0
  %1770 = vmatpush1.bf16.msra.mxu0 %v755
  %1771 = vmatprep.subr.bf16.mxu0 0
  %1772 = vmatpush1.bf16.msra.mxu0 %v756
  %1773 = vmatprep.subr.bf16.mxu0 0
  %1774 = vmatpush1.bf16.msra.mxu0 %v757
  %1775 = vmatprep.subr.bf16.mxu0 0
  %1776 = vmatpush1.bf16.msra.mxu0 %v758
  %1777 = vmatprep.subr.bf16.mxu0 0
  %1778 = vmatpush1.bf16.msra.mxu0 %v759
  %1779 = vmatprep.mubr.bf16.mxu0 %v1651
  %1780 = vmatmul.mubr.bf16.gmra.mrb[0].mxu0 %v1649
  %v1781 = vpop.f32.mrb[0].mxu0
  %v1782 = vadd.f32 %v1742, %v1781
  %v1783 = vpop.f32.mrb[0].mxu0
  %v1784 = vpop.f32.mrb[0].mxu0
  %v1785 = vpop.f32.mrb[0].mxu0
  %1786 = vdwg.mxu0
  %1787 = vmatprep.subr.bf16.mxu0 0
  %1788 = vmatpush1.bf16.msra.mxu0 %v760
  %1789 = vmatprep.subr.bf16.mxu0 0
  %1790 = vmatpush1.bf16.msra.mxu0 %v761
  %1791 = vmatprep.subr.bf16.mxu0 0
  %1792 = vmatpush1.bf16.msra.mxu0 %v762
  %1793 = vmatprep.subr.bf16.mxu0 0
  %1794 = vmatpush1.bf16.msra.mxu0 %v763
  %1795 = vmatprep.subr.bf16.mxu0 0
  %1796 = vmatpush1.bf16.msra.mxu0 %v764
  %1797 = vmatprep.subr.bf16.mxu0 0
  %1798 = vmatpush1.bf16.msra.mxu0 %v765
  %1799 = vmatprep.subr.bf16.mxu0 0
  %1800 = vmatpush1.bf16.msra.mxu0 %v766
  %1801 = vmatprep.subr.bf16.mxu0 0
  %1802 = vmatpush1.bf16.msra.mxu0 %v767
  %1803 = vmatprep.subr.bf16.mxu0 0
  %1804 = vmatpush1.bf16.msra.mxu0 %v768
  %1805 = vmatprep.subr.bf16.mxu0 0
  %1806 = vmatpush1.bf16.msra.mxu0 %v769
  %1807 = vmatprep.subr.bf16.mxu0 0
  %1808 = vmatpush1.bf16.msra.mxu0 %v770
  %1809 = vmatprep.subr.bf16.mxu0 0
  %1810 = vmatpush1.bf16.msra.mxu0 %v771
  %1811 = vmatprep.subr.bf16.mxu0 0
  %1812 = vmatpush1.bf16.msra.mxu0 %v772
  %1813 = vmatprep.subr.bf16.mxu0 0
  %1814 = vmatpush1.bf16.msra.mxu0 %v773
  %1815 = vmatprep.subr.bf16.mxu0 0
  %1816 = vmatpush1.bf16.msra.mxu0 %v774
  %1817 = vmatprep.subr.bf16.mxu0 0
  %1818 = vmatpush1.bf16.msra.mxu0 %v775
  %1819 = vmatprep.mubr.bf16.mxu0 %v1648
  %1820 = vmatmul.mubr.bf16.gmra.mrb[0].mxu0 %v1634
  %v1821 = vpop.f32.mrb[0].mxu0
  %v1822 = vadd.f32 %v1782, %v1821
  %v1823 = vpop.f32.mrb[0].mxu0
  %v1824 = vpop.f32.mrb[0].mxu0
  %v1825 = vpop.f32.mrb[0].mxu0
  %1826 = vdwg.mxu0
  %1827 = vmatprep.subr.bf16.mxu0 0
  %1828 = vmatpush1.bf16.msra.mxu0 %v776
  %1829 = vmatprep.subr.bf16.mxu0 0
  %1830 = vmatpush1.bf16.msra.mxu0 %v777
  %1831 = vmatprep.subr.bf16.mxu0 0
  %1832 = vmatpush1.bf16.msra.mxu0 %v778
  %1833 = vmatprep.subr.bf16.mxu0 0
  %1834 = vmatpush1.bf16.msra.mxu0 %v779
  %1835 = vmatprep.subr.bf16.mxu0 0
  %1836 = vmatpush1.bf16.msra.mxu0 %v780
  %1837 = vmatprep.subr.bf16.mxu0 0
  %1838 = vmatpush1.bf16.msra.mxu0 %v781
  %1839 = vmatprep.subr.bf16.mxu0 0
  %1840 = vmatpush1.bf16.msra.mxu0 %v782
  %1841 = vmatprep.subr.bf16.mxu0 0
  %1842 = vmatpush1.bf16.msra.mxu0 %v783
  %1843 = vmatprep.subr.bf16.mxu0 0
  %1844 = vmatpush1.bf16.msra.mxu0 %v784
  %1845 = vmatprep.subr.bf16.mxu0 0
  %1846 = vmatpush1.bf16.msra.mxu0 %v785
  %1847 = vmatprep.subr.bf16.mxu0 0
  %1848 = vmatpush1.bf16.msra.mxu0 %v786
  %1849 = vmatprep.subr.bf16.mxu0 0
  %1850 = vmatpush1.bf16.msra.mxu0 %v787
  %1851 = vmatprep.subr.bf16.mxu0 0
  %1852 = vmatpush1.bf16.msra.mxu0 %v788
  %1853 = vmatprep.subr.bf16.mxu0 0
  %1854 = vmatpush1.bf16.msra.mxu0 %v789
  %1855 = vmatprep.subr.bf16.mxu0 0
  %1856 = vmatpush1.bf16.msra.mxu0 %v790
  %1857 = vmatprep.subr.bf16.mxu0 0
  %1858 = vmatpush1.bf16.msra.mxu0 %v791
  %1859 = vmatprep.mubr.bf16.mxu0 %v1652
  %1860 = vmatmul.mubr.bf16.gmra.mrb[0].mxu0 %v1650
  %v1861 = vpop.f32.mrb[0].mxu0
  %v1862 = vadd.f32 %v1822, %v1861
  %v1863 = vpop.f32.mrb[0].mxu0
  %v1864 = vpop.f32.mrb[0].mxu0
  %v1865 = vpop.f32.mrb[0].mxu0
  %1866 = vdwg.mxu0
  %1867 = vmatprep.subr.bf16.mxu0 0
  %1868 = vmatpush1.bf16.msra.mxu0 %v792
  %1869 = vmatprep.subr.bf16.mxu0 0
  %1870 = vmatpush1.bf16.msra.mxu0 %v793
  %1871 = vmatprep.subr.bf16.mxu0 0
  %1872 = vmatpush1.bf16.msra.mxu0 %v794
  %1873 = vmatprep.subr.bf16.mxu0 0
  %1874 = vmatpush1.bf16.msra.mxu0 %v795
  %1875 = vmatprep.subr.bf16.mxu0 0
  %1876 = vmatpush1.bf16.msra.mxu0 %v796
  %1877 = vmatprep.subr.bf16.mxu0 0
  %1878 = vmatpush1.bf16.msra.mxu0 %v797
  %1879 = vmatprep.subr.bf16.mxu0 0
  %1880 = vmatpush1.bf16.msra.mxu0 %v798
  %1881 = vmatprep.subr.bf16.mxu0 0
  %1882 = vmatpush1.bf16.msra.mxu0 %v799
  %1883 = vmatprep.subr.bf16.mxu0 0
  %1884 = vmatpush1.bf16.msra.mxu0 %v800
  %1885 = vmatprep.subr.bf16.mxu0 0
  %1886 = vmatpush1.bf16.msra.mxu0 %v801
  %1887 = vmatprep.subr.bf16.mxu0 0
  %1888 = vmatpush1.bf16.msra.mxu0 %v802
  %1889 = vmatprep.subr.bf16.mxu0 0
  %1890 = vmatpush1.bf16.msra.mxu0 %v803
  %1891 = vmatprep.subr.bf16.mxu0 0
  %1892 = vmatpush1.bf16.msra.mxu0 %v804
  %1893 = vmatprep.subr.bf16.mxu0 0
  %1894 = vmatpush1.bf16.msra.mxu0 %v805
  %1895 = vmatprep.subr.bf16.mxu0 0
  %1896 = vmatpush1.bf16.msra.mxu0 %v806
  %1897 = vmatprep.subr.bf16.mxu0 0
  %1898 = vmatpush1.bf16.msra.mxu0 %v807
  %1899 = vmatprep.mubr.bf16.mxu0 %v1689
  %1900 = vmatmul.mubr.bf16.gmra.mrb[0].mxu0 %v1675
  %v1901 = vpop.f32.mrb[0].mxu0
  %v1902 = vadd.f32 %v1862, %v1901
  %v1903 = vpop.f32.mrb[0].mxu0
  %v1904 = vpop.f32.mrb[0].mxu0
  %v1905 = vpop.f32.mrb[0].mxu0
  %1906 = vdwg.mxu0
  %1907 = vmatprep.subr.bf16.mxu0 0
  %1908 = vmatpush1.bf16.msra.mxu0 %v808
  %1909 = vmatprep.subr.bf16.mxu0 0
  %1910 = vmatpush1.bf16.msra.mxu0 %v809
  %1911 = vmatprep.subr.bf16.mxu0 0
  %1912 = vmatpush1.bf16.msra.mxu0 %v810
  %1913 = vmatprep.subr.bf16.mxu0 0
  %1914 = vmatpush1.bf16.msra.mxu0 %v811
  %1915 = vmatprep.subr.bf16.mxu0 0
  %1916 = vmatpush1.bf16.msra.mxu0 %v812
  %1917 = vmatprep.subr.bf16.mxu0 0
  %1918 = vmatpush1.bf16.msra.mxu0 %v813
  %1919 = vmatprep.subr.bf16.mxu0 0
  %1920 = vmatpush1.bf16.msra.mxu0 %v814
  %1921 = vmatprep.subr.bf16.mxu0 0
  %1922 = vmatpush1.bf16.msra.mxu0 %v815
  %1923 = vmatprep.subr.bf16.mxu0 0
  %1924 = vmatpush1.bf16.msra.mxu0 %v816
  %1925 = vmatprep.subr.bf16.mxu0 0
  %1926 = vmatpush1.bf16.msra.mxu0 %v817
  %1927 = vmatprep.subr.bf16.mxu0 0
  %1928 = vmatpush1.bf16.msra.mxu0 %v818
  %1929 = vmatprep.subr.bf16.mxu0 0
  %1930 = vmatpush1.bf16.msra.mxu0 %v819
  %1931 = vmatprep.subr.bf16.mxu0 0
  %1932 = vmatpush1.bf16.msra.mxu0 %v820
  %1933 = vmatprep.subr.bf16.mxu0 0
  %1934 = vmatpush1.bf16.msra.mxu0 %v821
  %1935 = vmatprep.subr.bf16.mxu0 0
  %1936 = vmatpush1.bf16.msra.mxu0 %v822
  %1937 = vmatprep.subr.bf16.mxu0 0
  %1938 = vmatpush1.bf16.msra.mxu0 %v823
  %1939 = vmatprep.mubr.bf16.mxu0 %v1691
  %1940 = vmatmul.mubr.bf16.gmra.mrb[0].mxu0 %v1690
  %v1941 = vpop.f32.mrb[0].mxu0
  %v1942 = vadd.f32 %v1902, %v1941
  %v1943 = vpop.f32.mrb[0].mxu0
  %v1944 = vpop.f32.mrb[0].mxu0
  %v1945 = vpop.f32.mrb[0].mxu0
  %1946 = vdwg.mxu0
  %1947 = vmatprep.subr.bf16.mxu0 0
  %1948 = vmatpush1.bf16.msra.mxu0 %v824
  %1949 = vmatprep.subr.bf16.mxu0 0
  %1950 = vmatpush1.bf16.msra.mxu0 %v825
  %1951 = vmatprep.subr.bf16.mxu0 0
  %1952 = vmatpush1.bf16.msra.mxu0 %v826
  %1953 = vmatprep.subr.bf16.mxu0 0
  %1954 = vmatpush1.bf16.msra.mxu0 %v827
  %1955 = vmatprep.subr.bf16.mxu0 0
  %1956 = vmatpush1.bf16.msra.mxu0 0
  %1957 = vmatprep.subr.bf16.mxu0 0
  %1958 = vmatpush1.bf16.msra.mxu0 0
  %1959 = vmatprep.subr.bf16.mxu0 0
  %1960 = vmatpush1.bf16.msra.mxu0 0
  %1961 = vmatprep.subr.bf16.mxu0 0
  %1962 = vmatpush1.bf16.msra.mxu0 0
  %1963 = vmatprep.subr.bf16.mxu0 0
  %1964 = vmatpush1.bf16.msra.mxu0 0
  %1965 = vmatprep.subr.bf16.mxu0 0
  %1966 = vmatpush1.bf16.msra.mxu0 0
  %1967 = vmatprep.subr.bf16.mxu0 0
  %1968 = vmatpush1.bf16.msra.mxu0 0
  %1969 = vmatprep.subr.bf16.mxu0 0
  %1970 = vmatpush1.bf16.msra.mxu0 0
  %1971 = vmatprep.subr.bf16.mxu0 0
  %1972 = vmatpush1.bf16.msra.mxu0 0
  %1973 = vmatprep.subr.bf16.mxu0 0
  %1974 = vmatpush1.bf16.msra.mxu0 0
  %1975 = vmatprep.subr.bf16.mxu0 0
  %1976 = vmatpush1.bf16.msra.mxu0 0
  %1977 = vmatprep.subr.bf16.mxu0 0
  %1978 = vmatpush1.bf16.msra.mxu0 0
  %1979 = vmatprep.mubr.bf16.mxu0 0
  %1980 = vmatmul.mubr.bf16.gmra.mrb[0].mxu0 %v1705
  %v1981 = vpop.f32.mrb[0].mxu0
  %v1982 = vadd.f32 %v1942, %v1981
  %v1983 = vpop.f32.mrb[0].mxu0
  %v1984 = vpop.f32.mrb[0].mxu0
  %v1985 = vpop.f32.mrb[0].mxu0
  %1986 = vdwg.mxu0
  %v1987 = vld [vmem:[%s3] sm:$0xff]
  %v1988 = vld [vmem:[%s3 + $0x8] sm:$0x1f]
  %v1991 = vcombine.high %v1987, %v1987
  %v1993 = vunpack.c.l.s4 1966171168
  %v1994 = vunpack.c.0.s8 %v1993
  %v1995 = vlaneseq
  %v1996 = vshrl.u32 %v1995, 7
  %v1997 = vsub.s32 %v1994, %v1996
  %v1998 = vrot.slane %v1987, %v1997
  %v2000 = vunpack.c.l.s4 1966171168
  %v2001 = vunpack.c.0.s8 %v2000
  %v2002 = vlaneseq
  %v2003 = vshrl.u32 %v2002, 7
  %v2004 = vsub.s32 %v2001, %v2003
  %v2005 = vrot.slane %v1991, %v2004
  %v2006 = vcombine.high %v1998, %v1998
  %v2007 = vcombine.high %v2005, %v2005
  %v2009 = vunpack.c.l.s4 1966171168
  %v2010 = vunpack.c.0.s8 %v2009
  %v2011 = vlaneseq
  %v2012 = vshrl.u32 %v2011, 7
  %v2013 = vsub.s32 %v2010, %v2012
  %v2014 = vrot.slane %v1998, %v2013
  %v2016 = vunpack.c.l.s4 1966171168
  %v2017 = vunpack.c.0.s8 %v2016
  %v2018 = vlaneseq
  %v2019 = vshrl.u32 %v2018, 7
  %v2020 = vsub.s32 %v2017, %v2019
  %v2021 = vrot.slane %v2005, %v2020
  %v2023 = vunpack.c.l.s4 1966171168
  %v2024 = vunpack.c.0.s8 %v2023
  %v2025 = vlaneseq
  %v2026 = vshrl.u32 %v2025, 7
  %v2027 = vsub.s32 %v2024, %v2026
  %v2028 = vrot.slane %v2006, %v2027
  %v2030 = vunpack.c.l.s4 1966171168
  %v2031 = vunpack.c.0.s8 %v2030
  %v2032 = vlaneseq
  %v2033 = vshrl.u32 %v2032, 7
  %v2034 = vsub.s32 %v2031, %v2033
  %v2035 = vrot.slane %v2007, %v2034
  %v2036 = vcombine.high %v2014, %v2014
  %v2037 = vcombine.high %v2021, %v2021
  %v2038 = vcombine.high %v2028, %v2028
  %v2039 = vcombine.high %v2035, %v2035
  %v2040 = vcombine.high %v1988, %v1988
  %v2042 = vunpack.c.l.s4 1966171168
  %v2043 = vunpack.c.0.s8 %v2042
  %v2044 = vlaneseq
  %v2045 = vshrl.u32 %v2044, 7
  %v2046 = vsub.s32 %v2043, %v2045
  %v2047 = vrot.slane %v1988, %v2046
  %v2049 = vunpack.c.l.s4 1966171168
  %v2050 = vunpack.c.0.s8 %v2049
  %v2051 = vlaneseq
  %v2052 = vshrl.u32 %v2051, 7
  %v2053 = vsub.s32 %v2050, %v2052
  %v2054 = vrot.slane %v2040, %v2053
  %v2055 = vcombine.high %v2047, %v2047
  %v2057 = vunpack.c.l.s4 1966171168
  %v2058 = vunpack.c.0.s8 %v2057
  %v2059 = vlaneseq
  %v2060 = vshrl.u32 %v2059, 7
  %v2061 = vsub.s32 %v2058, %v2060
  %v2062 = vrot.slane %v2047, %v2061
  %v2064 = vunpack.c.l.s4 1966171168
  %v2065 = vunpack.c.0.s8 %v2064
  %v2066 = vlaneseq
  %v2067 = vshrl.u32 %v2066, 7
  %v2068 = vsub.s32 %v2065, %v2067
  %v2069 = vrot.slane %v2054, %v2068
  %v2071 = vunpack.c.l.s4 1966171168
  %v2072 = vunpack.c.0.s8 %v2071
  %v2073 = vlaneseq
  %v2074 = vshrl.u32 %v2073, 7
  %v2075 = vsub.s32 %v2072, %v2074
  %v2076 = vrot.slane %v2055, %v2075
  %v2077 = vcombine.high %v2062, %v2062
  %v2078 = vcombine.high %v2076, %v2076
  %v2092 = vsel %vm928, %v2069, 0
  %2094 = vmatprep.subr.bf16.mxu0 0
  %2095 = vmatpush1.bf16.msra.mxu0 %v728
  %2096 = vmatprep.subr.bf16.mxu0 0
  %2097 = vmatpush1.bf16.msra.mxu0 %v729
  %2098 = vmatprep.subr.bf16.mxu0 0
  %2099 = vmatpush1.bf16.msra.mxu0 %v730
  %2100 = vmatprep.subr.bf16.mxu0 0
  %2101 = vmatpush1.bf16.msra.mxu0 %v731
  %2102 = vmatprep.subr.bf16.mxu0 0
  %2103 = vmatpush1.bf16.msra.mxu0 %v732
  %2104 = vmatprep.subr.bf16.mxu0 0
  %2105 = vmatpush1.bf16.msra.mxu0 %v733
  %2106 = vmatprep.subr.bf16.mxu0 0
  %2107 = vmatpush1.bf16.msra.mxu0 %v734
  %2108 = vmatprep.subr.bf16.mxu0 0
  %2109 = vmatpush1.bf16.msra.mxu0 %v735
  %2110 = vmatprep.subr.bf16.mxu0 0
  %2111 = vmatpush1.bf16.msra.mxu0 %v736
  %2112 = vmatprep.subr.bf16.mxu0 0
  %2113 = vmatpush1.bf16.msra.mxu0 %v737
  %2114 = vmatprep.subr.bf16.mxu0 0
  %2115 = vmatpush1.bf16.msra.mxu0 %v738
  %2116 = vmatprep.subr.bf16.mxu0 0
  %2117 = vmatpush1.bf16.msra.mxu0 %v739
  %2118 = vmatprep.subr.bf16.mxu0 0
  %2119 = vmatpush1.bf16.msra.mxu0 %v740
  %2120 = vmatprep.subr.bf16.mxu0 0
  %2121 = vmatpush1.bf16.msra.mxu0 %v741
  %2122 = vmatprep.subr.bf16.mxu0 0
  %2123 = vmatpush1.bf16.msra.mxu0 %v742
  %2124 = vmatprep.subr.bf16.mxu0 0
  %2125 = vmatpush1.bf16.msra.mxu0 %v743
  %2126 = vmatprep.mubr.bf16.mxu0 %v2028
  %2127 = vmatmul.mubr.bf16.gmra.mrb[0].mxu0 %v2014
  %v2128 = vpop.f32.mrb[0].mxu0
  %v2129 = vadd.f32 0.0, %v2128
  %v2130 = vpop.f32.mrb[0].mxu0
  %v2131 = vpop.f32.mrb[0].mxu0
  %v2132 = vpop.f32.mrb[0].mxu0
  %2133 = vdwg.mxu0
  %2134 = vmatprep.subr.bf16.mxu0 0
  %2135 = vmatpush1.bf16.msra.mxu0 %v744
  %2136 = vmatprep.subr.bf16.mxu0 0
  %2137 = vmatpush1.bf16.msra.mxu0 %v745
  %2138 = vmatprep.subr.bf16.mxu0 0
  %2139 = vmatpush1.bf16.msra.mxu0 %v746
  %2140 = vmatprep.subr.bf16.mxu0 0
  %2141 = vmatpush1.bf16.msra.mxu0 %v747
  %2142 = vmatprep.subr.bf16.mxu0 0
  %2143 = vmatpush1.bf16.msra.mxu0 %v748
  %2144 = vmatprep.subr.bf16.mxu0 0
  %2145 = vmatpush1.bf16.msra.mxu0 %v749
  %2146 = vmatprep.subr.bf16.mxu0 0
  %2147 = vmatpush1.bf16.msra.mxu0 %v750
  %2148 = vmatprep.subr.bf16.mxu0 0
  %2149 = vmatpush1.bf16.msra.mxu0 %v751
  %2150 = vmatprep.subr.bf16.mxu0 0
  %2151 = vmatpush1.bf16.msra.mxu0 %v752
  %2152 = vmatprep.subr.bf16.mxu0 0
  %2153 = vmatpush1.bf16.msra.mxu0 %v753
  %2154 = vmatprep.subr.bf16.mxu0 0
  %2155 = vmatpush1.bf16.msra.mxu0 %v754
  %2156 = vmatprep.subr.bf16.mxu0 0
  %2157 = vmatpush1.bf16.msra.mxu0 %v755
  %2158 = vmatprep.subr.bf16.mxu0 0
  %2159 = vmatpush1.bf16.msra.mxu0 %v756
  %2160 = vmatprep.subr.bf16.mxu0 0
  %2161 = vmatpush1.bf16.msra.mxu0 %v757
  %2162 = vmatprep.subr.bf16.mxu0 0
  %2163 = vmatpush1.bf16.msra.mxu0 %v758
  %2164 = vmatprep.subr.bf16.mxu0 0
  %2165 = vmatpush1.bf16.msra.mxu0 %v759
  %2166 = vmatprep.mubr.bf16.mxu0 %v2038
  %2167 = vmatmul.mubr.bf16.gmra.mrb[0].mxu0 %v2036
  %v2168 = vpop.f32.mrb[0].mxu0
  %v2169 = vadd.f32 %v2129, %v2168
  %v2170 = vpop.f32.mrb[0].mxu0
  %v2171 = vpop.f32.mrb[0].mxu0
  %v2172 = vpop.f32.mrb[0].mxu0
  %2173 = vdwg.mxu0
  %2174 = vmatprep.subr.bf16.mxu0 0
  %2175 = vmatpush1.bf16.msra.mxu0 %v760
  %2176 = vmatprep.subr.bf16.mxu0 0
  %2177 = vmatpush1.bf16.msra.mxu0 %v761
  %2178 = vmatprep.subr.bf16.mxu0 0
  %2179 = vmatpush1.bf16.msra.mxu0 %v762
  %2180 = vmatprep.subr.bf16.mxu0 0
  %2181 = vmatpush1.bf16.msra.mxu0 %v763
  %2182 = vmatprep.subr.bf16.mxu0 0
  %2183 = vmatpush1.bf16.msra.mxu0 %v764
  %2184 = vmatprep.subr.bf16.mxu0 0
  %2185 = vmatpush1.bf16.msra.mxu0 %v765
  %2186 = vmatprep.subr.bf16.mxu0 0
  %2187 = vmatpush1.bf16.msra.mxu0 %v766
  %2188 = vmatprep.subr.bf16.mxu0 0
  %2189 = vmatpush1.bf16.msra.mxu0 %v767
  %2190 = vmatprep.subr.bf16.mxu0 0
  %2191 = vmatpush1.bf16.msra.mxu0 %v768
  %2192 = vmatprep.subr.bf16.mxu0 0
  %2193 = vmatpush1.bf16.msra.mxu0 %v769
  %2194 = vmatprep.subr.bf16.mxu0 0
  %2195 = vmatpush1.bf16.msra.mxu0 %v770
  %2196 = vmatprep.subr.bf16.mxu0 0
  %2197 = vmatpush1.bf16.msra.mxu0 %v771
  %2198 = vmatprep.subr.bf16.mxu0 0
  %2199 = vmatpush1.bf16.msra.mxu0 %v772
  %2200 = vmatprep.subr.bf16.mxu0 0
  %2201 = vmatpush1.bf16.msra.mxu0 %v773
  %2202 = vmatprep.subr.bf16.mxu0 0
  %2203 = vmatpush1.bf16.msra.mxu0 %v774
  %2204 = vmatprep.subr.bf16.mxu0 0
  %2205 = vmatpush1.bf16.msra.mxu0 %v775
  %2206 = vmatprep.mubr.bf16.mxu0 %v2035
  %2207 = vmatmul.mubr.bf16.gmra.mrb[0].mxu0 %v2021
  %v2208 = vpop.f32.mrb[0].mxu0
  %v2209 = vadd.f32 %v2169, %v2208
  %v2210 = vpop.f32.mrb[0].mxu0
  %v2211 = vpop.f32.mrb[0].mxu0
  %v2212 = vpop.f32.mrb[0].mxu0
  %2213 = vdwg.mxu0
  %2214 = vmatprep.subr.bf16.mxu0 0
  %2215 = vmatpush1.bf16.msra.mxu0 %v776
  %2216 = vmatprep.subr.bf16.mxu0 0
  %2217 = vmatpush1.bf16.msra.mxu0 %v777
  %2218 = vmatprep.subr.bf16.mxu0 0
  %2219 = vmatpush1.bf16.msra.mxu0 %v778
  %2220 = vmatprep.subr.bf16.mxu0 0
  %2221 = vmatpush1.bf16.msra.mxu0 %v779
  %2222 = vmatprep.subr.bf16.mxu0 0
  %2223 = vmatpush1.bf16.msra.mxu0 %v780
  %2224 = vmatprep.subr.bf16.mxu0 0
  %2225 = vmatpush1.bf16.msra.mxu0 %v781
  %2226 = vmatprep.subr.bf16.mxu0 0
  %2227 = vmatpush1.bf16.msra.mxu0 %v782
  %2228 = vmatprep.subr.bf16.mxu0 0
  %2229 = vmatpush1.bf16.msra.mxu0 %v783
  %2230 = vmatprep.subr.bf16.mxu0 0
  %2231 = vmatpush1.bf16.msra.mxu0 %v784
  %2232 = vmatprep.subr.bf16.mxu0 0
  %2233 = vmatpush1.bf16.msra.mxu0 %v785
  %2234 = vmatprep.subr.bf16.mxu0 0
  %2235 = vmatpush1.bf16.msra.mxu0 %v786
  %2236 = vmatprep.subr.bf16.mxu0 0
  %2237 = vmatpush1.bf16.msra.mxu0 %v787
  %2238 = vmatprep.subr.bf16.mxu0 0
  %2239 = vmatpush1.bf16.msra.mxu0 %v788
  %2240 = vmatprep.subr.bf16.mxu0 0
  %2241 = vmatpush1.bf16.msra.mxu0 %v789
  %2242 = vmatprep.subr.bf16.mxu0 0
  %2243 = vmatpush1.bf16.msra.mxu0 %v790
  %2244 = vmatprep.subr.bf16.mxu0 0
  %2245 = vmatpush1.bf16.msra.mxu0 %v791
  %2246 = vmatprep.mubr.bf16.mxu0 %v2039
  %2247 = vmatmul.mubr.bf16.gmra.mrb[0].mxu0 %v2037
  %v2248 = vpop.f32.mrb[0].mxu0
  %v2249 = vadd.f32 %v2209, %v2248
  %v2250 = vpop.f32.mrb[0].mxu0
  %v2251 = vpop.f32.mrb[0].mxu0
  %v2252 = vpop.f32.mrb[0].mxu0
  %2253 = vdwg.mxu0
  %2254 = vmatprep.subr.bf16.mxu0 0
  %2255 = vmatpush1.bf16.msra.mxu0 %v792
  %2256 = vmatprep.subr.bf16.mxu0 0
  %2257 = vmatpush1.bf16.msra.mxu0 %v793
  %2258 = vmatprep.subr.bf16.mxu0 0
  %2259 = vmatpush1.bf16.msra.mxu0 %v794
  %2260 = vmatprep.subr.bf16.mxu0 0
  %2261 = vmatpush1.bf16.msra.mxu0 %v795
  %2262 = vmatprep.subr.bf16.mxu0 0
  %2263 = vmatpush1.bf16.msra.mxu0 %v796
  %2264 = vmatprep.subr.bf16.mxu0 0
  %2265 = vmatpush1.bf16.msra.mxu0 %v797
  %2266 = vmatprep.subr.bf16.mxu0 0
  %2267 = vmatpush1.bf16.msra.mxu0 %v798
  %2268 = vmatprep.subr.bf16.mxu0 0
  %2269 = vmatpush1.bf16.msra.mxu0 %v799
  %2270 = vmatprep.subr.bf16.mxu0 0
  %2271 = vmatpush1.bf16.msra.mxu0 %v800
  %2272 = vmatprep.subr.bf16.mxu0 0
  %2273 = vmatpush1.bf16.msra.mxu0 %v801
  %2274 = vmatprep.subr.bf16.mxu0 0
  %2275 = vmatpush1.bf16.msra.mxu0 %v802
  %2276 = vmatprep.subr.bf16.mxu0 0
  %2277 = vmatpush1.bf16.msra.mxu0 %v803
  %2278 = vmatprep.subr.bf16.mxu0 0
  %2279 = vmatpush1.bf16.msra.mxu0 %v804
  %2280 = vmatprep.subr.bf16.mxu0 0
  %2281 = vmatpush1.bf16.msra.mxu0 %v805
  %2282 = vmatprep.subr.bf16.mxu0 0
  %2283 = vmatpush1.bf16.msra.mxu0 %v806
  %2284 = vmatprep.subr.bf16.mxu0 0
  %2285 = vmatpush1.bf16.msra.mxu0 %v807
  %2286 = vmatprep.mubr.bf16.mxu0 %v2076
  %2287 = vmatmul.mubr.bf16.gmra.mrb[0].mxu0 %v2062
  %v2288 = vpop.f32.mrb[0].mxu0
  %v2289 = vadd.f32 %v2249, %v2288
  %v2290 = vpop.f32.mrb[0].mxu0
  %v2291 = vpop.f32.mrb[0].mxu0
  %v2292 = vpop.f32.mrb[0].mxu0
  %2293 = vdwg.mxu0
  %2294 = vmatprep.subr.bf16.mxu0 0
  %2295 = vmatpush1.bf16.msra.mxu0 %v808
  %2296 = vmatprep.subr.bf16.mxu0 0
  %2297 = vmatpush1.bf16.msra.mxu0 %v809
  %2298 = vmatprep.subr.bf16.mxu0 0
  %2299 = vmatpush1.bf16.msra.mxu0 %v810
  %2300 = vmatprep.subr.bf16.mxu0 0
  %2301 = vmatpush1.bf16.msra.mxu0 %v811
  %2302 = vmatprep.subr.bf16.mxu0 0
  %2303 = vmatpush1.bf16.msra.mxu0 %v812
  %2304 = vmatprep.subr.bf16.mxu0 0
  %2305 = vmatpush1.bf16.msra.mxu0 %v813
  %2306 = vmatprep.subr.bf16.mxu0 0
  %2307 = vmatpush1.bf16.msra.mxu0 %v814
  %2308 = vmatprep.subr.bf16.mxu0 0
  %2309 = vmatpush1.bf16.msra.mxu0 %v815
  %2310 = vmatprep.subr.bf16.mxu0 0
  %2311 = vmatpush1.bf16.msra.mxu0 %v816
  %2312 = vmatprep.subr.bf16.mxu0 0
  %2313 = vmatpush1.bf16.msra.mxu0 %v817
  %2314 = vmatprep.subr.bf16.mxu0 0
  %2315 = vmatpush1.bf16.msra.mxu0 %v818
  %2316 = vmatprep.subr.bf16.mxu0 0
  %2317 = vmatpush1.bf16.msra.mxu0 %v819
  %2318 = vmatprep.subr.bf16.mxu0 0
  %2319 = vmatpush1.bf16.msra.mxu0 %v820
  %2320 = vmatprep.subr.bf16.mxu0 0
  %2321 = vmatpush1.bf16.msra.mxu0 %v821
  %2322 = vmatprep.subr.bf16.mxu0 0
  %2323 = vmatpush1.bf16.msra.mxu0 %v822
  %2324 = vmatprep.subr.bf16.mxu0 0
  %2325 = vmatpush1.bf16.msra.mxu0 %v823
  %2326 = vmatprep.mubr.bf16.mxu0 %v2078
  %2327 = vmatmul.mubr.bf16.gmra.mrb[0].mxu0 %v2077
  %v2328 = vpop.f32.mrb[0].mxu0
  %v2329 = vadd.f32 %v2289, %v2328
  %v2330 = vpop.f32.mrb[0].mxu0
  %v2331 = vpop.f32.mrb[0].mxu0
  %v2332 = vpop.f32.mrb[0].mxu0
  %2333 = vdwg.mxu0
  %2334 = vmatprep.subr.bf16.mxu0 0
  %2335 = vmatpush1.bf16.msra.mxu0 %v824
  %2336 = vmatprep.subr.bf16.mxu0 0
  %2337 = vmatpush1.bf16.msra.mxu0 %v825
  %2338 = vmatprep.subr.bf16.mxu0 0
  %2339 = vmatpush1.bf16.msra.mxu0 %v826
  %2340 = vmatprep.subr.bf16.mxu0 0
  %2341 = vmatpush1.bf16.msra.mxu0 %v827
  %2342 = vmatprep.subr.bf16.mxu0 0
  %2343 = vmatpush1.bf16.msra.mxu0 0
  %2344 = vmatprep.subr.bf16.mxu0 0
  %2345 = vmatpush1.bf16.msra.mxu0 0
  %2346 = vmatprep.subr.bf16.mxu0 0
  %2347 = vmatpush1.bf16.msra.mxu0 0
  %2348 = vmatprep.subr.bf16.mxu0 0
  %2349 = vmatpush1.bf16.msra.mxu0 0
  %2350 = vmatprep.subr.bf16.mxu0 0
  %2351 = vmatpush1.bf16.msra.mxu0 0
  %2352 = vmatprep.subr.bf16.mxu0 0
  %2353 = vmatpush1.bf16.msra.mxu0 0
  %2354 = vmatprep.subr.bf16.mxu0 0
  %2355 = vmatpush1.bf16.msra.mxu0 0
  %2356 = vmatprep.subr.bf16.mxu0 0
  %2357 = vmatpush1.bf16.msra.mxu0 0
  %2358 = vmatprep.subr.bf16.mxu0 0
  %2359 = vmatpush1.bf16.msra.mxu0 0
  %2360 = vmatprep.subr.bf16.mxu0 0
  %2361 = vmatpush1.bf16.msra.mxu0 0
  %2362 = vmatprep.subr.bf16.mxu0 0
  %2363 = vmatpush1.bf16.msra.mxu0 0
  %2364 = vmatprep.subr.bf16.mxu0 0
  %2365 = vmatpush1.bf16.msra.mxu0 0
  %2366 = vmatprep.mubr.bf16.mxu0 0
  %2367 = vmatmul.mubr.bf16.gmra.mrb[0].mxu0 %v2092
  %v2368 = vpop.f32.mrb[0].mxu0
  %v2369 = vadd.f32 %v2329, %v2368
  %v2370 = vpop.f32.mrb[0].mxu0
  %v2371 = vpop.f32.mrb[0].mxu0
  %v2372 = vpop.f32.mrb[0].mxu0
  %2373 = vdwg.mxu0
  %v2374 = vmax.f32 %v1982, %v2369
  %v2375 = vmax.f32 %v1599, %v2374
  %v2376 = vld [vmem:[%s5] sm:$0x1]
  %v2378 = vlaneseq
  %v2379 = vshrl.u32 %v2378, 7
  %v2380 = vsub.s32 0, %v2379
  %v2381 = vrot.slane %v2376, %v2380
  %v2383 = vadd.f32 %v2375, %v2381
  %v2384 = vmax.f32 %v2383, 0.0
  %2385 = vst [vmem:[%s6] sm:$0x3] %v2384
  // Predicated region
  $region26: #{source_forward.7} parent=0 // pred_check
    _
  $region27: #{source_forward.7} parent=0 // pred_check_branch
    %2387 = sbr.rel (0) target = $region29
  $region28: #{source_forward.7} parent=0 // pred_region
    _
  $region29: #{source_forward.7} parent=0 // pred_fallthru
    _
  // Predicated region
  $region30: #{source_forward.7} parent=0 // pred_check
    _
  $region31: #{source_forward.7} parent=0 // pred_check_branch
    %2389 = sbr.rel (0) target = $region33
  $region32: #{source_forward.7} parent=0 // pred_region
    _
  $region33: #{source_forward.7} parent=0 // pred_fallthru
    _

// kernel: source_forward.9
$region0: #{source_forward.9}
  #allocation0 [shape = 'u32[]', space=smem, size = 0x4, offset = 0x4, fixed_abs, tag = 'smem constant byte address 0x4 - core index']
  #allocation1 [shape = 'u32[144,128]{1,0:T(1,128)}', space=vmem, size = 0x12000, scoped, tag = 'internal scratch']
  %s0 = inlined_call_operand.vmem [shape: bf16[2,128], index: 0, kind: input, shape index: {}]
  %s1 = inlined_call_operand.vmem [shape: bf16[128,128], index: 1, kind: input, shape index: {}]
  %s2 = inlined_call_operand.vmem [shape: f32[1,128], index: 2, kind: input, shape index: {}]
  %s3 = inlined_call_operand.hbm [shape: f32[2,128], index: 3, kind: output, shape index: {}]
  %s4 = sld [smem:[#allocation0]]
  $region22: #{source_forward.9} parent=0
    _
  %s6 = ssub.s32 1, %s4
  %s7 = scalar_select 0, %s6, %s4
  $region1: #{source_forward.9} parent=0
    #allocation2 [shape = 'u8[1024]{0}', space=vmem, size = 0x400, scoped, tag = 'output window, operand 0, single buffered']
    #allocation3 [shape = 's32[1]{0}', space=sflag, size = 0x4, scoped, tag = 'scoped memory for source_forward.9']
    %8 = vsyncpa [#allocation3], 0
    // Predicated region
    $region2: #{source_forward.9} parent=1 // pred_check
      _
    $region3: #{source_forward.9} parent=1 // pred_check_branch
      %10 = sbr.rel (0) target = $region5
    $region4: #{source_forward.9} parent=1 // pred_region
      _
    $region5: #{source_forward.9} parent=1 // pred_fallthru
      _
    // Predicated region
    $region6: #{source_forward.9} parent=1 // pred_check
      _
    $region7: #{source_forward.9} parent=1 // pred_check_branch
      %12 = sbr.rel (0) target = $region9
    $region8: #{source_forward.9} parent=1 // pred_region
      _
    $region9: #{source_forward.9} parent=1 // pred_fallthru
      _
    // Predicated region
    $region10: #{source_forward.9} parent=1 // pred_check
      _
    $region11: #{source_forward.9} parent=1 // pred_check_branch
      %14 = sbr.rel (0) target = $region13
    $region12: #{source_forward.9} parent=1 // pred_region
      _
    $region13: #{source_forward.9} parent=1 // pred_fallthru
      _
    %v16 = vld [vmem:[%s0] sm:$0x1]
    %v17 = vld [vmem:[%s1] sm:$0xf]
    %v18 = vld [vmem:[%s1 + $0x4] sm:$0xf]
    %v19 = vld [vmem:[%s1 + $0x8] sm:$0xf]
    %v20 = vld [vmem:[%s1 + $0xc] sm:$0xf]
    %v21 = vld [vmem:[%s1 + $0x10] sm:$0xf]
    %v22 = vld [vmem:[%s1 + $0x14] sm:$0xf]
    %v23 = vld [vmem:[%s1 + $0x18] sm:$0xf]
    %v24 = vld [vmem:[%s1 + $0x1c] sm:$0xf]
    %v25 = vld [vmem:[%s1 + $0x20] sm:$0xf]
    %v26 = vld [vmem:[%s1 + $0x24] sm:$0xf]
    %v27 = vld [vmem:[%s1 + $0x28] sm:$0xf]
    %v28 = vld [vmem:[%s1 + $0x2c] sm:$0xf]
    %v29 = vld [vmem:[%s1 + $0x30] sm:$0xf]
    %v30 = vld [vmem:[%s1 + $0x34] sm:$0xf]
    %v31 = vld [vmem:[%s1 + $0x38] sm:$0xf]
    %v32 = vld [vmem:[%s1 + $0x3c] sm:$0xf]
    %v33 = vld [vmem:[%s2] sm:$0x1]
    %v35 = vlaneseq
    %v36 = vshrl.u32 %v35, 7
    %v37 = vsub.s32 0, %v36
    %v38 = vrot.slane %v33, %v37
    %v56 = vunpack.c.l.b16 %v17
    %v57 = vunpack.c.l.b16 %v18
    %v58 = vunpack.c.l.b16 %v19
    %v59 = vunpack.c.l.b16 %v20
    %v60 = vunpack.c.l.b16 %v21
    %v61 = vunpack.c.l.b16 %v22
    %v62 = vunpack.c.l.b16 %v23
    %v63 = vunpack.c.l.b16 %v24
    %v64 = vunpack.c.l.b16 %v25
    %v65 = vunpack.c.l.b16 %v26
    %v66 = vunpack.c.l.b16 %v27
    %v67 = vunpack.c.l.b16 %v28
    %v68 = vunpack.c.l.b16 %v29
    %v69 = vunpack.c.l.b16 %v30
    %v70 = vunpack.c.l.b16 %v31
    %v71 = vunpack.c.l.b16 %v32
    %v72 = vpack.c.b16 %v57, %v56
    %v73 = vpack.c.b16 %v59, %v58
    %v74 = vpack.c.b16 %v61, %v60
    %v75 = vpack.c.b16 %v63, %v62
    %v76 = vpack.c.b16 %v65, %v64
    %v77 = vpack.c.b16 %v67, %v66
    %v78 = vpack.c.b16 %v69, %v68
    %v79 = vpack.c.b16 %v71, %v70
    %88 = vmatprep.subr.bf16.mxu0 0
    %89 = vmatpush1.bf16.msra.mxu0 %v72
    %90 = vmatprep.subr.bf16.mxu0 0
    %91 = vmatpush1.bf16.msra.mxu0 %v73
    %92 = vmatprep.subr.bf16.mxu0 0
    %93 = vmatpush1.bf16.msra.mxu0 %v74
    %94 = vmatprep.subr.bf16.mxu0 0
    %95 = vmatpush1.bf16.msra.mxu0 %v75
    %96 = vmatprep.subr.bf16.mxu0 0
    %97 = vmatpush1.bf16.msra.mxu0 %v76
    %98 = vmatprep.subr.bf16.mxu0 0
    %99 = vmatpush1.bf16.msra.mxu0 %v77
    %100 = vmatprep.subr.bf16.mxu0 0
    %101 = vmatpush1.bf16.msra.mxu0 %v78
    %102 = vmatprep.subr.bf16.mxu0 0
    %103 = vmatpush1.bf16.msra.mxu0 %v79
    %104 = vmatprep.subr.bf16.mxu0 0
    %105 = vmatpush1.bf16.msra.mxu0 0
    %106 = vmatprep.subr.bf16.mxu0 0
    %107 = vmatpush1.bf16.msra.mxu0 0
    %108 = vmatprep.subr.bf16.mxu0 0
    %109 = vmatpush1.bf16.msra.mxu0 0
    %110 = vmatprep.subr.bf16.mxu0 0
    %111 = vmatpush1.bf16.msra.mxu0 0
    %112 = vmatprep.subr.bf16.mxu0 0
    %113 = vmatpush1.bf16.msra.mxu0 0
    %114 = vmatprep.subr.bf16.mxu0 0
    %115 = vmatpush1.bf16.msra.mxu0 0
    %116 = vmatprep.subr.bf16.mxu0 0
    %117 = vmatpush1.bf16.msra.mxu0 0
    %118 = vmatprep.subr.bf16.mxu0 0
    %119 = vmatpush1.bf16.msra.mxu0 0
    %120 = vmatprep.mubr.bf16.mxu0 0
    %121 = vmatmul.mubr.bf16.gmra.mrb[0].mxu0 %v16
    %v122 = vpop.f32.mrb[0].mxu0
    %v123 = vadd.f32 %v38, %v122
    %v124 = vpop.f32.mrb[0].mxu0
    %v125 = vpop.f32.mrb[0].mxu0
    %v126 = vpop.f32.mrb[0].mxu0
    %127 = vdwg.mxu0
    %128 = vst [vmem:[#allocation2] sm:$0x3] %v123
    // Predicated region
    $region14: #{source_forward.9} parent=1 // pred_check
      _
    $region15: #{source_forward.9} parent=1 // pred_check_branch
      %130 = sbr.rel (0) target = $region17
    $region16: #{source_forward.9} parent=1 // pred_region
      %s132 = ssub.s32 32, 32
      %133 = vsyncadd [#allocation3], %s132
      %s135 = sshll.u32 [#allocation2], 4
      %s136 = int_to_ptr.vmem [resolvable:$true] %s135
      %138 = dma.vmem_to_hbm [thread:$0]  %s136, 32, %s3, [#allocation3]
    $region17: #{source_forward.9} parent=1 // pred_fallthru
      _
    // Predicated region
    $region18: #{source_forward.9} parent=1 // pred_check
      _
    $region19: #{source_forward.9} parent=1 // pred_check_branch
      %140 = sbr.rel (0) target = $region21
    $region20: #{source_forward.9} parent=1 // pred_region
      %141 = dma.done [#allocation3], 32
    $region21: #{source_forward.9} parent=1 // pred_fallthru
      _
    %142 = vsyncpa [#allocation3], 1

// kernel: source_forward.8
$region0: #{source_forward.8}
  #allocation0 [shape = 'u32[]', space=smem, size = 0x4, offset = 0x4, fixed_abs, tag = 'smem constant byte address 0x4 - core index']
  #allocation1 [shape = 'u32[144,128]{1,0:T(1,128)}', space=vmem, size = 0x12000, scoped, tag = 'internal scratch']
  %s0 = inlined_call_operand.vmem [shape: bf16[2,3200], index: 0, kind: input, shape index: {}]
  %s1 = inlined_call_operand.vmem [shape: bf16[3200,128], index: 1, kind: input, shape index: {}]
  %s2 = inlined_call_operand.vmem [shape: f32[1,128], index: 2, kind: input, shape index: {}]
  %s3 = inlined_call_operand.vmem [shape: f32[2,128], index: 3, kind: output, shape index: {}]
  %s4 = sld [smem:[#allocation0]]
  $region22: #{source_forward.8} parent=0
    _
  %s6 = ssub.s32 1, %s4
  %s7 = scalar_select 0, %s6, %s4
  // Predicated region
  $region2: #{source_forward.8} parent=0 // pred_check
    _
  $region3: #{source_forward.8} parent=0 // pred_check_branch
    %9 = sbr.rel (0) target = $region5
  $region4: #{source_forward.8} parent=0 // pred_region
    _
  $region5: #{source_forward.8} parent=0 // pred_fallthru
    _
  // Predicated region
  $region6: #{source_forward.8} parent=0 // pred_check
    _
  $region7: #{source_forward.8} parent=0 // pred_check_branch
    %11 = sbr.rel (0) target = $region9
  $region8: #{source_forward.8} parent=0 // pred_region
    _
  $region9: #{source_forward.8} parent=0 // pred_fallthru
    _
  // Predicated region
  $region10: #{source_forward.8} parent=0 // pred_check
    _
  $region11: #{source_forward.8} parent=0 // pred_check_branch
    %13 = sbr.rel (0) target = $region13
  $region12: #{source_forward.8} parent=0 // pred_region
    _
  $region13: #{source_forward.8} parent=0 // pred_fallthru
    _
  %v15 = vld [vmem:[%s0] sm:$0xff]
  %v16 = vld [vmem:[%s0 + $0x8] sm:$0xff]
  %v17 = vld [vmem:[%s0 + $0x10] sm:$0xff]
  %v18 = vld [vmem:[%s0 + $0x18] sm:$0x1]
  %v19 = vld [vmem:[%s1] sm:$0xf]
  %v20 = vld [vmem:[%s1 + $0x4] sm:$0xf]
  %v21 = vld [vmem:[%s1 + $0x8] sm:$0xf]
  %v22 = vld [vmem:[%s1 + $0xc] sm:$0xf]
  %v23 = vld [vmem:[%s1 + $0x10] sm:$0xf]
  %v24 = vld [vmem:[%s1 + $0x14] sm:$0xf]
  %v25 = vld [vmem:[%s1 + $0x18] sm:$0xf]
  %v26 = vld [vmem:[%s1 + $0x1c] sm:$0xf]
  %v27 = vld [vmem:[%s1 + $0x20] sm:$0xf]
  %v28 = vld [vmem:[%s1 + $0x24] sm:$0xf]
  %v29 = vld [vmem:[%s1 + $0x28] sm:$0xf]
  %v30 = vld [vmem:[%s1 + $0x2c] sm:$0xf]
  %v31 = vld [vmem:[%s1 + $0x30] sm:$0xf]
  %v32 = vld [vmem:[%s1 + $0x34] sm:$0xf]
  %v33 = vld [vmem:[%s1 + $0x38] sm:$0xf]
  %v34 = vld [vmem:[%s1 + $0x3c] sm:$0xf]
  %v35 = vld [vmem:[%s1 + $0x40] sm:$0xf]
  %v36 = vld [vmem:[%s1 + $0x44] sm:$0xf]
  %v37 = vld [vmem:[%s1 + $0x48] sm:$0xf]
  %v38 = vld [vmem:[%s1 + $0x4c] sm:$0xf]
  %v39 = vld [vmem:[%s1 + $0x50] sm:$0xf]
  %v40 = vld [vmem:[%s1 + $0x54] sm:$0xf]
  %v41 = vld [vmem:[%s1 + $0x58] sm:$0xf]
  %v42 = vld [vmem:[%s1 + $0x5c] sm:$0xf]
  %v43 = vld [vmem:[%s1 + $0x60] sm:$0xf]
  %v44 = vld [vmem:[%s1 + $0x64] sm:$0xf]
  %v45 = vld [vmem:[%s1 + $0x68] sm:$0xf]
  %v46 = vld [vmem:[%s1 + $0x6c] sm:$0xf]
  %v47 = vld [vmem:[%s1 + $0x70] sm:$0xf]
  %v48 = vld [vmem:[%s1 + $0x74] sm:$0xf]
  %v49 = vld [vmem:[%s1 + $0x78] sm:$0xf]
  %v50 = vld [vmem:[%s1 + $0x7c] sm:$0xf]
  %v51 = vld [vmem:[%s1 + $0x80] sm:$0xf]
  %v52 = vld [vmem:[%s1 + $0x84] sm:$0xf]
  %v53 = vld [vmem:[%s1 + $0x88] sm:$0xf]
  %v54 = vld [vmem:[%s1 + $0x8c] sm:$0xf]
  %v55 = vld [vmem:[%s1 + $0x90] sm:$0xf]
  %v56 = vld [vmem:[%s1 + $0x94] sm:$0xf]
  %v57 = vld [vmem:[%s1 + $0x98] sm:$0xf]
  %v58 = vld [vmem:[%s1 + $0x9c] sm:$0xf]
  %v59 = vld [vmem:[%s1 + $0xa0] sm:$0xf]
  %v60 = vld [vmem:[%s1 + $0xa4] sm:$0xf]
  %v61 = vld [vmem:[%s1 + $0xa8] sm:$0xf]
  %v62 = vld [vmem:[%s1 + $0xac] sm:$0xf]
  %v63 = vld [vmem:[%s1 + $0xb0] sm:$0xf]
  %v64 = vld [vmem:[%s1 + $0xb4] sm:$0xf]
  %v65 = vld [vmem:[%s1 + $0xb8] sm:$0xf]
  %v66 = vld [vmem:[%s1 + $0xbc] sm:$0xf]
  %v67 = vld [vmem:[%s1 + $0xc0] sm:$0xf]
  %v68 = vld [vmem:[%s1 + $0xc4] sm:$0xf]
  %v69 = vld [vmem:[%s1 + $0xc8] sm:$0xf]
  %v70 = vld [vmem:[%s1 + $0xcc] sm:$0xf]
  %v71 = vld [vmem:[%s1 + $0xd0] sm:$0xf]
  %v72 = vld [vmem:[%s1 + $0xd4] sm:$0xf]
  %v73 = vld [vmem:[%s1 + $0xd8] sm:$0xf]
  %v74 = vld [vmem:[%s1 + $0xdc] sm:$0xf]
  %v75 = vld [vmem:[%s1 + $0xe0] sm:$0xf]
  %v76 = vld [vmem:[%s1 + $0xe4] sm:$0xf]
  %v77 = vld [vmem:[%s1 + $0xe8] sm:$0xf]
  %v78 = vld [vmem:[%s1 + $0xec] sm:$0xf]
  %v79 = vld [vmem:[%s1 + $0xf0] sm:$0xf]
  %v80 = vld [vmem:[%s1 + $0xf4] sm:$0xf]
  %v81 = vld [vmem:[%s1 + $0xf8] sm:$0xf]
  %v82 = vld [vmem:[%s1 + $0xfc] sm:$0xf]
  %v83 = vld [vmem:[%s1 + $0x100] sm:$0xf]
  %v84 = vld [vmem:[%s1 + $0x104] sm:$0xf]
  %v85 = vld [vmem:[%s1 + $0x108] sm:$0xf]
  %v86 = vld [vmem:[%s1 + $0x10c] sm:$0xf]
  %v87 = vld [vmem:[%s1 + $0x110] sm:$0xf]
  %v88 = vld [vmem:[%s1 + $0x114] sm:$0xf]
  %v89 = vld [vmem:[%s1 + $0x118] sm:$0xf]
  %v90 = vld [vmem:[%s1 + $0x11c] sm:$0xf]
  %v91 = vld [vmem:[%s1 + $0x120] sm:$0xf]
  %v92 = vld [vmem:[%s1 + $0x124] sm:$0xf]
  %v93 = vld [vmem:[%s1 + $0x128] sm:$0xf]
  %v94 = vld [vmem:[%s1 + $0x12c] sm:$0xf]
  %v95 = vld [vmem:[%s1 + $0x130] sm:$0xf]
  %v96 = vld [vmem:[%s1 + $0x134] sm:$0xf]
  %v97 = vld [vmem:[%s1 + $0x138] sm:$0xf]
  %v98 = vld [vmem:[%s1 + $0x13c] sm:$0xf]
  %v99 = vld [vmem:[%s1 + $0x140] sm:$0xf]
  %v100 = vld [vmem:[%s1 + $0x144] sm:$0xf]
  %v101 = vld [vmem:[%s1 + $0x148] sm:$0xf]
  %v102 = vld [vmem:[%s1 + $0x14c] sm:$0xf]
  %v103 = vld [vmem:[%s1 + $0x150] sm:$0xf]
  %v104 = vld [vmem:[%s1 + $0x154] sm:$0xf]
  %v105 = vld [vmem:[%s1 + $0x158] sm:$0xf]
  %v106 = vld [vmem:[%s1 + $0x15c] sm:$0xf]
  %v107 = vld [vmem:[%s1 + $0x160] sm:$0xf]
  %v108 = vld [vmem:[%s1 + $0x164] sm:$0xf]
  %v109 = vld [vmem:[%s1 + $0x168] sm:$0xf]
  %v110 = vld [vmem:[%s1 + $0x16c] sm:$0xf]
  %v111 = vld [vmem:[%s1 + $0x170] sm:$0xf]
  %v112 = vld [vmem:[%s1 + $0x174] sm:$0xf]
  %v113 = vld [vmem:[%s1 + $0x178] sm:$0xf]
  %v114 = vld [vmem:[%s1 + $0x17c] sm:$0xf]
  %v115 = vld [vmem:[%s1 + $0x180] sm:$0xf]
  %v116 = vld [vmem:[%s1 + $0x184] sm:$0xf]
  %v117 = vld [vmem:[%s1 + $0x188] sm:$0xf]
  %v118 = vld [vmem:[%s1 + $0x18c] sm:$0xf]
  %v119 = vld [vmem:[%s1 + $0x190] sm:$0xf]
  %v120 = vld [vmem:[%s1 + $0x194] sm:$0xf]
  %v121 = vld [vmem:[%s1 + $0x198] sm:$0xf]
  %v122 = vld [vmem:[%s1 + $0x19c] sm:$0xf]
  %v123 = vld [vmem:[%s1 + $0x1a0] sm:$0xf]
  %v124 = vld [vmem:[%s1 + $0x1a4] sm:$0xf]
  %v125 = vld [vmem:[%s1 + $0x1a8] sm:$0xf]
  %v126 = vld [vmem:[%s1 + $0x1ac] sm:$0xf]
  %v127 = vld [vmem:[%s1 + $0x1b0] sm:$0xf]
  %v128 = vld [vmem:[%s1 + $0x1b4] sm:$0xf]
  %v129 = vld [vmem:[%s1 + $0x1b8] sm:$0xf]
  %v130 = vld [vmem:[%s1 + $0x1bc] sm:$0xf]
  %v131 = vld [vmem:[%s1 + $0x1c0] sm:$0xf]
  %v132 = vld [vmem:[%s1 + $0x1c4] sm:$0xf]
  %v133 = vld [vmem:[%s1 + $0x1c8] sm:$0xf]
  %v134 = vld [vmem:[%s1 + $0x1cc] sm:$0xf]
  %v135 = vld [vmem:[%s1 + $0x1d0] sm:$0xf]
  %v136 = vld [vmem:[%s1 + $0x1d4] sm:$0xf]
  %v137 = vld [vmem:[%s1 + $0x1d8] sm:$0xf]
  %v138 = vld [vmem:[%s1 + $0x1dc] sm:$0xf]
  %v139 = vld [vmem:[%s1 + $0x1e0] sm:$0xf]
  %v140 = vld [vmem:[%s1 + $0x1e4] sm:$0xf]
  %v141 = vld [vmem:[%s1 + $0x1e8] sm:$0xf]
  %v142 = vld [vmem:[%s1 + $0x1ec] sm:$0xf]
  %v143 = vld [vmem:[%s1 + $0x1f0] sm:$0xf]
  %v144 = vld [vmem:[%s1 + $0x1f4] sm:$0xf]
  %v145 = vld [vmem:[%s1 + $0x1f8] sm:$0xf]
  %v146 = vld [vmem:[%s1 + $0x1fc] sm:$0xf]
  %v147 = vld [vmem:[%s1 + $0x200] sm:$0xf]
  %v148 = vld [vmem:[%s1 + $0x204] sm:$0xf]
  %v149 = vld [vmem:[%s1 + $0x208] sm:$0xf]
  %v150 = vld [vmem:[%s1 + $0x20c] sm:$0xf]
  %v151 = vld [vmem:[%s1 + $0x210] sm:$0xf]
  %v152 = vld [vmem:[%s1 + $0x214] sm:$0xf]
  %v153 = vld [vmem:[%s1 + $0x218] sm:$0xf]
  %v154 = vld [vmem:[%s1 + $0x21c] sm:$0xf]
  %v155 = vld [vmem:[%s1 + $0x220] sm:$0xf]
  %v156 = vld [vmem:[%s1 + $0x224] sm:$0xf]
  %v157 = vld [vmem:[%s1 + $0x228] sm:$0xf]
  %v158 = vld [vmem:[%s1 + $0x22c] sm:$0xf]
  %v159 = vld [vmem:[%s1 + $0x230] sm:$0xf]
  %v160 = vld [vmem:[%s1 + $0x234] sm:$0xf]
  %v161 = vld [vmem:[%s1 + $0x238] sm:$0xf]
  %v162 = vld [vmem:[%s1 + $0x23c] sm:$0xf]
  %v163 = vld [vmem:[%s1 + $0x240] sm:$0xf]
  %v164 = vld [vmem:[%s1 + $0x244] sm:$0xf]
  %v165 = vld [vmem:[%s1 + $0x248] sm:$0xf]
  %v166 = vld [vmem:[%s1 + $0x24c] sm:$0xf]
  %v167 = vld [vmem:[%s1 + $0x250] sm:$0xf]
  %v168 = vld [vmem:[%s1 + $0x254] sm:$0xf]
  %v169 = vld [vmem:[%s1 + $0x258] sm:$0xf]
  %v170 = vld [vmem:[%s1 + $0x25c] sm:$0xf]
  %v171 = vld [vmem:[%s1 + $0x260] sm:$0xf]
  %v172 = vld [vmem:[%s1 + $0x264] sm:$0xf]
  %v173 = vld [vmem:[%s1 + $0x268] sm:$0xf]
  %v174 = vld [vmem:[%s1 + $0x26c] sm:$0xf]
  %v175 = vld [vmem:[%s1 + $0x270] sm:$0xf]
  %v176 = vld [vmem:[%s1 + $0x274] sm:$0xf]
  %v177 = vld [vmem:[%s1 + $0x278] sm:$0xf]
  %v178 = vld [vmem:[%s1 + $0x27c] sm:$0xf]
  %v179 = vld [vmem:[%s1 + $0x280] sm:$0xf]
  %v180 = vld [vmem:[%s1 + $0x284] sm:$0xf]
  %v181 = vld [vmem:[%s1 + $0x288] sm:$0xf]
  %v182 = vld [vmem:[%s1 + $0x28c] sm:$0xf]
  %v183 = vld [vmem:[%s1 + $0x290] sm:$0xf]
  %v184 = vld [vmem:[%s1 + $0x294] sm:$0xf]
  %v185 = vld [vmem:[%s1 + $0x298] sm:$0xf]
  %v186 = vld [vmem:[%s1 + $0x29c] sm:$0xf]
  %v187 = vld [vmem:[%s1 + $0x2a0] sm:$0xf]
  %v188 = vld [vmem:[%s1 + $0x2a4] sm:$0xf]
  %v189 = vld [vmem:[%s1 + $0x2a8] sm:$0xf]
  %v190 = vld [vmem:[%s1 + $0x2ac] sm:$0xf]
  %v191 = vld [vmem:[%s1 + $0x2b0] sm:$0xf]
  %v192 = vld [vmem:[%s1 + $0x2b4] sm:$0xf]
  %v193 = vld [vmem:[%s1 + $0x2b8] sm:$0xf]
  %v194 = vld [vmem:[%s1 + $0x2bc] sm:$0xf]
  %v195 = vld [vmem:[%s1 + $0x2c0] sm:$0xf]
  %v196 = vld [vmem:[%s1 + $0x2c4] sm:$0xf]
  %v197 = vld [vmem:[%s1 + $0x2c8] sm:$0xf]
  %v198 = vld [vmem:[%s1 + $0x2cc] sm:$0xf]
  %v199 = vld [vmem:[%s1 + $0x2d0] sm:$0xf]
  %v200 = vld [vmem:[%s1 + $0x2d4] sm:$0xf]
  %v201 = vld [vmem:[%s1 + $0x2d8] sm:$0xf]
  %v202 = vld [vmem:[%s1 + $0x2dc] sm:$0xf]
  %v203 = vld [vmem:[%s1 + $0x2e0] sm:$0xf]
  %v204 = vld [vmem:[%s1 + $0x2e4] sm:$0xf]
  %v205 = vld [vmem:[%s1 + $0x2e8] sm:$0xf]
  %v206 = vld [vmem:[%s1 + $0x2ec] sm:$0xf]
  %v207 = vld [vmem:[%s1 + $0x2f0] sm:$0xf]
  %v208 = vld [vmem:[%s1 + $0x2f4] sm:$0xf]
  %v209 = vld [vmem:[%s1 + $0x2f8] sm:$0xf]
  %v210 = vld [vmem:[%s1 + $0x2fc] sm:$0xf]
  %v211 = vld [vmem:[%s1 + $0x300] sm:$0xf]
  %v212 = vld [vmem:[%s1 + $0x304] sm:$0xf]
  %v213 = vld [vmem:[%s1 + $0x308] sm:$0xf]
  %v214 = vld [vmem:[%s1 + $0x30c] sm:$0xf]
  %v215 = vld [vmem:[%s1 + $0x310] sm:$0xf]
  %v216 = vld [vmem:[%s1 + $0x314] sm:$0xf]
  %v217 = vld [vmem:[%s1 + $0x318] sm:$0xf]
  %v218 = vld [vmem:[%s1 + $0x31c] sm:$0xf]
  %v219 = vld [vmem:[%s1 + $0x320] sm:$0xf]
  %v220 = vld [vmem:[%s1 + $0x324] sm:$0xf]
  %v221 = vld [vmem:[%s1 + $0x328] sm:$0xf]
  %v222 = vld [vmem:[%s1 + $0x32c] sm:$0xf]
  %v223 = vld [vmem:[%s1 + $0x330] sm:$0xf]
  %v224 = vld [vmem:[%s1 + $0x334] sm:$0xf]
  %v225 = vld [vmem:[%s1 + $0x338] sm:$0xf]
  %v226 = vld [vmem:[%s1 + $0x33c] sm:$0xf]
  %v227 = vld [vmem:[%s1 + $0x340] sm:$0xf]
  %v228 = vld [vmem:[%s1 + $0x344] sm:$0xf]
  %v229 = vld [vmem:[%s1 + $0x348] sm:$0xf]
  %v230 = vld [vmem:[%s1 + $0x34c] sm:$0xf]
  %v231 = vld [vmem:[%s1 + $0x350] sm:$0xf]
  %v232 = vld [vmem:[%s1 + $0x354] sm:$0xf]
  %v233 = vld [vmem:[%s1 + $0x358] sm:$0xf]
  %v234 = vld [vmem:[%s1 + $0x35c] sm:$0xf]
  %v235 = vld [vmem:[%s1 + $0x360] sm:$0xf]
  %v236 = vld [vmem:[%s1 + $0x364] sm:$0xf]
  %v237 = vld [vmem:[%s1 + $0x368] sm:$0xf]
  %v238 = vld [vmem:[%s1 + $0x36c] sm:$0xf]
  %v239 = vld [vmem:[%s1 + $0x370] sm:$0xf]
  %v240 = vld [vmem:[%s1 + $0x374] sm:$0xf]
  %v241 = vld [vmem:[%s1 + $0x378] sm:$0xf]
  %v242 = vld [vmem:[%s1 + $0x37c] sm:$0xf]
  %v243 = vld [vmem:[%s1 + $0x380] sm:$0xf]
  %v244 = vld [vmem:[%s1 + $0x384] sm:$0xf]
  %v245 = vld [vmem:[%s1 + $0x388] sm:$0xf]
  %v246 = vld [vmem:[%s1 + $0x38c] sm:$0xf]
  %v247 = vld [vmem:[%s1 + $0x390] sm:$0xf]
  %v248 = vld [vmem:[%s1 + $0x394] sm:$0xf]
  %v249 = vld [vmem:[%s1 + $0x398] sm:$0xf]
  %v250 = vld [vmem:[%s1 + $0x39c] sm:$0xf]
  %v251 = vld [vmem:[%s1 + $0x3a0] sm:$0xf]
  %v252 = vld [vmem:[%s1 + $0x3a4] sm:$0xf]
  %v253 = vld [vmem:[%s1 + $0x3a8] sm:$0xf]
  %v254 = vld [vmem:[%s1 + $0x3ac] sm:$0xf]
  %v255 = vld [vmem:[%s1 + $0x3b0] sm:$0xf]
  %v256 = vld [vmem:[%s1 + $0x3b4] sm:$0xf]
  %v257 = vld [vmem:[%s1 + $0x3b8] sm:$0xf]
  %v258 = vld [vmem:[%s1 + $0x3bc] sm:$0xf]
  %v259 = vld [vmem:[%s1 + $0x3c0] sm:$0xf]
  %v260 = vld [vmem:[%s1 + $0x3c4] sm:$0xf]
  %v261 = vld [vmem:[%s1 + $0x3c8] sm:$0xf]
  %v262 = vld [vmem:[%s1 + $0x3cc] sm:$0xf]
  %v263 = vld [vmem:[%s1 + $0x3d0] sm:$0xf]
  %v264 = vld [vmem:[%s1 + $0x3d4] sm:$0xf]
  %v265 = vld [vmem:[%s1 + $0x3d8] sm:$0xf]
  %v266 = vld [vmem:[%s1 + $0x3dc] sm:$0xf]
  %v267 = vld [vmem:[%s1 + $0x3e0] sm:$0xf]
  %v268 = vld [vmem:[%s1 + $0x3e4] sm:$0xf]
  %v269 = vld [vmem:[%s1 + $0x3e8] sm:$0xf]
  %v270 = vld [vmem:[%s1 + $0x3ec] sm:$0xf]
  %v271 = vld [vmem:[%s1 + $0x3f0] sm:$0xf]
  %v272 = vld [vmem:[%s1 + $0x3f4] sm:$0xf]
  %v273 = vld [vmem:[%s1 + $0x3f8] sm:$0xf]
  %v274 = vld [vmem:[%s1 + $0x3fc] sm:$0xf]
  %v275 = vld [vmem:[%s1 + $0x400] sm:$0xf]
  %v276 = vld [vmem:[%s1 + $0x404] sm:$0xf]
  %v277 = vld [vmem:[%s1 + $0x408] sm:$0xf]
  %v278 = vld [vmem:[%s1 + $0x40c] sm:$0xf]
  %v279 = vld [vmem:[%s1 + $0x410] sm:$0xf]
  %v280 = vld [vmem:[%s1 + $0x414] sm:$0xf]
  %v281 = vld [vmem:[%s1 + $0x418] sm:$0xf]
  %v282 = vld [vmem:[%s1 + $0x41c] sm:$0xf]
  %v283 = vld [vmem:[%s1 + $0x420] sm:$0xf]
  %v284 = vld [vmem:[%s1 + $0x424] sm:$0xf]
  %v285 = vld [vmem:[%s1 + $0x428] sm:$0xf]
  %v286 = vld [vmem:[%s1 + $0x42c] sm:$0xf]
  %v287 = vld [vmem:[%s1 + $0x430] sm:$0xf]
  %v288 = vld [vmem:[%s1 + $0x434] sm:$0xf]
  %v289 = vld [vmem:[%s1 + $0x438] sm:$0xf]
  %v290 = vld [vmem:[%s1 + $0x43c] sm:$0xf]
  %v291 = vld [vmem:[%s1 + $0x440] sm:$0xf]
  %v292 = vld [vmem:[%s1 + $0x444] sm:$0xf]
  %v293 = vld [vmem:[%s1 + $0x448] sm:$0xf]
  %v294 = vld [vmem:[%s1 + $0x44c] sm:$0xf]
  %v295 = vld [vmem:[%s1 + $0x450] sm:$0xf]
  %v296 = vld [vmem:[%s1 + $0x454] sm:$0xf]
  %v297 = vld [vmem:[%s1 + $0x458] sm:$0xf]
  %v298 = vld [vmem:[%s1 + $0x45c] sm:$0xf]
  %v299 = vld [vmem:[%s1 + $0x460] sm:$0xf]
  %v300 = vld [vmem:[%s1 + $0x464] sm:$0xf]
  %v301 = vld [vmem:[%s1 + $0x468] sm:$0xf]
  %v302 = vld [vmem:[%s1 + $0x46c] sm:$0xf]
  %v303 = vld [vmem:[%s1 + $0x470] sm:$0xf]
  %v304 = vld [vmem:[%s1 + $0x474] sm:$0xf]
  %v305 = vld [vmem:[%s1 + $0x478] sm:$0xf]
  %v306 = vld [vmem:[%s1 + $0x47c] sm:$0xf]
  %v307 = vld [vmem:[%s1 + $0x480] sm:$0xf]
  %v308 = vld [vmem:[%s1 + $0x484] sm:$0xf]
  %v309 = vld [vmem:[%s1 + $0x488] sm:$0xf]
  %v310 = vld [vmem:[%s1 + $0x48c] sm:$0xf]
  %v311 = vld [vmem:[%s1 + $0x490] sm:$0xf]
  %v312 = vld [vmem:[%s1 + $0x494] sm:$0xf]
  %v313 = vld [vmem:[%s1 + $0x498] sm:$0xf]
  %v314 = vld [vmem:[%s1 + $0x49c] sm:$0xf]
  %v315 = vld [vmem:[%s1 + $0x4a0] sm:$0xf]
  %v316 = vld [vmem:[%s1 + $0x4a4] sm:$0xf]
  %v317 = vld [vmem:[%s1 + $0x4a8] sm:$0xf]
  %v318 = vld [vmem:[%s1 + $0x4ac] sm:$0xf]
  %v319 = vld [vmem:[%s1 + $0x4b0] sm:$0xf]
  %v320 = vld [vmem:[%s1 + $0x4b4] sm:$0xf]
  %v321 = vld [vmem:[%s1 + $0x4b8] sm:$0xf]
  %v322 = vld [vmem:[%s1 + $0x4bc] sm:$0xf]
  %v323 = vld [vmem:[%s1 + $0x4c0] sm:$0xf]
  %v324 = vld [vmem:[%s1 + $0x4c4] sm:$0xf]
  %v325 = vld [vmem:[%s1 + $0x4c8] sm:$0xf]
  %v326 = vld [vmem:[%s1 + $0x4cc] sm:$0xf]
  %v327 = vld [vmem:[%s1 + $0x4d0] sm:$0xf]
  %v328 = vld [vmem:[%s1 + $0x4d4] sm:$0xf]
  %v329 = vld [vmem:[%s1 + $0x4d8] sm:$0xf]
  %v330 = vld [vmem:[%s1 + $0x4dc] sm:$0xf]
  %v331 = vld [vmem:[%s1 + $0x4e0] sm:$0xf]
  %v332 = vld [vmem:[%s1 + $0x4e4] sm:$0xf]
  %v333 = vld [vmem:[%s1 + $0x4e8] sm:$0xf]
  %v334 = vld [vmem:[%s1 + $0x4ec] sm:$0xf]
  %v335 = vld [vmem:[%s1 + $0x4f0] sm:$0xf]
  %v336 = vld [vmem:[%s1 + $0x4f4] sm:$0xf]
  %v337 = vld [vmem:[%s1 + $0x4f8] sm:$0xf]
  %v338 = vld [vmem:[%s1 + $0x4fc] sm:$0xf]
  %v339 = vld [vmem:[%s1 + $0x500] sm:$0xf]
  %v340 = vld [vmem:[%s1 + $0x504] sm:$0xf]
  %v341 = vld [vmem:[%s1 + $0x508] sm:$0xf]
  %v342 = vld [vmem:[%s1 + $0x50c] sm:$0xf]
  %v343 = vld [vmem:[%s1 + $0x510] sm:$0xf]
  %v344 = vld [vmem:[%s1 + $0x514] sm:$0xf]
  %v345 = vld [vmem:[%s1 + $0x518] sm:$0xf]
  %v346 = vld [vmem:[%s1 + $0x51c] sm:$0xf]
  %v347 = vld [vmem:[%s1 + $0x520] sm:$0xf]
  %v348 = vld [vmem:[%s1 + $0x524] sm:$0xf]
  %v349 = vld [vmem:[%s1 + $0x528] sm:$0xf]
  %v350 = vld [vmem:[%s1 + $0x52c] sm:$0xf]
  %v351 = vld [vmem:[%s1 + $0x530] sm:$0xf]
  %v352 = vld [vmem:[%s1 + $0x534] sm:$0xf]
  %v353 = vld [vmem:[%s1 + $0x538] sm:$0xf]
  %v354 = vld [vmem:[%s1 + $0x53c] sm:$0xf]
  %v355 = vld [vmem:[%s1 + $0x540] sm:$0xf]
  %v356 = vld [vmem:[%s1 + $0x544] sm:$0xf]
  %v357 = vld [vmem:[%s1 + $0x548] sm:$0xf]
  %v358 = vld [vmem:[%s1 + $0x54c] sm:$0xf]
  %v359 = vld [vmem:[%s1 + $0x550] sm:$0xf]
  %v360 = vld [vmem:[%s1 + $0x554] sm:$0xf]
  %v361 = vld [vmem:[%s1 + $0x558] sm:$0xf]
  %v362 = vld [vmem:[%s1 + $0x55c] sm:$0xf]
  %v363 = vld [vmem:[%s1 + $0x560] sm:$0xf]
  %v364 = vld [vmem:[%s1 + $0x564] sm:$0xf]
  %v365 = vld [vmem:[%s1 + $0x568] sm:$0xf]
  %v366 = vld [vmem:[%s1 + $0x56c] sm:$0xf]
  %v367 = vld [vmem:[%s1 + $0x570] sm:$0xf]
  %v368 = vld [vmem:[%s1 + $0x574] sm:$0xf]
  %v369 = vld [vmem:[%s1 + $0x578] sm:$0xf]
  %v370 = vld [vmem:[%s1 + $0x57c] sm:$0xf]
  %v371 = vld [vmem:[%s1 + $0x580] sm:$0xf]
  %v372 = vld [vmem:[%s1 + $0x584] sm:$0xf]
  %v373 = vld [vmem:[%s1 + $0x588] sm:$0xf]
  %v374 = vld [vmem:[%s1 + $0x58c] sm:$0xf]
  %v375 = vld [vmem:[%s1 + $0x590] sm:$0xf]
  %v376 = vld [vmem:[%s1 + $0x594] sm:$0xf]
  %v377 = vld [vmem:[%s1 + $0x598] sm:$0xf]
  %v378 = vld [vmem:[%s1 + $0x59c] sm:$0xf]
  %v379 = vld [vmem:[%s1 + $0x5a0] sm:$0xf]
  %v380 = vld [vmem:[%s1 + $0x5a4] sm:$0xf]
  %v381 = vld [vmem:[%s1 + $0x5a8] sm:$0xf]
  %v382 = vld [vmem:[%s1 + $0x5ac] sm:$0xf]
  %v383 = vld [vmem:[%s1 + $0x5b0] sm:$0xf]
  %v384 = vld [vmem:[%s1 + $0x5b4] sm:$0xf]
  %v385 = vld [vmem:[%s1 + $0x5b8] sm:$0xf]
  %v386 = vld [vmem:[%s1 + $0x5bc] sm:$0xf]
  %v387 = vld [vmem:[%s1 + $0x5c0] sm:$0xf]
  %v388 = vld [vmem:[%s1 + $0x5c4] sm:$0xf]
  %v389 = vld [vmem:[%s1 + $0x5c8] sm:$0xf]
  %v390 = vld [vmem:[%s1 + $0x5cc] sm:$0xf]
  %v391 = vld [vmem:[%s1 + $0x5d0] sm:$0xf]
  %v392 = vld [vmem:[%s1 + $0x5d4] sm:$0xf]
  %v393 = vld [vmem:[%s1 + $0x5d8] sm:$0xf]
  %v394 = vld [vmem:[%s1 + $0x5dc] sm:$0xf]
  %v395 = vld [vmem:[%s1 + $0x5e0] sm:$0xf]
  %v396 = vld [vmem:[%s1 + $0x5e4] sm:$0xf]
  %v397 = vld [vmem:[%s1 + $0x5e8] sm:$0xf]
  %v398 = vld [vmem:[%s1 + $0x5ec] sm:$0xf]
  %v399 = vld [vmem:[%s1 + $0x5f0] sm:$0xf]
  %v400 = vld [vmem:[%s1 + $0x5f4] sm:$0xf]
  %v401 = vld [vmem:[%s1 + $0x5f8] sm:$0xf]
  %v402 = vld [vmem:[%s1 + $0x5fc] sm:$0xf]
  %v403 = vld [vmem:[%s1 + $0x600] sm:$0xf]
  %v404 = vld [vmem:[%s1 + $0x604] sm:$0xf]
  %v405 = vld [vmem:[%s1 + $0x608] sm:$0xf]
  %v406 = vld [vmem:[%s1 + $0x60c] sm:$0xf]
  %v407 = vld [vmem:[%s1 + $0x610] sm:$0xf]
  %v408 = vld [vmem:[%s1 + $0x614] sm:$0xf]
  %v409 = vld [vmem:[%s1 + $0x618] sm:$0xf]
  %v410 = vld [vmem:[%s1 + $0x61c] sm:$0xf]
  %v411 = vld [vmem:[%s1 + $0x620] sm:$0xf]
  %v412 = vld [vmem:[%s1 + $0x624] sm:$0xf]
  %v413 = vld [vmem:[%s1 + $0x628] sm:$0xf]
  %v414 = vld [vmem:[%s1 + $0x62c] sm:$0xf]
  %v415 = vld [vmem:[%s1 + $0x630] sm:$0xf]
  %v416 = vld [vmem:[%s1 + $0x634] sm:$0xf]
  %v417 = vld [vmem:[%s1 + $0x638] sm:$0xf]
  %v418 = vld [vmem:[%s1 + $0x63c] sm:$0xf]
  %v419 = vld [vmem:[%s2] sm:$0x1]
  %v421 = vlaneseq
  %v422 = vshrl.u32 %v421, 7
  %v423 = vsub.s32 0, %v422
  %v424 = vrot.slane %v419, %v423
  %v430 = vcombine.high %v15, %v15
  %v432 = vunpack.c.l.s4 1966171168
  %v433 = vunpack.c.0.s8 %v432
  %v434 = vlaneseq
  %v435 = vshrl.u32 %v434, 7
  %v436 = vsub.s32 %v433, %v435
  %v437 = vrot.slane %v15, %v436
  %v439 = vunpack.c.l.s4 1966171168
  %v440 = vunpack.c.0.s8 %v439
  %v441 = vlaneseq
  %v442 = vshrl.u32 %v441, 7
  %v443 = vsub.s32 %v440, %v442
  %v444 = vrot.slane %v430, %v443
  %v445 = vcombine.high %v437, %v437
  %v446 = vcombine.high %v444, %v444
  %v448 = vunpack.c.l.s4 1966171168
  %v449 = vunpack.c.0.s8 %v448
  %v450 = vlaneseq
  %v451 = vshrl.u32 %v450, 7
  %v452 = vsub.s32 %v449, %v451
  %v453 = vrot.slane %v437, %v452
  %v455 = vunpack.c.l.s4 1966171168
  %v456 = vunpack.c.0.s8 %v455
  %v457 = vlaneseq
  %v458 = vshrl.u32 %v457, 7
  %v459 = vsub.s32 %v456, %v458
  %v460 = vrot.slane %v444, %v459
  %v462 = vunpack.c.l.s4 1966171168
  %v463 = vunpack.c.0.s8 %v462
  %v464 = vlaneseq
  %v465 = vshrl.u32 %v464, 7
  %v466 = vsub.s32 %v463, %v465
  %v467 = vrot.slane %v445, %v466
  %v469 = vunpack.c.l.s4 1966171168
  %v470 = vunpack.c.0.s8 %v469
  %v471 = vlaneseq
  %v472 = vshrl.u32 %v471, 7
  %v473 = vsub.s32 %v470, %v472
  %v474 = vrot.slane %v446, %v473
  %v475 = vcombine.high %v453, %v453
  %v476 = vcombine.high %v460, %v460
  %v477 = vcombine.high %v467, %v467
  %v478 = vcombine.high %v474, %v474
  %v479 = vcombine.high %v16, %v16
  %v481 = vunpack.c.l.s4 1966171168
  %v482 = vunpack.c.0.s8 %v481
  %v483 = vlaneseq
  %v484 = vshrl.u32 %v483, 7
  %v485 = vsub.s32 %v482, %v484
  %v486 = vrot.slane %v16, %v485
  %v488 = vunpack.c.l.s4 1966171168
  %v489 = vunpack.c.0.s8 %v488
  %v490 = vlaneseq
  %v491 = vshrl.u32 %v490, 7
  %v492 = vsub.s32 %v489, %v491
  %v493 = vrot.slane %v479, %v492
  %v494 = vcombine.high %v486, %v486
  %v495 = vcombine.high %v493, %v493
  %v497 = vunpack.c.l.s4 1966171168
  %v498 = vunpack.c.0.s8 %v497
  %v499 = vlaneseq
  %v500 = vshrl.u32 %v499, 7
  %v501 = vsub.s32 %v498, %v500
  %v502 = vrot.slane %v486, %v501
  %v504 = vunpack.c.l.s4 1966171168
  %v505 = vunpack.c.0.s8 %v504
  %v506 = vlaneseq
  %v507 = vshrl.u32 %v506, 7
  %v508 = vsub.s32 %v505, %v507
  %v509 = vrot.slane %v493, %v508
  %v511 = vunpack.c.l.s4 1966171168
  %v512 = vunpack.c.0.s8 %v511
  %v513 = vlaneseq
  %v514 = vshrl.u32 %v513, 7
  %v515 = vsub.s32 %v512, %v514
  %v516 = vrot.slane %v494, %v515
  %v518 = vunpack.c.l.s4 1966171168
  %v519 = vunpack.c.0.s8 %v518
  %v520 = vlaneseq
  %v521 = vshrl.u32 %v520, 7
  %v522 = vsub.s32 %v519, %v521
  %v523 = vrot.slane %v495, %v522
  %v524 = vcombine.high %v502, %v502
  %v525 = vcombine.high %v509, %v509
  %v526 = vcombine.high %v516, %v516
  %v527 = vcombine.high %v523, %v523
  %v528 = vcombine.high %v17, %v17
  %v530 = vunpack.c.l.s4 1966171168
  %v531 = vunpack.c.0.s8 %v530
  %v532 = vlaneseq
  %v533 = vshrl.u32 %v532, 7
  %v534 = vsub.s32 %v531, %v533
  %v535 = vrot.slane %v17, %v534
  %v537 = vunpack.c.l.s4 1966171168
  %v538 = vunpack.c.0.s8 %v537
  %v539 = vlaneseq
  %v540 = vshrl.u32 %v539, 7
  %v541 = vsub.s32 %v538, %v540
  %v542 = vrot.slane %v528, %v541
  %v543 = vcombine.high %v535, %v535
  %v544 = vcombine.high %v542, %v542
  %v546 = vunpack.c.l.s4 1966171168
  %v547 = vunpack.c.0.s8 %v546
  %v548 = vlaneseq
  %v549 = vshrl.u32 %v548, 7
  %v550 = vsub.s32 %v547, %v549
  %v551 = vrot.slane %v535, %v550
  %v553 = vunpack.c.l.s4 1966171168
  %v554 = vunpack.c.0.s8 %v553
  %v555 = vlaneseq
  %v556 = vshrl.u32 %v555, 7
  %v557 = vsub.s32 %v554, %v556
  %v558 = vrot.slane %v542, %v557
  %v560 = vunpack.c.l.s4 1966171168
  %v561 = vunpack.c.0.s8 %v560
  %v562 = vlaneseq
  %v563 = vshrl.u32 %v562, 7
  %v564 = vsub.s32 %v561, %v563
  %v565 = vrot.slane %v543, %v564
  %v567 = vunpack.c.l.s4 1966171168
  %v568 = vunpack.c.0.s8 %v567
  %v569 = vlaneseq
  %v570 = vshrl.u32 %v569, 7
  %v571 = vsub.s32 %v568, %v570
  %v572 = vrot.slane %v544, %v571
  %v573 = vcombine.high %v551, %v551
  %v574 = vcombine.high %v558, %v558
  %v575 = vcombine.high %v565, %v565
  %v576 = vcombine.high %v572, %v572
  %v578 = vunpack.c.l.s4 1966171168
  %v579 = vunpack.c.0.s8 %v578
  %v580 = vlaneseq
  %v581 = vshrl.u32 %v580, 7
  %v582 = vsub.s32 %v579, %v581
  %v583 = vrot.slane %v18, %v582
  %v585 = vunpack.c.l.s4 1966171168
  %v586 = vunpack.c.0.s8 %v585
  %v587 = vlaneseq
  %v588 = vshrl.u32 %v587, 7
  %v589 = vsub.s32 %v586, %v588
  %v590 = vrot.slane %v583, %v589
  %v1016 = vunpack.c.l.b16 %v19
  %v1017 = vunpack.c.l.b16 %v20
  %v1018 = vunpack.c.l.b16 %v21
  %v1019 = vunpack.c.l.b16 %v22
  %v1020 = vunpack.c.l.b16 %v23
  %v1021 = vunpack.c.l.b16 %v24
  %v1022 = vunpack.c.l.b16 %v25
  %v1023 = vunpack.c.l.b16 %v26
  %v1024 = vunpack.c.l.b16 %v27
  %v1025 = vunpack.c.l.b16 %v28
  %v1026 = vunpack.c.l.b16 %v29
  %v1027 = vunpack.c.l.b16 %v30
  %v1028 = vunpack.c.l.b16 %v31
  %v1029 = vunpack.c.l.b16 %v32
  %v1030 = vunpack.c.l.b16 %v33
  %v1031 = vunpack.c.l.b16 %v34
  %v1032 = vunpack.c.l.b16 %v35
  %v1033 = vunpack.c.l.b16 %v36
  %v1034 = vunpack.c.l.b16 %v37
  %v1035 = vunpack.c.l.b16 %v38
  %v1036 = vunpack.c.l.b16 %v39
  %v1037 = vunpack.c.l.b16 %v40
  %v1038 = vunpack.c.l.b16 %v41
  %v1039 = vunpack.c.l.b16 %v42
  %v1040 = vunpack.c.l.b16 %v43
  %v1041 = vunpack.c.l.b16 %v44
  %v1042 = vunpack.c.l.b16 %v45
  %v1043 = vunpack.c.l.b16 %v46
  %v1044 = vunpack.c.l.b16 %v47
  %v1045 = vunpack.c.l.b16 %v48
  %v1046 = vunpack.c.l.b16 %v49
  %v1047 = vunpack.c.l.b16 %v50
  %v1048 = vunpack.c.l.b16 %v51
  %v1049 = vunpack.c.l.b16 %v52
  %v1050 = vunpack.c.l.b16 %v53
  %v1051 = vunpack.c.l.b16 %v54
  %v1052 = vunpack.c.l.b16 %v55
  %v1053 = vunpack.c.l.b16 %v56
  %v1054 = vunpack.c.l.b16 %v57
  %v1055 = vunpack.c.l.b16 %v58
  %v1056 = vunpack.c.l.b16 %v59
  %v1057 = vunpack.c.l.b16 %v60
  %v1058 = vunpack.c.l.b16 %v61
  %v1059 = vunpack.c.l.b16 %v62
  %v1060 = vunpack.c.l.b16 %v63
  %v1061 = vunpack.c.l.b16 %v64
  %v1062 = vunpack.c.l.b16 %v65
  %v1063 = vunpack.c.l.b16 %v66
  %v1064 = vunpack.c.l.b16 %v67
  %v1065 = vunpack.c.l.b16 %v68
  %v1066 = vunpack.c.l.b16 %v69
  %v1067 = vunpack.c.l.b16 %v70
  %v1068 = vunpack.c.l.b16 %v71
  %v1069 = vunpack.c.l.b16 %v72
  %v1070 = vunpack.c.l.b16 %v73
  %v1071 = vunpack.c.l.b16 %v74
  %v1072 = vunpack.c.l.b16 %v75
  %v1073 = vunpack.c.l.b16 %v76
  %v1074 = vunpack.c.l.b16 %v77
  %v1075 = vunpack.c.l.b16 %v78
  %v1076 = vunpack.c.l.b16 %v79
  %v1077 = vunpack.c.l.b16 %v80
  %v1078 = vunpack.c.l.b16 %v81
  %v1079 = vunpack.c.l.b16 %v82
  %v1080 = vunpack.c.l.b16 %v83
  %v1081 = vunpack.c.l.b16 %v84
  %v1082 = vunpack.c.l.b16 %v85
  %v1083 = vunpack.c.l.b16 %v86
  %v1084 = vunpack.c.l.b16 %v87
  %v1085 = vunpack.c.l.b16 %v88
  %v1086 = vunpack.c.l.b16 %v89
  %v1087 = vunpack.c.l.b16 %v90
  %v1088 = vunpack.c.l.b16 %v91
  %v1089 = vunpack.c.l.b16 %v92
  %v1090 = vunpack.c.l.b16 %v93
  %v1091 = vunpack.c.l.b16 %v94
  %v1092 = vunpack.c.l.b16 %v95
  %v1093 = vunpack.c.l.b16 %v96
  %v1094 = vunpack.c.l.b16 %v97
  %v1095 = vunpack.c.l.b16 %v98
  %v1096 = vunpack.c.l.b16 %v99
  %v1097 = vunpack.c.l.b16 %v100
  %v1098 = vunpack.c.l.b16 %v101
  %v1099 = vunpack.c.l.b16 %v102
  %v1100 = vunpack.c.l.b16 %v103
  %v1101 = vunpack.c.l.b16 %v104
  %v1102 = vunpack.c.l.b16 %v105
  %v1103 = vunpack.c.l.b16 %v106
  %v1104 = vunpack.c.l.b16 %v107
  %v1105 = vunpack.c.l.b16 %v108
  %v1106 = vunpack.c.l.b16 %v109
  %v1107 = vunpack.c.l.b16 %v110
  %v1108 = vunpack.c.l.b16 %v111
  %v1109 = vunpack.c.l.b16 %v112
  %v1110 = vunpack.c.l.b16 %v113
  %v1111 = vunpack.c.l.b16 %v114
  %v1112 = vunpack.c.l.b16 %v115
  %v1113 = vunpack.c.l.b16 %v116
  %v1114 = vunpack.c.l.b16 %v117
  %v1115 = vunpack.c.l.b16 %v118
  %v1116 = vunpack.c.l.b16 %v119
  %v1117 = vunpack.c.l.b16 %v120
  %v1118 = vunpack.c.l.b16 %v121
  %v1119 = vunpack.c.l.b16 %v122
  %v1120 = vunpack.c.l.b16 %v123
  %v1121 = vunpack.c.l.b16 %v124
  %v1122 = vunpack.c.l.b16 %v125
  %v1123 = vunpack.c.l.b16 %v126
  %v1124 = vunpack.c.l.b16 %v127
  %v1125 = vunpack.c.l.b16 %v128
  %v1126 = vunpack.c.l.b16 %v129
  %v1127 = vunpack.c.l.b16 %v130
  %v1128 = vunpack.c.l.b16 %v131
  %v1129 = vunpack.c.l.b16 %v132
  %v1130 = vunpack.c.l.b16 %v133
  %v1131 = vunpack.c.l.b16 %v134
  %v1132 = vunpack.c.l.b16 %v135
  %v1133 = vunpack.c.l.b16 %v136
  %v1134 = vunpack.c.l.b16 %v137
  %v1135 = vunpack.c.l.b16 %v138
  %v1136 = vunpack.c.l.b16 %v139
  %v1137 = vunpack.c.l.b16 %v140
  %v1138 = vunpack.c.l.b16 %v141
  %v1139 = vunpack.c.l.b16 %v142
  %v1140 = vunpack.c.l.b16 %v143
  %v1141 = vunpack.c.l.b16 %v144
  %v1142 = vunpack.c.l.b16 %v145
  %v1143 = vunpack.c.l.b16 %v146
  %v1144 = vunpack.c.l.b16 %v147
  %v1145 = vunpack.c.l.b16 %v148
  %v1146 = vunpack.c.l.b16 %v149
  %v1147 = vunpack.c.l.b16 %v150
  %v1148 = vunpack.c.l.b16 %v151
  %v1149 = vunpack.c.l.b16 %v152
  %v1150 = vunpack.c.l.b16 %v153
  %v1151 = vunpack.c.l.b16 %v154
  %v1152 = vunpack.c.l.b16 %v155
  %v1153 = vunpack.c.l.b16 %v156
  %v1154 = vunpack.c.l.b16 %v157
  %v1155 = vunpack.c.l.b16 %v158
  %v1156 = vunpack.c.l.b16 %v159
  %v1157 = vunpack.c.l.b16 %v160
  %v1158 = vunpack.c.l.b16 %v161
  %v1159 = vunpack.c.l.b16 %v162
  %v1160 = vunpack.c.l.b16 %v163
  %v1161 = vunpack.c.l.b16 %v164
  %v1162 = vunpack.c.l.b16 %v165
  %v1163 = vunpack.c.l.b16 %v166
  %v1164 = vunpack.c.l.b16 %v167
  %v1165 = vunpack.c.l.b16 %v168
  %v1166 = vunpack.c.l.b16 %v169
  %v1167 = vunpack.c.l.b16 %v170
  %v1168 = vunpack.c.l.b16 %v171
  %v1169 = vunpack.c.l.b16 %v172
  %v1170 = vunpack.c.l.b16 %v173
  %v1171 = vunpack.c.l.b16 %v174
  %v1172 = vunpack.c.l.b16 %v175
  %v1173 = vunpack.c.l.b16 %v176
  %v1174 = vunpack.c.l.b16 %v177
  %v1175 = vunpack.c.l.b16 %v178
  %v1176 = vunpack.c.l.b16 %v179
  %v1177 = vunpack.c.l.b16 %v180
  %v1178 = vunpack.c.l.b16 %v181
  %v1179 = vunpack.c.l.b16 %v182
  %v1180 = vunpack.c.l.b16 %v183
  %v1181 = vunpack.c.l.b16 %v184
  %v1182 = vunpack.c.l.b16 %v185
  %v1183 = vunpack.c.l.b16 %v186
  %v1184 = vunpack.c.l.b16 %v187
  %v1185 = vunpack.c.l.b16 %v188
  %v1186 = vunpack.c.l.b16 %v189
  %v1187 = vunpack.c.l.b16 %v190
  %v1188 = vunpack.c.l.b16 %v191
  %v1189 = vunpack.c.l.b16 %v192
  %v1190 = vunpack.c.l.b16 %v193
  %v1191 = vunpack.c.l.b16 %v194
  %v1192 = vunpack.c.l.b16 %v195
  %v1193 = vunpack.c.l.b16 %v196
  %v1194 = vunpack.c.l.b16 %v197
  %v1195 = vunpack.c.l.b16 %v198
  %v1196 = vunpack.c.l.b16 %v199
  %v1197 = vunpack.c.l.b16 %v200
  %v1198 = vunpack.c.l.b16 %v201
  %v1199 = vunpack.c.l.b16 %v202
  %v1200 = vunpack.c.l.b16 %v203
  %v1201 = vunpack.c.l.b16 %v204
  %v1202 = vunpack.c.l.b16 %v205
  %v1203 = vunpack.c.l.b16 %v206
  %v1204 = vunpack.c.l.b16 %v207
  %v1205 = vunpack.c.l.b16 %v208
  %v1206 = vunpack.c.l.b16 %v209
  %v1207 = vunpack.c.l.b16 %v210
  %v1208 = vunpack.c.l.b16 %v211
  %v1209 = vunpack.c.l.b16 %v212
  %v1210 = vunpack.c.l.b16 %v213
  %v1211 = vunpack.c.l.b16 %v214
  %v1212 = vunpack.c.l.b16 %v215
  %v1213 = vunpack.c.l.b16 %v216
  %v1214 = vunpack.c.l.b16 %v217
  %v1215 = vunpack.c.l.b16 %v218
  %v1216 = vunpack.c.l.b16 %v219
  %v1217 = vunpack.c.l.b16 %v220
  %v1218 = vunpack.c.l.b16 %v221
  %v1219 = vunpack.c.l.b16 %v222
  %v1220 = vunpack.c.l.b16 %v223
  %v1221 = vunpack.c.l.b16 %v224
  %v1222 = vunpack.c.l.b16 %v225
  %v1223 = vunpack.c.l.b16 %v226
  %v1224 = vunpack.c.l.b16 %v227
  %v1225 = vunpack.c.l.b16 %v228
  %v1226 = vunpack.c.l.b16 %v229
  %v1227 = vunpack.c.l.b16 %v230
  %v1228 = vunpack.c.l.b16 %v231
  %v1229 = vunpack.c.l.b16 %v232
  %v1230 = vunpack.c.l.b16 %v233
  %v1231 = vunpack.c.l.b16 %v234
  %v1232 = vunpack.c.l.b16 %v235
  %v1233 = vunpack.c.l.b16 %v236
  %v1234 = vunpack.c.l.b16 %v237
  %v1235 = vunpack.c.l.b16 %v238
  %v1236 = vunpack.c.l.b16 %v239
  %v1237 = vunpack.c.l.b16 %v240
  %v1238 = vunpack.c.l.b16 %v241
  %v1239 = vunpack.c.l.b16 %v242
  %v1240 = vunpack.c.l.b16 %v243
  %v1241 = vunpack.c.l.b16 %v244
  %v1242 = vunpack.c.l.b16 %v245
  %v1243 = vunpack.c.l.b16 %v246
  %v1244 = vunpack.c.l.b16 %v247
  %v1245 = vunpack.c.l.b16 %v248
  %v1246 = vunpack.c.l.b16 %v249
  %v1247 = vunpack.c.l.b16 %v250
  %v1248 = vunpack.c.l.b16 %v251
  %v1249 = vunpack.c.l.b16 %v252
  %v1250 = vunpack.c.l.b16 %v253
  %v1251 = vunpack.c.l.b16 %v254
  %v1252 = vunpack.c.l.b16 %v255
  %v1253 = vunpack.c.l.b16 %v256
  %v1254 = vunpack.c.l.b16 %v257
  %v1255 = vunpack.c.l.b16 %v258
  %v1256 = vunpack.c.l.b16 %v259
  %v1257 = vunpack.c.l.b16 %v260
  %v1258 = vunpack.c.l.b16 %v261
  %v1259 = vunpack.c.l.b16 %v262
  %v1260 = vunpack.c.l.b16 %v263
  %v1261 = vunpack.c.l.b16 %v264
  %v1262 = vunpack.c.l.b16 %v265
  %v1263 = vunpack.c.l.b16 %v266
  %v1264 = vunpack.c.l.b16 %v267
  %v1265 = vunpack.c.l.b16 %v268
  %v1266 = vunpack.c.l.b16 %v269
  %v1267 = vunpack.c.l.b16 %v270
  %v1268 = vunpack.c.l.b16 %v271
  %v1269 = vunpack.c.l.b16 %v272
  %v1270 = vunpack.c.l.b16 %v273
  %v1271 = vunpack.c.l.b16 %v274
  %v1272 = vunpack.c.l.b16 %v275
  %v1273 = vunpack.c.l.b16 %v276
  %v1274 = vunpack.c.l.b16 %v277
  %v1275 = vunpack.c.l.b16 %v278
  %v1276 = vunpack.c.l.b16 %v279
  %v1277 = vunpack.c.l.b16 %v280
  %v1278 = vunpack.c.l.b16 %v281
  %v1279 = vunpack.c.l.b16 %v282
  %v1280 = vunpack.c.l.b16 %v283
  %v1281 = vunpack.c.l.b16 %v284
  %v1282 = vunpack.c.l.b16 %v285
  %v1283 = vunpack.c.l.b16 %v286
  %v1284 = vunpack.c.l.b16 %v287
  %v1285 = vunpack.c.l.b16 %v288
  %v1286 = vunpack.c.l.b16 %v289
  %v1287 = vunpack.c.l.b16 %v290
  %v1288 = vunpack.c.l.b16 %v291
  %v1289 = vunpack.c.l.b16 %v292
  %v1290 = vunpack.c.l.b16 %v293
  %v1291 = vunpack.c.l.b16 %v294
  %v1292 = vunpack.c.l.b16 %v295
  %v1293 = vunpack.c.l.b16 %v296
  %v1294 = vunpack.c.l.b16 %v297
  %v1295 = vunpack.c.l.b16 %v298
  %v1296 = vunpack.c.l.b16 %v299
  %v1297 = vunpack.c.l.b16 %v300
  %v1298 = vunpack.c.l.b16 %v301
  %v1299 = vunpack.c.l.b16 %v302
  %v1300 = vunpack.c.l.b16 %v303
  %v1301 = vunpack.c.l.b16 %v304
  %v1302 = vunpack.c.l.b16 %v305
  %v1303 = vunpack.c.l.b16 %v306
  %v1304 = vunpack.c.l.b16 %v307
  %v1305 = vunpack.c.l.b16 %v308
  %v1306 = vunpack.c.l.b16 %v309
  %v1307 = vunpack.c.l.b16 %v310
  %v1308 = vunpack.c.l.b16 %v311
  %v1309 = vunpack.c.l.b16 %v312
  %v1310 = vunpack.c.l.b16 %v313
  %v1311 = vunpack.c.l.b16 %v314
  %v1312 = vunpack.c.l.b16 %v315
  %v1313 = vunpack.c.l.b16 %v316
  %v1314 = vunpack.c.l.b16 %v317
  %v1315 = vunpack.c.l.b16 %v318
  %v1316 = vunpack.c.l.b16 %v319
  %v1317 = vunpack.c.l.b16 %v320
  %v1318 = vunpack.c.l.b16 %v321
  %v1319 = vunpack.c.l.b16 %v322
  %v1320 = vunpack.c.l.b16 %v323
  %v1321 = vunpack.c.l.b16 %v324
  %v1322 = vunpack.c.l.b16 %v325
  %v1323 = vunpack.c.l.b16 %v326
  %v1324 = vunpack.c.l.b16 %v327
  %v1325 = vunpack.c.l.b16 %v328
  %v1326 = vunpack.c.l.b16 %v329
  %v1327 = vunpack.c.l.b16 %v330
  %v1328 = vunpack.c.l.b16 %v331
  %v1329 = vunpack.c.l.b16 %v332
  %v1330 = vunpack.c.l.b16 %v333
  %v1331 = vunpack.c.l.b16 %v334
  %v1332 = vunpack.c.l.b16 %v335
  %v1333 = vunpack.c.l.b16 %v336
  %v1334 = vunpack.c.l.b16 %v337
  %v1335 = vunpack.c.l.b16 %v338
  %v1336 = vunpack.c.l.b16 %v339
  %v1337 = vunpack.c.l.b16 %v340
  %v1338 = vunpack.c.l.b16 %v341
  %v1339 = vunpack.c.l.b16 %v342
  %v1340 = vunpack.c.l.b16 %v343
  %v1341 = vunpack.c.l.b16 %v344
  %v1342 = vunpack.c.l.b16 %v345
  %v1343 = vunpack.c.l.b16 %v346
  %v1344 = vunpack.c.l.b16 %v347
  %v1345 = vunpack.c.l.b16 %v348
  %v1346 = vunpack.c.l.b16 %v349
  %v1347 = vunpack.c.l.b16 %v350
  %v1348 = vunpack.c.l.b16 %v351
  %v1349 = vunpack.c.l.b16 %v352
  %v1350 = vunpack.c.l.b16 %v353
  %v1351 = vunpack.c.l.b16 %v354
  %v1352 = vunpack.c.l.b16 %v355
  %v1353 = vunpack.c.l.b16 %v356
  %v1354 = vunpack.c.l.b16 %v357
  %v1355 = vunpack.c.l.b16 %v358
  %v1356 = vunpack.c.l.b16 %v359
  %v1357 = vunpack.c.l.b16 %v360
  %v1358 = vunpack.c.l.b16 %v361
  %v1359 = vunpack.c.l.b16 %v362
  %v1360 = vunpack.c.l.b16 %v363
  %v1361 = vunpack.c.l.b16 %v364
  %v1362 = vunpack.c.l.b16 %v365
  %v1363 = vunpack.c.l.b16 %v366
  %v1364 = vunpack.c.l.b16 %v367
  %v1365 = vunpack.c.l.b16 %v368
  %v1366 = vunpack.c.l.b16 %v369
  %v1367 = vunpack.c.l.b16 %v370
  %v1368 = vunpack.c.l.b16 %v371
  %v1369 = vunpack.c.l.b16 %v372
  %v1370 = vunpack.c.l.b16 %v373
  %v1371 = vunpack.c.l.b16 %v374
  %v1372 = vunpack.c.l.b16 %v375
  %v1373 = vunpack.c.l.b16 %v376
  %v1374 = vunpack.c.l.b16 %v377
  %v1375 = vunpack.c.l.b16 %v378
  %v1376 = vunpack.c.l.b16 %v379
  %v1377 = vunpack.c.l.b16 %v380
  %v1378 = vunpack.c.l.b16 %v381
  %v1379 = vunpack.c.l.b16 %v382
  %v1380 = vunpack.c.l.b16 %v383
  %v1381 = vunpack.c.l.b16 %v384
  %v1382 = vunpack.c.l.b16 %v385
  %v1383 = vunpack.c.l.b16 %v386
  %v1384 = vunpack.c.l.b16 %v387
  %v1385 = vunpack.c.l.b16 %v388
  %v1386 = vunpack.c.l.b16 %v389
  %v1387 = vunpack.c.l.b16 %v390
  %v1388 = vunpack.c.l.b16 %v391
  %v1389 = vunpack.c.l.b16 %v392
  %v1390 = vunpack.c.l.b16 %v393
  %v1391 = vunpack.c.l.b16 %v394
  %v1392 = vunpack.c.l.b16 %v395
  %v1393 = vunpack.c.l.b16 %v396
  %v1394 = vunpack.c.l.b16 %v397
  %v1395 = vunpack.c.l.b16 %v398
  %v1396 = vunpack.c.l.b16 %v399
  %v1397 = vunpack.c.l.b16 %v400
  %v1398 = vunpack.c.l.b16 %v401
  %v1399 = vunpack.c.l.b16 %v402
  %v1400 = vunpack.c.l.b16 %v403
  %v1401 = vunpack.c.l.b16 %v404
  %v1402 = vunpack.c.l.b16 %v405
  %v1403 = vunpack.c.l.b16 %v406
  %v1404 = vunpack.c.l.b16 %v407
  %v1405 = vunpack.c.l.b16 %v408
  %v1406 = vunpack.c.l.b16 %v409
  %v1407 = vunpack.c.l.b16 %v410
  %v1408 = vunpack.c.l.b16 %v411
  %v1409 = vunpack.c.l.b16 %v412
  %v1410 = vunpack.c.l.b16 %v413
  %v1411 = vunpack.c.l.b16 %v414
  %v1412 = vunpack.c.l.b16 %v415
  %v1413 = vunpack.c.l.b16 %v416
  %v1414 = vunpack.c.l.b16 %v417
  %v1415 = vunpack.c.l.b16 %v418
  %v1416 = vpack.c.b16 %v1017, %v1016
  %v1417 = vpack.c.b16 %v1019, %v1018
  %v1418 = vpack.c.b16 %v1021, %v1020
  %v1419 = vpack.c.b16 %v1023, %v1022
  %v1420 = vpack.c.b16 %v1025, %v1024
  %v1421 = vpack.c.b16 %v1027, %v1026
  %v1422 = vpack.c.b16 %v1029, %v1028
  %v1423 = vpack.c.b16 %v1031, %v1030
  %v1424 = vpack.c.b16 %v1033, %v1032
  %v1425 = vpack.c.b16 %v1035, %v1034
  %v1426 = vpack.c.b16 %v1037, %v1036
  %v1427 = vpack.c.b16 %v1039, %v1038
  %v1428 = vpack.c.b16 %v1041, %v1040
  %v1429 = vpack.c.b16 %v1043, %v1042
  %v1430 = vpack.c.b16 %v1045, %v1044
  %v1431 = vpack.c.b16 %v1047, %v1046
  %v1432 = vpack.c.b16 %v1049, %v1048
  %v1433 = vpack.c.b16 %v1051, %v1050
  %v1434 = vpack.c.b16 %v1053, %v1052
  %v1435 = vpack.c.b16 %v1055, %v1054
  %v1436 = vpack.c.b16 %v1057, %v1056
  %v1437 = vpack.c.b16 %v1059, %v1058
  %v1438 = vpack.c.b16 %v1061, %v1060
  %v1439 = vpack.c.b16 %v1063, %v1062
  %v1440 = vpack.c.b16 %v1065, %v1064
  %v1441 = vpack.c.b16 %v1067, %v1066
  %v1442 = vpack.c.b16 %v1069, %v1068
  %v1443 = vpack.c.b16 %v1071, %v1070
  %v1444 = vpack.c.b16 %v1073, %v1072
  %v1445 = vpack.c.b16 %v1075, %v1074
  %v1446 = vpack.c.b16 %v1077, %v1076
  %v1447 = vpack.c.b16 %v1079, %v1078
  %v1448 = vpack.c.b16 %v1081, %v1080
  %v1449 = vpack.c.b16 %v1083, %v1082
  %v1450 = vpack.c.b16 %v1085, %v1084
  %v1451 = vpack.c.b16 %v1087, %v1086
  %v1452 = vpack.c.b16 %v1089, %v1088
  %v1453 = vpack.c.b16 %v1091, %v1090
  %v1454 = vpack.c.b16 %v1093, %v1092
  %v1455 = vpack.c.b16 %v1095, %v1094
  %v1456 = vpack.c.b16 %v1097, %v1096
  %v1457 = vpack.c.b16 %v1099, %v1098
  %v1458 = vpack.c.b16 %v1101, %v1100
  %v1459 = vpack.c.b16 %v1103, %v1102
  %v1460 = vpack.c.b16 %v1105, %v1104
  %v1461 = vpack.c.b16 %v1107, %v1106
  %v1462 = vpack.c.b16 %v1109, %v1108
  %v1463 = vpack.c.b16 %v1111, %v1110
  %v1464 = vpack.c.b16 %v1113, %v1112
  %v1465 = vpack.c.b16 %v1115, %v1114
  %v1466 = vpack.c.b16 %v1117, %v1116
  %v1467 = vpack.c.b16 %v1119, %v1118
  %v1468 = vpack.c.b16 %v1121, %v1120
  %v1469 = vpack.c.b16 %v1123, %v1122
  %v1470 = vpack.c.b16 %v1125, %v1124
  %v1471 = vpack.c.b16 %v1127, %v1126
  %v1472 = vpack.c.b16 %v1129, %v1128
  %v1473 = vpack.c.b16 %v1131, %v1130
  %v1474 = vpack.c.b16 %v1133, %v1132
  %v1475 = vpack.c.b16 %v1135, %v1134
  %v1476 = vpack.c.b16 %v1137, %v1136
  %v1477 = vpack.c.b16 %v1139, %v1138
  %v1478 = vpack.c.b16 %v1141, %v1140
  %v1479 = vpack.c.b16 %v1143, %v1142
  %v1480 = vpack.c.b16 %v1145, %v1144
  %v1481 = vpack.c.b16 %v1147, %v1146
  %v1482 = vpack.c.b16 %v1149, %v1148
  %v1483 = vpack.c.b16 %v1151, %v1150
  %v1484 = vpack.c.b16 %v1153, %v1152
  %v1485 = vpack.c.b16 %v1155, %v1154
  %v1486 = vpack.c.b16 %v1157, %v1156
  %v1487 = vpack.c.b16 %v1159, %v1158
  %v1488 = vpack.c.b16 %v1161, %v1160
  %v1489 = vpack.c.b16 %v1163, %v1162
  %v1490 = vpack.c.b16 %v1165, %v1164
  %v1491 = vpack.c.b16 %v1167, %v1166
  %v1492 = vpack.c.b16 %v1169, %v1168
  %v1493 = vpack.c.b16 %v1171, %v1170
  %v1494 = vpack.c.b16 %v1173, %v1172
  %v1495 = vpack.c.b16 %v1175, %v1174
  %v1496 = vpack.c.b16 %v1177, %v1176
  %v1497 = vpack.c.b16 %v1179, %v1178
  %v1498 = vpack.c.b16 %v1181, %v1180
  %v1499 = vpack.c.b16 %v1183, %v1182
  %v1500 = vpack.c.b16 %v1185, %v1184
  %v1501 = vpack.c.b16 %v1187, %v1186
  %v1502 = vpack.c.b16 %v1189, %v1188
  %v1503 = vpack.c.b16 %v1191, %v1190
  %v1504 = vpack.c.b16 %v1193, %v1192
  %v1505 = vpack.c.b16 %v1195, %v1194
  %v1506 = vpack.c.b16 %v1197, %v1196
  %v1507 = vpack.c.b16 %v1199, %v1198
  %v1508 = vpack.c.b16 %v1201, %v1200
  %v1509 = vpack.c.b16 %v1203, %v1202
  %v1510 = vpack.c.b16 %v1205, %v1204
  %v1511 = vpack.c.b16 %v1207, %v1206
  %v1512 = vpack.c.b16 %v1209, %v1208
  %v1513 = vpack.c.b16 %v1211, %v1210
  %v1514 = vpack.c.b16 %v1213, %v1212
  %v1515 = vpack.c.b16 %v1215, %v1214
  %v1516 = vpack.c.b16 %v1217, %v1216
  %v1517 = vpack.c.b16 %v1219, %v1218
  %v1518 = vpack.c.b16 %v1221, %v1220
  %v1519 = vpack.c.b16 %v1223, %v1222
  %v1520 = vpack.c.b16 %v1225, %v1224
  %v1521 = vpack.c.b16 %v1227, %v1226
  %v1522 = vpack.c.b16 %v1229, %v1228
  %v1523 = vpack.c.b16 %v1231, %v1230
  %v1524 = vpack.c.b16 %v1233, %v1232
  %v1525 = vpack.c.b16 %v1235, %v1234
  %v1526 = vpack.c.b16 %v1237, %v1236
  %v1527 = vpack.c.b16 %v1239, %v1238
  %v1528 = vpack.c.b16 %v1241, %v1240
  %v1529 = vpack.c.b16 %v1243, %v1242
  %v1530 = vpack.c.b16 %v1245, %v1244
  %v1531 = vpack.c.b16 %v1247, %v1246
  %v1532 = vpack.c.b16 %v1249, %v1248
  %v1533 = vpack.c.b16 %v1251, %v1250
  %v1534 = vpack.c.b16 %v1253, %v1252
  %v1535 = vpack.c.b16 %v1255, %v1254
  %v1536 = vpack.c.b16 %v1257, %v1256
  %v1537 = vpack.c.b16 %v1259, %v1258
  %v1538 = vpack.c.b16 %v1261, %v1260
  %v1539 = vpack.c.b16 %v1263, %v1262
  %v1540 = vpack.c.b16 %v1265, %v1264
  %v1541 = vpack.c.b16 %v1267, %v1266
  %v1542 = vpack.c.b16 %v1269, %v1268
  %v1543 = vpack.c.b16 %v1271, %v1270
  %v1544 = vpack.c.b16 %v1273, %v1272
  %v1545 = vpack.c.b16 %v1275, %v1274
  %v1546 = vpack.c.b16 %v1277, %v1276
  %v1547 = vpack.c.b16 %v1279, %v1278
  %v1548 = vpack.c.b16 %v1281, %v1280
  %v1549 = vpack.c.b16 %v1283, %v1282
  %v1550 = vpack.c.b16 %v1285, %v1284
  %v1551 = vpack.c.b16 %v1287, %v1286
  %v1552 = vpack.c.b16 %v1289, %v1288
  %v1553 = vpack.c.b16 %v1291, %v1290
  %v1554 = vpack.c.b16 %v1293, %v1292
  %v1555 = vpack.c.b16 %v1295, %v1294
  %v1556 = vpack.c.b16 %v1297, %v1296
  %v1557 = vpack.c.b16 %v1299, %v1298
  %v1558 = vpack.c.b16 %v1301, %v1300
  %v1559 = vpack.c.b16 %v1303, %v1302
  %v1560 = vpack.c.b16 %v1305, %v1304
  %v1561 = vpack.c.b16 %v1307, %v1306
  %v1562 = vpack.c.b16 %v1309, %v1308
  %v1563 = vpack.c.b16 %v1311, %v1310
  %v1564 = vpack.c.b16 %v1313, %v1312
  %v1565 = vpack.c.b16 %v1315, %v1314
  %v1566 = vpack.c.b16 %v1317, %v1316
  %v1567 = vpack.c.b16 %v1319, %v1318
  %v1568 = vpack.c.b16 %v1321, %v1320
  %v1569 = vpack.c.b16 %v1323, %v1322
  %v1570 = vpack.c.b16 %v1325, %v1324
  %v1571 = vpack.c.b16 %v1327, %v1326
  %v1572 = vpack.c.b16 %v1329, %v1328
  %v1573 = vpack.c.b16 %v1331, %v1330
  %v1574 = vpack.c.b16 %v1333, %v1332
  %v1575 = vpack.c.b16 %v1335, %v1334
  %v1576 = vpack.c.b16 %v1337, %v1336
  %v1577 = vpack.c.b16 %v1339, %v1338
  %v1578 = vpack.c.b16 %v1341, %v1340
  %v1579 = vpack.c.b16 %v1343, %v1342
  %v1580 = vpack.c.b16 %v1345, %v1344
  %v1581 = vpack.c.b16 %v1347, %v1346
  %v1582 = vpack.c.b16 %v1349, %v1348
  %v1583 = vpack.c.b16 %v1351, %v1350
  %v1584 = vpack.c.b16 %v1353, %v1352
  %v1585 = vpack.c.b16 %v1355, %v1354
  %v1586 = vpack.c.b16 %v1357, %v1356
  %v1587 = vpack.c.b16 %v1359, %v1358
  %v1588 = vpack.c.b16 %v1361, %v1360
  %v1589 = vpack.c.b16 %v1363, %v1362
  %v1590 = vpack.c.b16 %v1365, %v1364
  %v1591 = vpack.c.b16 %v1367, %v1366
  %v1592 = vpack.c.b16 %v1369, %v1368
  %v1593 = vpack.c.b16 %v1371, %v1370
  %v1594 = vpack.c.b16 %v1373, %v1372
  %v1595 = vpack.c.b16 %v1375, %v1374
  %v1596 = vpack.c.b16 %v1377, %v1376
  %v1597 = vpack.c.b16 %v1379, %v1378
  %v1598 = vpack.c.b16 %v1381, %v1380
  %v1599 = vpack.c.b16 %v1383, %v1382
  %v1600 = vpack.c.b16 %v1385, %v1384
  %v1601 = vpack.c.b16 %v1387, %v1386
  %v1602 = vpack.c.b16 %v1389, %v1388
  %v1603 = vpack.c.b16 %v1391, %v1390
  %v1604 = vpack.c.b16 %v1393, %v1392
  %v1605 = vpack.c.b16 %v1395, %v1394
  %v1606 = vpack.c.b16 %v1397, %v1396
  %v1607 = vpack.c.b16 %v1399, %v1398
  %v1608 = vpack.c.b16 %v1401, %v1400
  %v1609 = vpack.c.b16 %v1403, %v1402
  %v1610 = vpack.c.b16 %v1405, %v1404
  %v1611 = vpack.c.b16 %v1407, %v1406
  %v1612 = vpack.c.b16 %v1409, %v1408
  %v1613 = vpack.c.b16 %v1411, %v1410
  %v1614 = vpack.c.b16 %v1413, %v1412
  %v1615 = vpack.c.b16 %v1415, %v1414
  %1816 = vmatprep.subr.bf16.mxu0 0
  %1817 = vmatpush1.bf16.msra.mxu0 %v1416
  %1818 = vmatprep.subr.bf16.mxu0 0
  %1819 = vmatpush1.bf16.msra.mxu0 %v1417
  %1820 = vmatprep.subr.bf16.mxu0 0
  %1821 = vmatpush1.bf16.msra.mxu0 %v1418
  %1822 = vmatprep.subr.bf16.mxu0 0
  %1823 = vmatpush1.bf16.msra.mxu0 %v1419
  %1824 = vmatprep.subr.bf16.mxu0 0
  %1825 = vmatpush1.bf16.msra.mxu0 %v1420
  %1826 = vmatprep.subr.bf16.mxu0 0
  %1827 = vmatpush1.bf16.msra.mxu0 %v1421
  %1828 = vmatprep.subr.bf16.mxu0 0
  %1829 = vmatpush1.bf16.msra.mxu0 %v1422
  %1830 = vmatprep.subr.bf16.mxu0 0
  %1831 = vmatpush1.bf16.msra.mxu0 %v1423
  %1832 = vmatprep.subr.bf16.mxu0 0
  %1833 = vmatpush1.bf16.msra.mxu0 %v1424
  %1834 = vmatprep.subr.bf16.mxu0 0
  %1835 = vmatpush1.bf16.msra.mxu0 %v1425
  %1836 = vmatprep.subr.bf16.mxu0 0
  %1837 = vmatpush1.bf16.msra.mxu0 %v1426
  %1838 = vmatprep.subr.bf16.mxu0 0
  %1839 = vmatpush1.bf16.msra.mxu0 %v1427
  %1840 = vmatprep.subr.bf16.mxu0 0
  %1841 = vmatpush1.bf16.msra.mxu0 %v1428
  %1842 = vmatprep.subr.bf16.mxu0 0
  %1843 = vmatpush1.bf16.msra.mxu0 %v1429
  %1844 = vmatprep.subr.bf16.mxu0 0
  %1845 = vmatpush1.bf16.msra.mxu0 %v1430
  %1846 = vmatprep.subr.bf16.mxu0 0
  %1847 = vmatpush1.bf16.msra.mxu0 %v1431
  %1848 = vmatprep.mubr.bf16.mxu0 %v467
  %1849 = vmatmul.mubr.bf16.gmra.mrb[0].mxu0 %v453
  %v1850 = vpop.f32.mrb[0].mxu0
  %v1851 = vadd.f32 %v424, %v1850
  %v1852 = vpop.f32.mrb[0].mxu0
  %v1853 = vpop.f32.mrb[0].mxu0
  %v1854 = vpop.f32.mrb[0].mxu0
  %1855 = vdwg.mxu0
  %1856 = vmatprep.subr.bf16.mxu0 0
  %1857 = vmatpush1.bf16.msra.mxu0 %v1432
  %1858 = vmatprep.subr.bf16.mxu0 0
  %1859 = vmatpush1.bf16.msra.mxu0 %v1433
  %1860 = vmatprep.subr.bf16.mxu0 0
  %1861 = vmatpush1.bf16.msra.mxu0 %v1434
  %1862 = vmatprep.subr.bf16.mxu0 0
  %1863 = vmatpush1.bf16.msra.mxu0 %v1435
  %1864 = vmatprep.subr.bf16.mxu0 0
  %1865 = vmatpush1.bf16.msra.mxu0 %v1436
  %1866 = vmatprep.subr.bf16.mxu0 0
  %1867 = vmatpush1.bf16.msra.mxu0 %v1437
  %1868 = vmatprep.subr.bf16.mxu0 0
  %1869 = vmatpush1.bf16.msra.mxu0 %v1438
  %1870 = vmatprep.subr.bf16.mxu0 0
  %1871 = vmatpush1.bf16.msra.mxu0 %v1439
  %1872 = vmatprep.subr.bf16.mxu0 0
  %1873 = vmatpush1.bf16.msra.mxu0 %v1440
  %1874 = vmatprep.subr.bf16.mxu0 0
  %1875 = vmatpush1.bf16.msra.mxu0 %v1441
  %1876 = vmatprep.subr.bf16.mxu0 0
  %1877 = vmatpush1.bf16.msra.mxu0 %v1442
  %1878 = vmatprep.subr.bf16.mxu0 0
  %1879 = vmatpush1.bf16.msra.mxu0 %v1443
  %1880 = vmatprep.subr.bf16.mxu0 0
  %1881 = vmatpush1.bf16.msra.mxu0 %v1444
  %1882 = vmatprep.subr.bf16.mxu0 0
  %1883 = vmatpush1.bf16.msra.mxu0 %v1445
  %1884 = vmatprep.subr.bf16.mxu0 0
  %1885 = vmatpush1.bf16.msra.mxu0 %v1446
  %1886 = vmatprep.subr.bf16.mxu0 0
  %1887 = vmatpush1.bf16.msra.mxu0 %v1447
  %1888 = vmatprep.mubr.bf16.mxu0 %v477
  %1889 = vmatmul.mubr.bf16.gmra.mrb[0].mxu0 %v475
  %v1890 = vpop.f32.mrb[0].mxu0
  %v1891 = vadd.f32 %v1851, %v1890
  %v1892 = vpop.f32.mrb[0].mxu0
  %v1893 = vpop.f32.mrb[0].mxu0
  %v1894 = vpop.f32.mrb[0].mxu0
  %1895 = vdwg.mxu0
  %1896 = vmatprep.subr.bf16.mxu0 0
  %1897 = vmatpush1.bf16.msra.mxu0 %v1448
  %1898 = vmatprep.subr.bf16.mxu0 0
  %1899 = vmatpush1.bf16.msra.mxu0 %v1449
  %1900 = vmatprep.subr.bf16.mxu0 0
  %1901 = vmatpush1.bf16.msra.mxu0 %v1450
  %1902 = vmatprep.subr.bf16.mxu0 0
  %1903 = vmatpush1.bf16.msra.mxu0 %v1451
  %1904 = vmatprep.subr.bf16.mxu0 0
  %1905 = vmatpush1.bf16.msra.mxu0 %v1452
  %1906 = vmatprep.subr.bf16.mxu0 0
  %1907 = vmatpush1.bf16.msra.mxu0 %v1453
  %1908 = vmatprep.subr.bf16.mxu0 0
  %1909 = vmatpush1.bf16.msra.mxu0 %v1454
  %1910 = vmatprep.subr.bf16.mxu0 0
  %1911 = vmatpush1.bf16.msra.mxu0 %v1455
  %1912 = vmatprep.subr.bf16.mxu0 0
  %1913 = vmatpush1.bf16.msra.mxu0 %v1456
  %1914 = vmatprep.subr.bf16.mxu0 0
  %1915 = vmatpush1.bf16.msra.mxu0 %v1457
  %1916 = vmatprep.subr.bf16.mxu0 0
  %1917 = vmatpush1.bf16.msra.mxu0 %v1458
  %1918 = vmatprep.subr.bf16.mxu0 0
  %1919 = vmatpush1.bf16.msra.mxu0 %v1459
  %1920 = vmatprep.subr.bf16.mxu0 0
  %1921 = vmatpush1.bf16.msra.mxu0 %v1460
  %1922 = vmatprep.subr.bf16.mxu0 0
  %1923 = vmatpush1.bf16.msra.mxu0 %v1461
  %1924 = vmatprep.subr.bf16.mxu0 0
  %1925 = vmatpush1.bf16.msra.mxu0 %v1462
  %1926 = vmatprep.subr.bf16.mxu0 0
  %1927 = vmatpush1.bf16.msra.mxu0 %v1463
  %1928 = vmatprep.mubr.bf16.mxu0 %v474
  %1929 = vmatmul.mubr.bf16.gmra.mrb[0].mxu0 %v460
  %v1930 = vpop.f32.mrb[0].mxu0
  %v1931 = vadd.f32 %v1891, %v1930
  %v1932 = vpop.f32.mrb[0].mxu0
  %v1933 = vpop.f32.mrb[0].mxu0
  %v1934 = vpop.f32.mrb[0].mxu0
  %1935 = vdwg.mxu0
  %1936 = vmatprep.subr.bf16.mxu0 0
  %1937 = vmatpush1.bf16.msra.mxu0 %v1464
  %1938 = vmatprep.subr.bf16.mxu0 0
  %1939 = vmatpush1.bf16.msra.mxu0 %v1465
  %1940 = vmatprep.subr.bf16.mxu0 0
  %1941 = vmatpush1.bf16.msra.mxu0 %v1466
  %1942 = vmatprep.subr.bf16.mxu0 0
  %1943 = vmatpush1.bf16.msra.mxu0 %v1467
  %1944 = vmatprep.subr.bf16.mxu0 0
  %1945 = vmatpush1.bf16.msra.mxu0 %v1468
  %1946 = vmatprep.subr.bf16.mxu0 0
  %1947 = vmatpush1.bf16.msra.mxu0 %v1469
  %1948 = vmatprep.subr.bf16.mxu0 0
  %1949 = vmatpush1.bf16.msra.mxu0 %v1470
  %1950 = vmatprep.subr.bf16.mxu0 0
  %1951 = vmatpush1.bf16.msra.mxu0 %v1471
  %1952 = vmatprep.subr.bf16.mxu0 0
  %1953 = vmatpush1.bf16.msra.mxu0 %v1472
  %1954 = vmatprep.subr.bf16.mxu0 0
  %1955 = vmatpush1.bf16.msra.mxu0 %v1473
  %1956 = vmatprep.subr.bf16.mxu0 0
  %1957 = vmatpush1.bf16.msra.mxu0 %v1474
  %1958 = vmatprep.subr.bf16.mxu0 0
  %1959 = vmatpush1.bf16.msra.mxu0 %v1475
  %1960 = vmatprep.subr.bf16.mxu0 0
  %1961 = vmatpush1.bf16.msra.mxu0 %v1476
  %1962 = vmatprep.subr.bf16.mxu0 0
  %1963 = vmatpush1.bf16.msra.mxu0 %v1477
  %1964 = vmatprep.subr.bf16.mxu0 0
  %1965 = vmatpush1.bf16.msra.mxu0 %v1478
  %1966 = vmatprep.subr.bf16.mxu0 0
  %1967 = vmatpush1.bf16.msra.mxu0 %v1479
  %1968 = vmatprep.mubr.bf16.mxu0 %v478
  %1969 = vmatmul.mubr.bf16.gmra.mrb[0].mxu0 %v476
  %v1970 = vpop.f32.mrb[0].mxu0
  %v1971 = vadd.f32 %v1931, %v1970
  %v1972 = vpop.f32.mrb[0].mxu0
  %v1973 = vpop.f32.mrb[0].mxu0
  %v1974 = vpop.f32.mrb[0].mxu0
  %1975 = vdwg.mxu0
  %1976 = vmatprep.subr.bf16.mxu0 0
  %1977 = vmatpush1.bf16.msra.mxu0 %v1480
  %1978 = vmatprep.subr.bf16.mxu0 0
  %1979 = vmatpush1.bf16.msra.mxu0 %v1481
  %1980 = vmatprep.subr.bf16.mxu0 0
  %1981 = vmatpush1.bf16.msra.mxu0 %v1482
  %1982 = vmatprep.subr.bf16.mxu0 0
  %1983 = vmatpush1.bf16.msra.mxu0 %v1483
  %1984 = vmatprep.subr.bf16.mxu0 0
  %1985 = vmatpush1.bf16.msra.mxu0 %v1484
  %1986 = vmatprep.subr.bf16.mxu0 0
  %1987 = vmatpush1.bf16.msra.mxu0 %v1485
  %1988 = vmatprep.subr.bf16.mxu0 0
  %1989 = vmatpush1.bf16.msra.mxu0 %v1486
  %1990 = vmatprep.subr.bf16.mxu0 0
  %1991 = vmatpush1.bf16.msra.mxu0 %v1487
  %1992 = vmatprep.subr.bf16.mxu0 0
  %1993 = vmatpush1.bf16.msra.mxu0 %v1488
  %1994 = vmatprep.subr.bf16.mxu0 0
  %1995 = vmatpush1.bf16.msra.mxu0 %v1489
  %1996 = vmatprep.subr.bf16.mxu0 0
  %1997 = vmatpush1.bf16.msra.mxu0 %v1490
  %1998 = vmatprep.subr.bf16.mxu0 0
  %1999 = vmatpush1.bf16.msra.mxu0 %v1491
  %2000 = vmatprep.subr.bf16.mxu0 0
  %2001 = vmatpush1.bf16.msra.mxu0 %v1492
  %2002 = vmatprep.subr.bf16.mxu0 0
  %2003 = vmatpush1.bf16.msra.mxu0 %v1493
  %2004 = vmatprep.subr.bf16.mxu0 0
  %2005 = vmatpush1.bf16.msra.mxu0 %v1494
  %2006 = vmatprep.subr.bf16.mxu0 0
  %2007 = vmatpush1.bf16.msra.mxu0 %v1495
  %2008 = vmatprep.mubr.bf16.mxu0 %v516
  %2009 = vmatmul.mubr.bf16.gmra.mrb[0].mxu0 %v502
  %v2010 = vpop.f32.mrb[0].mxu0
  %v2011 = vadd.f32 %v1971, %v2010
  %v2012 = vpop.f32.mrb[0].mxu0
  %v2013 = vpop.f32.mrb[0].mxu0
  %v2014 = vpop.f32.mrb[0].mxu0
  %2015 = vdwg.mxu0
  %2016 = vmatprep.subr.bf16.mxu0 0
  %2017 = vmatpush1.bf16.msra.mxu0 %v1496
  %2018 = vmatprep.subr.bf16.mxu0 0
  %2019 = vmatpush1.bf16.msra.mxu0 %v1497
  %2020 = vmatprep.subr.bf16.mxu0 0
  %2021 = vmatpush1.bf16.msra.mxu0 %v1498
  %2022 = vmatprep.subr.bf16.mxu0 0
  %2023 = vmatpush1.bf16.msra.mxu0 %v1499
  %2024 = vmatprep.subr.bf16.mxu0 0
  %2025 = vmatpush1.bf16.msra.mxu0 %v1500
  %2026 = vmatprep.subr.bf16.mxu0 0
  %2027 = vmatpush1.bf16.msra.mxu0 %v1501
  %2028 = vmatprep.subr.bf16.mxu0 0
  %2029 = vmatpush1.bf16.msra.mxu0 %v1502
  %2030 = vmatprep.subr.bf16.mxu0 0
  %2031 = vmatpush1.bf16.msra.mxu0 %v1503
  %2032 = vmatprep.subr.bf16.mxu0 0
  %2033 = vmatpush1.bf16.msra.mxu0 %v1504
  %2034 = vmatprep.subr.bf16.mxu0 0
  %2035 = vmatpush1.bf16.msra.mxu0 %v1505
  %2036 = vmatprep.subr.bf16.mxu0 0
  %2037 = vmatpush1.bf16.msra.mxu0 %v1506
  %2038 = vmatprep.subr.bf16.mxu0 0
  %2039 = vmatpush1.bf16.msra.mxu0 %v1507
  %2040 = vmatprep.subr.bf16.mxu0 0
  %2041 = vmatpush1.bf16.msra.mxu0 %v1508
  %2042 = vmatprep.subr.bf16.mxu0 0
  %2043 = vmatpush1.bf16.msra.mxu0 %v1509
  %2044 = vmatprep.subr.bf16.mxu0 0
  %2045 = vmatpush1.bf16.msra.mxu0 %v1510
  %2046 = vmatprep.subr.bf16.mxu0 0
  %2047 = vmatpush1.bf16.msra.mxu0 %v1511
  %2048 = vmatprep.mubr.bf16.mxu0 %v526
  %2049 = vmatmul.mubr.bf16.gmra.mrb[0].mxu0 %v524
  %v2050 = vpop.f32.mrb[0].mxu0
  %v2051 = vadd.f32 %v2011, %v2050
  %v2052 = vpop.f32.mrb[0].mxu0
  %v2053 = vpop.f32.mrb[0].mxu0
  %v2054 = vpop.f32.mrb[0].mxu0
  %2055 = vdwg.mxu0
  %2056 = vmatprep.subr.bf16.mxu0 0
  %2057 = vmatpush1.bf16.msra.mxu0 %v1512
  %2058 = vmatprep.subr.bf16.mxu0 0
  %2059 = vmatpush1.bf16.msra.mxu0 %v1513
  %2060 = vmatprep.subr.bf16.mxu0 0
  %2061 = vmatpush1.bf16.msra.mxu0 %v1514
  %2062 = vmatprep.subr.bf16.mxu0 0
  %2063 = vmatpush1.bf16.msra.mxu0 %v1515
  %2064 = vmatprep.subr.bf16.mxu0 0
  %2065 = vmatpush1.bf16.msra.mxu0 %v1516
  %2066 = vmatprep.subr.bf16.mxu0 0
  %2067 = vmatpush1.bf16.msra.mxu0 %v1517
  %2068 = vmatprep.subr.bf16.mxu0 0
  %2069 = vmatpush1.bf16.msra.mxu0 %v1518
  %2070 = vmatprep.subr.bf16.mxu0 0
  %2071 = vmatpush1.bf16.msra.mxu0 %v1519
  %2072 = vmatprep.subr.bf16.mxu0 0
  %2073 = vmatpush1.bf16.msra.mxu0 %v1520
  %2074 = vmatprep.subr.bf16.mxu0 0
  %2075 = vmatpush1.bf16.msra.mxu0 %v1521
  %2076 = vmatprep.subr.bf16.mxu0 0
  %2077 = vmatpush1.bf16.msra.mxu0 %v1522
  %2078 = vmatprep.subr.bf16.mxu0 0
  %2079 = vmatpush1.bf16.msra.mxu0 %v1523
  %2080 = vmatprep.subr.bf16.mxu0 0
  %2081 = vmatpush1.bf16.msra.mxu0 %v1524
  %2082 = vmatprep.subr.bf16.mxu0 0
  %2083 = vmatpush1.bf16.msra.mxu0 %v1525
  %2084 = vmatprep.subr.bf16.mxu0 0
  %2085 = vmatpush1.bf16.msra.mxu0 %v1526
  %2086 = vmatprep.subr.bf16.mxu0 0
  %2087 = vmatpush1.bf16.msra.mxu0 %v1527
  %2088 = vmatprep.mubr.bf16.mxu0 %v523
  %2089 = vmatmul.mubr.bf16.gmra.mrb[0].mxu0 %v509
  %v2090 = vpop.f32.mrb[0].mxu0
  %v2091 = vadd.f32 %v2051, %v2090
  %v2092 = vpop.f32.mrb[0].mxu0
  %v2093 = vpop.f32.mrb[0].mxu0
  %v2094 = vpop.f32.mrb[0].mxu0
  %2095 = vdwg.mxu0
  %2096 = vmatprep.subr.bf16.mxu0 0
  %2097 = vmatpush1.bf16.msra.mxu0 %v1528
  %2098 = vmatprep.subr.bf16.mxu0 0
  %2099 = vmatpush1.bf16.msra.mxu0 %v1529
  %2100 = vmatprep.subr.bf16.mxu0 0
  %2101 = vmatpush1.bf16.msra.mxu0 %v1530
  %2102 = vmatprep.subr.bf16.mxu0 0
  %2103 = vmatpush1.bf16.msra.mxu0 %v1531
  %2104 = vmatprep.subr.bf16.mxu0 0
  %2105 = vmatpush1.bf16.msra.mxu0 %v1532
  %2106 = vmatprep.subr.bf16.mxu0 0
  %2107 = vmatpush1.bf16.msra.mxu0 %v1533
  %2108 = vmatprep.subr.bf16.mxu0 0
  %2109 = vmatpush1.bf16.msra.mxu0 %v1534
  %2110 = vmatprep.subr.bf16.mxu0 0
  %2111 = vmatpush1.bf16.msra.mxu0 %v1535
  %2112 = vmatprep.subr.bf16.mxu0 0
  %2113 = vmatpush1.bf16.msra.mxu0 %v1536
  %2114 = vmatprep.subr.bf16.mxu0 0
  %2115 = vmatpush1.bf16.msra.mxu0 %v1537
  %2116 = vmatprep.subr.bf16.mxu0 0
  %2117 = vmatpush1.bf16.msra.mxu0 %v1538
  %2118 = vmatprep.subr.bf16.mxu0 0
  %2119 = vmatpush1.bf16.msra.mxu0 %v1539
  %2120 = vmatprep.subr.bf16.mxu0 0
  %2121 = vmatpush1.bf16.msra.mxu0 %v1540
  %2122 = vmatprep.subr.bf16.mxu0 0
  %2123 = vmatpush1.bf16.msra.mxu0 %v1541
  %2124 = vmatprep.subr.bf16.mxu0 0
  %2125 = vmatpush1.bf16.msra.mxu0 %v1542
  %2126 = vmatprep.subr.bf16.mxu0 0
  %2127 = vmatpush1.bf16.msra.mxu0 %v1543
  %2128 = vmatprep.mubr.bf16.mxu0 %v527
  %2129 = vmatmul.mubr.bf16.gmra.mrb[0].mxu0 %v525
  %v2130 = vpop.f32.mrb[0].mxu0
  %v2131 = vadd.f32 %v2091, %v2130
  %v2132 = vpop.f32.mrb[0].mxu0
  %v2133 = vpop.f32.mrb[0].mxu0
  %v2134 = vpop.f32.mrb[0].mxu0
  %2135 = vdwg.mxu0
  %2136 = vmatprep.subr.bf16.mxu0 0
  %2137 = vmatpush1.bf16.msra.mxu0 %v1544
  %2138 = vmatprep.subr.bf16.mxu0 0
  %2139 = vmatpush1.bf16.msra.mxu0 %v1545
  %2140 = vmatprep.subr.bf16.mxu0 0
  %2141 = vmatpush1.bf16.msra.mxu0 %v1546
  %2142 = vmatprep.subr.bf16.mxu0 0
  %2143 = vmatpush1.bf16.msra.mxu0 %v1547
  %2144 = vmatprep.subr.bf16.mxu0 0
  %2145 = vmatpush1.bf16.msra.mxu0 %v1548
  %2146 = vmatprep.subr.bf16.mxu0 0
  %2147 = vmatpush1.bf16.msra.mxu0 %v1549
  %2148 = vmatprep.subr.bf16.mxu0 0
  %2149 = vmatpush1.bf16.msra.mxu0 %v1550
  %2150 = vmatprep.subr.bf16.mxu0 0
  %2151 = vmatpush1.bf16.msra.mxu0 %v1551
  %2152 = vmatprep.subr.bf16.mxu0 0
  %2153 = vmatpush1.bf16.msra.mxu0 %v1552
  %2154 = vmatprep.subr.bf16.mxu0 0
  %2155 = vmatpush1.bf16.msra.mxu0 %v1553
  %2156 = vmatprep.subr.bf16.mxu0 0
  %2157 = vmatpush1.bf16.msra.mxu0 %v1554
  %2158 = vmatprep.subr.bf16.mxu0 0
  %2159 = vmatpush1.bf16.msra.mxu0 %v1555
  %2160 = vmatprep.subr.bf16.mxu0 0
  %2161 = vmatpush1.bf16.msra.mxu0 %v1556
  %2162 = vmatprep.subr.bf16.mxu0 0
  %2163 = vmatpush1.bf16.msra.mxu0 %v1557
  %2164 = vmatprep.subr.bf16.mxu0 0
  %2165 = vmatpush1.bf16.msra.mxu0 %v1558
  %2166 = vmatprep.subr.bf16.mxu0 0
  %2167 = vmatpush1.bf16.msra.mxu0 %v1559
  %2168 = vmatprep.mubr.bf16.mxu0 %v565
  %2169 = vmatmul.mubr.bf16.gmra.mrb[0].mxu0 %v551
  %v2170 = vpop.f32.mrb[0].mxu0
  %v2171 = vadd.f32 %v2131, %v2170
  %v2172 = vpop.f32.mrb[0].mxu0
  %v2173 = vpop.f32.mrb[0].mxu0
  %v2174 = vpop.f32.mrb[0].mxu0
  %2175 = vdwg.mxu0
  %2176 = vmatprep.subr.bf16.mxu0 0
  %2177 = vmatpush1.bf16.msra.mxu0 %v1560
  %2178 = vmatprep.subr.bf16.mxu0 0
  %2179 = vmatpush1.bf16.msra.mxu0 %v1561
  %2180 = vmatprep.subr.bf16.mxu0 0
  %2181 = vmatpush1.bf16.msra.mxu0 %v1562
  %2182 = vmatprep.subr.bf16.mxu0 0
  %2183 = vmatpush1.bf16.msra.mxu0 %v1563
  %2184 = vmatprep.subr.bf16.mxu0 0
  %2185 = vmatpush1.bf16.msra.mxu0 %v1564
  %2186 = vmatprep.subr.bf16.mxu0 0
  %2187 = vmatpush1.bf16.msra.mxu0 %v1565
  %2188 = vmatprep.subr.bf16.mxu0 0
  %2189 = vmatpush1.bf16.msra.mxu0 %v1566
  %2190 = vmatprep.subr.bf16.mxu0 0
  %2191 = vmatpush1.bf16.msra.mxu0 %v1567
  %2192 = vmatprep.subr.bf16.mxu0 0
  %2193 = vmatpush1.bf16.msra.mxu0 %v1568
  %2194 = vmatprep.subr.bf16.mxu0 0
  %2195 = vmatpush1.bf16.msra.mxu0 %v1569
  %2196 = vmatprep.subr.bf16.mxu0 0
  %2197 = vmatpush1.bf16.msra.mxu0 %v1570
  %2198 = vmatprep.subr.bf16.mxu0 0
  %2199 = vmatpush1.bf16.msra.mxu0 %v1571
  %2200 = vmatprep.subr.bf16.mxu0 0
  %2201 = vmatpush1.bf16.msra.mxu0 %v1572
  %2202 = vmatprep.subr.bf16.mxu0 0
  %2203 = vmatpush1.bf16.msra.mxu0 %v1573
  %2204 = vmatprep.subr.bf16.mxu0 0
  %2205 = vmatpush1.bf16.msra.mxu0 %v1574
  %2206 = vmatprep.subr.bf16.mxu0 0
  %2207 = vmatpush1.bf16.msra.mxu0 %v1575
  %2208 = vmatprep.mubr.bf16.mxu0 %v575
  %2209 = vmatmul.mubr.bf16.gmra.mrb[0].mxu0 %v573
  %v2210 = vpop.f32.mrb[0].mxu0
  %v2211 = vadd.f32 %v2171, %v2210
  %v2212 = vpop.f32.mrb[0].mxu0
  %v2213 = vpop.f32.mrb[0].mxu0
  %v2214 = vpop.f32.mrb[0].mxu0
  %2215 = vdwg.mxu0
  %2216 = vmatprep.subr.bf16.mxu0 0
  %2217 = vmatpush1.bf16.msra.mxu0 %v1576
  %2218 = vmatprep.subr.bf16.mxu0 0
  %2219 = vmatpush1.bf16.msra.mxu0 %v1577
  %2220 = vmatprep.subr.bf16.mxu0 0
  %2221 = vmatpush1.bf16.msra.mxu0 %v1578
  %2222 = vmatprep.subr.bf16.mxu0 0
  %2223 = vmatpush1.bf16.msra.mxu0 %v1579
  %2224 = vmatprep.subr.bf16.mxu0 0
  %2225 = vmatpush1.bf16.msra.mxu0 %v1580
  %2226 = vmatprep.subr.bf16.mxu0 0
  %2227 = vmatpush1.bf16.msra.mxu0 %v1581
  %2228 = vmatprep.subr.bf16.mxu0 0
  %2229 = vmatpush1.bf16.msra.mxu0 %v1582
  %2230 = vmatprep.subr.bf16.mxu0 0
  %2231 = vmatpush1.bf16.msra.mxu0 %v1583
  %2232 = vmatprep.subr.bf16.mxu0 0
  %2233 = vmatpush1.bf16.msra.mxu0 %v1584
  %2234 = vmatprep.subr.bf16.mxu0 0
  %2235 = vmatpush1.bf16.msra.mxu0 %v1585
  %2236 = vmatprep.subr.bf16.mxu0 0
  %2237 = vmatpush1.bf16.msra.mxu0 %v1586
  %2238 = vmatprep.subr.bf16.mxu0 0
  %2239 = vmatpush1.bf16.msra.mxu0 %v1587
  %2240 = vmatprep.subr.bf16.mxu0 0
  %2241 = vmatpush1.bf16.msra.mxu0 %v1588
  %2242 = vmatprep.subr.bf16.mxu0 0
  %2243 = vmatpush1.bf16.msra.mxu0 %v1589
  %2244 = vmatprep.subr.bf16.mxu0 0
  %2245 = vmatpush1.bf16.msra.mxu0 %v1590
  %2246 = vmatprep.subr.bf16.mxu0 0
  %2247 = vmatpush1.bf16.msra.mxu0 %v1591
  %2248 = vmatprep.mubr.bf16.mxu0 %v572
  %2249 = vmatmul.mubr.bf16.gmra.mrb[0].mxu0 %v558
  %v2250 = vpop.f32.mrb[0].mxu0
  %v2251 = vadd.f32 %v2211, %v2250
  %v2252 = vpop.f32.mrb[0].mxu0
  %v2253 = vpop.f32.mrb[0].mxu0
  %v2254 = vpop.f32.mrb[0].mxu0
  %2255 = vdwg.mxu0
  %2256 = vmatprep.subr.bf16.mxu0 0
  %2257 = vmatpush1.bf16.msra.mxu0 %v1592
  %2258 = vmatprep.subr.bf16.mxu0 0
  %2259 = vmatpush1.bf16.msra.mxu0 %v1593
  %2260 = vmatprep.subr.bf16.mxu0 0
  %2261 = vmatpush1.bf16.msra.mxu0 %v1594
  %2262 = vmatprep.subr.bf16.mxu0 0
  %2263 = vmatpush1.bf16.msra.mxu0 %v1595
  %2264 = vmatprep.subr.bf16.mxu0 0
  %2265 = vmatpush1.bf16.msra.mxu0 %v1596
  %2266 = vmatprep.subr.bf16.mxu0 0
  %2267 = vmatpush1.bf16.msra.mxu0 %v1597
  %2268 = vmatprep.subr.bf16.mxu0 0
  %2269 = vmatpush1.bf16.msra.mxu0 %v1598
  %2270 = vmatprep.subr.bf16.mxu0 0
  %2271 = vmatpush1.bf16.msra.mxu0 %v1599
  %2272 = vmatprep.subr.bf16.mxu0 0
  %2273 = vmatpush1.bf16.msra.mxu0 %v1600
  %2274 = vmatprep.subr.bf16.mxu0 0
  %2275 = vmatpush1.bf16.msra.mxu0 %v1601
  %2276 = vmatprep.subr.bf16.mxu0 0
  %2277 = vmatpush1.bf16.msra.mxu0 %v1602
  %2278 = vmatprep.subr.bf16.mxu0 0
  %2279 = vmatpush1.bf16.msra.mxu0 %v1603
  %2280 = vmatprep.subr.bf16.mxu0 0
  %2281 = vmatpush1.bf16.msra.mxu0 %v1604
  %2282 = vmatprep.subr.bf16.mxu0 0
  %2283 = vmatpush1.bf16.msra.mxu0 %v1605
  %2284 = vmatprep.subr.bf16.mxu0 0
  %2285 = vmatpush1.bf16.msra.mxu0 %v1606
  %2286 = vmatprep.subr.bf16.mxu0 0
  %2287 = vmatpush1.bf16.msra.mxu0 %v1607
  %2288 = vmatprep.mubr.bf16.mxu0 %v576
  %2289 = vmatmul.mubr.bf16.gmra.mrb[0].mxu0 %v574
  %v2290 = vpop.f32.mrb[0].mxu0
  %v2291 = vadd.f32 %v2251, %v2290
  %v2292 = vpop.f32.mrb[0].mxu0
  %v2293 = vpop.f32.mrb[0].mxu0
  %v2294 = vpop.f32.mrb[0].mxu0
  %2295 = vdwg.mxu0
  %2296 = vmatprep.subr.bf16.mxu0 0
  %2297 = vmatpush1.bf16.msra.mxu0 %v1608
  %2298 = vmatprep.subr.bf16.mxu0 0
  %2299 = vmatpush1.bf16.msra.mxu0 %v1609
  %2300 = vmatprep.subr.bf16.mxu0 0
  %2301 = vmatpush1.bf16.msra.mxu0 %v1610
  %2302 = vmatprep.subr.bf16.mxu0 0
  %2303 = vmatpush1.bf16.msra.mxu0 %v1611
  %2304 = vmatprep.subr.bf16.mxu0 0
  %2305 = vmatpush1.bf16.msra.mxu0 %v1612
  %2306 = vmatprep.subr.bf16.mxu0 0
  %2307 = vmatpush1.bf16.msra.mxu0 %v1613
  %2308 = vmatprep.subr.bf16.mxu0 0
  %2309 = vmatpush1.bf16.msra.mxu0 %v1614
  %2310 = vmatprep.subr.bf16.mxu0 0
  %2311 = vmatpush1.bf16.msra.mxu0 %v1615
  %2312 = vmatprep.subr.bf16.mxu0 0
  %2313 = vmatpush1.bf16.msra.mxu0 0
  %2314 = vmatprep.subr.bf16.mxu0 0
  %2315 = vmatpush1.bf16.msra.mxu0 0
  %2316 = vmatprep.subr.bf16.mxu0 0
  %2317 = vmatpush1.bf16.msra.mxu0 0
  %2318 = vmatprep.subr.bf16.mxu0 0
  %2319 = vmatpush1.bf16.msra.mxu0 0
  %2320 = vmatprep.subr.bf16.mxu0 0
  %2321 = vmatpush1.bf16.msra.mxu0 0
  %2322 = vmatprep.subr.bf16.mxu0 0
  %2323 = vmatpush1.bf16.msra.mxu0 0
  %2324 = vmatprep.subr.bf16.mxu0 0
  %2325 = vmatpush1.bf16.msra.mxu0 0
  %2326 = vmatprep.subr.bf16.mxu0 0
  %2327 = vmatpush1.bf16.msra.mxu0 0
  %2328 = vmatprep.mubr.bf16.mxu0 0
  %2329 = vmatmul.mubr.bf16.gmra.mrb[0].mxu0 %v590
  %v2330 = vpop.f32.mrb[0].mxu0
  %v2331 = vadd.f32 %v2291, %v2330
  %v2332 = vpop.f32.mrb[0].mxu0
  %v2333 = vpop.f32.mrb[0].mxu0
  %v2334 = vpop.f32.mrb[0].mxu0
  %2335 = vdwg.mxu0
  %v2336 = vmax.f32 %v2331, 0.0
  %2337 = vst [vmem:[%s3] sm:$0x3] %v2336
  // Predicated region
  $region14: #{source_forward.8} parent=0 // pred_check
    _
  $region15: #{source_forward.8} parent=0 // pred_check_branch
    %2339 = sbr.rel (0) target = $region17
  $region16: #{source_forward.8} parent=0 // pred_region
    _
  $region17: #{source_forward.8} parent=0 // pred_fallthru
    _
  // Predicated region
  $region18: #{source_forward.8} parent=0 // pred_check
    _
  $region19: #{source_forward.8} parent=0 // pred_check_branch
    %2341 = sbr.rel (0) target = $region21
  $region20: #{source_forward.8} parent=0 // pred_region
    _
  $region21: #{source_forward.8} parent=0 // pred_fallthru
    _

</llo_original>
